<compile_context>
chip_gen: v7x
topology: tpu7x:2x2x1
jax: 0.10.0
libtpu: 0.0.40
codegen_flags: <defaults>
</compile_context>

<pallas_src>
import math
from functools import partial

import jax
import jax.numpy as jnp
from jax import lax
from jax.experimental import pallas as pl
from jax.experimental.pallas import tpu as pltpu

F32 = jnp.float32
_VMEM = pl.BlockSpec(memory_space=pltpu.MemorySpace.VMEM)


# ----------------------------- in-kernel helpers -----------------------------

def _roll_time(x, shift):
    # x: (B, L, D); y[:, t] = x[:, (t - shift) % L]  (static shift, circular)
    L = x.shape[1]
    shift = shift % L
    if shift == 0:
        return x
    return jnp.concatenate([x[:, L - shift:, :], x[:, :L - shift, :]], axis=1)


def _moving_avg(x, ksz):
    # replicate-pad by (ksz-1)//2 on the time axis, then AvgPool1d(ksz, stride=1)
    B, L, D = x.shape
    pad = (ksz - 1) // 2
    xp = jnp.concatenate([x[:, :1, :]] * pad + [x] + [x[:, L - 1:, :]] * pad, axis=1)
    acc = xp[:, 0:L, :]
    for j in range(1, ksz):
        acc = acc + xp[:, j:j + L, :]
    return acc * (1.0 / ksz)


def _series_decomp(x, ksz):
    ma = _moving_avg(x, ksz)
    return x - ma, ma


def _my_layernorm(x, g, b):
    # LayerNorm over last dim, then subtract its mean over the time axis (my_Layernorm)
    mu = jnp.mean(x, axis=-1, keepdims=True)
    var = jnp.mean(jnp.square(x - mu), axis=-1, keepdims=True)
    xhat = (x - mu) * lax.rsqrt(var + 1e-5)
    xhat = xhat * g + b
    bias = jnp.mean(xhat, axis=1, keepdims=True)
    return xhat - bias


def _autocorrelation(x_q, x_kv, wq, bq, wkv, bkv, top_k):
    """Full AutoCorrelation block (inference-time delay aggregation), fully in-kernel.

    Returns the aggregated values (B, L, D) BEFORE the output projection.
    """
    B, L, D = x_q.shape
    # Q projection + fused K|V projection (batch folded into the matmul M dim).
    q3 = (jnp.dot(x_q.reshape(B * L, D), wq, preferred_element_type=F32) + bq).reshape(B, L, D)
    kv = jnp.dot(x_kv.reshape(B * L, D), wkv, preferred_element_type=F32) + bkv
    k3 = kv[:, :D].reshape(B, L, D)
    v3 = kv[:, D:].reshape(B, L, D)

    # circular cross-correlation, averaged over channels (== mean over heads & head-dims):
    #   r[b, tau] = (1/D) * sum_t <q[b,t,:], k[b,(t-tau)%L,:]>
    k_ext = jnp.concatenate([k3, k3], axis=1)                 # (B, 2L, D), one copy, static slices below
    taus = []
    for tau in range(L):
        kr = k_ext[:, L - tau: 2 * L - tau, :]                # kr[:, t] = k3[:, (t - tau) % L]
        taus.append(jnp.sum(jnp.sum(q3 * kr, axis=2), axis=1, keepdims=True))   # (B, 1)
    r = jnp.concatenate(taus, axis=1) * (1.0 / D)             # (B, L)

    # in-kernel top-k (static, tiny k) + softmax over the k values (descending order).
    lane = lax.broadcasted_iota(jnp.int32, (B, L), 1)
    r_work = r
    vals, idxs = [], []
    for _ in range(top_k):
        m = jnp.max(r_work, axis=-1, keepdims=True)                               # (B, 1)
        idx = jnp.min(jnp.where(r_work == m, lane, L), axis=-1, keepdims=True)    # (B, 1) int32
        vals.append(m)
        idxs.append(idx)
        r_work = jnp.where(lane == idx, -1e30, r_work)
    wtop = jnp.concatenate(vals, axis=1)                       # (B, k)
    e = jnp.exp(wtop - vals[0])
    wsm = e / jnp.sum(e, axis=-1, keepdims=True)               # softmax weights (B, k)

    # delay aggregation: out[b,t,:] = sum_i w[b,i] * V[b, (t + delay[b,i]) % L, :]
    row = lax.broadcasted_iota(jnp.int32, (L, L), 0)
    col = lax.broadcasted_iota(jnp.int32, (L, L), 1)
    shift = col - row
    shift = jnp.where(shift < 0, shift + L, shift)             # shift[t, s] = (s - t) % L
    P = jnp.zeros((B, L, L), F32)
    for i in range(top_k):
        sel = (shift[None, :, :] == idxs[i][:, :, None]).astype(F32)   # (B, L, L) one-hot rows
        P = P + wsm[:, i:i + 1, None] * sel
    return jnp.einsum('bts,bsd->btd', P, v3, preferred_element_type=F32)   # (B, L, D)


# ----------------------------- Pallas kernels -----------------------------

def _embed_kernel(x_ref, xm_ref, wc_ref, wt_ref, o_ref):
    # DataEmbedding_wo_pos: circular kernel-3 token conv (as one matmul) + timeF linear + add
    B, L, C = x_ref.shape
    D = o_ref.shape[2]
    Fd = xm_ref.shape[2]
    x = x_ref[...]
    xm1 = _roll_time(x, 1)      # x[(t-1) % L]
    xp1 = _roll_time(x, -1)     # x[(t+1) % L]
    xcat = jnp.concatenate([xm1, x, xp1], axis=-1).reshape(B * L, 3 * C)
    tok = jnp.dot(xcat, wc_ref[...], preferred_element_type=F32)
    tf = jnp.dot(xm_ref[...].reshape(B * L, Fd), wt_ref[...], preferred_element_type=F32)
    o_ref[...] = (tok + tf).reshape(B, L, D)


def _dec_init_embed_kernel(xe_ref, xm_ref, wc_ref, wt_ref, demb_ref, trend_ref,
                           *, ksz, label_len, pred_len):
    # seasonal_init / trend_init for the decoder + decoder DataEmbedding_wo_pos, one kernel.
    B, Ls, C = xe_ref.shape
    D = demb_ref.shape[2]
    Fd = xm_ref.shape[2]
    L = label_len + pred_len
    x = xe_ref[...]
    seasonal, trend = _series_decomp(x, ksz)
    mean = jnp.mean(x, axis=1, keepdims=True)                                  # (B, 1, C)
    trend_ref[...] = jnp.concatenate(
        [trend[:, Ls - label_len:, :], jnp.broadcast_to(mean, (B, pred_len, C))], axis=1)
    seas_init = jnp.concatenate(
        [seasonal[:, Ls - label_len:, :], jnp.zeros((B, pred_len, C), F32)], axis=1)
    # embedding of seasonal_init with x_mark_dec
    xm1 = _roll_time(seas_init, 1)
    xp1 = _roll_time(seas_init, -1)
    xcat = jnp.concatenate([xm1, seas_init, xp1], axis=-1).reshape(B * L, 3 * C)
    tok = jnp.dot(xcat, wc_ref[...], preferred_element_type=F32)
    tf = jnp.dot(xm_ref[...].reshape(B * L, Fd), wt_ref[...], preferred_element_type=F32)
    demb_ref[...] = (tok + tf).reshape(B, L, D)


def _enc_layer_kernel(x_ref, wq_ref, bq_ref, wkv_ref, bkv_ref, wo_ref, bo_ref,
                      w1_ref, w2_ref, g_ref, b_ref, o_ref, *, ksz, top_k, apply_norm):
    # Whole EncoderLayer (AutoCorrelation + out proj + residual + decomp + FFN + residual +
    # decomp), plus the encoder's final my_Layernorm fused on the last layer.
    B, L, D = x_ref.shape
    x = x_ref[...]
    agg = _autocorrelation(x, x, wq_ref[...], bq_ref[...], wkv_ref[...], bkv_ref[...], top_k)
    attn = jnp.dot(agg.reshape(B * L, D), wo_ref[...], preferred_element_type=F32) + bo_ref[...]
    xs, _ = _series_decomp(x + attn.reshape(B, L, D), ksz)
    h = jnp.maximum(jnp.dot(xs.reshape(B * L, D), w1_ref[...], preferred_element_type=F32), 0.0)
    y = jnp.dot(h, w2_ref[...], preferred_element_type=F32)
    res, _ = _series_decomp(xs + y.reshape(B, L, D), ksz)
    if apply_norm:
        res = _my_layernorm(res, g_ref[...], b_ref[...])
    o_ref[...] = res


def _dec_layer_kernel(x_ref, cross_ref, trend_ref,
                      swq, sbq, swkv, sbkv, swo, sbo,
                      cwq, cbq, cwkv, cbkv, cwo, cbo,
                      w1_ref, w2_ref, wtr_ref,
                      xo_ref, trend_o_ref, *, ksz, top_k_self, top_k_cross):
    # Whole DecoderLayer: self-attn + decomp1, cross-attn + decomp2, FFN + decomp3,
    # circular conv3 trend projection and trend accumulation -- one kernel.
    B, L, D = x_ref.shape
    Cout = trend_ref.shape[2]
    x = x_ref[...]
    cross = cross_ref[...]

    agg1 = _autocorrelation(x, x, swq[...], sbq[...], swkv[...], sbkv[...], top_k_self)
    a1 = jnp.dot(agg1.reshape(B * L, D), swo[...], preferred_element_type=F32) + sbo[...]
    xs, t1 = _series_decomp(x + a1.reshape(B, L, D), ksz)

    agg2 = _autocorrelation(xs, cross, cwq[...], cbq[...], cwkv[...], cbkv[...], top_k_cross)
    a2 = jnp.dot(agg2.reshape(B * L, D), cwo[...], preferred_element_type=F32) + cbo[...]
    xs2, t2 = _series_decomp(xs + a2.reshape(B, L, D), ksz)

    h = jnp.maximum(jnp.dot(xs2.reshape(B * L, D), w1_ref[...], preferred_element_type=F32), 0.0)
    y = jnp.dot(h, w2_ref[...], preferred_element_type=F32)
    x3, t3 = _series_decomp(xs2 + y.reshape(B, L, D), ksz)
    xo_ref[...] = x3

    rt = t1 + t2 + t3                                                    # (B, L, D)
    rtc = jnp.concatenate([_roll_time(rt, 1), rt, _roll_time(rt, -1)],
                          axis=-1).reshape(B * L, 3 * D)
    rconv = jnp.dot(rtc, wtr_ref[...], preferred_element_type=F32)        # circular conv3 D->c_out
    trend_o_ref[...] = trend_ref[...] + rconv.reshape(B, L, Cout)


def _final_kernel(x_ref, trend_ref, g_ref, b_ref, wp_ref, bp_ref, o_ref, *, pred_len):
    # decoder norm + seasonal projection + trend add + final slice, fused
    B, L, D = x_ref.shape
    Cout = o_ref.shape[2]
    xn = _my_layernorm(x_ref[...], g_ref[...], b_ref[...])
    seas = jnp.dot(xn.reshape(B * L, D), wp_ref[...], preferred_element_type=F32) + bp_ref[...]
    dec = trend_ref[...] + seas.reshape(B, L, Cout)
    o_ref[...] = dec[:, L - pred_len:, :]


# ----------------------------- pallas_call wrapper -----------------------------

def _call(kernel, out_shape, inputs):
    # No grid: everything is KB-scale, so each kernel processes the whole operands once.
    multi = isinstance(out_shape, (tuple, list))
    out_specs = tuple(_VMEM for _ in out_shape) if multi else _VMEM
    if multi:
        out_shape = tuple(out_shape)
    return pl.pallas_call(kernel, out_shape=out_shape,
                          in_specs=[_VMEM] * len(inputs),
                          out_specs=out_specs)(*inputs)


# ----------------------------- model forward -----------------------------

def autoformer_forecast(params, cfg, x_enc, x_mark_enc, x_dec, x_mark_dec):
    B = x_enc.shape[0]
    ksz = cfg['moving_avg']
    L_enc = cfg['seq_len']
    L_dec = cfg['label_len'] + cfg['pred_len']
    D = cfg['d_model']
    C = x_dec.shape[2]
    assert x_enc.shape[2] == C            # enc_in == dec_in (required by the PyTorch concat too)
    # TODO(synk): PyTorch zero-pads/truncates K,V when query len != key len; not implemented.
    assert L_enc == L_dec

    top_k_enc = int(cfg['factor'] * math.log(L_enc))
    top_k_dec = int(cfg['factor'] * math.log(L_dec))

    # encoder embedding
    enc_out = _call(_embed_kernel,
                    jax.ShapeDtypeStruct((B, L_enc, D), F32),
                    (x_enc, x_mark_enc, params['enc_conv_w'], params['enc_temp_w']))

    # encoder layers (final my_Layernorm fused into the last layer)
    n_enc = len(params['enc_layers'])
    for li, lp in enumerate(params['enc_layers']):
        enc_out = _call(
            partial(_enc_layer_kernel, ksz=ksz, top_k=top_k_enc,
                    apply_norm=(li == n_enc - 1)),
            jax.ShapeDtypeStruct((B, L_enc, D), F32),
            (enc_out,
             lp['attn']['wq'], lp['attn']['bq'], lp['attn']['wkv'], lp['attn']['bkv'],
             lp['attn']['wo'], lp['attn']['bo'], lp['w1'], lp['w2'],
             params['enc_norm_g'], params['enc_norm_b']))

    # decoder init decomposition + decoder embedding, fused
    dec_x, trend = _call(
        partial(_dec_init_embed_kernel, ksz=ksz,
                label_len=cfg['label_len'], pred_len=cfg['pred_len']),
        (jax.ShapeDtypeStruct((B, L_dec, D), F32),
         jax.ShapeDtypeStruct((B, L_dec, C), F32)),
        (x_enc, x_mark_dec, params['dec_conv_w'], params['dec_temp_w']))

    # decoder layers
    for lp in params['dec_layers']:
        dec_x, trend = _call(
            partial(_dec_layer_kernel, ksz=ksz,
                    top_k_self=top_k_dec, top_k_cross=top_k_dec),
            (jax.ShapeDtypeStruct((B, L_dec, D), F32),
             jax.ShapeDtypeStruct((B, L_dec, C), F32)),
            (dec_x, enc_out, trend,
             lp['self_attn']['wq'], lp['self_attn']['bq'], lp['self_attn']['wkv'],
             lp['self_attn']['bkv'], lp['self_attn']['wo'], lp['self_attn']['bo'],
             lp['cross_attn']['wq'], lp['cross_attn']['bq'], lp['cross_attn']['wkv'],
             lp['cross_attn']['bkv'], lp['cross_attn']['wo'], lp['cross_attn']['bo'],
             lp['w1'], lp['w2'], lp['trend_w']))

    # decoder norm + projection + trend add + slice last pred_len, fused
    out = _call(partial(_final_kernel, pred_len=cfg['pred_len']),
                jax.ShapeDtypeStruct((B, cfg['pred_len'], cfg['c_out']), F32),
                (dec_x, trend, params['dec_norm_g'], params['dec_norm_b'],
                 params['proj_w'], params['proj_b']))
    return out


# ----------------------------- parameter init -----------------------------

def init_params(key, cfg):
    D, dff = cfg['d_model'], cfg['d_ff']
    enc_in, dec_in, c_out = cfg['enc_in'], cfg['dec_in'], cfg['c_out']
    Fd = cfg['freq_dim']
    keys = iter(jax.random.split(key, 512))

    def nrm(shape, scale=0.1):
        return jax.random.normal(next(keys), shape, F32) * scale

    def attn():
        return {'wq': nrm((D, D)), 'bq': nrm((1, D)),
                'wkv': nrm((D, 2 * D)), 'bkv': nrm((1, 2 * D)),   # fused K|V projection
                'wo': nrm((D, D)), 'bo': nrm((1, D))}

    return {
        'enc_conv_w': nrm((3 * enc_in, D)),      # circular conv3 token embedding (flattened taps)
        'enc_temp_w': nrm((Fd, D)),
        'dec_conv_w': nrm((3 * dec_in, D)),
        'dec_temp_w': nrm((Fd, D)),
        'enc_layers': [{'attn': attn(), 'w1': nrm((D, dff)), 'w2': nrm((dff, D))}
                       for _ in range(cfg['e_layers'])],
        'enc_norm_g': jnp.ones((1, D), F32),
        'enc_norm_b': jnp.zeros((1, D), F32),
        'dec_layers': [{'self_attn': attn(), 'cross_attn': attn(),
                        'w1': nrm((D, dff)), 'w2': nrm((dff, D)),
                        'trend_w': nrm((3 * D, c_out))}           # circular conv3 d_model -> c_out
                       for _ in range(cfg['d_layers'])],
        'dec_norm_g': jnp.ones((1, D), F32),
        'dec_norm_b': jnp.zeros((1, D), F32),
        'proj_w': nrm((D, c_out)),
        'proj_b': nrm((1, c_out)),
    }


# ----------------------------- main -----------------------------

if __name__ == "__main__":
    cfg = dict(task_name='long_term_forecast',
               seq_len=16, label_len=8, pred_len=8,
               enc_in=4, dec_in=4, c_out=4,
               d_model=32, n_heads=4, d_ff=64,
               e_layers=1, d_layers=1,
               moving_avg=5, factor=1, freq_dim=4)   # freq='h' -> 4 time features

    key = jax.random.PRNGKey(0)
    kp, k1, k2, k3, k4 = jax.random.split(key, 5)
    params = init_params(kp, cfg)

    B = 2
    L_dec = cfg['label_len'] + cfg['pred_len']
    x_enc = jax.random.normal(k1, (B, cfg['seq_len'], cfg['enc_in']), F32)
    x_mark_enc = jax.random.normal(k2, (B, cfg['seq_len'], cfg['freq_dim']), F32)
    x_dec = jax.random.normal(k3, (B, L_dec, cfg['dec_in']), F32)
    x_mark_dec = jax.random.normal(k4, (B, L_dec, cfg['freq_dim']), F32)

    fwd = jax.jit(lambda p, a, b, c, d: autoformer_forecast(p, cfg, a, b, c, d))
    out = fwd(params, x_enc, x_mark_enc, x_dec, x_mark_dec)
    out = jax.block_until_ready(out)
    assert out.shape == (B, cfg['pred_len'], cfg['c_out'])
    assert bool(jnp.all(jnp.isfinite(out)))
    print("KERNEL_OK")
</pallas_src>

<mosaic_0001>
module attributes {stable_mosaic.version = 11 : i64} {
  func.func @_dec_init_embed_kernel(%arg0: memref<2x16x4xf32, #tpu.memory_space<vmem>>, %arg1: memref<2x16x4xf32, #tpu.memory_space<vmem>>, %arg2: memref<12x32xf32, #tpu.memory_space<vmem>>, %arg3: memref<4x32xf32, #tpu.memory_space<vmem>>, %arg4: memref<2x16x32xf32, #tpu.memory_space<vmem>>, %arg5: memref<2x16x4xf32, #tpu.memory_space<vmem>>) attributes {dimension_semantics = [], scalar_prefetch = 0 : i64, scratch_operands = 0 : i64, tpu.core_type = #tpu.core_type<tc>} {
    %c0 = arith.constant 0 : index
    %c0_0 = arith.constant 0 : index
    %c0_1 = arith.constant 0 : index
    %0 = vector.load %arg0[%c0, %c0_0, %c0_1] : memref<2x16x4xf32, #tpu.memory_space<vmem>>, vector<2x16x4xf32>
    %1 = vector.extract_strided_slice %0 {offsets = [0, 0, 0], sizes = [2, 1, 4], strides = [1, 1, 1]} : vector<2x16x4xf32> to vector<2x1x4xf32>
    %2 = vector.extract_strided_slice %0 {offsets = [0, 15, 0], sizes = [2, 1, 4], strides = [1, 1, 1]} : vector<2x16x4xf32> to vector<2x1x4xf32>
    %3 = tpu.concatenate %1, %1, %0, %2, %2 in 1 : vector<2x1x4xf32>, vector<2x1x4xf32>, vector<2x16x4xf32>, vector<2x1x4xf32>, vector<2x1x4xf32> -> vector<2x20x4xf32>
    %4 = vector.extract_strided_slice %3 {offsets = [0, 0, 0], sizes = [2, 16, 4], strides = [1, 1, 1]} : vector<2x20x4xf32> to vector<2x16x4xf32>
    %5 = vector.extract_strided_slice %3 {offsets = [0, 1, 0], sizes = [2, 16, 4], strides = [1, 1, 1]} : vector<2x20x4xf32> to vector<2x16x4xf32>
    %6 = arith.addf %4, %5 : vector<2x16x4xf32>
    %7 = vector.extract_strided_slice %3 {offsets = [0, 2, 0], sizes = [2, 16, 4], strides = [1, 1, 1]} : vector<2x20x4xf32> to vector<2x16x4xf32>
    %8 = arith.addf %6, %7 : vector<2x16x4xf32>
    %9 = vector.extract_strided_slice %3 {offsets = [0, 3, 0], sizes = [2, 16, 4], strides = [1, 1, 1]} : vector<2x20x4xf32> to vector<2x16x4xf32>
    %10 = arith.addf %8, %9 : vector<2x16x4xf32>
    %11 = vector.extract_strided_slice %3 {offsets = [0, 4, 0], sizes = [2, 16, 4], strides = [1, 1, 1]} : vector<2x20x4xf32> to vector<2x16x4xf32>
    %12 = arith.addf %10, %11 : vector<2x16x4xf32>
    %cst = arith.constant 2.000000e-01 : f32
    %13 = vector.broadcast %cst : f32 to vector<2x16x4xf32>
    %14 = arith.mulf %12, %13 : vector<2x16x4xf32>
    %15 = arith.subf %0, %14 : vector<2x16x4xf32>
    %cst_2 = arith.constant dense<0.000000e+00> : vector<2x4xf32>
    %16 = vector.multi_reduction <add>, %0, %cst_2 [1] : vector<2x16x4xf32> to vector<2x4xf32>
    %17 = vector.shape_cast %16 : vector<2x4xf32> to vector<2x1x4xf32>
    %cst_3 = arith.constant 1.600000e+01 : f32
    %18 = vector.broadcast %cst_3 : f32 to vector<2x1x4xf32>
    %19 = arith.divf %17, %18 : vector<2x1x4xf32>
    %20 = vector.extract_strided_slice %14 {offsets = [0, 8, 0], sizes = [2, 8, 4], strides = [1, 1, 1]} : vector<2x16x4xf32> to vector<2x8x4xf32>
    %21 = vector.shape_cast %19 : vector<2x1x4xf32> to vector<2x1x4xf32>
    %22 = vector.broadcast %21 : vector<2x1x4xf32> to vector<2x8x4xf32>
    %23 = tpu.concatenate %20, %22 in 1 : vector<2x8x4xf32>, vector<2x8x4xf32> -> vector<2x16x4xf32>
    %c0_4 = arith.constant 0 : index
    %c0_5 = arith.constant 0 : index
    %c0_6 = arith.constant 0 : index
    %24 = vector.load %arg5[%c0_4, %c0_5, %c0_6] : memref<2x16x4xf32, #tpu.memory_space<vmem>>, vector<2x16x4xf32>
    tpu.vector_store %arg5[%c0_4, %c0_5, %c0_6], %23 {strides = array<i32>} : memref<2x16x4xf32, #tpu.memory_space<vmem>>, vector<2x16x4xf32>,
    %25 = vector.extract_strided_slice %15 {offsets = [0, 8, 0], sizes = [2, 8, 4], strides = [1, 1, 1]} : vector<2x16x4xf32> to vector<2x8x4xf32>
    %cst_7 = arith.constant 0.000000e+00 : f32
    %26 = vector.broadcast %cst_7 : f32 to vector<2x8x4xf32>
    %27 = tpu.concatenate %25, %26 in 1 : vector<2x8x4xf32>, vector<2x8x4xf32> -> vector<2x16x4xf32>
    %28 = vector.extract_strided_slice %27 {offsets = [0, 15, 0], sizes = [2, 1, 4], strides = [1, 1, 1]} : vector<2x16x4xf32> to vector<2x1x4xf32>
    %29 = vector.extract_strided_slice %27 {offsets = [0, 0, 0], sizes = [2, 15, 4], strides = [1, 1, 1]} : vector<2x16x4xf32> to vector<2x15x4xf32>
    %30 = tpu.concatenate %28, %29 in 1 : vector<2x1x4xf32>, vector<2x15x4xf32> -> vector<2x16x4xf32>
    %31 = vector.extract_strided_slice %27 {offsets = [0, 1, 0], sizes = [2, 15, 4], strides = [1, 1, 1]} : vector<2x16x4xf32> to vector<2x15x4xf32>
    %32 = vector.extract_strided_slice %27 {offsets = [0, 0, 0], sizes = [2, 1, 4], strides = [1, 1, 1]} : vector<2x16x4xf32> to vector<2x1x4xf32>
    %33 = tpu.concatenate %31, %32 in 1 : vector<2x15x4xf32>, vector<2x1x4xf32> -> vector<2x16x4xf32>
    %34 = tpu.concatenate %30, %27, %33 in 2 : vector<2x16x4xf32>, vector<2x16x4xf32>, vector<2x16x4xf32> -> vector<2x16x12xf32>
    %35 = vector.shape_cast %34 : vector<2x16x12xf32> to vector<32x12xf32>
    %c0_8 = arith.constant 0 : index
    %c0_9 = arith.constant 0 : index
    %36 = vector.load %arg2[%c0_8, %c0_9] : memref<12x32xf32, #tpu.memory_space<vmem>>, vector<12x32xf32>
    %cst_10 = arith.constant dense<0.000000e+00> : vector<32x32xf32>
    %37 = tpu.matmul %35, %36, %cst_10 {dimension_numbers = #tpu.dot_dimension_numbers<[1], [0], [0], [1], [0, 0, 1, 1], [], []>} : vector<32x12xf32>, vector<12x32xf32>, vector<32x32xf32> -> vector<32x32xf32>
    %c0_11 = arith.constant 0 : index
    %c0_12 = arith.constant 0 : index
    %c0_13 = arith.constant 0 : index
    %38 = vector.load %arg1[%c0_11, %c0_12, %c0_13] : memref<2x16x4xf32, #tpu.memory_space<vmem>>, vector<2x16x4xf32>
    %39 = vector.shape_cast %38 : vector<2x16x4xf32> to vector<32x4xf32>
    %c0_14 = arith.constant 0 : index
    %c0_15 = arith.constant 0 : index
    %40 = vector.load %arg3[%c0_14, %c0_15] : memref<4x32xf32, #tpu.memory_space<vmem>>, vector<4x32xf32>
    %cst_16 = arith.constant dense<0.000000e+00> : vector<32x32xf32>
    %41 = tpu.matmul %39, %40, %cst_16 {dimension_numbers = #tpu.dot_dimension_numbers<[1], [0], [0], [1], [0, 0, 1, 1], [], []>} : vector<32x4xf32>, vector<4x32xf32>, vector<32x32xf32> -> vector<32x32xf32>
    %42 = arith.addf %37, %41 : vector<32x32xf32>
    %43 = vector.shape_cast %42 : vector<32x32xf32> to vector<2x16x32xf32>
    %c0_17 = arith.constant 0 : index
    %c0_18 = arith.constant 0 : index
    %c0_19 = arith.constant 0 : index
    %44 = vector.load %arg4[%c0_17, %c0_18, %c0_19] : memref<2x16x32xf32, #tpu.memory_space<vmem>>, vector<2x16x32xf32>
    tpu.vector_store %arg4[%c0_17, %c0_18, %c0_19], %43 {strides = array<i32>} : memref<2x16x32xf32, #tpu.memory_space<vmem>>, vector<2x16x32xf32>,
    return
  }
}

module attributes {stable_mosaic.version = 11 : i64} {
  func.func @_embed_kernel(%arg0: memref<2x16x4xf32, #tpu.memory_space<vmem>>, %arg1: memref<2x16x4xf32, #tpu.memory_space<vmem>>, %arg2: memref<12x32xf32, #tpu.memory_space<vmem>>, %arg3: memref<4x32xf32, #tpu.memory_space<vmem>>, %arg4: memref<2x16x32xf32, #tpu.memory_space<vmem>>) attributes {dimension_semantics = [], scalar_prefetch = 0 : i64, scratch_operands = 0 : i64, tpu.core_type = #tpu.core_type<tc>} {
    %c0 = arith.constant 0 : index
    %c0_0 = arith.constant 0 : index
    %c0_1 = arith.constant 0 : index
    %0 = vector.load %arg0[%c0, %c0_0, %c0_1] : memref<2x16x4xf32, #tpu.memory_space<vmem>>, vector<2x16x4xf32>
    %1 = vector.extract_strided_slice %0 {offsets = [0, 15, 0], sizes = [2, 1, 4], strides = [1, 1, 1]} : vector<2x16x4xf32> to vector<2x1x4xf32>
    %2 = vector.extract_strided_slice %0 {offsets = [0, 0, 0], sizes = [2, 15, 4], strides = [1, 1, 1]} : vector<2x16x4xf32> to vector<2x15x4xf32>
    %3 = tpu.concatenate %1, %2 in 1 : vector<2x1x4xf32>, vector<2x15x4xf32> -> vector<2x16x4xf32>
    %4 = vector.extract_strided_slice %0 {offsets = [0, 1, 0], sizes = [2, 15, 4], strides = [1, 1, 1]} : vector<2x16x4xf32> to vector<2x15x4xf32>
    %5 = vector.extract_strided_slice %0 {offsets = [0, 0, 0], sizes = [2, 1, 4], strides = [1, 1, 1]} : vector<2x16x4xf32> to vector<2x1x4xf32>
    %6 = tpu.concatenate %4, %5 in 1 : vector<2x15x4xf32>, vector<2x1x4xf32> -> vector<2x16x4xf32>
    %7 = tpu.concatenate %3, %0, %6 in 2 : vector<2x16x4xf32>, vector<2x16x4xf32>, vector<2x16x4xf32> -> vector<2x16x12xf32>
    %8 = vector.shape_cast %7 : vector<2x16x12xf32> to vector<32x12xf32>
    %c0_2 = arith.constant 0 : index
    %c0_3 = arith.constant 0 : index
    %9 = vector.load %arg2[%c0_2, %c0_3] : memref<12x32xf32, #tpu.memory_space<vmem>>, vector<12x32xf32>
    %cst = arith.constant dense<0.000000e+00> : vector<32x32xf32>
    %10 = tpu.matmul %8, %9, %cst {dimension_numbers = #tpu.dot_dimension_numbers<[1], [0], [0], [1], [0, 0, 1, 1], [], []>} : vector<32x12xf32>, vector<12x32xf32>, vector<32x32xf32> -> vector<32x32xf32>
    %c0_4 = arith.constant 0 : index
    %c0_5 = arith.constant 0 : index
    %c0_6 = arith.constant 0 : index
    %11 = vector.load %arg1[%c0_4, %c0_5, %c0_6] : memref<2x16x4xf32, #tpu.memory_space<vmem>>, vector<2x16x4xf32>
    %12 = vector.shape_cast %11 : vector<2x16x4xf32> to vector<32x4xf32>
    %c0_7 = arith.constant 0 : index
    %c0_8 = arith.constant 0 : index
    %13 = vector.load %arg3[%c0_7, %c0_8] : memref<4x32xf32, #tpu.memory_space<vmem>>, vector<4x32xf32>
    %cst_9 = arith.constant dense<0.000000e+00> : vector<32x32xf32>
    %14 = tpu.matmul %12, %13, %cst_9 {dimension_numbers = #tpu.dot_dimension_numbers<[1], [0], [0], [1], [0, 0, 1, 1], [], []>} : vector<32x4xf32>, vector<4x32xf32>, vector<32x32xf32> -> vector<32x32xf32>
    %15 = arith.addf %10, %14 : vector<32x32xf32>
    %16 = vector.shape_cast %15 : vector<32x32xf32> to vector<2x16x32xf32>
    %c0_10 = arith.constant 0 : index
    %c0_11 = arith.constant 0 : index
    %c0_12 = arith.constant 0 : index
    %17 = vector.load %arg4[%c0_10, %c0_11, %c0_12] : memref<2x16x32xf32, #tpu.memory_space<vmem>>, vector<2x16x32xf32>
    tpu.vector_store %arg4[%c0_10, %c0_11, %c0_12], %16 {strides = array<i32>} : memref<2x16x32xf32, #tpu.memory_space<vmem>>, vector<2x16x32xf32>,
    return
  }
}

module attributes {stable_mosaic.version = 11 : i64} {
  func.func @_enc_layer_kernel(%arg0: memref<2x16x32xf32, #tpu.memory_space<vmem>>, %arg1: memref<32x32xf32, #tpu.memory_space<vmem>>, %arg2: memref<1x32xf32, #tpu.memory_space<vmem>>, %arg3: memref<32x64xf32, #tpu.memory_space<vmem>>, %arg4: memref<1x64xf32, #tpu.memory_space<vmem>>, %arg5: memref<32x32xf32, #tpu.memory_space<vmem>>, %arg6: memref<1x32xf32, #tpu.memory_space<vmem>>, %arg7: memref<32x64xf32, #tpu.memory_space<vmem>>, %arg8: memref<64x32xf32, #tpu.memory_space<vmem>>, %arg9: memref<1x32xf32, #tpu.memory_space<vmem>>, %arg10: memref<1x32xf32, #tpu.memory_space<vmem>>, %arg11: memref<2x16x32xf32, #tpu.memory_space<vmem>>) attributes {dimension_semantics = [], scalar_prefetch = 0 : i64, scratch_operands = 0 : i64, tpu.core_type = #tpu.core_type<tc>} {
    %c0 = arith.constant 0 : index
    %c0_0 = arith.constant 0 : index
    %c0_1 = arith.constant 0 : index
    %0 = vector.load %arg0[%c0, %c0_0, %c0_1] : memref<2x16x32xf32, #tpu.memory_space<vmem>>, vector<2x16x32xf32>
    %c0_2 = arith.constant 0 : index
    %c0_3 = arith.constant 0 : index
    %1 = vector.load %arg1[%c0_2, %c0_3] : memref<32x32xf32, #tpu.memory_space<vmem>>, vector<32x32xf32>
    %c0_4 = arith.constant 0 : index
    %c0_5 = arith.constant 0 : index
    %2 = vector.load %arg2[%c0_4, %c0_5] : memref<1x32xf32, #tpu.memory_space<vmem>>, vector<1x32xf32>
    %c0_6 = arith.constant 0 : index
    %c0_7 = arith.constant 0 : index
    %3 = vector.load %arg3[%c0_6, %c0_7] : memref<32x64xf32, #tpu.memory_space<vmem>>, vector<32x64xf32>
    %c0_8 = arith.constant 0 : index
    %c0_9 = arith.constant 0 : index
    %4 = vector.load %arg4[%c0_8, %c0_9] : memref<1x64xf32, #tpu.memory_space<vmem>>, vector<1x64xf32>
    %5 = vector.shape_cast %0 : vector<2x16x32xf32> to vector<32x32xf32>
    %cst = arith.constant dense<0.000000e+00> : vector<32x32xf32>
    %6 = tpu.matmul %5, %1, %cst {dimension_numbers = #tpu.dot_dimension_numbers<[1], [0], [0], [1], [0, 0, 1, 1], [], []>} : vector<32x32xf32>, vector<32x32xf32>, vector<32x32xf32> -> vector<32x32xf32>
    %7 = vector.broadcast %2 : vector<1x32xf32> to vector<32x32xf32>
    %8 = arith.addf %6, %7 : vector<32x32xf32>
    %9 = vector.shape_cast %8 : vector<32x32xf32> to vector<2x16x32xf32>
    %10 = vector.shape_cast %0 : vector<2x16x32xf32> to vector<32x32xf32>
    %cst_10 = arith.constant dense<0.000000e+00> : vector<32x64xf32>
    %11 = tpu.matmul %10, %3, %cst_10 {dimension_numbers = #tpu.dot_dimension_numbers<[1], [0], [0], [1], [0, 0, 1, 1], [], []>} : vector<32x32xf32>, vector<32x64xf32>, vector<32x64xf32> -> vector<32x64xf32>
    %12 = vector.broadcast %4 : vector<1x64xf32> to vector<32x64xf32>
    %13 = arith.addf %11, %12 : vector<32x64xf32>
    %14 = vector.extract_strided_slice %13 {offsets = [0, 0], sizes = [32, 32], strides = [1, 1]} : vector<32x64xf32> to vector<32x32xf32>
    %15 = vector.shape_cast %14 : vector<32x32xf32> to vector<2x16x32xf32>
    %16 = vector.extract_strided_slice %13 {offsets = [0, 32], sizes = [32, 32], strides = [1, 1]} : vector<32x64xf32> to vector<32x32xf32>
    %17 = vector.shape_cast %16 : vector<32x32xf32> to vector<2x16x32xf32>
    %18 = tpu.concatenate %15, %15 in 1 : vector<2x16x32xf32>, vector<2x16x32xf32> -> vector<2x32x32xf32>
    %19 = vector.extract_strided_slice %18 {offsets = [0, 16, 0], sizes = [2, 16, 32], strides = [1, 1, 1]} : vector<2x32x32xf32> to vector<2x16x32xf32>
    %20 = arith.mulf %9, %19 : vector<2x16x32xf32>
    %cst_11 = arith.constant dense<0.000000e+00> : vector<2x16xf32>
    %21 = vector.multi_reduction <add>, %20, %cst_11 [2] : vector<2x16x32xf32> to vector<2x16xf32>
    %cst_12 = arith.constant dense<0.000000e+00> : vector<2xf32>
    %22 = vector.multi_reduction <add>, %21, %cst_12 [1] : vector<2x16xf32> to vector<2xf32>
    %23 = vector.shape_cast %22 : vector<2xf32> to vector<2x1xf32>
    %24 = vector.extract_strided_slice %18 {offsets = [0, 15, 0], sizes = [2, 16, 32], strides = [1, 1, 1]} : vector<2x32x32xf32> to vector<2x16x32xf32>
    %25 = arith.mulf %9, %24 : vector<2x16x32xf32>
    %cst_13 = arith.constant dense<0.000000e+00> : vector<2x16xf32>
    %26 = vector.multi_reduction <add>, %25, %cst_13 [2] : vector<2x16x32xf32> to vector<2x16xf32>
    %cst_14 = arith.constant dense<0.000000e+00> : vector<2xf32>
    %27 = vector.multi_reduction <add>, %26, %cst_14 [1] : vector<2x16xf32> to vector<2xf32>
    %28 = vector.shape_cast %27 : vector<2xf32> to vector<2x1xf32>
    %29 = vector.extract_strided_slice %18 {offsets = [0, 14, 0], sizes = [2, 16, 32], strides = [1, 1, 1]} : vector<2x32x32xf32> to vector<2x16x32xf32>
    %30 = arith.mulf %9, %29 : vector<2x16x32xf32>
    %cst_15 = arith.constant dense<0.000000e+00> : vector<2x16xf32>
    %31 = vector.multi_reduction <add>, %30, %cst_15 [2] : vector<2x16x32xf32> to vector<2x16xf32>
    %cst_16 = arith.constant dense<0.000000e+00> : vector<2xf32>
    %32 = vector.multi_reduction <add>, %31, %cst_16 [1] : vector<2x16xf32> to vector<2xf32>
    %33 = vector.shape_cast %32 : vector<2xf32> to vector<2x1xf32>
    %34 = vector.extract_strided_slice %18 {offsets = [0, 13, 0], sizes = [2, 16, 32], strides = [1, 1, 1]} : vector<2x32x32xf32> to vector<2x16x32xf32>
    %35 = arith.mulf %9, %34 : vector<2x16x32xf32>
    %cst_17 = arith.constant dense<0.000000e+00> : vector<2x16xf32>
    %36 = vector.multi_reduction <add>, %35, %cst_17 [2] : vector<2x16x32xf32> to vector<2x16xf32>
    %cst_18 = arith.constant dense<0.000000e+00> : vector<2xf32>
    %37 = vector.multi_reduction <add>, %36, %cst_18 [1] : vector<2x16xf32> to vector<2xf32>
    %38 = vector.shape_cast %37 : vector<2xf32> to vector<2x1xf32>
    %39 = vector.extract_strided_slice %18 {offsets = [0, 12, 0], sizes = [2, 16, 32], strides = [1, 1, 1]} : vector<2x32x32xf32> to vector<2x16x32xf32>
    %40 = arith.mulf %9, %39 : vector<2x16x32xf32>
    %cst_19 = arith.constant dense<0.000000e+00> : vector<2x16xf32>
    %41 = vector.multi_reduction <add>, %40, %cst_19 [2] : vector<2x16x32xf32> to vector<2x16xf32>
    %cst_20 = arith.constant dense<0.000000e+00> : vector<2xf32>
    %42 = vector.multi_reduction <add>, %41, %cst_20 [1] : vector<2x16xf32> to vector<2xf32>
    %43 = vector.shape_cast %42 : vector<2xf32> to vector<2x1xf32>
    %44 = vector.extract_strided_slice %18 {offsets = [0, 11, 0], sizes = [2, 16, 32], strides = [1, 1, 1]} : vector<2x32x32xf32> to vector<2x16x32xf32>
    %45 = arith.mulf %9, %44 : vector<2x16x32xf32>
    %cst_21 = arith.constant dense<0.000000e+00> : vector<2x16xf32>
    %46 = vector.multi_reduction <add>, %45, %cst_21 [2] : vector<2x16x32xf32> to vector<2x16xf32>
    %cst_22 = arith.constant dense<0.000000e+00> : vector<2xf32>
    %47 = vector.multi_reduction <add>, %46, %cst_22 [1] : vector<2x16xf32> to vector<2xf32>
    %48 = vector.shape_cast %47 : vector<2xf32> to vector<2x1xf32>
    %49 = vector.extract_strided_slice %18 {offsets = [0, 10, 0], sizes = [2, 16, 32], strides = [1, 1, 1]} : vector<2x32x32xf32> to vector<2x16x32xf32>
    %50 = arith.mulf %9, %49 : vector<2x16x32xf32>
    %cst_23 = arith.constant dense<0.000000e+00> : vector<2x16xf32>
    %51 = vector.multi_reduction <add>, %50, %cst_23 [2] : vector<2x16x32xf32> to vector<2x16xf32>
    %cst_24 = arith.constant dense<0.000000e+00> : vector<2xf32>
    %52 = vector.multi_reduction <add>, %51, %cst_24 [1] : vector<2x16xf32> to vector<2xf32>
    %53 = vector.shape_cast %52 : vector<2xf32> to vector<2x1xf32>
    %54 = vector.extract_strided_slice %18 {offsets = [0, 9, 0], sizes = [2, 16, 32], strides = [1, 1, 1]} : vector<2x32x32xf32> to vector<2x16x32xf32>
    %55 = arith.mulf %9, %54 : vector<2x16x32xf32>
    %cst_25 = arith.constant dense<0.000000e+00> : vector<2x16xf32>
    %56 = vector.multi_reduction <add>, %55, %cst_25 [2] : vector<2x16x32xf32> to vector<2x16xf32>
    %cst_26 = arith.constant dense<0.000000e+00> : vector<2xf32>
    %57 = vector.multi_reduction <add>, %56, %cst_26 [1] : vector<2x16xf32> to vector<2xf32>
    %58 = vector.shape_cast %57 : vector<2xf32> to vector<2x1xf32>
    %59 = vector.extract_strided_slice %18 {offsets = [0, 8, 0], sizes = [2, 16, 32], strides = [1, 1, 1]} : vector<2x32x32xf32> to vector<2x16x32xf32>
    %60 = arith.mulf %9, %59 : vector<2x16x32xf32>
    %cst_27 = arith.constant dense<0.000000e+00> : vector<2x16xf32>
    %61 = vector.multi_reduction <add>, %60, %cst_27 [2] : vector<2x16x32xf32> to vector<2x16xf32>
    %cst_28 = arith.constant dense<0.000000e+00> : vector<2xf32>
    %62 = vector.multi_reduction <add>, %61, %cst_28 [1] : vector<2x16xf32> to vector<2xf32>
    %63 = vector.shape_cast %62 : vector<2xf32> to vector<2x1xf32>
    %64 = vector.extract_strided_slice %18 {offsets = [0, 7, 0], sizes = [2, 16, 32], strides = [1, 1, 1]} : vector<2x32x32xf32> to vector<2x16x32xf32>
    %65 = arith.mulf %9, %64 : vector<2x16x32xf32>
    %cst_29 = arith.constant dense<0.000000e+00> : vector<2x16xf32>
    %66 = vector.multi_reduction <add>, %65, %cst_29 [2] : vector<2x16x32xf32> to vector<2x16xf32>
    %cst_30 = arith.constant dense<0.000000e+00> : vector<2xf32>
    %67 = vector.multi_reduction <add>, %66, %cst_30 [1] : vector<2x16xf32> to vector<2xf32>
    %68 = vector.shape_cast %67 : vector<2xf32> to vector<2x1xf32>
    %69 = vector.extract_strided_slice %18 {offsets = [0, 6, 0], sizes = [2, 16, 32], strides = [1, 1, 1]} : vector<2x32x32xf32> to vector<2x16x32xf32>
    %70 = arith.mulf %9, %69 : vector<2x16x32xf32>
    %cst_31 = arith.constant dense<0.000000e+00> : vector<2x16xf32>
    %71 = vector.multi_reduction <add>, %70, %cst_31 [2] : vector<2x16x32xf32> to vector<2x16xf32>
    %cst_32 = arith.constant dense<0.000000e+00> : vector<2xf32>
    %72 = vector.multi_reduction <add>, %71, %cst_32 [1] : vector<2x16xf32> to vector<2xf32>
    %73 = vector.shape_cast %72 : vector<2xf32> to vector<2x1xf32>
    %74 = vector.extract_strided_slice %18 {offsets = [0, 5, 0], sizes = [2, 16, 32], strides = [1, 1, 1]} : vector<2x32x32xf32> to vector<2x16x32xf32>
    %75 = arith.mulf %9, %74 : vector<2x16x32xf32>
    %cst_33 = arith.constant dense<0.000000e+00> : vector<2x16xf32>
    %76 = vector.multi_reduction <add>, %75, %cst_33 [2] : vector<2x16x32xf32> to vector<2x16xf32>
    %cst_34 = arith.constant dense<0.000000e+00> : vector<2xf32>
    %77 = vector.multi_reduction <add>, %76, %cst_34 [1] : vector<2x16xf32> to vector<2xf32>
    %78 = vector.shape_cast %77 : vector<2xf32> to vector<2x1xf32>
    %79 = vector.extract_strided_slice %18 {offsets = [0, 4, 0], sizes = [2, 16, 32], strides = [1, 1, 1]} : vector<2x32x32xf32> to vector<2x16x32xf32>
    %80 = arith.mulf %9, %79 : vector<2x16x32xf32>
    %cst_35 = arith.constant dense<0.000000e+00> : vector<2x16xf32>
    %81 = vector.multi_reduction <add>, %80, %cst_35 [2] : vector<2x16x32xf32> to vector<2x16xf32>
    %cst_36 = arith.constant dense<0.000000e+00> : vector<2xf32>
    %82 = vector.multi_reduction <add>, %81, %cst_36 [1] : vector<2x16xf32> to vector<2xf32>
    %83 = vector.shape_cast %82 : vector<2xf32> to vector<2x1xf32>
    %84 = vector.extract_strided_slice %18 {offsets = [0, 3, 0], sizes = [2, 16, 32], strides = [1, 1, 1]} : vector<2x32x32xf32> to vector<2x16x32xf32>
    %85 = arith.mulf %9, %84 : vector<2x16x32xf32>
    %cst_37 = arith.constant dense<0.000000e+00> : vector<2x16xf32>
    %86 = vector.multi_reduction <add>, %85, %cst_37 [2] : vector<2x16x32xf32> to vector<2x16xf32>
    %cst_38 = arith.constant dense<0.000000e+00> : vector<2xf32>
    %87 = vector.multi_reduction <add>, %86, %cst_38 [1] : vector<2x16xf32> to vector<2xf32>
    %88 = vector.shape_cast %87 : vector<2xf32> to vector<2x1xf32>
    %89 = vector.extract_strided_slice %18 {offsets = [0, 2, 0], sizes = [2, 16, 32], strides = [1, 1, 1]} : vector<2x32x32xf32> to vector<2x16x32xf32>
    %90 = arith.mulf %9, %89 : vector<2x16x32xf32>
    %cst_39 = arith.constant dense<0.000000e+00> : vector<2x16xf32>
    %91 = vector.multi_reduction <add>, %90, %cst_39 [2] : vector<2x16x32xf32> to vector<2x16xf32>
    %cst_40 = arith.constant dense<0.000000e+00> : vector<2xf32>
    %92 = vector.multi_reduction <add>, %91, %cst_40 [1] : vector<2x16xf32> to vector<2xf32>
    %93 = vector.shape_cast %92 : vector<2xf32> to vector<2x1xf32>
    %94 = vector.extract_strided_slice %18 {offsets = [0, 1, 0], sizes = [2, 16, 32], strides = [1, 1, 1]} : vector<2x32x32xf32> to vector<2x16x32xf32>
    %95 = arith.mulf %9, %94 : vector<2x16x32xf32>
    %cst_41 = arith.constant dense<0.000000e+00> : vector<2x16xf32>
    %96 = vector.multi_reduction <add>, %95, %cst_41 [2] : vector<2x16x32xf32> to vector<2x16xf32>
    %cst_42 = arith.constant dense<0.000000e+00> : vector<2xf32>
    %97 = vector.multi_reduction <add>, %96, %cst_42 [1] : vector<2x16xf32> to vector<2xf32>
    %98 = vector.shape_cast %97 : vector<2xf32> to vector<2x1xf32>
    %99 = tpu.concatenate %23, %28, %33, %38, %43, %48, %53, %58, %63, %68, %73, %78, %83, %88, %93, %98 in 1 : vector<2x1xf32>, vector<2x1xf32>, vector<2x1xf32>, vector<2x1xf32>, vector<2x1xf32>, vector<2x1xf32>, vector<2x1xf32>, vector<2x1xf32>, vector<2x1xf32>, vector<2x1xf32>, vector<2x1xf32>, vector<2x1xf32>, vector<2x1xf32>, vector<2x1xf32>, vector<2x1xf32>, vector<2x1xf32> -> vector<2x16xf32>
    %cst_43 = arith.constant 3.125000e-02 : f32
    %100 = vector.broadcast %cst_43 : f32 to vector<2x16xf32>
    %101 = arith.mulf %99, %100 : vector<2x16xf32>
    %102 = tpu.iota {dimensions = array<i32: 1>} : vector<2x16xi32>
    %cst_44 = arith.constant dense<0xFF800000> : vector<2xf32>
    %103 = vector.multi_reduction <maximumf>, %101, %cst_44 [1] : vector<2x16xf32> to vector<2xf32>
    %104 = vector.shape_cast %103 : vector<2xf32> to vector<2x1xf32>
    %105 = vector.broadcast %104 : vector<2x1xf32> to vector<2x16xf32>
    %106 = arith.cmpf oeq, %101, %105 : vector<2x16xf32>
    %c16_i32 = arith.constant 16 : i32
    %107 = vector.broadcast %c16_i32 : i32 to vector<2x16xi32>
    %108 = arith.select %106, %102, %107 : vector<2x16xi1>, vector<2x16xi32>
    %cst_45 = arith.constant dense<2147483647> : vector<2xi32>
    %109 = vector.multi_reduction <minsi>, %108, %cst_45 [1] : vector<2x16xi32> to vector<2xi32>
    %110 = vector.shape_cast %109 : vector<2xi32> to vector<2x1xi32>
    %111 = vector.broadcast %110 : vector<2x1xi32> to vector<2x16xi32>
    %112 = arith.cmpi eq, %102, %111 : vector<2x16xi32>
    %cst_46 = arith.constant -1.000000e+30 : f32
    %113 = vector.broadcast %cst_46 : f32 to vector<2x16xf32>
    %114 = arith.select %112, %113, %101 : vector<2x16xi1>, vector<2x16xf32>
    %cst_47 = arith.constant dense<0xFF800000> : vector<2xf32>
    %115 = vector.multi_reduction <maximumf>, %114, %cst_47 [1] : vector<2x16xf32> to vector<2xf32>
    %116 = vector.shape_cast %115 : vector<2xf32> to vector<2x1xf32>
    %117 = vector.broadcast %116 : vector<2x1xf32> to vector<2x16xf32>
    %118 = arith.cmpf oeq, %114, %117 : vector<2x16xf32>
    %c16_i32_48 = arith.constant 16 : i32
    %119 = vector.broadcast %c16_i32_48 : i32 to vector<2x16xi32>
    %120 = arith.select %118, %102, %119 : vector<2x16xi1>, vector<2x16xi32>
    %cst_49 = arith.constant dense<2147483647> : vector<2xi32>
    %121 = vector.multi_reduction <minsi>, %120, %cst_49 [1] : vector<2x16xi32> to vector<2xi32>
    %122 = vector.shape_cast %121 : vector<2xi32> to vector<2x1xi32>
    %123 = tpu.concatenate %104, %116 in 1 : vector<2x1xf32>, vector<2x1xf32> -> vector<2x2xf32>
    %124 = vector.broadcast %104 : vector<2x1xf32> to vector<2x2xf32>
    %125 = arith.subf %123, %124 : vector<2x2xf32>
    %126 = math.exp %125 : vector<2x2xf32>
    %cst_50 = arith.constant dense<0.000000e+00> : vector<2xf32>
    %127 = vector.multi_reduction <add>, %126, %cst_50 [1] : vector<2x2xf32> to vector<2xf32>
    %128 = vector.shape_cast %127 : vector<2xf32> to vector<2x1xf32>
    %129 = vector.broadcast %128 : vector<2x1xf32> to vector<2x2xf32>
    %130 = arith.divf %126, %129 : vector<2x2xf32>
    %131 = tpu.iota {dimensions = array<i32: 0>} : vector<16x16xi32>
    %132 = tpu.iota {dimensions = array<i32: 1>} : vector<16x16xi32>
    %133 = arith.subi %132, %131 : vector<16x16xi32>
    %c0_i32 = arith.constant 0 : i32
    %134 = vector.broadcast %c0_i32 : i32 to vector<16x16xi32>
    %135 = arith.cmpi slt, %133, %134 : vector<16x16xi32>
    %c16_i32_51 = arith.constant 16 : i32
    %136 = vector.broadcast %c16_i32_51 : i32 to vector<16x16xi32>
    %137 = arith.addi %133, %136 : vector<16x16xi32>
    %138 = arith.select %135, %137, %133 : vector<16x16xi1>, vector<16x16xi32>
    %cst_52 = arith.constant 0.000000e+00 : f32
    %139 = vector.broadcast %cst_52 : f32 to vector<2x16x16xf32>
    %140 = vector.shape_cast %138 : vector<16x16xi32> to vector<1x16x16xi32>
    %141 = vector.shape_cast %110 : vector<2x1xi32> to vector<2x1x1xi32>
    %142 = vector.broadcast %140 : vector<1x16x16xi32> to vector<2x16x16xi32>
    %143 = vector.broadcast %141 : vector<2x1x1xi32> to vector<2x16x16xi32>
    %144 = arith.cmpi eq, %142, %143 : vector<2x16x16xi32>
    %145 = arith.extui %144 : vector<2x16x16xi1> to vector<2x16x16xi32>
    %146 = arith.sitofp %145 : vector<2x16x16xi32> to vector<2x16x16xf32>
    %147 = vector.extract_strided_slice %130 {offsets = [0, 0], sizes = [2, 1], strides = [1, 1]} : vector<2x2xf32> to vector<2x1xf32>
    %148 = vector.shape_cast %147 : vector<2x1xf32> to vector<2x1x1xf32>
    %149 = vector.broadcast %148 : vector<2x1x1xf32> to vector<2x16x16xf32>
    %150 = arith.mulf %149, %146 : vector<2x16x16xf32>
    %151 = arith.addf %139, %150 : vector<2x16x16xf32>
    %152 = vector.shape_cast %138 : vector<16x16xi32> to vector<1x16x16xi32>
    %153 = vector.shape_cast %122 : vector<2x1xi32> to vector<2x1x1xi32>
    %154 = vector.broadcast %152 : vector<1x16x16xi32> to vector<2x16x16xi32>
    %155 = vector.broadcast %153 : vector<2x1x1xi32> to vector<2x16x16xi32>
    %156 = arith.cmpi eq, %154, %155 : vector<2x16x16xi32>
    %157 = arith.extui %156 : vector<2x16x16xi1> to vector<2x16x16xi32>
    %158 = arith.sitofp %157 : vector<2x16x16xi32> to vector<2x16x16xf32>
    %159 = vector.extract_strided_slice %130 {offsets = [0, 1], sizes = [2, 1], strides = [1, 1]} : vector<2x2xf32> to vector<2x1xf32>
    %160 = vector.shape_cast %159 : vector<2x1xf32> to vector<2x1x1xf32>
    %161 = vector.broadcast %160 : vector<2x1x1xf32> to vector<2x16x16xf32>
    %162 = arith.mulf %161, %158 : vector<2x16x16xf32>
    %163 = arith.addf %151, %162 : vector<2x16x16xf32>
    "tpu.trace_start"() <{level = 10 : i32, message = "bts,bsd->btd"}> : () -> ()
    %cst_53 = arith.constant dense<0.000000e+00> : vector<2x16x32xf32>
    %164 = tpu.matmul %163, %17, %cst_53 {dimension_numbers = #tpu.dot_dimension_numbers<[2], [1], [1], [2], [0, 0, 0, 1, 1, 2], [0], [0]>} : vector<2x16x16xf32>, vector<2x16x32xf32>, vector<2x16x32xf32> -> vector<2x16x32xf32>
    "tpu.trace_stop"() : () -> ()
    %165 = vector.shape_cast %164 : vector<2x16x32xf32> to vector<32x32xf32>
    %c0_54 = arith.constant 0 : index
    %c0_55 = arith.constant 0 : index
    %166 = vector.load %arg5[%c0_54, %c0_55] : memref<32x32xf32, #tpu.memory_space<vmem>>, vector<32x32xf32>
    %cst_56 = arith.constant dense<0.000000e+00> : vector<32x32xf32>
    %167 = tpu.matmul %165, %166, %cst_56 {dimension_numbers = #tpu.dot_dimension_numbers<[1], [0], [0], [1], [0, 0, 1, 1], [], []>} : vector<32x32xf32>, vector<32x32xf32>, vector<32x32xf32> -> vector<32x32xf32>
    %c0_57 = arith.constant 0 : index
    %c0_58 = arith.constant 0 : index
    %168 = vector.load %arg6[%c0_57, %c0_58] : memref<1x32xf32, #tpu.memory_space<vmem>>, vector<1x32xf32>
    %169 = vector.broadcast %168 : vector<1x32xf32> to vector<32x32xf32>
    %170 = arith.addf %167, %169 : vector<32x32xf32>
    %171 = vector.shape_cast %170 : vector<32x32xf32> to vector<2x16x32xf32>
    %172 = arith.addf %0, %171 : vector<2x16x32xf32>
    %173 = vector.extract_strided_slice %172 {offsets = [0, 0, 0], sizes = [2, 1, 32], strides = [1, 1, 1]} : vector<2x16x32xf32> to vector<2x1x32xf32>
    %174 = vector.extract_strided_slice %172 {offsets = [0, 15, 0], sizes = [2, 1, 32], strides = [1, 1, 1]} : vector<2x16x32xf32> to vector<2x1x32xf32>
    %175 = tpu.concatenate %173, %173, %172, %174, %174 in 1 : vector<2x1x32xf32>, vector<2x1x32xf32>, vector<2x16x32xf32>, vector<2x1x32xf32>, vector<2x1x32xf32> -> vector<2x20x32xf32>
    %176 = vector.extract_strided_slice %175 {offsets = [0, 0, 0], sizes = [2, 16, 32], strides = [1, 1, 1]} : vector<2x20x32xf32> to vector<2x16x32xf32>
    %177 = vector.extract_strided_slice %175 {offsets = [0, 1, 0], sizes = [2, 16, 32], strides = [1, 1, 1]} : vector<2x20x32xf32> to vector<2x16x32xf32>
    %178 = arith.addf %176, %177 : vector<2x16x32xf32>
    %179 = vector.extract_strided_slice %175 {offsets = [0, 2, 0], sizes = [2, 16, 32], strides = [1, 1, 1]} : vector<2x20x32xf32> to vector<2x16x32xf32>
    %180 = arith.addf %178, %179 : vector<2x16x32xf32>
    %181 = vector.extract_strided_slice %175 {offsets = [0, 3, 0], sizes = [2, 16, 32], strides = [1, 1, 1]} : vector<2x20x32xf32> to vector<2x16x32xf32>
    %182 = arith.addf %180, %181 : vector<2x16x32xf32>
    %183 = vector.extract_strided_slice %175 {offsets = [0, 4, 0], sizes = [2, 16, 32], strides = [1, 1, 1]} : vector<2x20x32xf32> to vector<2x16x32xf32>
    %184 = arith.addf %182, %183 : vector<2x16x32xf32>
    %cst_59 = arith.constant 2.000000e-01 : f32
    %185 = vector.broadcast %cst_59 : f32 to vector<2x16x32xf32>
    %186 = arith.mulf %184, %185 : vector<2x16x32xf32>
    %187 = arith.subf %172, %186 : vector<2x16x32xf32>
    %188 = vector.shape_cast %187 : vector<2x16x32xf32> to vector<32x32xf32>
    %c0_60 = arith.constant 0 : index
    %c0_61 = arith.constant 0 : index
    %189 = vector.load %arg7[%c0_60, %c0_61] : memref<32x64xf32, #tpu.memory_space<vmem>>, vector<32x64xf32>
    %cst_62 = arith.constant dense<0.000000e+00> : vector<32x64xf32>
    %190 = tpu.matmul %188, %189, %cst_62 {dimension_numbers = #tpu.dot_dimension_numbers<[1], [0], [0], [1], [0, 0, 1, 1], [], []>} : vector<32x32xf32>, vector<32x64xf32>, vector<32x64xf32> -> vector<32x64xf32>
    %cst_63 = arith.constant 0.000000e+00 : f32
    %191 = vector.broadcast %cst_63 : f32 to vector<32x64xf32>
    %192 = arith.maximumf %190, %191 : vector<32x64xf32>
    %c0_64 = arith.constant 0 : index
    %c0_65 = arith.constant 0 : index
    %193 = vector.load %arg8[%c0_64, %c0_65] : memref<64x32xf32, #tpu.memory_space<vmem>>, vector<64x32xf32>
    %cst_66 = arith.constant dense<0.000000e+00> : vector<32x32xf32>
    %194 = tpu.matmul %192, %193, %cst_66 {dimension_numbers = #tpu.dot_dimension_numbers<[1], [0], [0], [1], [0, 0, 1, 1], [], []>} : vector<32x64xf32>, vector<64x32xf32>, vector<32x32xf32> -> vector<32x32xf32>
    %195 = vector.shape_cast %194 : vector<32x32xf32> to vector<2x16x32xf32>
    %196 = arith.addf %187, %195 : vector<2x16x32xf32>
    %197 = vector.extract_strided_slice %196 {offsets = [0, 0, 0], sizes = [2, 1, 32], strides = [1, 1, 1]} : vector<2x16x32xf32> to vector<2x1x32xf32>
    %198 = vector.extract_strided_slice %196 {offsets = [0, 15, 0], sizes = [2, 1, 32], strides = [1, 1, 1]} : vector<2x16x32xf32> to vector<2x1x32xf32>
    %199 = tpu.concatenate %197, %197, %196, %198, %198 in 1 : vector<2x1x32xf32>, vector<2x1x32xf32>, vector<2x16x32xf32>, vector<2x1x32xf32>, vector<2x1x32xf32> -> vector<2x20x32xf32>
    %200 = vector.extract_strided_slice %199 {offsets = [0, 0, 0], sizes = [2, 16, 32], strides = [1, 1, 1]} : vector<2x20x32xf32> to vector<2x16x32xf32>
    %201 = vector.extract_strided_slice %199 {offsets = [0, 1, 0], sizes = [2, 16, 32], strides = [1, 1, 1]} : vector<2x20x32xf32> to vector<2x16x32xf32>
    %202 = arith.addf %200, %201 : vector<2x16x32xf32>
    %203 = vector.extract_strided_slice %199 {offsets = [0, 2, 0], sizes = [2, 16, 32], strides = [1, 1, 1]} : vector<2x20x32xf32> to vector<2x16x32xf32>
    %204 = arith.addf %202, %203 : vector<2x16x32xf32>
    %205 = vector.extract_strided_slice %199 {offsets = [0, 3, 0], sizes = [2, 16, 32], strides = [1, 1, 1]} : vector<2x20x32xf32> to vector<2x16x32xf32>
    %206 = arith.addf %204, %205 : vector<2x16x32xf32>
    %207 = vector.extract_strided_slice %199 {offsets = [0, 4, 0], sizes = [2, 16, 32], strides = [1, 1, 1]} : vector<2x20x32xf32> to vector<2x16x32xf32>
    %208 = arith.addf %206, %207 : vector<2x16x32xf32>
    %cst_67 = arith.constant 2.000000e-01 : f32
    %209 = vector.broadcast %cst_67 : f32 to vector<2x16x32xf32>
    %210 = arith.mulf %208, %209 : vector<2x16x32xf32>
    %211 = arith.subf %196, %210 : vector<2x16x32xf32>
    %c0_68 = arith.constant 0 : index
    %c0_69 = arith.constant 0 : index
    %212 = vector.load %arg9[%c0_68, %c0_69] : memref<1x32xf32, #tpu.memory_space<vmem>>, vector<1x32xf32>
    %c0_70 = arith.constant 0 : index
    %c0_71 = arith.constant 0 : index
    %213 = vector.load %arg10[%c0_70, %c0_71] : memref<1x32xf32, #tpu.memory_space<vmem>>, vector<1x32xf32>
    %cst_72 = arith.constant dense<0.000000e+00> : vector<2x16xf32>
    %214 = vector.multi_reduction <add>, %211, %cst_72 [2] : vector<2x16x32xf32> to vector<2x16xf32>
    %215 = vector.shape_cast %214 : vector<2x16xf32> to vector<2x16x1xf32>
    %cst_73 = arith.constant 3.200000e+01 : f32
    %216 = vector.broadcast %cst_73 : f32 to vector<2x16x1xf32>
    %217 = arith.divf %215, %216 : vector<2x16x1xf32>
    %218 = vector.broadcast %217 : vector<2x16x1xf32> to vector<2x16x32xf32>
    %219 = arith.subf %211, %218 : vector<2x16x32xf32>
    %220 = arith.mulf %219, %219 : vector<2x16x32xf32>
    %cst_74 = arith.constant dense<0.000000e+00> : vector<2x16xf32>
    %221 = vector.multi_reduction <add>, %220, %cst_74 [2] : vector<2x16x32xf32> to vector<2x16xf32>
    %222 = vector.shape_cast %221 : vector<2x16xf32> to vector<2x16x1xf32>
    %cst_75 = arith.constant 3.200000e+01 : f32
    %223 = vector.broadcast %cst_75 : f32 to vector<2x16x1xf32>
    %224 = arith.divf %222, %223 : vector<2x16x1xf32>
    %225 = vector.broadcast %217 : vector<2x16x1xf32> to vector<2x16x32xf32>
    %226 = arith.subf %211, %225 : vector<2x16x32xf32>
    %cst_76 = arith.constant 9.99999974E-6 : f32
    %227 = vector.broadcast %cst_76 : f32 to vector<2x16x1xf32>
    %228 = arith.addf %224, %227 : vector<2x16x1xf32>
    %229 = math.rsqrt %228 : vector<2x16x1xf32>
    %230 = vector.broadcast %229 : vector<2x16x1xf32> to vector<2x16x32xf32>
    %231 = arith.mulf %226, %230 : vector<2x16x32xf32>
    %232 = vector.shape_cast %212 : vector<1x32xf32> to vector<1x1x32xf32>
    %233 = vector.broadcast %232 : vector<1x1x32xf32> to vector<2x16x32xf32>
    %234 = arith.mulf %231, %233 : vector<2x16x32xf32>
    %235 = vector.shape_cast %213 : vector<1x32xf32> to vector<1x1x32xf32>
    %236 = vector.broadcast %235 : vector<1x1x32xf32> to vector<2x16x32xf32>
    %237 = arith.addf %234, %236 : vector<2x16x32xf32>
    %cst_77 = arith.constant dense<0.000000e+00> : vector<2x32xf32>
    %238 = vector.multi_reduction <add>, %237, %cst_77 [1] : vector<2x16x32xf32> to vector<2x32xf32>
    %239 = vector.shape_cast %238 : vector<2x32xf32> to vector<2x1x32xf32>
    %cst_78 = arith.constant 1.600000e+01 : f32
    %240 = vector.broadcast %cst_78 : f32 to vector<2x1x32xf32>
    %241 = arith.divf %239, %240 : vector<2x1x32xf32>
    %242 = vector.broadcast %241 : vector<2x1x32xf32> to vector<2x16x32xf32>
    %243 = arith.subf %237, %242 : vector<2x16x32xf32>
    %c0_79 = arith.constant 0 : index
    %c0_80 = arith.constant 0 : index
    %c0_81 = arith.constant 0 : index
    %244 = vector.load %arg11[%c0_79, %c0_80, %c0_81] : memref<2x16x32xf32, #tpu.memory_space<vmem>>, vector<2x16x32xf32>
    tpu.vector_store %arg11[%c0_79, %c0_80, %c0_81], %243 {strides = array<i32>} : memref<2x16x32xf32, #tpu.memory_space<vmem>>, vector<2x16x32xf32>,
    return
  }
}

module attributes {stable_mosaic.version = 11 : i64} {
  func.func @_dec_layer_kernel(%arg0: memref<2x16x32xf32, #tpu.memory_space<vmem>>, %arg1: memref<2x16x32xf32, #tpu.memory_space<vmem>>, %arg2: memref<2x16x4xf32, #tpu.memory_space<vmem>>, %arg3: memref<32x32xf32, #tpu.memory_space<vmem>>, %arg4: memref<1x32xf32, #tpu.memory_space<vmem>>, %arg5: memref<32x64xf32, #tpu.memory_space<vmem>>, %arg6: memref<1x64xf32, #tpu.memory_space<vmem>>, %arg7: memref<32x32xf32, #tpu.memory_space<vmem>>, %arg8: memref<1x32xf32, #tpu.memory_space<vmem>>, %arg9: memref<32x32xf32, #tpu.memory_space<vmem>>, %arg10: memref<1x32xf32, #tpu.memory_space<vmem>>, %arg11: memref<32x64xf32, #tpu.memory_space<vmem>>, %arg12: memref<1x64xf32, #tpu.memory_space<vmem>>, %arg13: memref<32x32xf32, #tpu.memory_space<vmem>>, %arg14: memref<1x32xf32, #tpu.memory_space<vmem>>, %arg15: memref<32x64xf32, #tpu.memory_space<vmem>>, %arg16: memref<64x32xf32, #tpu.memory_space<vmem>>, %arg17: memref<96x4xf32, #tpu.memory_space<vmem>>, %arg18: memref<2x16x32xf32, #tpu.memory_space<vmem>>, %arg19: memref<2x16x4xf32, #tpu.memory_space<vmem>>) attributes {dimension_semantics = [], scalar_prefetch = 0 : i64, scratch_operands = 0 : i64, tpu.core_type = #tpu.core_type<tc>} {
    %c0 = arith.constant 0 : index
    %c0_0 = arith.constant 0 : index
    %c0_1 = arith.constant 0 : index
    %0 = vector.load %arg0[%c0, %c0_0, %c0_1] : memref<2x16x32xf32, #tpu.memory_space<vmem>>, vector<2x16x32xf32>
    %c0_2 = arith.constant 0 : index
    %c0_3 = arith.constant 0 : index
    %c0_4 = arith.constant 0 : index
    %1 = vector.load %arg1[%c0_2, %c0_3, %c0_4] : memref<2x16x32xf32, #tpu.memory_space<vmem>>, vector<2x16x32xf32>
    %c0_5 = arith.constant 0 : index
    %c0_6 = arith.constant 0 : index
    %2 = vector.load %arg3[%c0_5, %c0_6] : memref<32x32xf32, #tpu.memory_space<vmem>>, vector<32x32xf32>
    %c0_7 = arith.constant 0 : index
    %c0_8 = arith.constant 0 : index
    %3 = vector.load %arg4[%c0_7, %c0_8] : memref<1x32xf32, #tpu.memory_space<vmem>>, vector<1x32xf32>
    %c0_9 = arith.constant 0 : index
    %c0_10 = arith.constant 0 : index
    %4 = vector.load %arg5[%c0_9, %c0_10] : memref<32x64xf32, #tpu.memory_space<vmem>>, vector<32x64xf32>
    %c0_11 = arith.constant 0 : index
    %c0_12 = arith.constant 0 : index
    %5 = vector.load %arg6[%c0_11, %c0_12] : memref<1x64xf32, #tpu.memory_space<vmem>>, vector<1x64xf32>
    %6 = vector.shape_cast %0 : vector<2x16x32xf32> to vector<32x32xf32>
    %cst = arith.constant dense<0.000000e+00> : vector<32x32xf32>
    %7 = tpu.matmul %6, %2, %cst {dimension_numbers = #tpu.dot_dimension_numbers<[1], [0], [0], [1], [0, 0, 1, 1], [], []>} : vector<32x32xf32>, vector<32x32xf32>, vector<32x32xf32> -> vector<32x32xf32>
    %8 = vector.broadcast %3 : vector<1x32xf32> to vector<32x32xf32>
    %9 = arith.addf %7, %8 : vector<32x32xf32>
    %10 = vector.shape_cast %9 : vector<32x32xf32> to vector<2x16x32xf32>
    %11 = vector.shape_cast %0 : vector<2x16x32xf32> to vector<32x32xf32>
    %cst_13 = arith.constant dense<0.000000e+00> : vector<32x64xf32>
    %12 = tpu.matmul %11, %4, %cst_13 {dimension_numbers = #tpu.dot_dimension_numbers<[1], [0], [0], [1], [0, 0, 1, 1], [], []>} : vector<32x32xf32>, vector<32x64xf32>, vector<32x64xf32> -> vector<32x64xf32>
    %13 = vector.broadcast %5 : vector<1x64xf32> to vector<32x64xf32>
    %14 = arith.addf %12, %13 : vector<32x64xf32>
    %15 = vector.extract_strided_slice %14 {offsets = [0, 0], sizes = [32, 32], strides = [1, 1]} : vector<32x64xf32> to vector<32x32xf32>
    %16 = vector.shape_cast %15 : vector<32x32xf32> to vector<2x16x32xf32>
    %17 = vector.extract_strided_slice %14 {offsets = [0, 32], sizes = [32, 32], strides = [1, 1]} : vector<32x64xf32> to vector<32x32xf32>
    %18 = vector.shape_cast %17 : vector<32x32xf32> to vector<2x16x32xf32>
    %19 = tpu.concatenate %16, %16 in 1 : vector<2x16x32xf32>, vector<2x16x32xf32> -> vector<2x32x32xf32>
    %20 = vector.extract_strided_slice %19 {offsets = [0, 16, 0], sizes = [2, 16, 32], strides = [1, 1, 1]} : vector<2x32x32xf32> to vector<2x16x32xf32>
    %21 = arith.mulf %10, %20 : vector<2x16x32xf32>
    %cst_14 = arith.constant dense<0.000000e+00> : vector<2x16xf32>
    %22 = vector.multi_reduction <add>, %21, %cst_14 [2] : vector<2x16x32xf32> to vector<2x16xf32>
    %cst_15 = arith.constant dense<0.000000e+00> : vector<2xf32>
    %23 = vector.multi_reduction <add>, %22, %cst_15 [1] : vector<2x16xf32> to vector<2xf32>
    %24 = vector.shape_cast %23 : vector<2xf32> to vector<2x1xf32>
    %25 = vector.extract_strided_slice %19 {offsets = [0, 15, 0], sizes = [2, 16, 32], strides = [1, 1, 1]} : vector<2x32x32xf32> to vector<2x16x32xf32>
    %26 = arith.mulf %10, %25 : vector<2x16x32xf32>
    %cst_16 = arith.constant dense<0.000000e+00> : vector<2x16xf32>
    %27 = vector.multi_reduction <add>, %26, %cst_16 [2] : vector<2x16x32xf32> to vector<2x16xf32>
    %cst_17 = arith.constant dense<0.000000e+00> : vector<2xf32>
    %28 = vector.multi_reduction <add>, %27, %cst_17 [1] : vector<2x16xf32> to vector<2xf32>
    %29 = vector.shape_cast %28 : vector<2xf32> to vector<2x1xf32>
    %30 = vector.extract_strided_slice %19 {offsets = [0, 14, 0], sizes = [2, 16, 32], strides = [1, 1, 1]} : vector<2x32x32xf32> to vector<2x16x32xf32>
    %31 = arith.mulf %10, %30 : vector<2x16x32xf32>
    %cst_18 = arith.constant dense<0.000000e+00> : vector<2x16xf32>
    %32 = vector.multi_reduction <add>, %31, %cst_18 [2] : vector<2x16x32xf32> to vector<2x16xf32>
    %cst_19 = arith.constant dense<0.000000e+00> : vector<2xf32>
    %33 = vector.multi_reduction <add>, %32, %cst_19 [1] : vector<2x16xf32> to vector<2xf32>
    %34 = vector.shape_cast %33 : vector<2xf32> to vector<2x1xf32>
    %35 = vector.extract_strided_slice %19 {offsets = [0, 13, 0], sizes = [2, 16, 32], strides = [1, 1, 1]} : vector<2x32x32xf32> to vector<2x16x32xf32>
    %36 = arith.mulf %10, %35 : vector<2x16x32xf32>
    %cst_20 = arith.constant dense<0.000000e+00> : vector<2x16xf32>
    %37 = vector.multi_reduction <add>, %36, %cst_20 [2] : vector<2x16x32xf32> to vector<2x16xf32>
    %cst_21 = arith.constant dense<0.000000e+00> : vector<2xf32>
    %38 = vector.multi_reduction <add>, %37, %cst_21 [1] : vector<2x16xf32> to vector<2xf32>
    %39 = vector.shape_cast %38 : vector<2xf32> to vector<2x1xf32>
    %40 = vector.extract_strided_slice %19 {offsets = [0, 12, 0], sizes = [2, 16, 32], strides = [1, 1, 1]} : vector<2x32x32xf32> to vector<2x16x32xf32>
    %41 = arith.mulf %10, %40 : vector<2x16x32xf32>
    %cst_22 = arith.constant dense<0.000000e+00> : vector<2x16xf32>
    %42 = vector.multi_reduction <add>, %41, %cst_22 [2] : vector<2x16x32xf32> to vector<2x16xf32>
    %cst_23 = arith.constant dense<0.000000e+00> : vector<2xf32>
    %43 = vector.multi_reduction <add>, %42, %cst_23 [1] : vector<2x16xf32> to vector<2xf32>
    %44 = vector.shape_cast %43 : vector<2xf32> to vector<2x1xf32>
    %45 = vector.extract_strided_slice %19 {offsets = [0, 11, 0], sizes = [2, 16, 32], strides = [1, 1, 1]} : vector<2x32x32xf32> to vector<2x16x32xf32>
    %46 = arith.mulf %10, %45 : vector<2x16x32xf32>
    %cst_24 = arith.constant dense<0.000000e+00> : vector<2x16xf32>
    %47 = vector.multi_reduction <add>, %46, %cst_24 [2] : vector<2x16x32xf32> to vector<2x16xf32>
    %cst_25 = arith.constant dense<0.000000e+00> : vector<2xf32>
    %48 = vector.multi_reduction <add>, %47, %cst_25 [1] : vector<2x16xf32> to vector<2xf32>
    %49 = vector.shape_cast %48 : vector<2xf32> to vector<2x1xf32>
    %50 = vector.extract_strided_slice %19 {offsets = [0, 10, 0], sizes = [2, 16, 32], strides = [1, 1, 1]} : vector<2x32x32xf32> to vector<2x16x32xf32>
    %51 = arith.mulf %10, %50 : vector<2x16x32xf32>
    %cst_26 = arith.constant dense<0.000000e+00> : vector<2x16xf32>
    %52 = vector.multi_reduction <add>, %51, %cst_26 [2] : vector<2x16x32xf32> to vector<2x16xf32>
    %cst_27 = arith.constant dense<0.000000e+00> : vector<2xf32>
    %53 = vector.multi_reduction <add>, %52, %cst_27 [1] : vector<2x16xf32> to vector<2xf32>
    %54 = vector.shape_cast %53 : vector<2xf32> to vector<2x1xf32>
    %55 = vector.extract_strided_slice %19 {offsets = [0, 9, 0], sizes = [2, 16, 32], strides = [1, 1, 1]} : vector<2x32x32xf32> to vector<2x16x32xf32>
    %56 = arith.mulf %10, %55 : vector<2x16x32xf32>
    %cst_28 = arith.constant dense<0.000000e+00> : vector<2x16xf32>
    %57 = vector.multi_reduction <add>, %56, %cst_28 [2] : vector<2x16x32xf32> to vector<2x16xf32>
    %cst_29 = arith.constant dense<0.000000e+00> : vector<2xf32>
    %58 = vector.multi_reduction <add>, %57, %cst_29 [1] : vector<2x16xf32> to vector<2xf32>
    %59 = vector.shape_cast %58 : vector<2xf32> to vector<2x1xf32>
    %60 = vector.extract_strided_slice %19 {offsets = [0, 8, 0], sizes = [2, 16, 32], strides = [1, 1, 1]} : vector<2x32x32xf32> to vector<2x16x32xf32>
    %61 = arith.mulf %10, %60 : vector<2x16x32xf32>
    %cst_30 = arith.constant dense<0.000000e+00> : vector<2x16xf32>
    %62 = vector.multi_reduction <add>, %61, %cst_30 [2] : vector<2x16x32xf32> to vector<2x16xf32>
    %cst_31 = arith.constant dense<0.000000e+00> : vector<2xf32>
    %63 = vector.multi_reduction <add>, %62, %cst_31 [1] : vector<2x16xf32> to vector<2xf32>
    %64 = vector.shape_cast %63 : vector<2xf32> to vector<2x1xf32>
    %65 = vector.extract_strided_slice %19 {offsets = [0, 7, 0], sizes = [2, 16, 32], strides = [1, 1, 1]} : vector<2x32x32xf32> to vector<2x16x32xf32>
    %66 = arith.mulf %10, %65 : vector<2x16x32xf32>
    %cst_32 = arith.constant dense<0.000000e+00> : vector<2x16xf32>
    %67 = vector.multi_reduction <add>, %66, %cst_32 [2] : vector<2x16x32xf32> to vector<2x16xf32>
    %cst_33 = arith.constant dense<0.000000e+00> : vector<2xf32>
    %68 = vector.multi_reduction <add>, %67, %cst_33 [1] : vector<2x16xf32> to vector<2xf32>
    %69 = vector.shape_cast %68 : vector<2xf32> to vector<2x1xf32>
    %70 = vector.extract_strided_slice %19 {offsets = [0, 6, 0], sizes = [2, 16, 32], strides = [1, 1, 1]} : vector<2x32x32xf32> to vector<2x16x32xf32>
    %71 = arith.mulf %10, %70 : vector<2x16x32xf32>
    %cst_34 = arith.constant dense<0.000000e+00> : vector<2x16xf32>
    %72 = vector.multi_reduction <add>, %71, %cst_34 [2] : vector<2x16x32xf32> to vector<2x16xf32>
    %cst_35 = arith.constant dense<0.000000e+00> : vector<2xf32>
    %73 = vector.multi_reduction <add>, %72, %cst_35 [1] : vector<2x16xf32> to vector<2xf32>
    %74 = vector.shape_cast %73 : vector<2xf32> to vector<2x1xf32>
    %75 = vector.extract_strided_slice %19 {offsets = [0, 5, 0], sizes = [2, 16, 32], strides = [1, 1, 1]} : vector<2x32x32xf32> to vector<2x16x32xf32>
    %76 = arith.mulf %10, %75 : vector<2x16x32xf32>
    %cst_36 = arith.constant dense<0.000000e+00> : vector<2x16xf32>
    %77 = vector.multi_reduction <add>, %76, %cst_36 [2] : vector<2x16x32xf32> to vector<2x16xf32>
    %cst_37 = arith.constant dense<0.000000e+00> : vector<2xf32>
    %78 = vector.multi_reduction <add>, %77, %cst_37 [1] : vector<2x16xf32> to vector<2xf32>
    %79 = vector.shape_cast %78 : vector<2xf32> to vector<2x1xf32>
    %80 = vector.extract_strided_slice %19 {offsets = [0, 4, 0], sizes = [2, 16, 32], strides = [1, 1, 1]} : vector<2x32x32xf32> to vector<2x16x32xf32>
    %81 = arith.mulf %10, %80 : vector<2x16x32xf32>
    %cst_38 = arith.constant dense<0.000000e+00> : vector<2x16xf32>
    %82 = vector.multi_reduction <add>, %81, %cst_38 [2] : vector<2x16x32xf32> to vector<2x16xf32>
    %cst_39 = arith.constant dense<0.000000e+00> : vector<2xf32>
    %83 = vector.multi_reduction <add>, %82, %cst_39 [1] : vector<2x16xf32> to vector<2xf32>
    %84 = vector.shape_cast %83 : vector<2xf32> to vector<2x1xf32>
    %85 = vector.extract_strided_slice %19 {offsets = [0, 3, 0], sizes = [2, 16, 32], strides = [1, 1, 1]} : vector<2x32x32xf32> to vector<2x16x32xf32>
    %86 = arith.mulf %10, %85 : vector<2x16x32xf32>
    %cst_40 = arith.constant dense<0.000000e+00> : vector<2x16xf32>
    %87 = vector.multi_reduction <add>, %86, %cst_40 [2] : vector<2x16x32xf32> to vector<2x16xf32>
    %cst_41 = arith.constant dense<0.000000e+00> : vector<2xf32>
    %88 = vector.multi_reduction <add>, %87, %cst_41 [1] : vector<2x16xf32> to vector<2xf32>
    %89 = vector.shape_cast %88 : vector<2xf32> to vector<2x1xf32>
    %90 = vector.extract_strided_slice %19 {offsets = [0, 2, 0], sizes = [2, 16, 32], strides = [1, 1, 1]} : vector<2x32x32xf32> to vector<2x16x32xf32>
    %91 = arith.mulf %10, %90 : vector<2x16x32xf32>
    %cst_42 = arith.constant dense<0.000000e+00> : vector<2x16xf32>
    %92 = vector.multi_reduction <add>, %91, %cst_42 [2] : vector<2x16x32xf32> to vector<2x16xf32>
    %cst_43 = arith.constant dense<0.000000e+00> : vector<2xf32>
    %93 = vector.multi_reduction <add>, %92, %cst_43 [1] : vector<2x16xf32> to vector<2xf32>
    %94 = vector.shape_cast %93 : vector<2xf32> to vector<2x1xf32>
    %95 = vector.extract_strided_slice %19 {offsets = [0, 1, 0], sizes = [2, 16, 32], strides = [1, 1, 1]} : vector<2x32x32xf32> to vector<2x16x32xf32>
    %96 = arith.mulf %10, %95 : vector<2x16x32xf32>
    %cst_44 = arith.constant dense<0.000000e+00> : vector<2x16xf32>
    %97 = vector.multi_reduction <add>, %96, %cst_44 [2] : vector<2x16x32xf32> to vector<2x16xf32>
    %cst_45 = arith.constant dense<0.000000e+00> : vector<2xf32>
    %98 = vector.multi_reduction <add>, %97, %cst_45 [1] : vector<2x16xf32> to vector<2xf32>
    %99 = vector.shape_cast %98 : vector<2xf32> to vector<2x1xf32>
    %100 = tpu.concatenate %24, %29, %34, %39, %44, %49, %54, %59, %64, %69, %74, %79, %84, %89, %94, %99 in 1 : vector<2x1xf32>, vector<2x1xf32>, vector<2x1xf32>, vector<2x1xf32>, vector<2x1xf32>, vector<2x1xf32>, vector<2x1xf32>, vector<2x1xf32>, vector<2x1xf32>, vector<2x1xf32>, vector<2x1xf32>, vector<2x1xf32>, vector<2x1xf32>, vector<2x1xf32>, vector<2x1xf32>, vector<2x1xf32> -> vector<2x16xf32>
    %cst_46 = arith.constant 3.125000e-02 : f32
    %101 = vector.broadcast %cst_46 : f32 to vector<2x16xf32>
    %102 = arith.mulf %100, %101 : vector<2x16xf32>
    %103 = tpu.iota {dimensions = array<i32: 1>} : vector<2x16xi32>
    %cst_47 = arith.constant dense<0xFF800000> : vector<2xf32>
    %104 = vector.multi_reduction <maximumf>, %102, %cst_47 [1] : vector<2x16xf32> to vector<2xf32>
    %105 = vector.shape_cast %104 : vector<2xf32> to vector<2x1xf32>
    %106 = vector.broadcast %105 : vector<2x1xf32> to vector<2x16xf32>
    %107 = arith.cmpf oeq, %102, %106 : vector<2x16xf32>
    %c16_i32 = arith.constant 16 : i32
    %108 = vector.broadcast %c16_i32 : i32 to vector<2x16xi32>
    %109 = arith.select %107, %103, %108 : vector<2x16xi1>, vector<2x16xi32>
    %cst_48 = arith.constant dense<2147483647> : vector<2xi32>
    %110 = vector.multi_reduction <minsi>, %109, %cst_48 [1] : vector<2x16xi32> to vector<2xi32>
    %111 = vector.shape_cast %110 : vector<2xi32> to vector<2x1xi32>
    %112 = vector.broadcast %111 : vector<2x1xi32> to vector<2x16xi32>
    %113 = arith.cmpi eq, %103, %112 : vector<2x16xi32>
    %cst_49 = arith.constant -1.000000e+30 : f32
    %114 = vector.broadcast %cst_49 : f32 to vector<2x16xf32>
    %115 = arith.select %113, %114, %102 : vector<2x16xi1>, vector<2x16xf32>
    %cst_50 = arith.constant dense<0xFF800000> : vector<2xf32>
    %116 = vector.multi_reduction <maximumf>, %115, %cst_50 [1] : vector<2x16xf32> to vector<2xf32>
    %117 = vector.shape_cast %116 : vector<2xf32> to vector<2x1xf32>
    %118 = vector.broadcast %117 : vector<2x1xf32> to vector<2x16xf32>
    %119 = arith.cmpf oeq, %115, %118 : vector<2x16xf32>
    %c16_i32_51 = arith.constant 16 : i32
    %120 = vector.broadcast %c16_i32_51 : i32 to vector<2x16xi32>
    %121 = arith.select %119, %103, %120 : vector<2x16xi1>, vector<2x16xi32>
    %cst_52 = arith.constant dense<2147483647> : vector<2xi32>
    %122 = vector.multi_reduction <minsi>, %121, %cst_52 [1] : vector<2x16xi32> to vector<2xi32>
    %123 = vector.shape_cast %122 : vector<2xi32> to vector<2x1xi32>
    %124 = tpu.concatenate %105, %117 in 1 : vector<2x1xf32>, vector<2x1xf32> -> vector<2x2xf32>
    %125 = vector.broadcast %105 : vector<2x1xf32> to vector<2x2xf32>
    %126 = arith.subf %124, %125 : vector<2x2xf32>
    %127 = math.exp %126 : vector<2x2xf32>
    %cst_53 = arith.constant dense<0.000000e+00> : vector<2xf32>
    %128 = vector.multi_reduction <add>, %127, %cst_53 [1] : vector<2x2xf32> to vector<2xf32>
    %129 = vector.shape_cast %128 : vector<2xf32> to vector<2x1xf32>
    %130 = vector.broadcast %129 : vector<2x1xf32> to vector<2x2xf32>
    %131 = arith.divf %127, %130 : vector<2x2xf32>
    %132 = tpu.iota {dimensions = array<i32: 0>} : vector<16x16xi32>
    %133 = tpu.iota {dimensions = array<i32: 1>} : vector<16x16xi32>
    %134 = arith.subi %133, %132 : vector<16x16xi32>
    %c0_i32 = arith.constant 0 : i32
    %135 = vector.broadcast %c0_i32 : i32 to vector<16x16xi32>
    %136 = arith.cmpi slt, %134, %135 : vector<16x16xi32>
    %c16_i32_54 = arith.constant 16 : i32
    %137 = vector.broadcast %c16_i32_54 : i32 to vector<16x16xi32>
    %138 = arith.addi %134, %137 : vector<16x16xi32>
    %139 = arith.select %136, %138, %134 : vector<16x16xi1>, vector<16x16xi32>
    %cst_55 = arith.constant 0.000000e+00 : f32
    %140 = vector.broadcast %cst_55 : f32 to vector<2x16x16xf32>
    %141 = vector.shape_cast %139 : vector<16x16xi32> to vector<1x16x16xi32>
    %142 = vector.shape_cast %111 : vector<2x1xi32> to vector<2x1x1xi32>
    %143 = vector.broadcast %141 : vector<1x16x16xi32> to vector<2x16x16xi32>
    %144 = vector.broadcast %142 : vector<2x1x1xi32> to vector<2x16x16xi32>
    %145 = arith.cmpi eq, %143, %144 : vector<2x16x16xi32>
    %146 = arith.extui %145 : vector<2x16x16xi1> to vector<2x16x16xi32>
    %147 = arith.sitofp %146 : vector<2x16x16xi32> to vector<2x16x16xf32>
    %148 = vector.extract_strided_slice %131 {offsets = [0, 0], sizes = [2, 1], strides = [1, 1]} : vector<2x2xf32> to vector<2x1xf32>
    %149 = vector.shape_cast %148 : vector<2x1xf32> to vector<2x1x1xf32>
    %150 = vector.broadcast %149 : vector<2x1x1xf32> to vector<2x16x16xf32>
    %151 = arith.mulf %150, %147 : vector<2x16x16xf32>
    %152 = arith.addf %140, %151 : vector<2x16x16xf32>
    %153 = vector.shape_cast %139 : vector<16x16xi32> to vector<1x16x16xi32>
    %154 = vector.shape_cast %123 : vector<2x1xi32> to vector<2x1x1xi32>
    %155 = vector.broadcast %153 : vector<1x16x16xi32> to vector<2x16x16xi32>
    %156 = vector.broadcast %154 : vector<2x1x1xi32> to vector<2x16x16xi32>
    %157 = arith.cmpi eq, %155, %156 : vector<2x16x16xi32>
    %158 = arith.extui %157 : vector<2x16x16xi1> to vector<2x16x16xi32>
    %159 = arith.sitofp %158 : vector<2x16x16xi32> to vector<2x16x16xf32>
    %160 = vector.extract_strided_slice %131 {offsets = [0, 1], sizes = [2, 1], strides = [1, 1]} : vector<2x2xf32> to vector<2x1xf32>
    %161 = vector.shape_cast %160 : vector<2x1xf32> to vector<2x1x1xf32>
    %162 = vector.broadcast %161 : vector<2x1x1xf32> to vector<2x16x16xf32>
    %163 = arith.mulf %162, %159 : vector<2x16x16xf32>
    %164 = arith.addf %152, %163 : vector<2x16x16xf32>
    "tpu.trace_start"() <{level = 10 : i32, message = "bts,bsd->btd"}> : () -> ()
    %cst_56 = arith.constant dense<0.000000e+00> : vector<2x16x32xf32>
    %165 = tpu.matmul %164, %18, %cst_56 {dimension_numbers = #tpu.dot_dimension_numbers<[2], [1], [1], [2], [0, 0, 0, 1, 1, 2], [0], [0]>} : vector<2x16x16xf32>, vector<2x16x32xf32>, vector<2x16x32xf32> -> vector<2x16x32xf32>
    "tpu.trace_stop"() : () -> ()
    %166 = vector.shape_cast %165 : vector<2x16x32xf32> to vector<32x32xf32>
    %c0_57 = arith.constant 0 : index
    %c0_58 = arith.constant 0 : index
    %167 = vector.load %arg7[%c0_57, %c0_58] : memref<32x32xf32, #tpu.memory_space<vmem>>, vector<32x32xf32>
    %cst_59 = arith.constant dense<0.000000e+00> : vector<32x32xf32>
    %168 = tpu.matmul %166, %167, %cst_59 {dimension_numbers = #tpu.dot_dimension_numbers<[1], [0], [0], [1], [0, 0, 1, 1], [], []>} : vector<32x32xf32>, vector<32x32xf32>, vector<32x32xf32> -> vector<32x32xf32>
    %c0_60 = arith.constant 0 : index
    %c0_61 = arith.constant 0 : index
    %169 = vector.load %arg8[%c0_60, %c0_61] : memref<1x32xf32, #tpu.memory_space<vmem>>, vector<1x32xf32>
    %170 = vector.broadcast %169 : vector<1x32xf32> to vector<32x32xf32>
    %171 = arith.addf %168, %170 : vector<32x32xf32>
    %172 = vector.shape_cast %171 : vector<32x32xf32> to vector<2x16x32xf32>
    %173 = arith.addf %0, %172 : vector<2x16x32xf32>
    %174 = vector.extract_strided_slice %173 {offsets = [0, 0, 0], sizes = [2, 1, 32], strides = [1, 1, 1]} : vector<2x16x32xf32> to vector<2x1x32xf32>
    %175 = vector.extract_strided_slice %173 {offsets = [0, 15, 0], sizes = [2, 1, 32], strides = [1, 1, 1]} : vector<2x16x32xf32> to vector<2x1x32xf32>
    %176 = tpu.concatenate %174, %174, %173, %175, %175 in 1 : vector<2x1x32xf32>, vector<2x1x32xf32>, vector<2x16x32xf32>, vector<2x1x32xf32>, vector<2x1x32xf32> -> vector<2x20x32xf32>
    %177 = vector.extract_strided_slice %176 {offsets = [0, 0, 0], sizes = [2, 16, 32], strides = [1, 1, 1]} : vector<2x20x32xf32> to vector<2x16x32xf32>
    %178 = vector.extract_strided_slice %176 {offsets = [0, 1, 0], sizes = [2, 16, 32], strides = [1, 1, 1]} : vector<2x20x32xf32> to vector<2x16x32xf32>
    %179 = arith.addf %177, %178 : vector<2x16x32xf32>
    %180 = vector.extract_strided_slice %176 {offsets = [0, 2, 0], sizes = [2, 16, 32], strides = [1, 1, 1]} : vector<2x20x32xf32> to vector<2x16x32xf32>
    %181 = arith.addf %179, %180 : vector<2x16x32xf32>
    %182 = vector.extract_strided_slice %176 {offsets = [0, 3, 0], sizes = [2, 16, 32], strides = [1, 1, 1]} : vector<2x20x32xf32> to vector<2x16x32xf32>
    %183 = arith.addf %181, %182 : vector<2x16x32xf32>
    %184 = vector.extract_strided_slice %176 {offsets = [0, 4, 0], sizes = [2, 16, 32], strides = [1, 1, 1]} : vector<2x20x32xf32> to vector<2x16x32xf32>
    %185 = arith.addf %183, %184 : vector<2x16x32xf32>
    %cst_62 = arith.constant 2.000000e-01 : f32
    %186 = vector.broadcast %cst_62 : f32 to vector<2x16x32xf32>
    %187 = arith.mulf %185, %186 : vector<2x16x32xf32>
    %188 = arith.subf %173, %187 : vector<2x16x32xf32>
    %c0_63 = arith.constant 0 : index
    %c0_64 = arith.constant 0 : index
    %189 = vector.load %arg9[%c0_63, %c0_64] : memref<32x32xf32, #tpu.memory_space<vmem>>, vector<32x32xf32>
    %c0_65 = arith.constant 0 : index
    %c0_66 = arith.constant 0 : index
    %190 = vector.load %arg10[%c0_65, %c0_66] : memref<1x32xf32, #tpu.memory_space<vmem>>, vector<1x32xf32>
    %c0_67 = arith.constant 0 : index
    %c0_68 = arith.constant 0 : index
    %191 = vector.load %arg11[%c0_67, %c0_68] : memref<32x64xf32, #tpu.memory_space<vmem>>, vector<32x64xf32>
    %c0_69 = arith.constant 0 : index
    %c0_70 = arith.constant 0 : index
    %192 = vector.load %arg12[%c0_69, %c0_70] : memref<1x64xf32, #tpu.memory_space<vmem>>, vector<1x64xf32>
    %193 = vector.shape_cast %188 : vector<2x16x32xf32> to vector<32x32xf32>
    %cst_71 = arith.constant dense<0.000000e+00> : vector<32x32xf32>
    %194 = tpu.matmul %193, %189, %cst_71 {dimension_numbers = #tpu.dot_dimension_numbers<[1], [0], [0], [1], [0, 0, 1, 1], [], []>} : vector<32x32xf32>, vector<32x32xf32>, vector<32x32xf32> -> vector<32x32xf32>
    %195 = vector.broadcast %190 : vector<1x32xf32> to vector<32x32xf32>
    %196 = arith.addf %194, %195 : vector<32x32xf32>
    %197 = vector.shape_cast %196 : vector<32x32xf32> to vector<2x16x32xf32>
    %198 = vector.shape_cast %1 : vector<2x16x32xf32> to vector<32x32xf32>
    %cst_72 = arith.constant dense<0.000000e+00> : vector<32x64xf32>
    %199 = tpu.matmul %198, %191, %cst_72 {dimension_numbers = #tpu.dot_dimension_numbers<[1], [0], [0], [1], [0, 0, 1, 1], [], []>} : vector<32x32xf32>, vector<32x64xf32>, vector<32x64xf32> -> vector<32x64xf32>
    %200 = vector.broadcast %192 : vector<1x64xf32> to vector<32x64xf32>
    %201 = arith.addf %199, %200 : vector<32x64xf32>
    %202 = vector.extract_strided_slice %201 {offsets = [0, 0], sizes = [32, 32], strides = [1, 1]} : vector<32x64xf32> to vector<32x32xf32>
    %203 = vector.shape_cast %202 : vector<32x32xf32> to vector<2x16x32xf32>
    %204 = vector.extract_strided_slice %201 {offsets = [0, 32], sizes = [32, 32], strides = [1, 1]} : vector<32x64xf32> to vector<32x32xf32>
    %205 = vector.shape_cast %204 : vector<32x32xf32> to vector<2x16x32xf32>
    %206 = tpu.concatenate %203, %203 in 1 : vector<2x16x32xf32>, vector<2x16x32xf32> -> vector<2x32x32xf32>
    %207 = vector.extract_strided_slice %206 {offsets = [0, 16, 0], sizes = [2, 16, 32], strides = [1, 1, 1]} : vector<2x32x32xf32> to vector<2x16x32xf32>
    %208 = arith.mulf %197, %207 : vector<2x16x32xf32>
    %cst_73 = arith.constant dense<0.000000e+00> : vector<2x16xf32>
    %209 = vector.multi_reduction <add>, %208, %cst_73 [2] : vector<2x16x32xf32> to vector<2x16xf32>
    %cst_74 = arith.constant dense<0.000000e+00> : vector<2xf32>
    %210 = vector.multi_reduction <add>, %209, %cst_74 [1] : vector<2x16xf32> to vector<2xf32>
    %211 = vector.shape_cast %210 : vector<2xf32> to vector<2x1xf32>
    %212 = vector.extract_strided_slice %206 {offsets = [0, 15, 0], sizes = [2, 16, 32], strides = [1, 1, 1]} : vector<2x32x32xf32> to vector<2x16x32xf32>
    %213 = arith.mulf %197, %212 : vector<2x16x32xf32>
    %cst_75 = arith.constant dense<0.000000e+00> : vector<2x16xf32>
    %214 = vector.multi_reduction <add>, %213, %cst_75 [2] : vector<2x16x32xf32> to vector<2x16xf32>
    %cst_76 = arith.constant dense<0.000000e+00> : vector<2xf32>
    %215 = vector.multi_reduction <add>, %214, %cst_76 [1] : vector<2x16xf32> to vector<2xf32>
    %216 = vector.shape_cast %215 : vector<2xf32> to vector<2x1xf32>
    %217 = vector.extract_strided_slice %206 {offsets = [0, 14, 0], sizes = [2, 16, 32], strides = [1, 1, 1]} : vector<2x32x32xf32> to vector<2x16x32xf32>
    %218 = arith.mulf %197, %217 : vector<2x16x32xf32>
    %cst_77 = arith.constant dense<0.000000e+00> : vector<2x16xf32>
    %219 = vector.multi_reduction <add>, %218, %cst_77 [2] : vector<2x16x32xf32> to vector<2x16xf32>
    %cst_78 = arith.constant dense<0.000000e+00> : vector<2xf32>
    %220 = vector.multi_reduction <add>, %219, %cst_78 [1] : vector<2x16xf32> to vector<2xf32>
    %221 = vector.shape_cast %220 : vector<2xf32> to vector<2x1xf32>
    %222 = vector.extract_strided_slice %206 {offsets = [0, 13, 0], sizes = [2, 16, 32], strides = [1, 1, 1]} : vector<2x32x32xf32> to vector<2x16x32xf32>
    %223 = arith.mulf %197, %222 : vector<2x16x32xf32>
    %cst_79 = arith.constant dense<0.000000e+00> : vector<2x16xf32>
    %224 = vector.multi_reduction <add>, %223, %cst_79 [2] : vector<2x16x32xf32> to vector<2x16xf32>
    %cst_80 = arith.constant dense<0.000000e+00> : vector<2xf32>
    %225 = vector.multi_reduction <add>, %224, %cst_80 [1] : vector<2x16xf32> to vector<2xf32>
    %226 = vector.shape_cast %225 : vector<2xf32> to vector<2x1xf32>
    %227 = vector.extract_strided_slice %206 {offsets = [0, 12, 0], sizes = [2, 16, 32], strides = [1, 1, 1]} : vector<2x32x32xf32> to vector<2x16x32xf32>
    %228 = arith.mulf %197, %227 : vector<2x16x32xf32>
    %cst_81 = arith.constant dense<0.000000e+00> : vector<2x16xf32>
    %229 = vector.multi_reduction <add>, %228, %cst_81 [2] : vector<2x16x32xf32> to vector<2x16xf32>
    %cst_82 = arith.constant dense<0.000000e+00> : vector<2xf32>
    %230 = vector.multi_reduction <add>, %229, %cst_82 [1] : vector<2x16xf32> to vector<2xf32>
    %231 = vector.shape_cast %230 : vector<2xf32> to vector<2x1xf32>
    %232 = vector.extract_strided_slice %206 {offsets = [0, 11, 0], sizes = [2, 16, 32], strides = [1, 1, 1]} : vector<2x32x32xf32> to vector<2x16x32xf32>
    %233 = arith.mulf %197, %232 : vector<2x16x32xf32>
    %cst_83 = arith.constant dense<0.000000e+00> : vector<2x16xf32>
    %234 = vector.multi_reduction <add>, %233, %cst_83 [2] : vector<2x16x32xf32> to vector<2x16xf32>
    %cst_84 = arith.constant dense<0.000000e+00> : vector<2xf32>
    %235 = vector.multi_reduction <add>, %234, %cst_84 [1] : vector<2x16xf32> to vector<2xf32>
    %236 = vector.shape_cast %235 : vector<2xf32> to vector<2x1xf32>
    %237 = vector.extract_strided_slice %206 {offsets = [0, 10, 0], sizes = [2, 16, 32], strides = [1, 1, 1]} : vector<2x32x32xf32> to vector<2x16x32xf32>
    %238 = arith.mulf %197, %237 : vector<2x16x32xf32>
    %cst_85 = arith.constant dense<0.000000e+00> : vector<2x16xf32>
    %239 = vector.multi_reduction <add>, %238, %cst_85 [2] : vector<2x16x32xf32> to vector<2x16xf32>
    %cst_86 = arith.constant dense<0.000000e+00> : vector<2xf32>
    %240 = vector.multi_reduction <add>, %239, %cst_86 [1] : vector<2x16xf32> to vector<2xf32>
    %241 = vector.shape_cast %240 : vector<2xf32> to vector<2x1xf32>
    %242 = vector.extract_strided_slice %206 {offsets = [0, 9, 0], sizes = [2, 16, 32], strides = [1, 1, 1]} : vector<2x32x32xf32> to vector<2x16x32xf32>
    %243 = arith.mulf %197, %242 : vector<2x16x32xf32>
    %cst_87 = arith.constant dense<0.000000e+00> : vector<2x16xf32>
    %244 = vector.multi_reduction <add>, %243, %cst_87 [2] : vector<2x16x32xf32> to vector<2x16xf32>
    %cst_88 = arith.constant dense<0.000000e+00> : vector<2xf32>
    %245 = vector.multi_reduction <add>, %244, %cst_88 [1] : vector<2x16xf32> to vector<2xf32>
    %246 = vector.shape_cast %245 : vector<2xf32> to vector<2x1xf32>
    %247 = vector.extract_strided_slice %206 {offsets = [0, 8, 0], sizes = [2, 16, 32], strides = [1, 1, 1]} : vector<2x32x32xf32> to vector<2x16x32xf32>
    %248 = arith.mulf %197, %247 : vector<2x16x32xf32>
    %cst_89 = arith.constant dense<0.000000e+00> : vector<2x16xf32>
    %249 = vector.multi_reduction <add>, %248, %cst_89 [2] : vector<2x16x32xf32> to vector<2x16xf32>
    %cst_90 = arith.constant dense<0.000000e+00> : vector<2xf32>
    %250 = vector.multi_reduction <add>, %249, %cst_90 [1] : vector<2x16xf32> to vector<2xf32>
    %251 = vector.shape_cast %250 : vector<2xf32> to vector<2x1xf32>
    %252 = vector.extract_strided_slice %206 {offsets = [0, 7, 0], sizes = [2, 16, 32], strides = [1, 1, 1]} : vector<2x32x32xf32> to vector<2x16x32xf32>
    %253 = arith.mulf %197, %252 : vector<2x16x32xf32>
    %cst_91 = arith.constant dense<0.000000e+00> : vector<2x16xf32>
    %254 = vector.multi_reduction <add>, %253, %cst_91 [2] : vector<2x16x32xf32> to vector<2x16xf32>
    %cst_92 = arith.constant dense<0.000000e+00> : vector<2xf32>
    %255 = vector.multi_reduction <add>, %254, %cst_92 [1] : vector<2x16xf32> to vector<2xf32>
    %256 = vector.shape_cast %255 : vector<2xf32> to vector<2x1xf32>
    %257 = vector.extract_strided_slice %206 {offsets = [0, 6, 0], sizes = [2, 16, 32], strides = [1, 1, 1]} : vector<2x32x32xf32> to vector<2x16x32xf32>
    %258 = arith.mulf %197, %257 : vector<2x16x32xf32>
    %cst_93 = arith.constant dense<0.000000e+00> : vector<2x16xf32>
    %259 = vector.multi_reduction <add>, %258, %cst_93 [2] : vector<2x16x32xf32> to vector<2x16xf32>
    %cst_94 = arith.constant dense<0.000000e+00> : vector<2xf32>
    %260 = vector.multi_reduction <add>, %259, %cst_94 [1] : vector<2x16xf32> to vector<2xf32>
    %261 = vector.shape_cast %260 : vector<2xf32> to vector<2x1xf32>
    %262 = vector.extract_strided_slice %206 {offsets = [0, 5, 0], sizes = [2, 16, 32], strides = [1, 1, 1]} : vector<2x32x32xf32> to vector<2x16x32xf32>
    %263 = arith.mulf %197, %262 : vector<2x16x32xf32>
    %cst_95 = arith.constant dense<0.000000e+00> : vector<2x16xf32>
    %264 = vector.multi_reduction <add>, %263, %cst_95 [2] : vector<2x16x32xf32> to vector<2x16xf32>
    %cst_96 = arith.constant dense<0.000000e+00> : vector<2xf32>
    %265 = vector.multi_reduction <add>, %264, %cst_96 [1] : vector<2x16xf32> to vector<2xf32>
    %266 = vector.shape_cast %265 : vector<2xf32> to vector<2x1xf32>
    %267 = vector.extract_strided_slice %206 {offsets = [0, 4, 0], sizes = [2, 16, 32], strides = [1, 1, 1]} : vector<2x32x32xf32> to vector<2x16x32xf32>
    %268 = arith.mulf %197, %267 : vector<2x16x32xf32>
    %cst_97 = arith.constant dense<0.000000e+00> : vector<2x16xf32>
    %269 = vector.multi_reduction <add>, %268, %cst_97 [2] : vector<2x16x32xf32> to vector<2x16xf32>
    %cst_98 = arith.constant dense<0.000000e+00> : vector<2xf32>
    %270 = vector.multi_reduction <add>, %269, %cst_98 [1] : vector<2x16xf32> to vector<2xf32>
    %271 = vector.shape_cast %270 : vector<2xf32> to vector<2x1xf32>
    %272 = vector.extract_strided_slice %206 {offsets = [0, 3, 0], sizes = [2, 16, 32], strides = [1, 1, 1]} : vector<2x32x32xf32> to vector<2x16x32xf32>
    %273 = arith.mulf %197, %272 : vector<2x16x32xf32>
    %cst_99 = arith.constant dense<0.000000e+00> : vector<2x16xf32>
    %274 = vector.multi_reduction <add>, %273, %cst_99 [2] : vector<2x16x32xf32> to vector<2x16xf32>
    %cst_100 = arith.constant dense<0.000000e+00> : vector<2xf32>
    %275 = vector.multi_reduction <add>, %274, %cst_100 [1] : vector<2x16xf32> to vector<2xf32>
    %276 = vector.shape_cast %275 : vector<2xf32> to vector<2x1xf32>
    %277 = vector.extract_strided_slice %206 {offsets = [0, 2, 0], sizes = [2, 16, 32], strides = [1, 1, 1]} : vector<2x32x32xf32> to vector<2x16x32xf32>
    %278 = arith.mulf %197, %277 : vector<2x16x32xf32>
    %cst_101 = arith.constant dense<0.000000e+00> : vector<2x16xf32>
    %279 = vector.multi_reduction <add>, %278, %cst_101 [2] : vector<2x16x32xf32> to vector<2x16xf32>
    %cst_102 = arith.constant dense<0.000000e+00> : vector<2xf32>
    %280 = vector.multi_reduction <add>, %279, %cst_102 [1] : vector<2x16xf32> to vector<2xf32>
    %281 = vector.shape_cast %280 : vector<2xf32> to vector<2x1xf32>
    %282 = vector.extract_strided_slice %206 {offsets = [0, 1, 0], sizes = [2, 16, 32], strides = [1, 1, 1]} : vector<2x32x32xf32> to vector<2x16x32xf32>
    %283 = arith.mulf %197, %282 : vector<2x16x32xf32>
    %cst_103 = arith.constant dense<0.000000e+00> : vector<2x16xf32>
    %284 = vector.multi_reduction <add>, %283, %cst_103 [2] : vector<2x16x32xf32> to vector<2x16xf32>
    %cst_104 = arith.constant dense<0.000000e+00> : vector<2xf32>
    %285 = vector.multi_reduction <add>, %284, %cst_104 [1] : vector<2x16xf32> to vector<2xf32>
    %286 = vector.shape_cast %285 : vector<2xf32> to vector<2x1xf32>
    %287 = tpu.concatenate %211, %216, %221, %226, %231, %236, %241, %246, %251, %256, %261, %266, %271, %276, %281, %286 in 1 : vector<2x1xf32>, vector<2x1xf32>, vector<2x1xf32>, vector<2x1xf32>, vector<2x1xf32>, vector<2x1xf32>, vector<2x1xf32>, vector<2x1xf32>, vector<2x1xf32>, vector<2x1xf32>, vector<2x1xf32>, vector<2x1xf32>, vector<2x1xf32>, vector<2x1xf32>, vector<2x1xf32>, vector<2x1xf32> -> vector<2x16xf32>
    %cst_105 = arith.constant 3.125000e-02 : f32
    %288 = vector.broadcast %cst_105 : f32 to vector<2x16xf32>
    %289 = arith.mulf %287, %288 : vector<2x16xf32>
    %290 = tpu.iota {dimensions = array<i32: 1>} : vector<2x16xi32>
    %cst_106 = arith.constant dense<0xFF800000> : vector<2xf32>
    %291 = vector.multi_reduction <maximumf>, %289, %cst_106 [1] : vector<2x16xf32> to vector<2xf32>
    %292 = vector.shape_cast %291 : vector<2xf32> to vector<2x1xf32>
    %293 = vector.broadcast %292 : vector<2x1xf32> to vector<2x16xf32>
    %294 = arith.cmpf oeq, %289, %293 : vector<2x16xf32>
    %c16_i32_107 = arith.constant 16 : i32
    %295 = vector.broadcast %c16_i32_107 : i32 to vector<2x16xi32>
    %296 = arith.select %294, %290, %295 : vector<2x16xi1>, vector<2x16xi32>
    %cst_108 = arith.constant dense<2147483647> : vector<2xi32>
    %297 = vector.multi_reduction <minsi>, %296, %cst_108 [1] : vector<2x16xi32> to vector<2xi32>
    %298 = vector.shape_cast %297 : vector<2xi32> to vector<2x1xi32>
    %299 = vector.broadcast %298 : vector<2x1xi32> to vector<2x16xi32>
    %300 = arith.cmpi eq, %290, %299 : vector<2x16xi32>
    %cst_109 = arith.constant -1.000000e+30 : f32
    %301 = vector.broadcast %cst_109 : f32 to vector<2x16xf32>
    %302 = arith.select %300, %301, %289 : vector<2x16xi1>, vector<2x16xf32>
    %cst_110 = arith.constant dense<0xFF800000> : vector<2xf32>
    %303 = vector.multi_reduction <maximumf>, %302, %cst_110 [1] : vector<2x16xf32> to vector<2xf32>
    %304 = vector.shape_cast %303 : vector<2xf32> to vector<2x1xf32>
    %305 = vector.broadcast %304 : vector<2x1xf32> to vector<2x16xf32>
    %306 = arith.cmpf oeq, %302, %305 : vector<2x16xf32>
    %c16_i32_111 = arith.constant 16 : i32
    %307 = vector.broadcast %c16_i32_111 : i32 to vector<2x16xi32>
    %308 = arith.select %306, %290, %307 : vector<2x16xi1>, vector<2x16xi32>
    %cst_112 = arith.constant dense<2147483647> : vector<2xi32>
    %309 = vector.multi_reduction <minsi>, %308, %cst_112 [1] : vector<2x16xi32> to vector<2xi32>
    %310 = vector.shape_cast %309 : vector<2xi32> to vector<2x1xi32>
    %311 = tpu.concatenate %292, %304 in 1 : vector<2x1xf32>, vector<2x1xf32> -> vector<2x2xf32>
    %312 = vector.broadcast %292 : vector<2x1xf32> to vector<2x2xf32>
    %313 = arith.subf %311, %312 : vector<2x2xf32>
    %314 = math.exp %313 : vector<2x2xf32>
    %cst_113 = arith.constant dense<0.000000e+00> : vector<2xf32>
    %315 = vector.multi_reduction <add>, %314, %cst_113 [1] : vector<2x2xf32> to vector<2xf32>
    %316 = vector.shape_cast %315 : vector<2xf32> to vector<2x1xf32>
    %317 = vector.broadcast %316 : vector<2x1xf32> to vector<2x2xf32>
    %318 = arith.divf %314, %317 : vector<2x2xf32>
    %319 = tpu.iota {dimensions = array<i32: 0>} : vector<16x16xi32>
    %320 = tpu.iota {dimensions = array<i32: 1>} : vector<16x16xi32>
    %321 = arith.subi %320, %319 : vector<16x16xi32>
    %c0_i32_114 = arith.constant 0 : i32
    %322 = vector.broadcast %c0_i32_114 : i32 to vector<16x16xi32>
    %323 = arith.cmpi slt, %321, %322 : vector<16x16xi32>
    %c16_i32_115 = arith.constant 16 : i32
    %324 = vector.broadcast %c16_i32_115 : i32 to vector<16x16xi32>
    %325 = arith.addi %321, %324 : vector<16x16xi32>
    %326 = arith.select %323, %325, %321 : vector<16x16xi1>, vector<16x16xi32>
    %cst_116 = arith.constant 0.000000e+00 : f32
    %327 = vector.broadcast %cst_116 : f32 to vector<2x16x16xf32>
    %328 = vector.shape_cast %326 : vector<16x16xi32> to vector<1x16x16xi32>
    %329 = vector.shape_cast %298 : vector<2x1xi32> to vector<2x1x1xi32>
    %330 = vector.broadcast %328 : vector<1x16x16xi32> to vector<2x16x16xi32>
    %331 = vector.broadcast %329 : vector<2x1x1xi32> to vector<2x16x16xi32>
    %332 = arith.cmpi eq, %330, %331 : vector<2x16x16xi32>
    %333 = arith.extui %332 : vector<2x16x16xi1> to vector<2x16x16xi32>
    %334 = arith.sitofp %333 : vector<2x16x16xi32> to vector<2x16x16xf32>
    %335 = vector.extract_strided_slice %318 {offsets = [0, 0], sizes = [2, 1], strides = [1, 1]} : vector<2x2xf32> to vector<2x1xf32>
    %336 = vector.shape_cast %335 : vector<2x1xf32> to vector<2x1x1xf32>
    %337 = vector.broadcast %336 : vector<2x1x1xf32> to vector<2x16x16xf32>
    %338 = arith.mulf %337, %334 : vector<2x16x16xf32>
    %339 = arith.addf %327, %338 : vector<2x16x16xf32>
    %340 = vector.shape_cast %326 : vector<16x16xi32> to vector<1x16x16xi32>
    %341 = vector.shape_cast %310 : vector<2x1xi32> to vector<2x1x1xi32>
    %342 = vector.broadcast %340 : vector<1x16x16xi32> to vector<2x16x16xi32>
    %343 = vector.broadcast %341 : vector<2x1x1xi32> to vector<2x16x16xi32>
    %344 = arith.cmpi eq, %342, %343 : vector<2x16x16xi32>
    %345 = arith.extui %344 : vector<2x16x16xi1> to vector<2x16x16xi32>
    %346 = arith.sitofp %345 : vector<2x16x16xi32> to vector<2x16x16xf32>
    %347 = vector.extract_strided_slice %318 {offsets = [0, 1], sizes = [2, 1], strides = [1, 1]} : vector<2x2xf32> to vector<2x1xf32>
    %348 = vector.shape_cast %347 : vector<2x1xf32> to vector<2x1x1xf32>
    %349 = vector.broadcast %348 : vector<2x1x1xf32> to vector<2x16x16xf32>
    %350 = arith.mulf %349, %346 : vector<2x16x16xf32>
    %351 = arith.addf %339, %350 : vector<2x16x16xf32>
    "tpu.trace_start"() <{level = 10 : i32, message = "bts,bsd->btd"}> : () -> ()
    %cst_117 = arith.constant dense<0.000000e+00> : vector<2x16x32xf32>
    %352 = tpu.matmul %351, %205, %cst_117 {dimension_numbers = #tpu.dot_dimension_numbers<[2], [1], [1], [2], [0, 0, 0, 1, 1, 2], [0], [0]>} : vector<2x16x16xf32>, vector<2x16x32xf32>, vector<2x16x32xf32> -> vector<2x16x32xf32>
    "tpu.trace_stop"() : () -> ()
    %353 = vector.shape_cast %352 : vector<2x16x32xf32> to vector<32x32xf32>
    %c0_118 = arith.constant 0 : index
    %c0_119 = arith.constant 0 : index
    %354 = vector.load %arg13[%c0_118, %c0_119] : memref<32x32xf32, #tpu.memory_space<vmem>>, vector<32x32xf32>
    %cst_120 = arith.constant dense<0.000000e+00> : vector<32x32xf32>
    %355 = tpu.matmul %353, %354, %cst_120 {dimension_numbers = #tpu.dot_dimension_numbers<[1], [0], [0], [1], [0, 0, 1, 1], [], []>} : vector<32x32xf32>, vector<32x32xf32>, vector<32x32xf32> -> vector<32x32xf32>
    %c0_121 = arith.constant 0 : index
    %c0_122 = arith.constant 0 : index
    %356 = vector.load %arg14[%c0_121, %c0_122] : memref<1x32xf32, #tpu.memory_space<vmem>>, vector<1x32xf32>
    %357 = vector.broadcast %356 : vector<1x32xf32> to vector<32x32xf32>
    %358 = arith.addf %355, %357 : vector<32x32xf32>
    %359 = vector.shape_cast %358 : vector<32x32xf32> to vector<2x16x32xf32>
    %360 = arith.addf %188, %359 : vector<2x16x32xf32>
    %361 = vector.extract_strided_slice %360 {offsets = [0, 0, 0], sizes = [2, 1, 32], strides = [1, 1, 1]} : vector<2x16x32xf32> to vector<2x1x32xf32>
    %362 = vector.extract_strided_slice %360 {offsets = [0, 15, 0], sizes = [2, 1, 32], strides = [1, 1, 1]} : vector<2x16x32xf32> to vector<2x1x32xf32>
    %363 = tpu.concatenate %361, %361, %360, %362, %362 in 1 : vector<2x1x32xf32>, vector<2x1x32xf32>, vector<2x16x32xf32>, vector<2x1x32xf32>, vector<2x1x32xf32> -> vector<2x20x32xf32>
    %364 = vector.extract_strided_slice %363 {offsets = [0, 0, 0], sizes = [2, 16, 32], strides = [1, 1, 1]} : vector<2x20x32xf32> to vector<2x16x32xf32>
    %365 = vector.extract_strided_slice %363 {offsets = [0, 1, 0], sizes = [2, 16, 32], strides = [1, 1, 1]} : vector<2x20x32xf32> to vector<2x16x32xf32>
    %366 = arith.addf %364, %365 : vector<2x16x32xf32>
    %367 = vector.extract_strided_slice %363 {offsets = [0, 2, 0], sizes = [2, 16, 32], strides = [1, 1, 1]} : vector<2x20x32xf32> to vector<2x16x32xf32>
    %368 = arith.addf %366, %367 : vector<2x16x32xf32>
    %369 = vector.extract_strided_slice %363 {offsets = [0, 3, 0], sizes = [2, 16, 32], strides = [1, 1, 1]} : vector<2x20x32xf32> to vector<2x16x32xf32>
    %370 = arith.addf %368, %369 : vector<2x16x32xf32>
    %371 = vector.extract_strided_slice %363 {offsets = [0, 4, 0], sizes = [2, 16, 32], strides = [1, 1, 1]} : vector<2x20x32xf32> to vector<2x16x32xf32>
    %372 = arith.addf %370, %371 : vector<2x16x32xf32>
    %cst_123 = arith.constant 2.000000e-01 : f32
    %373 = vector.broadcast %cst_123 : f32 to vector<2x16x32xf32>
    %374 = arith.mulf %372, %373 : vector<2x16x32xf32>
    %375 = arith.subf %360, %374 : vector<2x16x32xf32>
    %376 = vector.shape_cast %375 : vector<2x16x32xf32> to vector<32x32xf32>
    %c0_124 = arith.constant 0 : index
    %c0_125 = arith.constant 0 : index
    %377 = vector.load %arg15[%c0_124, %c0_125] : memref<32x64xf32, #tpu.memory_space<vmem>>, vector<32x64xf32>
    %cst_126 = arith.constant dense<0.000000e+00> : vector<32x64xf32>
    %378 = tpu.matmul %376, %377, %cst_126 {dimension_numbers = #tpu.dot_dimension_numbers<[1], [0], [0], [1], [0, 0, 1, 1], [], []>} : vector<32x32xf32>, vector<32x64xf32>, vector<32x64xf32> -> vector<32x64xf32>
    %cst_127 = arith.constant 0.000000e+00 : f32
    %379 = vector.broadcast %cst_127 : f32 to vector<32x64xf32>
    %380 = arith.maximumf %378, %379 : vector<32x64xf32>
    %c0_128 = arith.constant 0 : index
    %c0_129 = arith.constant 0 : index
    %381 = vector.load %arg16[%c0_128, %c0_129] : memref<64x32xf32, #tpu.memory_space<vmem>>, vector<64x32xf32>
    %cst_130 = arith.constant dense<0.000000e+00> : vector<32x32xf32>
    %382 = tpu.matmul %380, %381, %cst_130 {dimension_numbers = #tpu.dot_dimension_numbers<[1], [0], [0], [1], [0, 0, 1, 1], [], []>} : vector<32x64xf32>, vector<64x32xf32>, vector<32x32xf32> -> vector<32x32xf32>
    %383 = vector.shape_cast %382 : vector<32x32xf32> to vector<2x16x32xf32>
    %384 = arith.addf %375, %383 : vector<2x16x32xf32>
    %385 = vector.extract_strided_slice %384 {offsets = [0, 0, 0], sizes = [2, 1, 32], strides = [1, 1, 1]} : vector<2x16x32xf32> to vector<2x1x32xf32>
    %386 = vector.extract_strided_slice %384 {offsets = [0, 15, 0], sizes = [2, 1, 32], strides = [1, 1, 1]} : vector<2x16x32xf32> to vector<2x1x32xf32>
    %387 = tpu.concatenate %385, %385, %384, %386, %386 in 1 : vector<2x1x32xf32>, vector<2x1x32xf32>, vector<2x16x32xf32>, vector<2x1x32xf32>, vector<2x1x32xf32> -> vector<2x20x32xf32>
    %388 = vector.extract_strided_slice %387 {offsets = [0, 0, 0], sizes = [2, 16, 32], strides = [1, 1, 1]} : vector<2x20x32xf32> to vector<2x16x32xf32>
    %389 = vector.extract_strided_slice %387 {offsets = [0, 1, 0], sizes = [2, 16, 32], strides = [1, 1, 1]} : vector<2x20x32xf32> to vector<2x16x32xf32>
    %390 = arith.addf %388, %389 : vector<2x16x32xf32>
    %391 = vector.extract_strided_slice %387 {offsets = [0, 2, 0], sizes = [2, 16, 32], strides = [1, 1, 1]} : vector<2x20x32xf32> to vector<2x16x32xf32>
    %392 = arith.addf %390, %391 : vector<2x16x32xf32>
    %393 = vector.extract_strided_slice %387 {offsets = [0, 3, 0], sizes = [2, 16, 32], strides = [1, 1, 1]} : vector<2x20x32xf32> to vector<2x16x32xf32>
    %394 = arith.addf %392, %393 : vector<2x16x32xf32>
    %395 = vector.extract_strided_slice %387 {offsets = [0, 4, 0], sizes = [2, 16, 32], strides = [1, 1, 1]} : vector<2x20x32xf32> to vector<2x16x32xf32>
    %396 = arith.addf %394, %395 : vector<2x16x32xf32>
    %cst_131 = arith.constant 2.000000e-01 : f32
    %397 = vector.broadcast %cst_131 : f32 to vector<2x16x32xf32>
    %398 = arith.mulf %396, %397 : vector<2x16x32xf32>
    %399 = arith.subf %384, %398 : vector<2x16x32xf32>
    %c0_132 = arith.constant 0 : index
    %c0_133 = arith.constant 0 : index
    %c0_134 = arith.constant 0 : index
    %400 = vector.load %arg18[%c0_132, %c0_133, %c0_134] : memref<2x16x32xf32, #tpu.memory_space<vmem>>, vector<2x16x32xf32>
    tpu.vector_store %arg18[%c0_132, %c0_133, %c0_134], %399 {strides = array<i32>} : memref<2x16x32xf32, #tpu.memory_space<vmem>>, vector<2x16x32xf32>,
    %401 = arith.addf %187, %374 : vector<2x16x32xf32>
    %402 = arith.addf %401, %398 : vector<2x16x32xf32>
    %403 = vector.extract_strided_slice %402 {offsets = [0, 15, 0], sizes = [2, 1, 32], strides = [1, 1, 1]} : vector<2x16x32xf32> to vector<2x1x32xf32>
    %404 = vector.extract_strided_slice %402 {offsets = [0, 0, 0], sizes = [2, 15, 32], strides = [1, 1, 1]} : vector<2x16x32xf32> to vector<2x15x32xf32>
    %405 = tpu.concatenate %403, %404 in 1 : vector<2x1x32xf32>, vector<2x15x32xf32> -> vector<2x16x32xf32>
    %406 = vector.extract_strided_slice %402 {offsets = [0, 1, 0], sizes = [2, 15, 32], strides = [1, 1, 1]} : vector<2x16x32xf32> to vector<2x15x32xf32>
    %407 = vector.extract_strided_slice %402 {offsets = [0, 0, 0], sizes = [2, 1, 32], strides = [1, 1, 1]} : vector<2x16x32xf32> to vector<2x1x32xf32>
    %408 = tpu.concatenate %406, %407 in 1 : vector<2x15x32xf32>, vector<2x1x32xf32> -> vector<2x16x32xf32>
    %409 = tpu.concatenate %405, %402, %408 in 2 : vector<2x16x32xf32>, vector<2x16x32xf32>, vector<2x16x32xf32> -> vector<2x16x96xf32>
    %410 = vector.shape_cast %409 : vector<2x16x96xf32> to vector<32x96xf32>
    %c0_135 = arith.constant 0 : index
    %c0_136 = arith.constant 0 : index
    %411 = vector.load %arg17[%c0_135, %c0_136] : memref<96x4xf32, #tpu.memory_space<vmem>>, vector<96x4xf32>
    %cst_137 = arith.constant dense<0.000000e+00> : vector<32x4xf32>
    %412 = tpu.matmul %410, %411, %cst_137 {dimension_numbers = #tpu.dot_dimension_numbers<[1], [0], [0], [1], [0, 0, 1, 1], [], []>} : vector<32x96xf32>, vector<96x4xf32>, vector<32x4xf32> -> vector<32x4xf32>
    %c0_138 = arith.constant 0 : index
    %c0_139 = arith.constant 0 : index
    %c0_140 = arith.constant 0 : index
    %413 = vector.load %arg2[%c0_138, %c0_139, %c0_140] : memref<2x16x4xf32, #tpu.memory_space<vmem>>, vector<2x16x4xf32>
    %414 = vector.shape_cast %412 : vector<32x4xf32> to vector<2x16x4xf32>
    %415 = arith.addf %413, %414 : vector<2x16x4xf32>
    %c0_141 = arith.constant 0 : index
    %c0_142 = arith.constant 0 : index
    %c0_143 = arith.constant 0 : index
    %416 = vector.load %arg19[%c0_141, %c0_142, %c0_143] : memref<2x16x4xf32, #tpu.memory_space<vmem>>, vector<2x16x4xf32>
    tpu.vector_store %arg19[%c0_141, %c0_142, %c0_143], %415 {strides = array<i32>} : memref<2x16x4xf32, #tpu.memory_space<vmem>>, vector<2x16x4xf32>,
    return
  }
}

module attributes {stable_mosaic.version = 11 : i64} {
  func.func @_final_kernel(%arg0: memref<2x16x32xf32, #tpu.memory_space<vmem>>, %arg1: memref<2x16x4xf32, #tpu.memory_space<vmem>>, %arg2: memref<1x32xf32, #tpu.memory_space<vmem>>, %arg3: memref<1x32xf32, #tpu.memory_space<vmem>>, %arg4: memref<32x4xf32, #tpu.memory_space<vmem>>, %arg5: memref<1x4xf32, #tpu.memory_space<vmem>>, %arg6: memref<2x8x4xf32, #tpu.memory_space<vmem>>) attributes {dimension_semantics = [], scalar_prefetch = 0 : i64, scratch_operands = 0 : i64, tpu.core_type = #tpu.core_type<tc>} {
    %c0 = arith.constant 0 : index
    %c0_0 = arith.constant 0 : index
    %c0_1 = arith.constant 0 : index
    %0 = vector.load %arg0[%c0, %c0_0, %c0_1] : memref<2x16x32xf32, #tpu.memory_space<vmem>>, vector<2x16x32xf32>
    %c0_2 = arith.constant 0 : index
    %c0_3 = arith.constant 0 : index
    %1 = vector.load %arg2[%c0_2, %c0_3] : memref<1x32xf32, #tpu.memory_space<vmem>>, vector<1x32xf32>
    %c0_4 = arith.constant 0 : index
    %c0_5 = arith.constant 0 : index
    %2 = vector.load %arg3[%c0_4, %c0_5] : memref<1x32xf32, #tpu.memory_space<vmem>>, vector<1x32xf32>
    %cst = arith.constant dense<0.000000e+00> : vector<2x16xf32>
    %3 = vector.multi_reduction <add>, %0, %cst [2] : vector<2x16x32xf32> to vector<2x16xf32>
    %4 = vector.shape_cast %3 : vector<2x16xf32> to vector<2x16x1xf32>
    %cst_6 = arith.constant 3.200000e+01 : f32
    %5 = vector.broadcast %cst_6 : f32 to vector<2x16x1xf32>
    %6 = arith.divf %4, %5 : vector<2x16x1xf32>
    %7 = vector.broadcast %6 : vector<2x16x1xf32> to vector<2x16x32xf32>
    %8 = arith.subf %0, %7 : vector<2x16x32xf32>
    %9 = arith.mulf %8, %8 : vector<2x16x32xf32>
    %cst_7 = arith.constant dense<0.000000e+00> : vector<2x16xf32>
    %10 = vector.multi_reduction <add>, %9, %cst_7 [2] : vector<2x16x32xf32> to vector<2x16xf32>
    %11 = vector.shape_cast %10 : vector<2x16xf32> to vector<2x16x1xf32>
    %cst_8 = arith.constant 3.200000e+01 : f32
    %12 = vector.broadcast %cst_8 : f32 to vector<2x16x1xf32>
    %13 = arith.divf %11, %12 : vector<2x16x1xf32>
    %14 = vector.broadcast %6 : vector<2x16x1xf32> to vector<2x16x32xf32>
    %15 = arith.subf %0, %14 : vector<2x16x32xf32>
    %cst_9 = arith.constant 9.99999974E-6 : f32
    %16 = vector.broadcast %cst_9 : f32 to vector<2x16x1xf32>
    %17 = arith.addf %13, %16 : vector<2x16x1xf32>
    %18 = math.rsqrt %17 : vector<2x16x1xf32>
    %19 = vector.broadcast %18 : vector<2x16x1xf32> to vector<2x16x32xf32>
    %20 = arith.mulf %15, %19 : vector<2x16x32xf32>
    %21 = vector.shape_cast %1 : vector<1x32xf32> to vector<1x1x32xf32>
    %22 = vector.broadcast %21 : vector<1x1x32xf32> to vector<2x16x32xf32>
    %23 = arith.mulf %20, %22 : vector<2x16x32xf32>
    %24 = vector.shape_cast %2 : vector<1x32xf32> to vector<1x1x32xf32>
    %25 = vector.broadcast %24 : vector<1x1x32xf32> to vector<2x16x32xf32>
    %26 = arith.addf %23, %25 : vector<2x16x32xf32>
    %cst_10 = arith.constant dense<0.000000e+00> : vector<2x32xf32>
    %27 = vector.multi_reduction <add>, %26, %cst_10 [1] : vector<2x16x32xf32> to vector<2x32xf32>
    %28 = vector.shape_cast %27 : vector<2x32xf32> to vector<2x1x32xf32>
    %cst_11 = arith.constant 1.600000e+01 : f32
    %29 = vector.broadcast %cst_11 : f32 to vector<2x1x32xf32>
    %30 = arith.divf %28, %29 : vector<2x1x32xf32>
    %31 = vector.broadcast %30 : vector<2x1x32xf32> to vector<2x16x32xf32>
    %32 = arith.subf %26, %31 : vector<2x16x32xf32>
    %33 = vector.shape_cast %32 : vector<2x16x32xf32> to vector<32x32xf32>
    %c0_12 = arith.constant 0 : index
    %c0_13 = arith.constant 0 : index
    %34 = vector.load %arg4[%c0_12, %c0_13] : memref<32x4xf32, #tpu.memory_space<vmem>>, vector<32x4xf32>
    %cst_14 = arith.constant dense<0.000000e+00> : vector<32x4xf32>
    %35 = tpu.matmul %33, %34, %cst_14 {dimension_numbers = #tpu.dot_dimension_numbers<[1], [0], [0], [1], [0, 0, 1, 1], [], []>} : vector<32x32xf32>, vector<32x4xf32>, vector<32x4xf32> -> vector<32x4xf32>
    %c0_15 = arith.constant 0 : index
    %c0_16 = arith.constant 0 : index
    %36 = vector.load %arg5[%c0_15, %c0_16] : memref<1x4xf32, #tpu.memory_space<vmem>>, vector<1x4xf32>
    %37 = vector.broadcast %36 : vector<1x4xf32> to vector<32x4xf32>
    %38 = arith.addf %35, %37 : vector<32x4xf32>
    %c0_17 = arith.constant 0 : index
    %c0_18 = arith.constant 0 : index
    %c0_19 = arith.constant 0 : index
    %39 = vector.load %arg1[%c0_17, %c0_18, %c0_19] : memref<2x16x4xf32, #tpu.memory_space<vmem>>, vector<2x16x4xf32>
    %40 = vector.shape_cast %38 : vector<32x4xf32> to vector<2x16x4xf32>
    %41 = arith.addf %39, %40 : vector<2x16x4xf32>
    %42 = vector.extract_strided_slice %41 {offsets = [0, 8, 0], sizes = [2, 8, 4], strides = [1, 1, 1]} : vector<2x16x4xf32> to vector<2x8x4xf32>
    %c0_20 = arith.constant 0 : index
    %c0_21 = arith.constant 0 : index
    %c0_22 = arith.constant 0 : index
    %43 = vector.load %arg6[%c0_20, %c0_21, %c0_22] : memref<2x8x4xf32, #tpu.memory_space<vmem>>, vector<2x8x4xf32>
    tpu.vector_store %arg6[%c0_20, %c0_21, %c0_22], %42 {strides = array<i32>} : memref<2x8x4xf32, #tpu.memory_space<vmem>>, vector<2x8x4xf32>,
    return
  }
}

</mosaic_0001>

<llo_original>
// kernel: _lambda_.5
$region0: #{_lambda_.5}
  #allocation0 [shape = 'u32[]', space=smem, size = 0x4, offset = 0x4, fixed_abs, tag = 'smem constant byte address 0x4 - core index']
  #allocation1 [shape = 'u32[144,128]{1,0:T(1,128)}', space=vmem, size = 0x12000, scoped, tag = 'internal scratch']
  %s0 = inlined_call_operand.vmem [shape: f32[2,16,4], index: 0, kind: input, shape index: {}]
  %s1 = inlined_call_operand.vmem [shape: f32[2,16,4], index: 1, kind: input, shape index: {}]
  %s2 = inlined_call_operand.vmem [shape: f32[12,32], index: 2, kind: input, shape index: {}]
  %s3 = inlined_call_operand.vmem [shape: f32[4,32], index: 3, kind: input, shape index: {}]
  %s4 = inlined_call_operand.vmem [shape: f32[2,16,32], index: 4, kind: output, shape index: {}]
  %s5 = sld [smem:[#allocation0]]
  $region26: #{_lambda_.5} parent=0
    _
  %s7 = ssub.s32 1, %s5
  %s8 = scalar_select 0, %s7, %s5
  // Predicated region
  $region2: #{_lambda_.5} parent=0 // pred_check
    _
  $region3: #{_lambda_.5} parent=0 // pred_check_branch
    %10 = sbr.rel (0) target = $region5
  $region4: #{_lambda_.5} parent=0 // pred_region
    _
  $region5: #{_lambda_.5} parent=0 // pred_fallthru
    _
  // Predicated region
  $region6: #{_lambda_.5} parent=0 // pred_check
    _
  $region7: #{_lambda_.5} parent=0 // pred_check_branch
    %12 = sbr.rel (0) target = $region9
  $region8: #{_lambda_.5} parent=0 // pred_region
    _
  $region9: #{_lambda_.5} parent=0 // pred_fallthru
    _
  // Predicated region
  $region10: #{_lambda_.5} parent=0 // pred_check
    _
  $region11: #{_lambda_.5} parent=0 // pred_check_branch
    %14 = sbr.rel (0) target = $region13
  $region12: #{_lambda_.5} parent=0 // pred_region
    _
  $region13: #{_lambda_.5} parent=0 // pred_fallthru
    _
  // Predicated region
  $region14: #{_lambda_.5} parent=0 // pred_check
    _
  $region15: #{_lambda_.5} parent=0 // pred_check_branch
    %16 = sbr.rel (0) target = $region17
  $region16: #{_lambda_.5} parent=0 // pred_region
    _
  $region17: #{_lambda_.5} parent=0 // pred_fallthru
    _
  %v17 = vld [vmem:[%s0] sm:$0xff]
  %v18 = vld [vmem:[%s0 + $0x8] sm:$0xff]
  %v19 = vld [vmem:[%s0 + $0x10] sm:$0xff]
  %v20 = vld [vmem:[%s0 + $0x18] sm:$0xff]
  %v23 = vrot.slane %v18, 7
  %v24 = vrot.slane %v20, 7
  %vm29 = vcmask 1040384
  %v30 = vrot.slane %v17, 7
  %v31 = vsel %vm29, %v30, %v23
  %v32 = vrot.slane %v19, 7
  %v33 = vsel %vm29, %v32, %v24
  %v38 = vsel %vm29, %v23, %v30
  %v39 = vsel %vm29, %v24, %v32
  %vm40 = vcmask 1046528
  %v41 = vrot.slane %v17, 1
  %v42 = vrot.slane %v18, 1
  %v43 = vsel %vm40, %v41, %v42
  %v44 = vrot.slane %v19, 1
  %v45 = vrot.slane %v20, 1
  %v46 = vsel %vm40, %v44, %v45
  %v51 = vsel %vm40, %v42, %v41
  %v52 = vsel %vm40, %v45, %v44
  %53 = vrot.lane.b32.xlu0 %v17, 4
  %v54 = vpop.permute.xlu0 %53
  %55 = vrot.lane.b32.xlu0 %v18, 4
  %v56 = vpop.permute.xlu0 %55
  %57 = vrot.lane.b32.xlu0 %v19, 4
  %v58 = vpop.permute.xlu0 %57
  %59 = vrot.lane.b32.xlu0 %v20, 4
  %v60 = vpop.permute.xlu0 %59
  %67 = vrot.lane.b32.xlu0 %v43, 8
  %v68 = vpop.permute.xlu0 %67
  %69 = vrot.lane.b32.xlu0 %v51, 8
  %v70 = vpop.permute.xlu0 %69
  %71 = vrot.lane.b32.xlu0 %v46, 8
  %v72 = vpop.permute.xlu0 %71
  %73 = vrot.lane.b32.xlu0 %v52, 8
  %v74 = vpop.permute.xlu0 %73
  %vm79 = vcmask 31744
  %v80 = vsel %vm79, %v38, %v54
  %v81 = vsel %vm79, %v31, %v56
  %v82 = vsel %vm79, %v39, %v58
  %v83 = vsel %vm79, %v33, %v60
  %vm84 = vcmask 64512
  %v85 = vsel %vm84, %v80, %v68
  %v86 = vsel %vm84, %v81, %v70
  %v87 = vsel %vm84, %v82, %v72
  %v88 = vsel %vm84, %v83, %v74
  %v89 = vld [vmem:[%s2] sm:$0xff]
  %v90 = vld [vmem:[%s2 + $0x8] sm:$0xf]
  %v91 = vld [vmem:[%s1] sm:$0xff]
  %v92 = vld [vmem:[%s1 + $0x8] sm:$0xff]
  %v93 = vld [vmem:[%s1 + $0x10] sm:$0xff]
  %v94 = vld [vmem:[%s1 + $0x18] sm:$0xff]
  %v95 = vld [vmem:[%s3] sm:$0xf]
  %v97 = vsel %vm79, %v91, 0
  %v100 = vsel %vm79, %v92, 0
  %v103 = vsel %vm79, %v93, 0
  %v106 = vsel %vm79, %v94, 0
  %vm108 = vcmask 1043456
  %v110 = vsel %vm108, %v95, 0
  %112 = vmatprep.subr.mxu0 0.0
  %113 = vmatpush1.msra.mxu0 %v110
  %114 = vmatprep.subr.mxu0 0.0
  %115 = vmatpush1.msra.mxu0 0.0
  %116 = vmatprep.subr.mxu0 0.0
  %117 = vmatpush1.msra.mxu0 0.0
  %118 = vmatprep.subr.mxu0 0.0
  %119 = vmatpush1.msra.mxu0 0.0
  %120 = vmatprep.subr.mxu0 0.0
  %121 = vmatpush1.msra.mxu0 0.0
  %122 = vmatprep.subr.mxu0 0.0
  %123 = vmatpush1.msra.mxu0 0.0
  %124 = vmatprep.subr.mxu0 0.0
  %125 = vmatpush1.msra.mxu0 0.0
  %126 = vmatprep.subr.mxu0 0.0
  %127 = vmatpush1.msra.mxu0 0.0
  %128 = vmatprep.subr.mxu0 0.0
  %129 = vmatpush1.msra.mxu0 0.0
  %130 = vmatprep.subr.mxu0 0.0
  %131 = vmatpush1.msra.mxu0 0.0
  %132 = vmatprep.subr.mxu0 0.0
  %133 = vmatpush1.msra.mxu0 0.0
  %134 = vmatprep.subr.mxu0 0.0
  %135 = vmatpush1.msra.mxu0 0.0
  %136 = vmatprep.subr.mxu0 0.0
  %137 = vmatpush1.msra.mxu0 0.0
  %138 = vmatprep.subr.mxu0 0.0
  %139 = vmatpush1.msra.mxu0 0.0
  %140 = vmatprep.subr.mxu0 0.0
  %141 = vmatpush1.msra.mxu0 0.0
  %142 = vmatprep.subr.mxu0 0.0
  %143 = vmatpush1.msra.mxu0 0.0
  %144 = vmatprep.subr.mxu0 0.0
  %145 = vmatpush1.msra.mxu0 0.0
  %146 = vmatprep.subr.mxu0 0.0
  %147 = vmatpush1.msra.mxu0 0.0
  %148 = vmatprep.subr.mxu0 0.0
  %149 = vmatpush1.msra.mxu0 0.0
  %150 = vmatprep.subr.mxu0 0.0
  %151 = vmatpush1.msra.mxu0 0.0
  %152 = vmatprep.subr.mxu0 0.0
  %153 = vmatpush1.msra.mxu0 0.0
  %154 = vmatprep.subr.mxu0 0.0
  %155 = vmatpush1.msra.mxu0 0.0
  %156 = vmatprep.subr.mxu0 0.0
  %157 = vmatpush1.msra.mxu0 0.0
  %158 = vmatprep.subr.mxu0 0.0
  %159 = vmatpush1.msra.mxu0 0.0
  %160 = vmatprep.subr.mxu0 0.0
  %161 = vmatpush1.msra.mxu0 0.0
  %162 = vmatprep.subr.mxu0 0.0
  %163 = vmatpush1.msra.mxu0 0.0
  %164 = vmatprep.subr.mxu0 0.0
  %165 = vmatpush1.msra.mxu0 0.0
  %166 = vmatprep.subr.mxu0 0.0
  %167 = vmatpush1.msra.mxu0 0.0
  %168 = vmatprep.subr.mxu0 0.0
  %169 = vmatpush1.msra.mxu0 0.0
  %170 = vmatprep.subr.mxu0 0.0
  %171 = vmatpush1.msra.mxu0 0.0
  %172 = vmatprep.subr.mxu0 0.0
  %173 = vmatpush1.msra.mxu0 0.0
  %174 = vmatprep.subr.mxu0 0.0
  %175 = vmatpush1.msra.mxu0 0.0
  %176 = vmatprep.mubr.f32.mxu0 0.0
  %177 = vmatmul.mubr.f32.gmra.mrb[0].mxu0 %v97
  %v178 = vpop.f32.mrb[0].mxu0
  %v179 = vadd.f32 0.0, %v178
  %v180 = vpop.f32.mrb[0].mxu0
  %181 = vmatprep.mubr.f32.mxu0 0.0
  %182 = vmatmul.mubr.f32.gmra.mrb[0].mxu0 %v100
  %v183 = vpop.f32.mrb[0].mxu0
  %v184 = vadd.f32 0.0, %v183
  %v185 = vpop.f32.mrb[0].mxu0
  %186 = vmatprep.mubr.f32.mxu0 0.0
  %187 = vmatmul.mubr.f32.gmra.mrb[0].mxu0 %v103
  %v188 = vpop.f32.mrb[0].mxu0
  %v189 = vadd.f32 0.0, %v188
  %v190 = vpop.f32.mrb[0].mxu0
  %191 = vmatprep.mubr.f32.mxu0 0.0
  %192 = vmatmul.mubr.f32.gmra.mrb[0].mxu0 %v106
  %v193 = vpop.f32.mrb[0].mxu0
  %v194 = vadd.f32 0.0, %v193
  %v195 = vpop.f32.mrb[0].mxu0
  %196 = vdwg.mxu0
  %vm197 = vcmask 97280
  %v199 = vsel %vm197, %v85, 0
  %v202 = vsel %vm197, %v86, 0
  %v205 = vsel %vm197, %v87, 0
  %v208 = vsel %vm197, %v88, 0
  %v211 = vsel %vm108, %v90, 0
  %213 = vmatprep.subr.mxu0 0.0
  %214 = vmatpush1.msra.mxu0 %v89
  %215 = vmatprep.subr.mxu0 0.0
  %216 = vmatpush1.msra.mxu0 %v211
  %217 = vmatprep.subr.mxu0 0.0
  %218 = vmatpush1.msra.mxu0 0.0
  %219 = vmatprep.subr.mxu0 0.0
  %220 = vmatpush1.msra.mxu0 0.0
  %221 = vmatprep.subr.mxu0 0.0
  %222 = vmatpush1.msra.mxu0 0.0
  %223 = vmatprep.subr.mxu0 0.0
  %224 = vmatpush1.msra.mxu0 0.0
  %225 = vmatprep.subr.mxu0 0.0
  %226 = vmatpush1.msra.mxu0 0.0
  %227 = vmatprep.subr.mxu0 0.0
  %228 = vmatpush1.msra.mxu0 0.0
  %229 = vmatprep.subr.mxu0 0.0
  %230 = vmatpush1.msra.mxu0 0.0
  %231 = vmatprep.subr.mxu0 0.0
  %232 = vmatpush1.msra.mxu0 0.0
  %233 = vmatprep.subr.mxu0 0.0
  %234 = vmatpush1.msra.mxu0 0.0
  %235 = vmatprep.subr.mxu0 0.0
  %236 = vmatpush1.msra.mxu0 0.0
  %237 = vmatprep.subr.mxu0 0.0
  %238 = vmatpush1.msra.mxu0 0.0
  %239 = vmatprep.subr.mxu0 0.0
  %240 = vmatpush1.msra.mxu0 0.0
  %241 = vmatprep.subr.mxu0 0.0
  %242 = vmatpush1.msra.mxu0 0.0
  %243 = vmatprep.subr.mxu0 0.0
  %244 = vmatpush1.msra.mxu0 0.0
  %245 = vmatprep.subr.mxu0 0.0
  %246 = vmatpush1.msra.mxu0 0.0
  %247 = vmatprep.subr.mxu0 0.0
  %248 = vmatpush1.msra.mxu0 0.0
  %249 = vmatprep.subr.mxu0 0.0
  %250 = vmatpush1.msra.mxu0 0.0
  %251 = vmatprep.subr.mxu0 0.0
  %252 = vmatpush1.msra.mxu0 0.0
  %253 = vmatprep.subr.mxu0 0.0
  %254 = vmatpush1.msra.mxu0 0.0
  %255 = vmatprep.subr.mxu0 0.0
  %256 = vmatpush1.msra.mxu0 0.0
  %257 = vmatprep.subr.mxu0 0.0
  %258 = vmatpush1.msra.mxu0 0.0
  %259 = vmatprep.subr.mxu0 0.0
  %260 = vmatpush1.msra.mxu0 0.0
  %261 = vmatprep.subr.mxu0 0.0
  %262 = vmatpush1.msra.mxu0 0.0
  %263 = vmatprep.subr.mxu0 0.0
  %264 = vmatpush1.msra.mxu0 0.0
  %265 = vmatprep.subr.mxu0 0.0
  %266 = vmatpush1.msra.mxu0 0.0
  %267 = vmatprep.subr.mxu0 0.0
  %268 = vmatpush1.msra.mxu0 0.0
  %269 = vmatprep.subr.mxu0 0.0
  %270 = vmatpush1.msra.mxu0 0.0
  %271 = vmatprep.subr.mxu0 0.0
  %272 = vmatpush1.msra.mxu0 0.0
  %273 = vmatprep.subr.mxu0 0.0
  %274 = vmatpush1.msra.mxu0 0.0
  %275 = vmatprep.subr.mxu0 0.0
  %276 = vmatpush1.msra.mxu0 0.0
  %277 = vmatprep.mubr.f32.mxu0 0.0
  %278 = vmatmul.mubr.f32.gmra.mrb[0].mxu0 %v199
  %v279 = vpop.f32.mrb[0].mxu0
  %v280 = vadd.f32 %v179, %v279
  %v281 = vpop.f32.mrb[0].mxu0
  %282 = vmatprep.mubr.f32.mxu0 0.0
  %283 = vmatmul.mubr.f32.gmra.mrb[0].mxu0 %v202
  %v284 = vpop.f32.mrb[0].mxu0
  %v285 = vadd.f32 %v184, %v284
  %v286 = vpop.f32.mrb[0].mxu0
  %287 = vmatprep.mubr.f32.mxu0 0.0
  %288 = vmatmul.mubr.f32.gmra.mrb[0].mxu0 %v205
  %v289 = vpop.f32.mrb[0].mxu0
  %v290 = vadd.f32 %v189, %v289
  %v291 = vpop.f32.mrb[0].mxu0
  %292 = vmatprep.mubr.f32.mxu0 0.0
  %293 = vmatmul.mubr.f32.gmra.mrb[0].mxu0 %v208
  %v294 = vpop.f32.mrb[0].mxu0
  %v295 = vadd.f32 %v194, %v294
  %v296 = vpop.f32.mrb[0].mxu0
  %297 = vdwg.mxu0
  %vm298 = vcmask 261120
  %299 = vst.msk [vmem:[%s4] sm:$0xff] %vm298, %v280
  %300 = vst.msk [vmem:[%s4 + $0x8] sm:$0xff] %vm298, %v285
  %301 = vst.msk [vmem:[%s4 + $0x10] sm:$0xff] %vm298, %v290
  %302 = vst.msk [vmem:[%s4 + $0x18] sm:$0xff] %vm298, %v295
  // Predicated region
  $region18: #{_lambda_.5} parent=0 // pred_check
    _
  $region19: #{_lambda_.5} parent=0 // pred_check_branch
    %304 = sbr.rel (0) target = $region21
  $region20: #{_lambda_.5} parent=0 // pred_region
    _
  $region21: #{_lambda_.5} parent=0 // pred_fallthru
    _
  // Predicated region
  $region22: #{_lambda_.5} parent=0 // pred_check
    _
  $region23: #{_lambda_.5} parent=0 // pred_check_branch
    %306 = sbr.rel (0) target = $region25
  $region24: #{_lambda_.5} parent=0 // pred_region
    _
  $region25: #{_lambda_.5} parent=0 // pred_fallthru
    _

// kernel: _lambda_.7
$region0: #{_lambda_.7}
  #allocation0 [shape = 'u32[]', space=smem, size = 0x4, offset = 0x4, fixed_abs, tag = 'smem constant byte address 0x4 - core index']
  #allocation1 [shape = 'u32[144,128]{1,0:T(1,128)}', space=vmem, size = 0x12000, scoped, tag = 'internal scratch']
  %s0 = inlined_call_operand.vmem [shape: f32[2,16,4], index: 0, kind: input, shape index: {}]
  %s1 = inlined_call_operand.vmem [shape: f32[2,16,4], index: 1, kind: input, shape index: {}]
  %s2 = inlined_call_operand.vmem [shape: f32[12,32], index: 2, kind: input, shape index: {}]
  %s3 = inlined_call_operand.vmem [shape: f32[4,32], index: 3, kind: input, shape index: {}]
  %s4 = inlined_call_operand.vmem [shape: f32[2,16,32], index: 4, kind: output, shape index: {0}]
  %s5 = inlined_call_operand.vmem [shape: f32[2,16,4], index: 5, kind: output, shape index: {1}]
  %6 = xla_tuple %s4, %s5
  %s7 = sld [smem:[#allocation0]]
  $region34: #{_lambda_.7} parent=0
    _
  %s9 = ssub.s32 1, %s7
  %s10 = scalar_select 0, %s9, %s7
  // Predicated region
  $region2: #{_lambda_.7} parent=0 // pred_check
    _
  $region3: #{_lambda_.7} parent=0 // pred_check_branch
    %12 = sbr.rel (0) target = $region5
  $region4: #{_lambda_.7} parent=0 // pred_region
    _
  $region5: #{_lambda_.7} parent=0 // pred_fallthru
    _
  // Predicated region
  $region6: #{_lambda_.7} parent=0 // pred_check
    _
  $region7: #{_lambda_.7} parent=0 // pred_check_branch
    %14 = sbr.rel (0) target = $region9
  $region8: #{_lambda_.7} parent=0 // pred_region
    _
  $region9: #{_lambda_.7} parent=0 // pred_fallthru
    _
  // Predicated region
  $region10: #{_lambda_.7} parent=0 // pred_check
    _
  $region11: #{_lambda_.7} parent=0 // pred_check_branch
    %16 = sbr.rel (0) target = $region13
  $region12: #{_lambda_.7} parent=0 // pred_region
    _
  $region13: #{_lambda_.7} parent=0 // pred_fallthru
    _
  // Predicated region
  $region14: #{_lambda_.7} parent=0 // pred_check
    _
  $region15: #{_lambda_.7} parent=0 // pred_check_branch
    %18 = sbr.rel (0) target = $region17
  $region16: #{_lambda_.7} parent=0 // pred_region
    _
  $region17: #{_lambda_.7} parent=0 // pred_fallthru
    _
  %v19 = vld [vmem:[%s0] sm:$0xff]
  %v20 = vld [vmem:[%s0 + $0x8] sm:$0xff]
  %v21 = vld [vmem:[%s0 + $0x10] sm:$0xff]
  %v22 = vld [vmem:[%s0 + $0x18] sm:$0xff]
  %vm27 = vcmask 1041408
  %v28 = vrot.slane %v19, 6
  %v29 = vrot.slane %v20, 6
  %v30 = vsel %vm27, %v28, %v29
  %v31 = vrot.slane %v21, 6
  %v32 = vrot.slane %v22, 6
  %v33 = vsel %vm27, %v31, %v32
  %v38 = vrot.slane %v20, 5
  %v39 = vrot.slane %v22, 5
  %v42 = vrot.slane %v20, 4
  %v43 = vrot.slane %v22, 4
  %v46 = vsel %vm27, %v29, %v38
  %v47 = vsel %vm27, %v32, %v39
  %vm48 = vcmask 1042432
  %v49 = vsel %vm48, %v46, %v42
  %v50 = vsel %vm48, %v47, %v43
  %vm53 = vcmask 1046528
  %v54 = vrot.slane %v30, 1
  %v55 = vrot.slane %v49, 1
  %v56 = vsel %vm53, %v54, %v55
  %v57 = vrot.slane %v33, 1
  %v58 = vrot.slane %v50, 1
  %v59 = vsel %vm53, %v57, %v58
  %v62 = vadd.f32 %v30, %v56
  %v63 = vadd.f32 %v33, %v59
  %vm64 = vcmask 1045504
  %v65 = vrot.slane %v30, 2
  %v66 = vrot.slane %v49, 2
  %v67 = vsel %vm64, %v65, %v66
  %v68 = vrot.slane %v33, 2
  %v69 = vrot.slane %v50, 2
  %v70 = vsel %vm64, %v68, %v69
  %v73 = vadd.f32 %v62, %v67
  %v74 = vadd.f32 %v63, %v70
  %vm75 = vcmask 1044480
  %v76 = vrot.slane %v30, 3
  %v77 = vrot.slane %v49, 3
  %v78 = vsel %vm75, %v76, %v77
  %v79 = vrot.slane %v33, 3
  %v80 = vrot.slane %v50, 3
  %v81 = vsel %vm75, %v79, %v80
  %v84 = vadd.f32 %v73, %v78
  %v85 = vadd.f32 %v74, %v81
  %vm86 = vcmask 1043456
  %v87 = vrot.slane %v30, 4
  %v88 = vrot.slane %v49, 4
  %v89 = vsel %vm86, %v87, %v88
  %v90 = vrot.slane %v33, 4
  %v91 = vrot.slane %v50, 4
  %v92 = vsel %vm86, %v90, %v91
  %v95 = vadd.f32 %v84, %v89
  %v96 = vadd.f32 %v85, %v92
  %v97 = vmul.f32 %v95, 0.2
  %v98 = vmul.f32 %v96, 0.2
  %v99 = vsub.f32 %v20, %v97
  %v100 = vsub.f32 %v22, %v98
  %vm101 = vcmask 31744
  %v102 = vsel %vm101, %v19, 0.0
  %v103 = vsel %vm101, %v20, 0.0
  %v104 = vadd.f32 %v102, %v103
  %v105 = vrot.slane %v104, 4
  %v106 = vadd.f32 %v104, %v105
  %v107 = vrot.slane %v106, 2
  %v108 = vadd.f32 %v106, %v107
  %v109 = vrot.slane %v108, 1
  %v110 = vadd.f32 %v108, %v109
  %v111 = vsel %vm101, %v21, 0.0
  %v112 = vsel %vm101, %v22, 0.0
  %v113 = vadd.f32 %v111, %v112
  %v114 = vrot.slane %v113, 4
  %v115 = vadd.f32 %v113, %v114
  %v116 = vrot.slane %v115, 2
  %v117 = vadd.f32 %v115, %v116
  %v118 = vrot.slane %v117, 1
  %v119 = vadd.f32 %v117, %v118
  %v120 = vrcp.pop 16.0
  %v121 = vmul.f32 %v110, %v120
  %v122 = vmul.f32 %v119, %v120
  %123 = vst.msk [vmem:[%s5] sm:$0xff] %vm101, %v97
  %124 = vst.msk [vmem:[%s5 + $0x8] sm:$0xff] %vm101, %v121
  %125 = vst.msk [vmem:[%s5 + $0x10] sm:$0xff] %vm101, %v98
  %126 = vst.msk [vmem:[%s5 + $0x18] sm:$0xff] %vm101, %v122
  %v128 = vrot.slane 0.0, 7
  %vm132 = vcmask 1040384
  %v133 = vrot.slane %v99, 7
  %v134 = vsel %vm132, %v133, %v128
  %v135 = vrot.slane %v100, 7
  %v136 = vsel %vm132, %v135, %v128
  %v141 = vsel %vm132, %v128, %v133
  %v142 = vsel %vm132, %v128, %v135
  %v143 = vrot.slane %v99, 1
  %v144 = vrot.slane 0.0, 1
  %v145 = vsel %vm53, %v143, %v144
  %v146 = vrot.slane %v100, 1
  %v147 = vsel %vm53, %v146, %v144
  %v151 = vsel %vm53, %v144, %v143
  %v152 = vsel %vm53, %v144, %v146
  %153 = vrot.lane.b32.xlu0 %v99, 4
  %v154 = vpop.permute.xlu0 %153
  %155 = vrot.lane.b32.xlu0 0.0, 4
  %v156 = vpop.permute.xlu0 %155
  %157 = vrot.lane.b32.xlu0 %v100, 4
  %v158 = vpop.permute.xlu0 %157
  %164 = vrot.lane.b32.xlu0 %v145, 8
  %v165 = vpop.permute.xlu0 %164
  %166 = vrot.lane.b32.xlu0 %v151, 8
  %v167 = vpop.permute.xlu0 %166
  %168 = vrot.lane.b32.xlu0 %v147, 8
  %v169 = vpop.permute.xlu0 %168
  %170 = vrot.lane.b32.xlu0 %v152, 8
  %v171 = vpop.permute.xlu0 %170
  %v176 = vsel %vm101, %v141, %v154
  %v177 = vsel %vm101, %v134, %v156
  %v178 = vsel %vm101, %v142, %v158
  %v179 = vsel %vm101, %v136, %v156
  %vm180 = vcmask 64512
  %v181 = vsel %vm180, %v176, %v165
  %v182 = vsel %vm180, %v177, %v167
  %v183 = vsel %vm180, %v178, %v169
  %v184 = vsel %vm180, %v179, %v171
  %v185 = vld [vmem:[%s2] sm:$0xff]
  %v186 = vld [vmem:[%s2 + $0x8] sm:$0xf]
  %v187 = vld [vmem:[%s1] sm:$0xff]
  %v188 = vld [vmem:[%s1 + $0x8] sm:$0xff]
  %v189 = vld [vmem:[%s1 + $0x10] sm:$0xff]
  %v190 = vld [vmem:[%s1 + $0x18] sm:$0xff]
  %v191 = vld [vmem:[%s3] sm:$0xf]
  %v193 = vsel %vm101, %v187, 0
  %v196 = vsel %vm101, %v188, 0
  %v199 = vsel %vm101, %v189, 0
  %v202 = vsel %vm101, %v190, 0
  %v205 = vsel %vm86, %v191, 0
  %207 = vmatprep.subr.mxu0 0.0
  %208 = vmatpush1.msra.mxu0 %v205
  %209 = vmatprep.subr.mxu0 0.0
  %210 = vmatpush1.msra.mxu0 0.0
  %211 = vmatprep.subr.mxu0 0.0
  %212 = vmatpush1.msra.mxu0 0.0
  %213 = vmatprep.subr.mxu0 0.0
  %214 = vmatpush1.msra.mxu0 0.0
  %215 = vmatprep.subr.mxu0 0.0
  %216 = vmatpush1.msra.mxu0 0.0
  %217 = vmatprep.subr.mxu0 0.0
  %218 = vmatpush1.msra.mxu0 0.0
  %219 = vmatprep.subr.mxu0 0.0
  %220 = vmatpush1.msra.mxu0 0.0
  %221 = vmatprep.subr.mxu0 0.0
  %222 = vmatpush1.msra.mxu0 0.0
  %223 = vmatprep.subr.mxu0 0.0
  %224 = vmatpush1.msra.mxu0 0.0
  %225 = vmatprep.subr.mxu0 0.0
  %226 = vmatpush1.msra.mxu0 0.0
  %227 = vmatprep.subr.mxu0 0.0
  %228 = vmatpush1.msra.mxu0 0.0
  %229 = vmatprep.subr.mxu0 0.0
  %230 = vmatpush1.msra.mxu0 0.0
  %231 = vmatprep.subr.mxu0 0.0
  %232 = vmatpush1.msra.mxu0 0.0
  %233 = vmatprep.subr.mxu0 0.0
  %234 = vmatpush1.msra.mxu0 0.0
  %235 = vmatprep.subr.mxu0 0.0
  %236 = vmatpush1.msra.mxu0 0.0
  %237 = vmatprep.subr.mxu0 0.0
  %238 = vmatpush1.msra.mxu0 0.0
  %239 = vmatprep.subr.mxu0 0.0
  %240 = vmatpush1.msra.mxu0 0.0
  %241 = vmatprep.subr.mxu0 0.0
  %242 = vmatpush1.msra.mxu0 0.0
  %243 = vmatprep.subr.mxu0 0.0
  %244 = vmatpush1.msra.mxu0 0.0
  %245 = vmatprep.subr.mxu0 0.0
  %246 = vmatpush1.msra.mxu0 0.0
  %247 = vmatprep.subr.mxu0 0.0
  %248 = vmatpush1.msra.mxu0 0.0
  %249 = vmatprep.subr.mxu0 0.0
  %250 = vmatpush1.msra.mxu0 0.0
  %251 = vmatprep.subr.mxu0 0.0
  %252 = vmatpush1.msra.mxu0 0.0
  %253 = vmatprep.subr.mxu0 0.0
  %254 = vmatpush1.msra.mxu0 0.0
  %255 = vmatprep.subr.mxu0 0.0
  %256 = vmatpush1.msra.mxu0 0.0
  %257 = vmatprep.subr.mxu0 0.0
  %258 = vmatpush1.msra.mxu0 0.0
  %259 = vmatprep.subr.mxu0 0.0
  %260 = vmatpush1.msra.mxu0 0.0
  %261 = vmatprep.subr.mxu0 0.0
  %262 = vmatpush1.msra.mxu0 0.0
  %263 = vmatprep.subr.mxu0 0.0
  %264 = vmatpush1.msra.mxu0 0.0
  %265 = vmatprep.subr.mxu0 0.0
  %266 = vmatpush1.msra.mxu0 0.0
  %267 = vmatprep.subr.mxu0 0.0
  %268 = vmatpush1.msra.mxu0 0.0
  %269 = vmatprep.subr.mxu0 0.0
  %270 = vmatpush1.msra.mxu0 0.0
  %271 = vmatprep.mubr.f32.mxu0 0.0
  %272 = vmatmul.mubr.f32.gmra.mrb[0].mxu0 %v193
  %v273 = vpop.f32.mrb[0].mxu0
  %v274 = vadd.f32 0.0, %v273
  %v275 = vpop.f32.mrb[0].mxu0
  %276 = vmatprep.mubr.f32.mxu0 0.0
  %277 = vmatmul.mubr.f32.gmra.mrb[0].mxu0 %v196
  %v278 = vpop.f32.mrb[0].mxu0
  %v279 = vadd.f32 0.0, %v278
  %v280 = vpop.f32.mrb[0].mxu0
  %281 = vmatprep.mubr.f32.mxu0 0.0
  %282 = vmatmul.mubr.f32.gmra.mrb[0].mxu0 %v199
  %v283 = vpop.f32.mrb[0].mxu0
  %v284 = vadd.f32 0.0, %v283
  %v285 = vpop.f32.mrb[0].mxu0
  %286 = vmatprep.mubr.f32.mxu0 0.0
  %287 = vmatmul.mubr.f32.gmra.mrb[0].mxu0 %v202
  %v288 = vpop.f32.mrb[0].mxu0
  %v289 = vadd.f32 0.0, %v288
  %v290 = vpop.f32.mrb[0].mxu0
  %291 = vdwg.mxu0
  %vm292 = vcmask 97280
  %v294 = vsel %vm292, %v181, 0
  %v297 = vsel %vm292, %v182, 0
  %v300 = vsel %vm292, %v183, 0
  %v303 = vsel %vm292, %v184, 0
  %v306 = vsel %vm86, %v186, 0
  %308 = vmatprep.subr.mxu0 0.0
  %309 = vmatpush1.msra.mxu0 %v185
  %310 = vmatprep.subr.mxu0 0.0
  %311 = vmatpush1.msra.mxu0 %v306
  %312 = vmatprep.subr.mxu0 0.0
  %313 = vmatpush1.msra.mxu0 0.0
  %314 = vmatprep.subr.mxu0 0.0
  %315 = vmatpush1.msra.mxu0 0.0
  %316 = vmatprep.subr.mxu0 0.0
  %317 = vmatpush1.msra.mxu0 0.0
  %318 = vmatprep.subr.mxu0 0.0
  %319 = vmatpush1.msra.mxu0 0.0
  %320 = vmatprep.subr.mxu0 0.0
  %321 = vmatpush1.msra.mxu0 0.0
  %322 = vmatprep.subr.mxu0 0.0
  %323 = vmatpush1.msra.mxu0 0.0
  %324 = vmatprep.subr.mxu0 0.0
  %325 = vmatpush1.msra.mxu0 0.0
  %326 = vmatprep.subr.mxu0 0.0
  %327 = vmatpush1.msra.mxu0 0.0
  %328 = vmatprep.subr.mxu0 0.0
  %329 = vmatpush1.msra.mxu0 0.0
  %330 = vmatprep.subr.mxu0 0.0
  %331 = vmatpush1.msra.mxu0 0.0
  %332 = vmatprep.subr.mxu0 0.0
  %333 = vmatpush1.msra.mxu0 0.0
  %334 = vmatprep.subr.mxu0 0.0
  %335 = vmatpush1.msra.mxu0 0.0
  %336 = vmatprep.subr.mxu0 0.0
  %337 = vmatpush1.msra.mxu0 0.0
  %338 = vmatprep.subr.mxu0 0.0
  %339 = vmatpush1.msra.mxu0 0.0
  %340 = vmatprep.subr.mxu0 0.0
  %341 = vmatpush1.msra.mxu0 0.0
  %342 = vmatprep.subr.mxu0 0.0
  %343 = vmatpush1.msra.mxu0 0.0
  %344 = vmatprep.subr.mxu0 0.0
  %345 = vmatpush1.msra.mxu0 0.0
  %346 = vmatprep.subr.mxu0 0.0
  %347 = vmatpush1.msra.mxu0 0.0
  %348 = vmatprep.subr.mxu0 0.0
  %349 = vmatpush1.msra.mxu0 0.0
  %350 = vmatprep.subr.mxu0 0.0
  %351 = vmatpush1.msra.mxu0 0.0
  %352 = vmatprep.subr.mxu0 0.0
  %353 = vmatpush1.msra.mxu0 0.0
  %354 = vmatprep.subr.mxu0 0.0
  %355 = vmatpush1.msra.mxu0 0.0
  %356 = vmatprep.subr.mxu0 0.0
  %357 = vmatpush1.msra.mxu0 0.0
  %358 = vmatprep.subr.mxu0 0.0
  %359 = vmatpush1.msra.mxu0 0.0
  %360 = vmatprep.subr.mxu0 0.0
  %361 = vmatpush1.msra.mxu0 0.0
  %362 = vmatprep.subr.mxu0 0.0
  %363 = vmatpush1.msra.mxu0 0.0
  %364 = vmatprep.subr.mxu0 0.0
  %365 = vmatpush1.msra.mxu0 0.0
  %366 = vmatprep.subr.mxu0 0.0
  %367 = vmatpush1.msra.mxu0 0.0
  %368 = vmatprep.subr.mxu0 0.0
  %369 = vmatpush1.msra.mxu0 0.0
  %370 = vmatprep.subr.mxu0 0.0
  %371 = vmatpush1.msra.mxu0 0.0
  %372 = vmatprep.mubr.f32.mxu0 0.0
  %373 = vmatmul.mubr.f32.gmra.mrb[0].mxu0 %v294
  %v374 = vpop.f32.mrb[0].mxu0
  %v375 = vadd.f32 %v274, %v374
  %v376 = vpop.f32.mrb[0].mxu0
  %377 = vmatprep.mubr.f32.mxu0 0.0
  %378 = vmatmul.mubr.f32.gmra.mrb[0].mxu0 %v297
  %v379 = vpop.f32.mrb[0].mxu0
  %v380 = vadd.f32 %v279, %v379
  %v381 = vpop.f32.mrb[0].mxu0
  %382 = vmatprep.mubr.f32.mxu0 0.0
  %383 = vmatmul.mubr.f32.gmra.mrb[0].mxu0 %v300
  %v384 = vpop.f32.mrb[0].mxu0
  %v385 = vadd.f32 %v284, %v384
  %v386 = vpop.f32.mrb[0].mxu0
  %387 = vmatprep.mubr.f32.mxu0 0.0
  %388 = vmatmul.mubr.f32.gmra.mrb[0].mxu0 %v303
  %v389 = vpop.f32.mrb[0].mxu0
  %v390 = vadd.f32 %v289, %v389
  %v391 = vpop.f32.mrb[0].mxu0
  %392 = vdwg.mxu0
  %vm393 = vcmask 261120
  %394 = vst.msk [vmem:[%s4] sm:$0xff] %vm393, %v375
  %395 = vst.msk [vmem:[%s4 + $0x8] sm:$0xff] %vm393, %v380
  %396 = vst.msk [vmem:[%s4 + $0x10] sm:$0xff] %vm393, %v385
  %397 = vst.msk [vmem:[%s4 + $0x18] sm:$0xff] %vm393, %v390
  // Predicated region
  $region18: #{_lambda_.7} parent=0 // pred_check
    _
  $region19: #{_lambda_.7} parent=0 // pred_check_branch
    %399 = sbr.rel (0) target = $region21
  $region20: #{_lambda_.7} parent=0 // pred_region
    _
  $region21: #{_lambda_.7} parent=0 // pred_fallthru
    _
  // Predicated region
  $region22: #{_lambda_.7} parent=0 // pred_check
    _
  $region23: #{_lambda_.7} parent=0 // pred_check_branch
    %401 = sbr.rel (0) target = $region25
  $region24: #{_lambda_.7} parent=0 // pred_region
    _
  $region25: #{_lambda_.7} parent=0 // pred_fallthru
    _
  // Predicated region
  $region26: #{_lambda_.7} parent=0 // pred_check
    _
  $region27: #{_lambda_.7} parent=0 // pred_check_branch
    %403 = sbr.rel (0) target = $region29
  $region28: #{_lambda_.7} parent=0 // pred_region
    _
  $region29: #{_lambda_.7} parent=0 // pred_fallthru
    _
  // Predicated region
  $region30: #{_lambda_.7} parent=0 // pred_check
    _
  $region31: #{_lambda_.7} parent=0 // pred_check_branch
    %405 = sbr.rel (0) target = $region33
  $region32: #{_lambda_.7} parent=0 // pred_region
    _
  $region33: #{_lambda_.7} parent=0 // pred_fallthru
    _

// kernel: _lambda_.9
$region0: #{_lambda_.9}
  #allocation0 [shape = 'u32[]', space=smem, size = 0x4, offset = 0x4, fixed_abs, tag = 'smem constant byte address 0x4 - core index']
  #allocation1 [shape = 'u32[144,128]{1,0:T(1,128)}', space=vmem, size = 0x12000, scoped, tag = 'internal scratch']
  %s0 = inlined_call_operand.vmem [shape: f32[2,16,32], index: 0, kind: input, shape index: {}]
  %s1 = inlined_call_operand.vmem [shape: f32[2,16,4], index: 1, kind: input, shape index: {}]
  %s2 = inlined_call_operand.vmem [shape: f32[1,32], index: 2, kind: input, shape index: {}]
  %s3 = inlined_call_operand.vmem [shape: f32[1,32], index: 3, kind: input, shape index: {}]
  %s4 = inlined_call_operand.vmem [shape: f32[32,4], index: 4, kind: input, shape index: {}]
  %s5 = inlined_call_operand.vmem [shape: f32[1,4], index: 5, kind: input, shape index: {}]
  %s6 = inlined_call_operand.vmem [shape: f32[2,8,4], index: 6, kind: output, shape index: {}]
  %s7 = sld [smem:[#allocation0]]
  $region34: #{_lambda_.9} parent=0
    _
  %s9 = ssub.s32 1, %s7
  %s10 = scalar_select 0, %s9, %s7
  // Predicated region
  $region2: #{_lambda_.9} parent=0 // pred_check
    _
  $region3: #{_lambda_.9} parent=0 // pred_check_branch
    %12 = sbr.rel (0) target = $region5
  $region4: #{_lambda_.9} parent=0 // pred_region
    _
  $region5: #{_lambda_.9} parent=0 // pred_fallthru
    _
  // Predicated region
  $region6: #{_lambda_.9} parent=0 // pred_check
    _
  $region7: #{_lambda_.9} parent=0 // pred_check_branch
    %14 = sbr.rel (0) target = $region9
  $region8: #{_lambda_.9} parent=0 // pred_region
    _
  $region9: #{_lambda_.9} parent=0 // pred_fallthru
    _
  // Predicated region
  $region10: #{_lambda_.9} parent=0 // pred_check
    _
  $region11: #{_lambda_.9} parent=0 // pred_check_branch
    %16 = sbr.rel (0) target = $region13
  $region12: #{_lambda_.9} parent=0 // pred_region
    _
  $region13: #{_lambda_.9} parent=0 // pred_fallthru
    _
  // Predicated region
  $region14: #{_lambda_.9} parent=0 // pred_check
    _
  $region15: #{_lambda_.9} parent=0 // pred_check_branch
    %18 = sbr.rel (0) target = $region17
  $region16: #{_lambda_.9} parent=0 // pred_region
    _
  $region17: #{_lambda_.9} parent=0 // pred_fallthru
    _
  // Predicated region
  $region18: #{_lambda_.9} parent=0 // pred_check
    _
  $region19: #{_lambda_.9} parent=0 // pred_check_branch
    %20 = sbr.rel (0) target = $region21
  $region20: #{_lambda_.9} parent=0 // pred_region
    _
  $region21: #{_lambda_.9} parent=0 // pred_fallthru
    _
  // Predicated region
  $region22: #{_lambda_.9} parent=0 // pred_check
    _
  $region23: #{_lambda_.9} parent=0 // pred_check_branch
    %22 = sbr.rel (0) target = $region25
  $region24: #{_lambda_.9} parent=0 // pred_region
    _
  $region25: #{_lambda_.9} parent=0 // pred_fallthru
    _
  %v23 = vld [vmem:[%s0] sm:$0xff]
  %v24 = vld [vmem:[%s0 + $0x8] sm:$0xff]
  %v25 = vld [vmem:[%s0 + $0x10] sm:$0xff]
  %v26 = vld [vmem:[%s0 + $0x18] sm:$0xff]
  %v27 = vld [vmem:[%s2] sm:$0x1]
  %v28 = vld [vmem:[%s3] sm:$0x1]
  %vm29 = vcmask 261120
  %v30 = vsel %vm29, %v23, 0.0
  %31 = vadd.xlane.f32.xlu0 %v30
  %v32 = vpop.xlane.xlu0 %31
  %v33 = vsel %vm29, %v24, 0.0
  %34 = vadd.xlane.f32.xlu0 %v33
  %v35 = vpop.xlane.xlu0 %34
  %v36 = vsel %vm29, %v25, 0.0
  %37 = vadd.xlane.f32.xlu0 %v36
  %v38 = vpop.xlane.xlu0 %37
  %v39 = vsel %vm29, %v26, 0.0
  %40 = vadd.xlane.f32.xlu0 %v39
  %v41 = vpop.xlane.xlu0 %40
  %v42 = vrcp.pop 32.0
  %v43 = vmul.f32 %v32, %v42
  %v44 = vmul.f32 %v35, %v42
  %v45 = vmul.f32 %v38, %v42
  %v46 = vmul.f32 %v41, %v42
  %v47 = vsub.f32 %v23, %v43
  %v48 = vsub.f32 %v24, %v44
  %v49 = vsub.f32 %v25, %v45
  %v50 = vsub.f32 %v26, %v46
  %v51 = vmul.f32 %v47, %v47
  %v52 = vmul.f32 %v48, %v48
  %v53 = vmul.f32 %v49, %v49
  %v54 = vmul.f32 %v50, %v50
  %v55 = vsel %vm29, %v51, 0.0
  %56 = vadd.xlane.f32.xlu0 %v55
  %v57 = vpop.xlane.xlu0 %56
  %v58 = vsel %vm29, %v52, 0.0
  %59 = vadd.xlane.f32.xlu0 %v58
  %v60 = vpop.xlane.xlu0 %59
  %v61 = vsel %vm29, %v53, 0.0
  %62 = vadd.xlane.f32.xlu0 %v61
  %v63 = vpop.xlane.xlu0 %62
  %v64 = vsel %vm29, %v54, 0.0
  %65 = vadd.xlane.f32.xlu0 %v64
  %v66 = vpop.xlane.xlu0 %65
  %v67 = vmul.f32 %v57, %v42
  %v68 = vmul.f32 %v60, %v42
  %v69 = vmul.f32 %v63, %v42
  %v70 = vmul.f32 %v66, %v42
  %v71 = vadd.f32 %v67, 1e-05
  %v72 = vadd.f32 %v68, 1e-05
  %v73 = vadd.f32 %v69, 1e-05
  %v74 = vadd.f32 %v70, 1e-05
  %v75 = vrsqrt.pop %v71
  %v76 = vrsqrt.pop %v72
  %v77 = vrsqrt.pop %v73
  %v78 = vrsqrt.pop %v74
  %v79 = vmul.f32 %v47, %v75
  %v80 = vmul.f32 %v48, %v76
  %v81 = vmul.f32 %v49, %v77
  %v82 = vmul.f32 %v50, %v78
  %v84 = vlaneseq
  %v85 = vshrl.u32 %v84, 7
  %v86 = vsub.s32 0, %v85
  %v87 = vrot.slane %v27, %v86
  %v89 = vmul.f32 %v79, %v87
  %v90 = vmul.f32 %v80, %v87
  %v91 = vmul.f32 %v81, %v87
  %v92 = vmul.f32 %v82, %v87
  %v94 = vlaneseq
  %v95 = vshrl.u32 %v94, 7
  %v96 = vsub.s32 0, %v95
  %v97 = vrot.slane %v28, %v96
  %v99 = vadd.f32 %v89, %v97
  %v100 = vadd.f32 %v90, %v97
  %v101 = vadd.f32 %v91, %v97
  %v102 = vadd.f32 %v92, %v97
  %v103 = vsel %vm29, %v99, 0.0
  %v104 = vsel %vm29, %v100, 0.0
  %v105 = vadd.f32 %v103, %v104
  %v106 = vrot.slane %v105, 4
  %v107 = vadd.f32 %v105, %v106
  %v108 = vrot.slane %v107, 2
  %v109 = vadd.f32 %v107, %v108
  %v110 = vrot.slane %v109, 1
  %v111 = vadd.f32 %v109, %v110
  %v112 = vsel %vm29, %v101, 0.0
  %v113 = vsel %vm29, %v102, 0.0
  %v114 = vadd.f32 %v112, %v113
  %v115 = vrot.slane %v114, 4
  %v116 = vadd.f32 %v114, %v115
  %v117 = vrot.slane %v116, 2
  %v118 = vadd.f32 %v116, %v117
  %v119 = vrot.slane %v118, 1
  %v120 = vadd.f32 %v118, %v119
  %v121 = vrcp.pop 16.0
  %v122 = vmul.f32 %v111, %v121
  %v123 = vmul.f32 %v120, %v121
  %v124 = vsub.f32 %v99, %v122
  %v125 = vsub.f32 %v100, %v122
  %v126 = vsub.f32 %v101, %v123
  %v127 = vsub.f32 %v102, %v123
  %v128 = vld [vmem:[%s4] sm:$0xff]
  %v129 = vld [vmem:[%s4 + $0x8] sm:$0xff]
  %v130 = vld [vmem:[%s4 + $0x10] sm:$0xff]
  %v131 = vld [vmem:[%s4 + $0x18] sm:$0xff]
  %v132 = vld [vmem:[%s5] sm:$0x1]
  %v134 = vlaneseq
  %v135 = vshrl.u32 %v134, 7
  %v136 = vsub.s32 0, %v135
  %v137 = vrot.slane %v132, %v136
  %v140 = vsel %vm29, %v124, 0
  %v143 = vsel %vm29, %v125, 0
  %v146 = vsel %vm29, %v126, 0
  %v149 = vsel %vm29, %v127, 0
  %151 = vmatprep.subr.mxu0 0.0
  %152 = vmatpush1.msra.mxu0 %v128
  %153 = vmatprep.subr.mxu0 0.0
  %154 = vmatpush1.msra.mxu0 %v129
  %155 = vmatprep.subr.mxu0 0.0
  %156 = vmatpush1.msra.mxu0 %v130
  %157 = vmatprep.subr.mxu0 0.0
  %158 = vmatpush1.msra.mxu0 %v131
  %159 = vmatprep.subr.mxu0 0.0
  %160 = vmatpush1.msra.mxu0 0.0
  %161 = vmatprep.subr.mxu0 0.0
  %162 = vmatpush1.msra.mxu0 0.0
  %163 = vmatprep.subr.mxu0 0.0
  %164 = vmatpush1.msra.mxu0 0.0
  %165 = vmatprep.subr.mxu0 0.0
  %166 = vmatpush1.msra.mxu0 0.0
  %167 = vmatprep.subr.mxu0 0.0
  %168 = vmatpush1.msra.mxu0 0.0
  %169 = vmatprep.subr.mxu0 0.0
  %170 = vmatpush1.msra.mxu0 0.0
  %171 = vmatprep.subr.mxu0 0.0
  %172 = vmatpush1.msra.mxu0 0.0
  %173 = vmatprep.subr.mxu0 0.0
  %174 = vmatpush1.msra.mxu0 0.0
  %175 = vmatprep.subr.mxu0 0.0
  %176 = vmatpush1.msra.mxu0 0.0
  %177 = vmatprep.subr.mxu0 0.0
  %178 = vmatpush1.msra.mxu0 0.0
  %179 = vmatprep.subr.mxu0 0.0
  %180 = vmatpush1.msra.mxu0 0.0
  %181 = vmatprep.subr.mxu0 0.0
  %182 = vmatpush1.msra.mxu0 0.0
  %183 = vmatprep.subr.mxu0 0.0
  %184 = vmatpush1.msra.mxu0 0.0
  %185 = vmatprep.subr.mxu0 0.0
  %186 = vmatpush1.msra.mxu0 0.0
  %187 = vmatprep.subr.mxu0 0.0
  %188 = vmatpush1.msra.mxu0 0.0
  %189 = vmatprep.subr.mxu0 0.0
  %190 = vmatpush1.msra.mxu0 0.0
  %191 = vmatprep.subr.mxu0 0.0
  %192 = vmatpush1.msra.mxu0 0.0
  %193 = vmatprep.subr.mxu0 0.0
  %194 = vmatpush1.msra.mxu0 0.0
  %195 = vmatprep.subr.mxu0 0.0
  %196 = vmatpush1.msra.mxu0 0.0
  %197 = vmatprep.subr.mxu0 0.0
  %198 = vmatpush1.msra.mxu0 0.0
  %199 = vmatprep.subr.mxu0 0.0
  %200 = vmatpush1.msra.mxu0 0.0
  %201 = vmatprep.subr.mxu0 0.0
  %202 = vmatpush1.msra.mxu0 0.0
  %203 = vmatprep.subr.mxu0 0.0
  %204 = vmatpush1.msra.mxu0 0.0
  %205 = vmatprep.subr.mxu0 0.0
  %206 = vmatpush1.msra.mxu0 0.0
  %207 = vmatprep.subr.mxu0 0.0
  %208 = vmatpush1.msra.mxu0 0.0
  %209 = vmatprep.subr.mxu0 0.0
  %210 = vmatpush1.msra.mxu0 0.0
  %211 = vmatprep.subr.mxu0 0.0
  %212 = vmatpush1.msra.mxu0 0.0
  %213 = vmatprep.subr.mxu0 0.0
  %214 = vmatpush1.msra.mxu0 0.0
  %215 = vmatprep.mubr.f32.mxu0 0.0
  %216 = vmatmul.mubr.f32.gmra.mrb[0].mxu0 %v140
  %v217 = vpop.f32.mrb[0].mxu0
  %v218 = vpop.f32.mrb[0].mxu0
  %219 = vmatprep.mubr.f32.mxu0 0.0
  %220 = vmatmul.mubr.f32.gmra.mrb[0].mxu0 %v143
  %v221 = vpop.f32.mrb[0].mxu0
  %v222 = vadd.f32 %v137, %v221
  %v223 = vpop.f32.mrb[0].mxu0
  %224 = vmatprep.mubr.f32.mxu0 0.0
  %225 = vmatmul.mubr.f32.gmra.mrb[0].mxu0 %v146
  %v226 = vpop.f32.mrb[0].mxu0
  %v227 = vpop.f32.mrb[0].mxu0
  %228 = vmatprep.mubr.f32.mxu0 0.0
  %229 = vmatmul.mubr.f32.gmra.mrb[0].mxu0 %v149
  %v230 = vpop.f32.mrb[0].mxu0
  %v231 = vadd.f32 %v137, %v230
  %v232 = vpop.f32.mrb[0].mxu0
  %233 = vdwg.mxu0
  %v234 = vld [vmem:[%s1 + $0x8] sm:$0xff]
  %v235 = vld [vmem:[%s1 + $0x18] sm:$0xff]
  %v236 = vadd.f32 %v234, %v222
  %v237 = vadd.f32 %v235, %v231
  %vm238 = vcmask 31744
  %239 = vst.msk [vmem:[%s6] sm:$0xff] %vm238, %v236
  %240 = vst.msk [vmem:[%s6 + $0x8] sm:$0xff] %vm238, %v237
  // Predicated region
  $region26: #{_lambda_.9} parent=0 // pred_check
    _
  $region27: #{_lambda_.9} parent=0 // pred_check_branch
    %242 = sbr.rel (0) target = $region29
  $region28: #{_lambda_.9} parent=0 // pred_region
    _
  $region29: #{_lambda_.9} parent=0 // pred_fallthru
    _
  // Predicated region
  $region30: #{_lambda_.9} parent=0 // pred_check
    _
  $region31: #{_lambda_.9} parent=0 // pred_check_branch
    %244 = sbr.rel (0) target = $region33
  $region32: #{_lambda_.9} parent=0 // pred_region
    _
  $region33: #{_lambda_.9} parent=0 // pred_fallthru
    _

// kernel: _lambda_.6
$region0: #{_lambda_.6}
  #allocation0 [shape = 'u32[]', space=smem, size = 0x4, offset = 0x4, fixed_abs, tag = 'smem constant byte address 0x4 - core index']
  #allocation1 [shape = 'u32[144,128]{1,0:T(1,128)}', space=vmem, size = 0x12000, scoped, tag = 'internal scratch']
  %s0 = inlined_call_operand.vmem [shape: f32[2,16,32], index: 0, kind: input, shape index: {}]
  %s1 = inlined_call_operand.vmem [shape: f32[32,32], index: 1, kind: input, shape index: {}]
  %s2 = inlined_call_operand.vmem [shape: f32[1,32], index: 2, kind: input, shape index: {}]
  %s3 = inlined_call_operand.vmem [shape: f32[32,64], index: 3, kind: input, shape index: {}]
  %s4 = inlined_call_operand.vmem [shape: f32[1,64], index: 4, kind: input, shape index: {}]
  %s5 = inlined_call_operand.vmem [shape: f32[32,32], index: 5, kind: input, shape index: {}]
  %s6 = inlined_call_operand.vmem [shape: f32[1,32], index: 6, kind: input, shape index: {}]
  %s7 = inlined_call_operand.vmem [shape: f32[32,64], index: 7, kind: input, shape index: {}]
  %s8 = inlined_call_operand.vmem [shape: f32[64,32], index: 8, kind: input, shape index: {}]
  %s9 = inlined_call_operand.vmem [shape: f32[1,32], index: 9, kind: input, shape index: {}]
  %s10 = inlined_call_operand.vmem [shape: f32[1,32], index: 10, kind: input, shape index: {}]
  %s11 = inlined_call_operand.vmem [shape: f32[2,16,32], index: 11, kind: output, shape index: {}]
  %s12 = sld [smem:[#allocation0]]
  $region54: #{_lambda_.6} parent=0
    _
  %s14 = ssub.s32 1, %s12
  %s15 = scalar_select 0, %s14, %s12
  // Predicated region
  $region2: #{_lambda_.6} parent=0 // pred_check
    _
  $region3: #{_lambda_.6} parent=0 // pred_check_branch
    %17 = sbr.rel (0) target = $region5
  $region4: #{_lambda_.6} parent=0 // pred_region
    _
  $region5: #{_lambda_.6} parent=0 // pred_fallthru
    _
  // Predicated region
  $region6: #{_lambda_.6} parent=0 // pred_check
    _
  $region7: #{_lambda_.6} parent=0 // pred_check_branch
    %19 = sbr.rel (0) target = $region9
  $region8: #{_lambda_.6} parent=0 // pred_region
    _
  $region9: #{_lambda_.6} parent=0 // pred_fallthru
    _
  // Predicated region
  $region10: #{_lambda_.6} parent=0 // pred_check
    _
  $region11: #{_lambda_.6} parent=0 // pred_check_branch
    %21 = sbr.rel (0) target = $region13
  $region12: #{_lambda_.6} parent=0 // pred_region
    _
  $region13: #{_lambda_.6} parent=0 // pred_fallthru
    _
  // Predicated region
  $region14: #{_lambda_.6} parent=0 // pred_check
    _
  $region15: #{_lambda_.6} parent=0 // pred_check_branch
    %23 = sbr.rel (0) target = $region17
  $region16: #{_lambda_.6} parent=0 // pred_region
    _
  $region17: #{_lambda_.6} parent=0 // pred_fallthru
    _
  // Predicated region
  $region18: #{_lambda_.6} parent=0 // pred_check
    _
  $region19: #{_lambda_.6} parent=0 // pred_check_branch
    %25 = sbr.rel (0) target = $region21
  $region20: #{_lambda_.6} parent=0 // pred_region
    _
  $region21: #{_lambda_.6} parent=0 // pred_fallthru
    _
  // Predicated region
  $region22: #{_lambda_.6} parent=0 // pred_check
    _
  $region23: #{_lambda_.6} parent=0 // pred_check_branch
    %27 = sbr.rel (0) target = $region25
  $region24: #{_lambda_.6} parent=0 // pred_region
    _
  $region25: #{_lambda_.6} parent=0 // pred_fallthru
    _
  // Predicated region
  $region26: #{_lambda_.6} parent=0 // pred_check
    _
  $region27: #{_lambda_.6} parent=0 // pred_check_branch
    %29 = sbr.rel (0) target = $region29
  $region28: #{_lambda_.6} parent=0 // pred_region
    _
  $region29: #{_lambda_.6} parent=0 // pred_fallthru
    _
  // Predicated region
  $region30: #{_lambda_.6} parent=0 // pred_check
    _
  $region31: #{_lambda_.6} parent=0 // pred_check_branch
    %31 = sbr.rel (0) target = $region33
  $region32: #{_lambda_.6} parent=0 // pred_region
    _
  $region33: #{_lambda_.6} parent=0 // pred_fallthru
    _
  // Predicated region
  $region34: #{_lambda_.6} parent=0 // pred_check
    _
  $region35: #{_lambda_.6} parent=0 // pred_check_branch
    %33 = sbr.rel (0) target = $region37
  $region36: #{_lambda_.6} parent=0 // pred_region
    _
  $region37: #{_lambda_.6} parent=0 // pred_fallthru
    _
  // Predicated region
  $region38: #{_lambda_.6} parent=0 // pred_check
    _
  $region39: #{_lambda_.6} parent=0 // pred_check_branch
    %35 = sbr.rel (0) target = $region41
  $region40: #{_lambda_.6} parent=0 // pred_region
    _
  $region41: #{_lambda_.6} parent=0 // pred_fallthru
    _
  // Predicated region
  $region42: #{_lambda_.6} parent=0 // pred_check
    _
  $region43: #{_lambda_.6} parent=0 // pred_check_branch
    %37 = sbr.rel (0) target = $region45
  $region44: #{_lambda_.6} parent=0 // pred_region
    _
  $region45: #{_lambda_.6} parent=0 // pred_fallthru
    _
  %v38 = vld [vmem:[%s0] sm:$0xff]
  %v39 = vld [vmem:[%s0 + $0x8] sm:$0xff]
  %v40 = vld [vmem:[%s0 + $0x10] sm:$0xff]
  %v41 = vld [vmem:[%s0 + $0x18] sm:$0xff]
  %v42 = vld [vmem:[%s1] sm:$0xff]
  %v43 = vld [vmem:[%s1 + $0x8] sm:$0xff]
  %v44 = vld [vmem:[%s1 + $0x10] sm:$0xff]
  %v45 = vld [vmem:[%s1 + $0x18] sm:$0xff]
  %v46 = vld [vmem:[%s2] sm:$0x1]
  %v47 = vld [vmem:[%s3] sm:$0xff]
  %v48 = vld [vmem:[%s3 + $0x8] sm:$0xff]
  %v49 = vld [vmem:[%s3 + $0x10] sm:$0xff]
  %v50 = vld [vmem:[%s3 + $0x18] sm:$0xff]
  %v51 = vld [vmem:[%s4] sm:$0x1]
  %v53 = vlaneseq
  %v54 = vshrl.u32 %v53, 7
  %v55 = vsub.s32 0, %v54
  %v56 = vrot.slane %v46, %v55
  %vm58 = vcmask 261120
  %v60 = vsel %vm58, %v38, 0
  %v63 = vsel %vm58, %v39, 0
  %v66 = vsel %vm58, %v40, 0
  %v69 = vsel %vm58, %v41, 0
  %71 = vmatprep.subr.mxu0 0.0
  %72 = vmatpush1.msra.mxu0 %v42
  %73 = vmatprep.subr.mxu0 0.0
  %74 = vmatpush1.msra.mxu0 %v43
  %75 = vmatprep.subr.mxu0 0.0
  %76 = vmatpush1.msra.mxu0 %v44
  %77 = vmatprep.subr.mxu0 0.0
  %78 = vmatpush1.msra.mxu0 %v45
  %79 = vmatprep.subr.mxu0 0.0
  %80 = vmatpush1.msra.mxu0 0.0
  %81 = vmatprep.subr.mxu0 0.0
  %82 = vmatpush1.msra.mxu0 0.0
  %83 = vmatprep.subr.mxu0 0.0
  %84 = vmatpush1.msra.mxu0 0.0
  %85 = vmatprep.subr.mxu0 0.0
  %86 = vmatpush1.msra.mxu0 0.0
  %87 = vmatprep.subr.mxu0 0.0
  %88 = vmatpush1.msra.mxu0 0.0
  %89 = vmatprep.subr.mxu0 0.0
  %90 = vmatpush1.msra.mxu0 0.0
  %91 = vmatprep.subr.mxu0 0.0
  %92 = vmatpush1.msra.mxu0 0.0
  %93 = vmatprep.subr.mxu0 0.0
  %94 = vmatpush1.msra.mxu0 0.0
  %95 = vmatprep.subr.mxu0 0.0
  %96 = vmatpush1.msra.mxu0 0.0
  %97 = vmatprep.subr.mxu0 0.0
  %98 = vmatpush1.msra.mxu0 0.0
  %99 = vmatprep.subr.mxu0 0.0
  %100 = vmatpush1.msra.mxu0 0.0
  %101 = vmatprep.subr.mxu0 0.0
  %102 = vmatpush1.msra.mxu0 0.0
  %103 = vmatprep.subr.mxu0 0.0
  %104 = vmatpush1.msra.mxu0 0.0
  %105 = vmatprep.subr.mxu0 0.0
  %106 = vmatpush1.msra.mxu0 0.0
  %107 = vmatprep.subr.mxu0 0.0
  %108 = vmatpush1.msra.mxu0 0.0
  %109 = vmatprep.subr.mxu0 0.0
  %110 = vmatpush1.msra.mxu0 0.0
  %111 = vmatprep.subr.mxu0 0.0
  %112 = vmatpush1.msra.mxu0 0.0
  %113 = vmatprep.subr.mxu0 0.0
  %114 = vmatpush1.msra.mxu0 0.0
  %115 = vmatprep.subr.mxu0 0.0
  %116 = vmatpush1.msra.mxu0 0.0
  %117 = vmatprep.subr.mxu0 0.0
  %118 = vmatpush1.msra.mxu0 0.0
  %119 = vmatprep.subr.mxu0 0.0
  %120 = vmatpush1.msra.mxu0 0.0
  %121 = vmatprep.subr.mxu0 0.0
  %122 = vmatpush1.msra.mxu0 0.0
  %123 = vmatprep.subr.mxu0 0.0
  %124 = vmatpush1.msra.mxu0 0.0
  %125 = vmatprep.subr.mxu0 0.0
  %126 = vmatpush1.msra.mxu0 0.0
  %127 = vmatprep.subr.mxu0 0.0
  %128 = vmatpush1.msra.mxu0 0.0
  %129 = vmatprep.subr.mxu0 0.0
  %130 = vmatpush1.msra.mxu0 0.0
  %131 = vmatprep.subr.mxu0 0.0
  %132 = vmatpush1.msra.mxu0 0.0
  %133 = vmatprep.subr.mxu0 0.0
  %134 = vmatpush1.msra.mxu0 0.0
  %135 = vmatprep.mubr.f32.mxu0 0.0
  %136 = vmatmul.mubr.f32.gmra.mrb[0].mxu0 %v60
  %v137 = vpop.f32.mrb[0].mxu0
  %v138 = vadd.f32 %v56, %v137
  %v139 = vpop.f32.mrb[0].mxu0
  %140 = vmatprep.mubr.f32.mxu0 0.0
  %141 = vmatmul.mubr.f32.gmra.mrb[0].mxu0 %v63
  %v142 = vpop.f32.mrb[0].mxu0
  %v143 = vadd.f32 %v56, %v142
  %v144 = vpop.f32.mrb[0].mxu0
  %145 = vmatprep.mubr.f32.mxu0 0.0
  %146 = vmatmul.mubr.f32.gmra.mrb[0].mxu0 %v66
  %v147 = vpop.f32.mrb[0].mxu0
  %v148 = vadd.f32 %v56, %v147
  %v149 = vpop.f32.mrb[0].mxu0
  %150 = vmatprep.mubr.f32.mxu0 0.0
  %151 = vmatmul.mubr.f32.gmra.mrb[0].mxu0 %v69
  %v152 = vpop.f32.mrb[0].mxu0
  %v153 = vadd.f32 %v56, %v152
  %v154 = vpop.f32.mrb[0].mxu0
  %155 = vdwg.mxu0
  %v157 = vlaneseq
  %v158 = vshrl.u32 %v157, 7
  %v159 = vsub.s32 0, %v158
  %v160 = vrot.slane %v51, %v159
  %162 = vmatprep.subr.mxu0 0.0
  %163 = vmatpush1.msra.mxu0 %v47
  %164 = vmatprep.subr.mxu0 0.0
  %165 = vmatpush1.msra.mxu0 %v48
  %166 = vmatprep.subr.mxu0 0.0
  %167 = vmatpush1.msra.mxu0 %v49
  %168 = vmatprep.subr.mxu0 0.0
  %169 = vmatpush1.msra.mxu0 %v50
  %170 = vmatprep.subr.mxu0 0.0
  %171 = vmatpush1.msra.mxu0 0.0
  %172 = vmatprep.subr.mxu0 0.0
  %173 = vmatpush1.msra.mxu0 0.0
  %174 = vmatprep.subr.mxu0 0.0
  %175 = vmatpush1.msra.mxu0 0.0
  %176 = vmatprep.subr.mxu0 0.0
  %177 = vmatpush1.msra.mxu0 0.0
  %178 = vmatprep.subr.mxu0 0.0
  %179 = vmatpush1.msra.mxu0 0.0
  %180 = vmatprep.subr.mxu0 0.0
  %181 = vmatpush1.msra.mxu0 0.0
  %182 = vmatprep.subr.mxu0 0.0
  %183 = vmatpush1.msra.mxu0 0.0
  %184 = vmatprep.subr.mxu0 0.0
  %185 = vmatpush1.msra.mxu0 0.0
  %186 = vmatprep.subr.mxu0 0.0
  %187 = vmatpush1.msra.mxu0 0.0
  %188 = vmatprep.subr.mxu0 0.0
  %189 = vmatpush1.msra.mxu0 0.0
  %190 = vmatprep.subr.mxu0 0.0
  %191 = vmatpush1.msra.mxu0 0.0
  %192 = vmatprep.subr.mxu0 0.0
  %193 = vmatpush1.msra.mxu0 0.0
  %194 = vmatprep.subr.mxu0 0.0
  %195 = vmatpush1.msra.mxu0 0.0
  %196 = vmatprep.subr.mxu0 0.0
  %197 = vmatpush1.msra.mxu0 0.0
  %198 = vmatprep.subr.mxu0 0.0
  %199 = vmatpush1.msra.mxu0 0.0
  %200 = vmatprep.subr.mxu0 0.0
  %201 = vmatpush1.msra.mxu0 0.0
  %202 = vmatprep.subr.mxu0 0.0
  %203 = vmatpush1.msra.mxu0 0.0
  %204 = vmatprep.subr.mxu0 0.0
  %205 = vmatpush1.msra.mxu0 0.0
  %206 = vmatprep.subr.mxu0 0.0
  %207 = vmatpush1.msra.mxu0 0.0
  %208 = vmatprep.subr.mxu0 0.0
  %209 = vmatpush1.msra.mxu0 0.0
  %210 = vmatprep.subr.mxu0 0.0
  %211 = vmatpush1.msra.mxu0 0.0
  %212 = vmatprep.subr.mxu0 0.0
  %213 = vmatpush1.msra.mxu0 0.0
  %214 = vmatprep.subr.mxu0 0.0
  %215 = vmatpush1.msra.mxu0 0.0
  %216 = vmatprep.subr.mxu0 0.0
  %217 = vmatpush1.msra.mxu0 0.0
  %218 = vmatprep.subr.mxu0 0.0
  %219 = vmatpush1.msra.mxu0 0.0
  %220 = vmatprep.subr.mxu0 0.0
  %221 = vmatpush1.msra.mxu0 0.0
  %222 = vmatprep.subr.mxu0 0.0
  %223 = vmatpush1.msra.mxu0 0.0
  %224 = vmatprep.subr.mxu0 0.0
  %225 = vmatpush1.msra.mxu0 0.0
  %226 = vmatprep.mubr.f32.mxu0 0.0
  %227 = vmatmul.mubr.f32.gmra.mrb[0].mxu0 %v60
  %v228 = vpop.f32.mrb[0].mxu0
  %v229 = vadd.f32 %v160, %v228
  %v230 = vpop.f32.mrb[0].mxu0
  %231 = vmatprep.mubr.f32.mxu0 0.0
  %232 = vmatmul.mubr.f32.gmra.mrb[0].mxu0 %v63
  %v233 = vpop.f32.mrb[0].mxu0
  %v234 = vadd.f32 %v160, %v233
  %v235 = vpop.f32.mrb[0].mxu0
  %236 = vmatprep.mubr.f32.mxu0 0.0
  %237 = vmatmul.mubr.f32.gmra.mrb[0].mxu0 %v66
  %v238 = vpop.f32.mrb[0].mxu0
  %v239 = vadd.f32 %v160, %v238
  %v240 = vpop.f32.mrb[0].mxu0
  %241 = vmatprep.mubr.f32.mxu0 0.0
  %242 = vmatmul.mubr.f32.gmra.mrb[0].mxu0 %v69
  %v243 = vpop.f32.mrb[0].mxu0
  %v244 = vadd.f32 %v160, %v243
  %v245 = vpop.f32.mrb[0].mxu0
  %246 = vdwg.mxu0
  %v247 = vmul.f32 %v138, %v229
  %v248 = vmul.f32 %v143, %v234
  %v249 = vmul.f32 %v148, %v239
  %v250 = vmul.f32 %v153, %v244
  %v251 = vsel %vm58, %v247, 0.0
  %252 = vadd.xlane.f32.xlu0 %v251
  %v253 = vpop.xlane.xlu0 %252
  %v254 = vsel %vm58, %v248, 0.0
  %255 = vadd.xlane.f32.xlu0 %v254
  %v256 = vpop.xlane.xlu0 %255
  %v257 = vsel %vm58, %v249, 0.0
  %258 = vadd.xlane.f32.xlu0 %v257
  %v259 = vpop.xlane.xlu0 %258
  %v260 = vsel %vm58, %v250, 0.0
  %261 = vadd.xlane.f32.xlu0 %v260
  %v262 = vpop.xlane.xlu0 %261
  %v267 = vlaneseq
  %v268 = vand.u32 %v267, 127
  %v269 = vlaneseq
  %v270 = vshrl.u32 %v269, 7
  %v271 = vsub.s32 %v268, %v270
  %v272 = vrot.slane %v253, %v271
  %v273 = vadd.s32 %v268, 4294967288
  %v274 = vlaneseq
  %v275 = vshrl.u32 %v274, 7
  %v276 = vsub.s32 %v273, %v275
  %v277 = vrot.slane %v256, %v276
  %vm278 = vcmask 130112
  %v279 = vsel %vm278, %v277, %v272
  %v280 = vlaneseq
  %v281 = vshrl.u32 %v280, 7
  %v282 = vsub.s32 %v268, %v281
  %v283 = vrot.slane %v259, %v282
  %v284 = vlaneseq
  %v285 = vshrl.u32 %v284, 7
  %v286 = vsub.s32 %v273, %v285
  %v287 = vrot.slane %v262, %v286
  %v288 = vsel %vm278, %v287, %v283
  %vm289 = vcmask 1041409
  %v290 = vsel %vm289, %v288, %v279
  %vm292 = vcmask 123904
  %v293 = vsel %vm292, %v290, 0.0
  %294 = vadd.xlane.f32.xlu0 %v293
  %v295 = vpop.xlane.xlu0 %294
  %vm300 = vcmask 1040384
  %v301 = vrot.slane %v234, 7
  %v302 = vrot.slane %v229, 7
  %v303 = vsel %vm300, %v301, %v302
  %v304 = vsel %vm300, %v302, %v301
  %v305 = vrot.slane %v244, 7
  %v306 = vrot.slane %v239, 7
  %v307 = vsel %vm300, %v305, %v306
  %v308 = vsel %vm300, %v306, %v305
  %v313 = vmul.f32 %v138, %v303
  %v314 = vmul.f32 %v143, %v304
  %v315 = vmul.f32 %v148, %v307
  %v316 = vmul.f32 %v153, %v308
  %v317 = vsel %vm58, %v313, 0.0
  %318 = vadd.xlane.f32.xlu0 %v317
  %v319 = vpop.xlane.xlu0 %318
  %v320 = vsel %vm58, %v314, 0.0
  %321 = vadd.xlane.f32.xlu0 %v320
  %v322 = vpop.xlane.xlu0 %321
  %v323 = vsel %vm58, %v315, 0.0
  %324 = vadd.xlane.f32.xlu0 %v323
  %v325 = vpop.xlane.xlu0 %324
  %v326 = vsel %vm58, %v316, 0.0
  %327 = vadd.xlane.f32.xlu0 %v326
  %v328 = vpop.xlane.xlu0 %327
  %v333 = vlaneseq
  %v334 = vshrl.u32 %v333, 7
  %v335 = vsub.s32 %v268, %v334
  %v336 = vrot.slane %v319, %v335
  %v337 = vlaneseq
  %v338 = vshrl.u32 %v337, 7
  %v339 = vsub.s32 %v273, %v338
  %v340 = vrot.slane %v322, %v339
  %v341 = vsel %vm278, %v340, %v336
  %v342 = vlaneseq
  %v343 = vshrl.u32 %v342, 7
  %v344 = vsub.s32 %v268, %v343
  %v345 = vrot.slane %v325, %v344
  %v346 = vlaneseq
  %v347 = vshrl.u32 %v346, 7
  %v348 = vsub.s32 %v273, %v347
  %v349 = vrot.slane %v328, %v348
  %v350 = vsel %vm278, %v349, %v345
  %v351 = vsel %vm289, %v350, %v341
  %v353 = vsel %vm292, %v351, 0.0
  %354 = vadd.xlane.f32.xlu0 %v353
  %v355 = vpop.xlane.xlu0 %354
  %vm356 = vcmask 1041408
  %v357 = vrot.slane %v234, 6
  %v358 = vrot.slane %v229, 6
  %v359 = vsel %vm356, %v357, %v358
  %v360 = vsel %vm356, %v358, %v357
  %v361 = vrot.slane %v244, 6
  %v362 = vrot.slane %v239, 6
  %v363 = vsel %vm356, %v361, %v362
  %v364 = vsel %vm356, %v362, %v361
  %v369 = vmul.f32 %v138, %v359
  %v370 = vmul.f32 %v143, %v360
  %v371 = vmul.f32 %v148, %v363
  %v372 = vmul.f32 %v153, %v364
  %v373 = vsel %vm58, %v369, 0.0
  %374 = vadd.xlane.f32.xlu0 %v373
  %v375 = vpop.xlane.xlu0 %374
  %v376 = vsel %vm58, %v370, 0.0
  %377 = vadd.xlane.f32.xlu0 %v376
  %v378 = vpop.xlane.xlu0 %377
  %v379 = vsel %vm58, %v371, 0.0
  %380 = vadd.xlane.f32.xlu0 %v379
  %v381 = vpop.xlane.xlu0 %380
  %v382 = vsel %vm58, %v372, 0.0
  %383 = vadd.xlane.f32.xlu0 %v382
  %v384 = vpop.xlane.xlu0 %383
  %v389 = vlaneseq
  %v390 = vshrl.u32 %v389, 7
  %v391 = vsub.s32 %v268, %v390
  %v392 = vrot.slane %v375, %v391
  %v393 = vlaneseq
  %v394 = vshrl.u32 %v393, 7
  %v395 = vsub.s32 %v273, %v394
  %v396 = vrot.slane %v378, %v395
  %v397 = vsel %vm278, %v396, %v392
  %v398 = vlaneseq
  %v399 = vshrl.u32 %v398, 7
  %v400 = vsub.s32 %v268, %v399
  %v401 = vrot.slane %v381, %v400
  %v402 = vlaneseq
  %v403 = vshrl.u32 %v402, 7
  %v404 = vsub.s32 %v273, %v403
  %v405 = vrot.slane %v384, %v404
  %v406 = vsel %vm278, %v405, %v401
  %v407 = vsel %vm289, %v406, %v397
  %v409 = vsel %vm292, %v407, 0.0
  %410 = vadd.xlane.f32.xlu0 %v409
  %v411 = vpop.xlane.xlu0 %410
  %vm412 = vcmask 1042432
  %v413 = vrot.slane %v234, 5
  %v414 = vrot.slane %v229, 5
  %v415 = vsel %vm412, %v413, %v414
  %v416 = vsel %vm412, %v414, %v413
  %v417 = vrot.slane %v244, 5
  %v418 = vrot.slane %v239, 5
  %v419 = vsel %vm412, %v417, %v418
  %v420 = vsel %vm412, %v418, %v417
  %v425 = vmul.f32 %v138, %v415
  %v426 = vmul.f32 %v143, %v416
  %v427 = vmul.f32 %v148, %v419
  %v428 = vmul.f32 %v153, %v420
  %v429 = vsel %vm58, %v425, 0.0
  %430 = vadd.xlane.f32.xlu0 %v429
  %v431 = vpop.xlane.xlu0 %430
  %v432 = vsel %vm58, %v426, 0.0
  %433 = vadd.xlane.f32.xlu0 %v432
  %v434 = vpop.xlane.xlu0 %433
  %v435 = vsel %vm58, %v427, 0.0
  %436 = vadd.xlane.f32.xlu0 %v435
  %v437 = vpop.xlane.xlu0 %436
  %v438 = vsel %vm58, %v428, 0.0
  %439 = vadd.xlane.f32.xlu0 %v438
  %v440 = vpop.xlane.xlu0 %439
  %v445 = vlaneseq
  %v446 = vshrl.u32 %v445, 7
  %v447 = vsub.s32 %v268, %v446
  %v448 = vrot.slane %v431, %v447
  %v449 = vlaneseq
  %v450 = vshrl.u32 %v449, 7
  %v451 = vsub.s32 %v273, %v450
  %v452 = vrot.slane %v434, %v451
  %v453 = vsel %vm278, %v452, %v448
  %v454 = vlaneseq
  %v455 = vshrl.u32 %v454, 7
  %v456 = vsub.s32 %v268, %v455
  %v457 = vrot.slane %v437, %v456
  %v458 = vlaneseq
  %v459 = vshrl.u32 %v458, 7
  %v460 = vsub.s32 %v273, %v459
  %v461 = vrot.slane %v440, %v460
  %v462 = vsel %vm278, %v461, %v457
  %v463 = vsel %vm289, %v462, %v453
  %v465 = vsel %vm292, %v463, 0.0
  %466 = vadd.xlane.f32.xlu0 %v465
  %v467 = vpop.xlane.xlu0 %466
  %vm468 = vcmask 1043456
  %v469 = vrot.slane %v234, 4
  %v470 = vrot.slane %v229, 4
  %v471 = vsel %vm468, %v469, %v470
  %v472 = vsel %vm468, %v470, %v469
  %v473 = vrot.slane %v244, 4
  %v474 = vrot.slane %v239, 4
  %v475 = vsel %vm468, %v473, %v474
  %v476 = vsel %vm468, %v474, %v473
  %v481 = vmul.f32 %v138, %v471
  %v482 = vmul.f32 %v143, %v472
  %v483 = vmul.f32 %v148, %v475
  %v484 = vmul.f32 %v153, %v476
  %v485 = vsel %vm58, %v481, 0.0
  %486 = vadd.xlane.f32.xlu0 %v485
  %v487 = vpop.xlane.xlu0 %486
  %v488 = vsel %vm58, %v482, 0.0
  %489 = vadd.xlane.f32.xlu0 %v488
  %v490 = vpop.xlane.xlu0 %489
  %v491 = vsel %vm58, %v483, 0.0
  %492 = vadd.xlane.f32.xlu0 %v491
  %v493 = vpop.xlane.xlu0 %492
  %v494 = vsel %vm58, %v484, 0.0
  %495 = vadd.xlane.f32.xlu0 %v494
  %v496 = vpop.xlane.xlu0 %495
  %v501 = vlaneseq
  %v502 = vshrl.u32 %v501, 7
  %v503 = vsub.s32 %v268, %v502
  %v504 = vrot.slane %v487, %v503
  %v505 = vlaneseq
  %v506 = vshrl.u32 %v505, 7
  %v507 = vsub.s32 %v273, %v506
  %v508 = vrot.slane %v490, %v507
  %v509 = vsel %vm278, %v508, %v504
  %v510 = vlaneseq
  %v511 = vshrl.u32 %v510, 7
  %v512 = vsub.s32 %v268, %v511
  %v513 = vrot.slane %v493, %v512
  %v514 = vlaneseq
  %v515 = vshrl.u32 %v514, 7
  %v516 = vsub.s32 %v273, %v515
  %v517 = vrot.slane %v496, %v516
  %v518 = vsel %vm278, %v517, %v513
  %v519 = vsel %vm289, %v518, %v509
  %v521 = vsel %vm292, %v519, 0.0
  %522 = vadd.xlane.f32.xlu0 %v521
  %v523 = vpop.xlane.xlu0 %522
  %vm524 = vcmask 1044480
  %v525 = vrot.slane %v234, 3
  %v526 = vrot.slane %v229, 3
  %v527 = vsel %vm524, %v525, %v526
  %v528 = vsel %vm524, %v526, %v525
  %v529 = vrot.slane %v244, 3
  %v530 = vrot.slane %v239, 3
  %v531 = vsel %vm524, %v529, %v530
  %v532 = vsel %vm524, %v530, %v529
  %v537 = vmul.f32 %v138, %v527
  %v538 = vmul.f32 %v143, %v528
  %v539 = vmul.f32 %v148, %v531
  %v540 = vmul.f32 %v153, %v532
  %v541 = vsel %vm58, %v537, 0.0
  %542 = vadd.xlane.f32.xlu0 %v541
  %v543 = vpop.xlane.xlu0 %542
  %v544 = vsel %vm58, %v538, 0.0
  %545 = vadd.xlane.f32.xlu0 %v544
  %v546 = vpop.xlane.xlu0 %545
  %v547 = vsel %vm58, %v539, 0.0
  %548 = vadd.xlane.f32.xlu0 %v547
  %v549 = vpop.xlane.xlu0 %548
  %v550 = vsel %vm58, %v540, 0.0
  %551 = vadd.xlane.f32.xlu0 %v550
  %v552 = vpop.xlane.xlu0 %551
  %v557 = vlaneseq
  %v558 = vshrl.u32 %v557, 7
  %v559 = vsub.s32 %v268, %v558
  %v560 = vrot.slane %v543, %v559
  %v561 = vlaneseq
  %v562 = vshrl.u32 %v561, 7
  %v563 = vsub.s32 %v273, %v562
  %v564 = vrot.slane %v546, %v563
  %v565 = vsel %vm278, %v564, %v560
  %v566 = vlaneseq
  %v567 = vshrl.u32 %v566, 7
  %v568 = vsub.s32 %v268, %v567
  %v569 = vrot.slane %v549, %v568
  %v570 = vlaneseq
  %v571 = vshrl.u32 %v570, 7
  %v572 = vsub.s32 %v273, %v571
  %v573 = vrot.slane %v552, %v572
  %v574 = vsel %vm278, %v573, %v569
  %v575 = vsel %vm289, %v574, %v565
  %v577 = vsel %vm292, %v575, 0.0
  %578 = vadd.xlane.f32.xlu0 %v577
  %v579 = vpop.xlane.xlu0 %578
  %vm580 = vcmask 1045504
  %v581 = vrot.slane %v234, 2
  %v582 = vrot.slane %v229, 2
  %v583 = vsel %vm580, %v581, %v582
  %v584 = vsel %vm580, %v582, %v581
  %v585 = vrot.slane %v244, 2
  %v586 = vrot.slane %v239, 2
  %v587 = vsel %vm580, %v585, %v586
  %v588 = vsel %vm580, %v586, %v585
  %v593 = vmul.f32 %v138, %v583
  %v594 = vmul.f32 %v143, %v584
  %v595 = vmul.f32 %v148, %v587
  %v596 = vmul.f32 %v153, %v588
  %v597 = vsel %vm58, %v593, 0.0
  %598 = vadd.xlane.f32.xlu0 %v597
  %v599 = vpop.xlane.xlu0 %598
  %v600 = vsel %vm58, %v594, 0.0
  %601 = vadd.xlane.f32.xlu0 %v600
  %v602 = vpop.xlane.xlu0 %601
  %v603 = vsel %vm58, %v595, 0.0
  %604 = vadd.xlane.f32.xlu0 %v603
  %v605 = vpop.xlane.xlu0 %604
  %v606 = vsel %vm58, %v596, 0.0
  %607 = vadd.xlane.f32.xlu0 %v606
  %v608 = vpop.xlane.xlu0 %607
  %v613 = vlaneseq
  %v614 = vshrl.u32 %v613, 7
  %v615 = vsub.s32 %v268, %v614
  %v616 = vrot.slane %v599, %v615
  %v617 = vlaneseq
  %v618 = vshrl.u32 %v617, 7
  %v619 = vsub.s32 %v273, %v618
  %v620 = vrot.slane %v602, %v619
  %v621 = vsel %vm278, %v620, %v616
  %v622 = vlaneseq
  %v623 = vshrl.u32 %v622, 7
  %v624 = vsub.s32 %v268, %v623
  %v625 = vrot.slane %v605, %v624
  %v626 = vlaneseq
  %v627 = vshrl.u32 %v626, 7
  %v628 = vsub.s32 %v273, %v627
  %v629 = vrot.slane %v608, %v628
  %v630 = vsel %vm278, %v629, %v625
  %v631 = vsel %vm289, %v630, %v621
  %v633 = vsel %vm292, %v631, 0.0
  %634 = vadd.xlane.f32.xlu0 %v633
  %v635 = vpop.xlane.xlu0 %634
  %vm636 = vcmask 1046528
  %v637 = vrot.slane %v234, 1
  %v638 = vrot.slane %v229, 1
  %v639 = vsel %vm636, %v637, %v638
  %v640 = vsel %vm636, %v638, %v637
  %v641 = vrot.slane %v244, 1
  %v642 = vrot.slane %v239, 1
  %v643 = vsel %vm636, %v641, %v642
  %v644 = vsel %vm636, %v642, %v641
  %v649 = vmul.f32 %v138, %v639
  %v650 = vmul.f32 %v143, %v640
  %v651 = vmul.f32 %v148, %v643
  %v652 = vmul.f32 %v153, %v644
  %v653 = vsel %vm58, %v649, 0.0
  %654 = vadd.xlane.f32.xlu0 %v653
  %v655 = vpop.xlane.xlu0 %654
  %v656 = vsel %vm58, %v650, 0.0
  %657 = vadd.xlane.f32.xlu0 %v656
  %v658 = vpop.xlane.xlu0 %657
  %v659 = vsel %vm58, %v651, 0.0
  %660 = vadd.xlane.f32.xlu0 %v659
  %v661 = vpop.xlane.xlu0 %660
  %v662 = vsel %vm58, %v652, 0.0
  %663 = vadd.xlane.f32.xlu0 %v662
  %v664 = vpop.xlane.xlu0 %663
  %v669 = vlaneseq
  %v670 = vshrl.u32 %v669, 7
  %v671 = vsub.s32 %v268, %v670
  %v672 = vrot.slane %v655, %v671
  %v673 = vlaneseq
  %v674 = vshrl.u32 %v673, 7
  %v675 = vsub.s32 %v273, %v674
  %v676 = vrot.slane %v658, %v675
  %v677 = vsel %vm278, %v676, %v672
  %v678 = vlaneseq
  %v679 = vshrl.u32 %v678, 7
  %v680 = vsub.s32 %v268, %v679
  %v681 = vrot.slane %v661, %v680
  %v682 = vlaneseq
  %v683 = vshrl.u32 %v682, 7
  %v684 = vsub.s32 %v273, %v683
  %v685 = vrot.slane %v664, %v684
  %v686 = vsel %vm278, %v685, %v681
  %v687 = vsel %vm289, %v686, %v677
  %v689 = vsel %vm292, %v687, 0.0
  %690 = vadd.xlane.f32.xlu0 %v689
  %v691 = vpop.xlane.xlu0 %690
  %v692 = vmul.f32 %v138, %v234
  %v693 = vmul.f32 %v143, %v229
  %v694 = vmul.f32 %v148, %v244
  %v695 = vmul.f32 %v153, %v239
  %v696 = vsel %vm58, %v692, 0.0
  %697 = vadd.xlane.f32.xlu0 %v696
  %v698 = vpop.xlane.xlu0 %697
  %v699 = vsel %vm58, %v693, 0.0
  %700 = vadd.xlane.f32.xlu0 %v699
  %v701 = vpop.xlane.xlu0 %700
  %v702 = vsel %vm58, %v694, 0.0
  %703 = vadd.xlane.f32.xlu0 %v702
  %v704 = vpop.xlane.xlu0 %703
  %v705 = vsel %vm58, %v695, 0.0
  %706 = vadd.xlane.f32.xlu0 %v705
  %v707 = vpop.xlane.xlu0 %706
  %v712 = vlaneseq
  %v713 = vshrl.u32 %v712, 7
  %v714 = vsub.s32 %v268, %v713
  %v715 = vrot.slane %v698, %v714
  %v716 = vlaneseq
  %v717 = vshrl.u32 %v716, 7
  %v718 = vsub.s32 %v273, %v717
  %v719 = vrot.slane %v701, %v718
  %v720 = vsel %vm278, %v719, %v715
  %v721 = vlaneseq
  %v722 = vshrl.u32 %v721, 7
  %v723 = vsub.s32 %v268, %v722
  %v724 = vrot.slane %v704, %v723
  %v725 = vlaneseq
  %v726 = vshrl.u32 %v725, 7
  %v727 = vsub.s32 %v273, %v726
  %v728 = vrot.slane %v707, %v727
  %v729 = vsel %vm278, %v728, %v724
  %v730 = vsel %vm289, %v729, %v720
  %v732 = vsel %vm292, %v730, 0.0
  %733 = vadd.xlane.f32.xlu0 %v732
  %v734 = vpop.xlane.xlu0 %733
  %v735 = vmul.f32 %v138, %v304
  %v736 = vmul.f32 %v143, %v303
  %v737 = vmul.f32 %v148, %v308
  %v738 = vmul.f32 %v153, %v307
  %v739 = vsel %vm58, %v735, 0.0
  %740 = vadd.xlane.f32.xlu0 %v739
  %v741 = vpop.xlane.xlu0 %740
  %v742 = vsel %vm58, %v736, 0.0
  %743 = vadd.xlane.f32.xlu0 %v742
  %v744 = vpop.xlane.xlu0 %743
  %v745 = vsel %vm58, %v737, 0.0
  %746 = vadd.xlane.f32.xlu0 %v745
  %v747 = vpop.xlane.xlu0 %746
  %v748 = vsel %vm58, %v738, 0.0
  %749 = vadd.xlane.f32.xlu0 %v748
  %v750 = vpop.xlane.xlu0 %749
  %v755 = vlaneseq
  %v756 = vshrl.u32 %v755, 7
  %v757 = vsub.s32 %v268, %v756
  %v758 = vrot.slane %v741, %v757
  %v759 = vlaneseq
  %v760 = vshrl.u32 %v759, 7
  %v761 = vsub.s32 %v273, %v760
  %v762 = vrot.slane %v744, %v761
  %v763 = vsel %vm278, %v762, %v758
  %v764 = vlaneseq
  %v765 = vshrl.u32 %v764, 7
  %v766 = vsub.s32 %v268, %v765
  %v767 = vrot.slane %v747, %v766
  %v768 = vlaneseq
  %v769 = vshrl.u32 %v768, 7
  %v770 = vsub.s32 %v273, %v769
  %v771 = vrot.slane %v750, %v770
  %v772 = vsel %vm278, %v771, %v767
  %v773 = vsel %vm289, %v772, %v763
  %v775 = vsel %vm292, %v773, 0.0
  %776 = vadd.xlane.f32.xlu0 %v775
  %v777 = vpop.xlane.xlu0 %776
  %v778 = vmul.f32 %v138, %v360
  %v779 = vmul.f32 %v143, %v359
  %v780 = vmul.f32 %v148, %v364
  %v781 = vmul.f32 %v153, %v363
  %v782 = vsel %vm58, %v778, 0.0
  %783 = vadd.xlane.f32.xlu0 %v782
  %v784 = vpop.xlane.xlu0 %783
  %v785 = vsel %vm58, %v779, 0.0
  %786 = vadd.xlane.f32.xlu0 %v785
  %v787 = vpop.xlane.xlu0 %786
  %v788 = vsel %vm58, %v780, 0.0
  %789 = vadd.xlane.f32.xlu0 %v788
  %v790 = vpop.xlane.xlu0 %789
  %v791 = vsel %vm58, %v781, 0.0
  %792 = vadd.xlane.f32.xlu0 %v791
  %v793 = vpop.xlane.xlu0 %792
  %v798 = vlaneseq
  %v799 = vshrl.u32 %v798, 7
  %v800 = vsub.s32 %v268, %v799
  %v801 = vrot.slane %v784, %v800
  %v802 = vlaneseq
  %v803 = vshrl.u32 %v802, 7
  %v804 = vsub.s32 %v273, %v803
  %v805 = vrot.slane %v787, %v804
  %v806 = vsel %vm278, %v805, %v801
  %v807 = vlaneseq
  %v808 = vshrl.u32 %v807, 7
  %v809 = vsub.s32 %v268, %v808
  %v810 = vrot.slane %v790, %v809
  %v811 = vlaneseq
  %v812 = vshrl.u32 %v811, 7
  %v813 = vsub.s32 %v273, %v812
  %v814 = vrot.slane %v793, %v813
  %v815 = vsel %vm278, %v814, %v810
  %v816 = vsel %vm289, %v815, %v806
  %v818 = vsel %vm292, %v816, 0.0
  %819 = vadd.xlane.f32.xlu0 %v818
  %v820 = vpop.xlane.xlu0 %819
  %v821 = vmul.f32 %v138, %v416
  %v822 = vmul.f32 %v143, %v415
  %v823 = vmul.f32 %v148, %v420
  %v824 = vmul.f32 %v153, %v419
  %v825 = vsel %vm58, %v821, 0.0
  %826 = vadd.xlane.f32.xlu0 %v825
  %v827 = vpop.xlane.xlu0 %826
  %v828 = vsel %vm58, %v822, 0.0
  %829 = vadd.xlane.f32.xlu0 %v828
  %v830 = vpop.xlane.xlu0 %829
  %v831 = vsel %vm58, %v823, 0.0
  %832 = vadd.xlane.f32.xlu0 %v831
  %v833 = vpop.xlane.xlu0 %832
  %v834 = vsel %vm58, %v824, 0.0
  %835 = vadd.xlane.f32.xlu0 %v834
  %v836 = vpop.xlane.xlu0 %835
  %v841 = vlaneseq
  %v842 = vshrl.u32 %v841, 7
  %v843 = vsub.s32 %v268, %v842
  %v844 = vrot.slane %v827, %v843
  %v845 = vlaneseq
  %v846 = vshrl.u32 %v845, 7
  %v847 = vsub.s32 %v273, %v846
  %v848 = vrot.slane %v830, %v847
  %v849 = vsel %vm278, %v848, %v844
  %v850 = vlaneseq
  %v851 = vshrl.u32 %v850, 7
  %v852 = vsub.s32 %v268, %v851
  %v853 = vrot.slane %v833, %v852
  %v854 = vlaneseq
  %v855 = vshrl.u32 %v854, 7
  %v856 = vsub.s32 %v273, %v855
  %v857 = vrot.slane %v836, %v856
  %v858 = vsel %vm278, %v857, %v853
  %v859 = vsel %vm289, %v858, %v849
  %v861 = vsel %vm292, %v859, 0.0
  %862 = vadd.xlane.f32.xlu0 %v861
  %v863 = vpop.xlane.xlu0 %862
  %v864 = vmul.f32 %v138, %v472
  %v865 = vmul.f32 %v143, %v471
  %v866 = vmul.f32 %v148, %v476
  %v867 = vmul.f32 %v153, %v475
  %v868 = vsel %vm58, %v864, 0.0
  %869 = vadd.xlane.f32.xlu0 %v868
  %v870 = vpop.xlane.xlu0 %869
  %v871 = vsel %vm58, %v865, 0.0
  %872 = vadd.xlane.f32.xlu0 %v871
  %v873 = vpop.xlane.xlu0 %872
  %v874 = vsel %vm58, %v866, 0.0
  %875 = vadd.xlane.f32.xlu0 %v874
  %v876 = vpop.xlane.xlu0 %875
  %v877 = vsel %vm58, %v867, 0.0
  %878 = vadd.xlane.f32.xlu0 %v877
  %v879 = vpop.xlane.xlu0 %878
  %v884 = vlaneseq
  %v885 = vshrl.u32 %v884, 7
  %v886 = vsub.s32 %v268, %v885
  %v887 = vrot.slane %v870, %v886
  %v888 = vlaneseq
  %v889 = vshrl.u32 %v888, 7
  %v890 = vsub.s32 %v273, %v889
  %v891 = vrot.slane %v873, %v890
  %v892 = vsel %vm278, %v891, %v887
  %v893 = vlaneseq
  %v894 = vshrl.u32 %v893, 7
  %v895 = vsub.s32 %v268, %v894
  %v896 = vrot.slane %v876, %v895
  %v897 = vlaneseq
  %v898 = vshrl.u32 %v897, 7
  %v899 = vsub.s32 %v273, %v898
  %v900 = vrot.slane %v879, %v899
  %v901 = vsel %vm278, %v900, %v896
  %v902 = vsel %vm289, %v901, %v892
  %v904 = vsel %vm292, %v902, 0.0
  %905 = vadd.xlane.f32.xlu0 %v904
  %v906 = vpop.xlane.xlu0 %905
  %v907 = vmul.f32 %v138, %v528
  %v908 = vmul.f32 %v143, %v527
  %v909 = vmul.f32 %v148, %v532
  %v910 = vmul.f32 %v153, %v531
  %v911 = vsel %vm58, %v907, 0.0
  %912 = vadd.xlane.f32.xlu0 %v911
  %v913 = vpop.xlane.xlu0 %912
  %v914 = vsel %vm58, %v908, 0.0
  %915 = vadd.xlane.f32.xlu0 %v914
  %v916 = vpop.xlane.xlu0 %915
  %v917 = vsel %vm58, %v909, 0.0
  %918 = vadd.xlane.f32.xlu0 %v917
  %v919 = vpop.xlane.xlu0 %918
  %v920 = vsel %vm58, %v910, 0.0
  %921 = vadd.xlane.f32.xlu0 %v920
  %v922 = vpop.xlane.xlu0 %921
  %v927 = vlaneseq
  %v928 = vshrl.u32 %v927, 7
  %v929 = vsub.s32 %v268, %v928
  %v930 = vrot.slane %v913, %v929
  %v931 = vlaneseq
  %v932 = vshrl.u32 %v931, 7
  %v933 = vsub.s32 %v273, %v932
  %v934 = vrot.slane %v916, %v933
  %v935 = vsel %vm278, %v934, %v930
  %v936 = vlaneseq
  %v937 = vshrl.u32 %v936, 7
  %v938 = vsub.s32 %v268, %v937
  %v939 = vrot.slane %v919, %v938
  %v940 = vlaneseq
  %v941 = vshrl.u32 %v940, 7
  %v942 = vsub.s32 %v273, %v941
  %v943 = vrot.slane %v922, %v942
  %v944 = vsel %vm278, %v943, %v939
  %v945 = vsel %vm289, %v944, %v935
  %v947 = vsel %vm292, %v945, 0.0
  %948 = vadd.xlane.f32.xlu0 %v947
  %v949 = vpop.xlane.xlu0 %948
  %v950 = vmul.f32 %v138, %v584
  %v951 = vmul.f32 %v143, %v583
  %v952 = vmul.f32 %v148, %v588
  %v953 = vmul.f32 %v153, %v587
  %v954 = vsel %vm58, %v950, 0.0
  %955 = vadd.xlane.f32.xlu0 %v954
  %v956 = vpop.xlane.xlu0 %955
  %v957 = vsel %vm58, %v951, 0.0
  %958 = vadd.xlane.f32.xlu0 %v957
  %v959 = vpop.xlane.xlu0 %958
  %v960 = vsel %vm58, %v952, 0.0
  %961 = vadd.xlane.f32.xlu0 %v960
  %v962 = vpop.xlane.xlu0 %961
  %v963 = vsel %vm58, %v953, 0.0
  %964 = vadd.xlane.f32.xlu0 %v963
  %v965 = vpop.xlane.xlu0 %964
  %v970 = vlaneseq
  %v971 = vshrl.u32 %v970, 7
  %v972 = vsub.s32 %v268, %v971
  %v973 = vrot.slane %v956, %v972
  %v974 = vlaneseq
  %v975 = vshrl.u32 %v974, 7
  %v976 = vsub.s32 %v273, %v975
  %v977 = vrot.slane %v959, %v976
  %v978 = vsel %vm278, %v977, %v973
  %v979 = vlaneseq
  %v980 = vshrl.u32 %v979, 7
  %v981 = vsub.s32 %v268, %v980
  %v982 = vrot.slane %v962, %v981
  %v983 = vlaneseq
  %v984 = vshrl.u32 %v983, 7
  %v985 = vsub.s32 %v273, %v984
  %v986 = vrot.slane %v965, %v985
  %v987 = vsel %vm278, %v986, %v982
  %v988 = vsel %vm289, %v987, %v978
  %v990 = vsel %vm292, %v988, 0.0
  %991 = vadd.xlane.f32.xlu0 %v990
  %v992 = vpop.xlane.xlu0 %991
  %v993 = vmul.f32 %v138, %v640
  %v994 = vmul.f32 %v143, %v639
  %v995 = vmul.f32 %v148, %v644
  %v996 = vmul.f32 %v153, %v643
  %v997 = vsel %vm58, %v993, 0.0
  %998 = vadd.xlane.f32.xlu0 %v997
  %v999 = vpop.xlane.xlu0 %998
  %v1000 = vsel %vm58, %v994, 0.0
  %1001 = vadd.xlane.f32.xlu0 %v1000
  %v1002 = vpop.xlane.xlu0 %1001
  %v1003 = vsel %vm58, %v995, 0.0
  %1004 = vadd.xlane.f32.xlu0 %v1003
  %v1005 = vpop.xlane.xlu0 %1004
  %v1006 = vsel %vm58, %v996, 0.0
  %1007 = vadd.xlane.f32.xlu0 %v1006
  %v1008 = vpop.xlane.xlu0 %1007
  %v1013 = vlaneseq
  %v1014 = vshrl.u32 %v1013, 7
  %v1015 = vsub.s32 %v268, %v1014
  %v1016 = vrot.slane %v999, %v1015
  %v1017 = vlaneseq
  %v1018 = vshrl.u32 %v1017, 7
  %v1019 = vsub.s32 %v273, %v1018
  %v1020 = vrot.slane %v1002, %v1019
  %v1021 = vsel %vm278, %v1020, %v1016
  %v1022 = vlaneseq
  %v1023 = vshrl.u32 %v1022, 7
  %v1024 = vsub.s32 %v268, %v1023
  %v1025 = vrot.slane %v1005, %v1024
  %v1026 = vlaneseq
  %v1027 = vshrl.u32 %v1026, 7
  %v1028 = vsub.s32 %v273, %v1027
  %v1029 = vrot.slane %v1008, %v1028
  %v1030 = vsel %vm278, %v1029, %v1025
  %v1031 = vsel %vm289, %v1030, %v1021
  %v1033 = vsel %vm292, %v1031, 0.0
  %1034 = vadd.xlane.f32.xlu0 %v1033
  %v1035 = vpop.xlane.xlu0 %1034
  %vm1036 = vcmask 7168
  %v1037 = vsel %vm1036, %v295, %v355
  %vm1038 = vcmask 15360
  %v1039 = vsel %vm1038, %v1037, %v411
  %vm1040 = vcmask 23552
  %v1041 = vsel %vm1040, %v1039, %v467
  %vm1042 = vcmask 31744
  %v1043 = vsel %vm1042, %v1041, %v523
  %vm1044 = vcmask 39936
  %v1045 = vsel %vm1044, %v1043, %v579
  %vm1046 = vcmask 48128
  %v1047 = vsel %vm1046, %v1045, %v635
  %vm1048 = vcmask 56320
  %v1049 = vsel %vm1048, %v1047, %v691
  %vm1050 = vcmask 64512
  %v1051 = vsel %vm1050, %v1049, %v734
  %vm1052 = vcmask 72704
  %v1053 = vsel %vm1052, %v1051, %v777
  %vm1054 = vcmask 80896
  %v1055 = vsel %vm1054, %v1053, %v820
  %vm1056 = vcmask 89088
  %v1057 = vsel %vm1056, %v1055, %v863
  %vm1058 = vcmask 97280
  %v1059 = vsel %vm1058, %v1057, %v906
  %vm1060 = vcmask 105472
  %v1061 = vsel %vm1060, %v1059, %v949
  %vm1062 = vcmask 113664
  %v1063 = vsel %vm1062, %v1061, %v992
  %vm1064 = vcmask 121856
  %v1065 = vsel %vm1064, %v1063, %v1035
  %v1066 = vmul.f32 %v1065, 0.03125
  %v1067 = vsel %vm292, %v1066, -inf
  %1068 = vmax.xlane.f32.xlu0 %v1067
  %v1069 = vpop.xlane.xlu0 %1068
  %vm1070 = vcmp.eq.f32.partialorder %v1066, %v1069
  %v1071 = vsel %vm1070, %v268, 16
  %v1072 = vsel %vm292, %v1071, 2147483647
  %v1073 = vand.u32 %v1072, 65535
  %v1074 = vshra.s32 %v1072, 16
  %v1075 = vcvt.s32.f32 %v1073
  %v1076 = vcvt.s32.f32 %v1074
  %1077 = vmin.xlane.f32.xlu0 %v1076
  %v1078 = vpop.xlane.xlu0 %1077
  %vm1079 = vcmp.eq.f32.partialorder %v1076, %v1078
  %v1080 = vsel %vm1079, %v1075, inf
  %1081 = vmin.xlane.f32.xlu0 %v1080
  %v1082 = vpop.xlane.xlu0 %1081
  %v1083 = vcvt.f32.s32 %v1082
  %v1084 = vcvt.f32.s32 %v1078
  %v1085 = vshll.u32 %v1084, 16
  %v1086 = vadd.s32 %v1085, %v1083
  %vm1087 = vcmp.eq.s32.totalorder %v268, %v1086
  %v1088 = vsel %vm1087, -1e+30, %v1066
  %v1089 = vsel %vm292, %v1088, -inf
  %1090 = vmax.xlane.f32.xlu0 %v1089
  %v1091 = vpop.xlane.xlu0 %1090
  %vm1092 = vcmp.eq.f32.partialorder %v1088, %v1091
  %v1093 = vsel %vm1092, %v268, 16
  %v1094 = vsel %vm292, %v1093, 2147483647
  %v1095 = vand.u32 %v1094, 65535
  %v1096 = vshra.s32 %v1094, 16
  %v1097 = vcvt.s32.f32 %v1095
  %v1098 = vcvt.s32.f32 %v1096
  %1099 = vmin.xlane.f32.xlu0 %v1098
  %v1100 = vpop.xlane.xlu0 %1099
  %vm1101 = vcmp.eq.f32.partialorder %v1098, %v1100
  %v1102 = vsel %vm1101, %v1097, inf
  %1103 = vmin.xlane.f32.xlu0 %v1102
  %v1104 = vpop.xlane.xlu0 %1103
  %v1105 = vcvt.f32.s32 %v1104
  %v1106 = vcvt.f32.s32 %v1100
  %v1107 = vshll.u32 %v1106, 16
  %v1108 = vadd.s32 %v1107, %v1105
  %v1109 = vsel %vm1036, %v1069, %v1091
  %v1110 = vsub.f32 %v1109, %v1069
  %v1111 = vmul.f32 %v1110, 1.442695
  %v1112 = vpow.pop %v1111
  %vm1113 = vcmask 9216
  %v1114 = vsel %vm1113, %v1112, 0.0
  %1115 = vadd.xlane.f32.xlu0 %v1114
  %v1116 = vpop.xlane.xlu0 %1115
  %v1117 = vrcp.pop %v1116
  %v1118 = vmul.f32 %v1112, %v1117
  %v1119 = vlaneseq
  %v1120 = vshrl.u32 %v1119, 7
  %v1121 = vadd.s32 %v1120, 8
  %v1122 = vsub.s32 %v268, %v1120
  %v1123 = vsub.s32 %v268, %v1121
  %vm1124 = vcmp.lt.s32.totalorder %v1122, 0
  %vm1125 = vcmp.lt.s32.totalorder %v1123, 0
  %v1126 = vadd.s32 %v1122, 16
  %v1127 = vadd.s32 %v1123, 16
  %v1128 = vsel %vm1124, %v1126, %v1122
  %v1129 = vsel %vm1125, %v1127, %v1123
  %v1130 = vlaneseq
  %v1131 = vshrl.u32 %v1130, 7
  %v1132 = vsub.s32 0, %v1131
  %v1133 = vrot.slane %v1086, %v1132
  %v1134 = vlaneseq
  %v1135 = vshrl.u32 %v1134, 7
  %v1136 = vsub.s32 1, %v1135
  %v1137 = vrot.slane %v1086, %v1136
  %vm1138 = vcmp.eq.s32.totalorder %v1128, %v1133
  %vm1139 = vcmp.eq.s32.totalorder %v1129, %v1133
  %vm1140 = vcmp.eq.s32.totalorder %v1128, %v1137
  %vm1141 = vcmp.eq.s32.totalorder %v1129, %v1137
  %v1142 = vsel %vm1138, 1, 0
  %v1143 = vsel %vm1139, 1, 0
  %v1144 = vsel %vm1140, 1, 0
  %v1145 = vsel %vm1141, 1, 0
  %v1146 = vcvt.s32.f32 %v1142
  %v1147 = vcvt.s32.f32 %v1143
  %v1148 = vcvt.s32.f32 %v1144
  %v1149 = vcvt.s32.f32 %v1145
  %v1152 = vunpack.c.l.s4 1966171168
  %v1153 = vunpack.c.0.s8 %v1152
  %v1154 = vlaneseq
  %v1155 = vshrl.u32 %v1154, 7
  %v1156 = vsub.s32 %v1153, %v1155
  %v1157 = vrot.slane %v1118, %v1156
  %v1158 = vcombine.high %v1157, %v1157
  %v1160 = vunpack.c.l.s4 1966171168
  %v1161 = vunpack.c.0.s8 %v1160
  %v1162 = vlaneseq
  %v1163 = vshrl.u32 %v1162, 7
  %v1164 = vsub.s32 %v1161, %v1163
  %v1165 = vrot.slane %v1157, %v1164
  %v1167 = vunpack.c.l.s4 1966171168
  %v1168 = vunpack.c.0.s8 %v1167
  %v1169 = vlaneseq
  %v1170 = vshrl.u32 %v1169, 7
  %v1171 = vsub.s32 %v1168, %v1170
  %v1172 = vrot.slane %v1158, %v1171
  %v1173 = vlaneseq
  %v1174 = vshrl.u32 %v1173, 7
  %v1175 = vsub.s32 0, %v1174
  %v1176 = vrot.slane %v1165, %v1175
  %v1177 = vlaneseq
  %v1178 = vshrl.u32 %v1177, 7
  %v1179 = vsub.s32 0, %v1178
  %v1180 = vrot.slane %v1172, %v1179
  %1181 = vset.pattern.permute.xlu0 0
  %1182 = vperm.xlu0 %1181, %v1176
  %v1183 = vpop.permute.xlu0 %1182
  %1185 = vset.pattern.permute.xlu0 0
  %1186 = vperm.xlu0 %1185, %v1180
  %v1187 = vpop.permute.xlu0 %1186
  %v1189 = vmul.f32 %v1183, %v1146
  %v1190 = vmul.f32 %v1183, %v1147
  %v1191 = vmul.f32 %v1187, %v1148
  %v1192 = vmul.f32 %v1187, %v1149
  %v1193 = vadd.f32 %v1189, 0.0
  %v1194 = vadd.f32 %v1190, 0.0
  %v1195 = vadd.f32 %v1191, 0.0
  %v1196 = vadd.f32 %v1192, 0.0
  %v1197 = vlaneseq
  %v1198 = vshrl.u32 %v1197, 7
  %v1199 = vsub.s32 0, %v1198
  %v1200 = vrot.slane %v1108, %v1199
  %v1201 = vlaneseq
  %v1202 = vshrl.u32 %v1201, 7
  %v1203 = vsub.s32 1, %v1202
  %v1204 = vrot.slane %v1108, %v1203
  %vm1205 = vcmp.eq.s32.totalorder %v1128, %v1200
  %vm1206 = vcmp.eq.s32.totalorder %v1129, %v1200
  %vm1207 = vcmp.eq.s32.totalorder %v1128, %v1204
  %vm1208 = vcmp.eq.s32.totalorder %v1129, %v1204
  %v1209 = vsel %vm1205, 1, 0
  %v1210 = vsel %vm1206, 1, 0
  %v1211 = vsel %vm1207, 1, 0
  %v1212 = vsel %vm1208, 1, 0
  %v1213 = vcvt.s32.f32 %v1209
  %v1214 = vcvt.s32.f32 %v1210
  %v1215 = vcvt.s32.f32 %v1211
  %v1216 = vcvt.s32.f32 %v1212
  %1217 = vset.pattern.permute.xlu0 1
  %1218 = vperm.xlu0 %1217, %v1176
  %v1219 = vpop.permute.xlu0 %1218
  %1221 = vset.pattern.permute.xlu0 1
  %1222 = vperm.xlu0 %1221, %v1180
  %v1223 = vpop.permute.xlu0 %1222
  %v1225 = vmul.f32 %v1219, %v1213
  %v1226 = vmul.f32 %v1219, %v1214
  %v1227 = vmul.f32 %v1223, %v1215
  %v1228 = vmul.f32 %v1223, %v1216
  %v1229 = vadd.f32 %v1193, %v1225
  %v1230 = vadd.f32 %v1194, %v1226
  %v1231 = vadd.f32 %v1195, %v1227
  %v1232 = vadd.f32 %v1196, %v1228
  %1233 = vrot.lane.b32.xlu0 %v229, 96
  %v1234 = vpop.permute.xlu0 %1233
  %1235 = vrot.lane.b32.xlu0 %v234, 96
  %v1236 = vpop.permute.xlu0 %1235
  %vm1239 = vcmask 130048
  %v1241 = vsel %vm1239, %v1229, 0
  %v1244 = vsel %vm1239, %v1230, 0
  %1246 = vmatprep.subr.mxu0 0.0
  %1247 = vmatpush1.msra.mxu0 %v1234
  %1248 = vmatprep.subr.mxu0 0.0
  %1249 = vmatpush1.msra.mxu0 %v1236
  %1250 = vmatprep.subr.mxu0 0.0
  %1251 = vmatpush1.msra.mxu0 0.0
  %1252 = vmatprep.subr.mxu0 0.0
  %1253 = vmatpush1.msra.mxu0 0.0
  %1254 = vmatprep.subr.mxu0 0.0
  %1255 = vmatpush1.msra.mxu0 0.0
  %1256 = vmatprep.subr.mxu0 0.0
  %1257 = vmatpush1.msra.mxu0 0.0
  %1258 = vmatprep.subr.mxu0 0.0
  %1259 = vmatpush1.msra.mxu0 0.0
  %1260 = vmatprep.subr.mxu0 0.0
  %1261 = vmatpush1.msra.mxu0 0.0
  %1262 = vmatprep.subr.mxu0 0.0
  %1263 = vmatpush1.msra.mxu0 0.0
  %1264 = vmatprep.subr.mxu0 0.0
  %1265 = vmatpush1.msra.mxu0 0.0
  %1266 = vmatprep.subr.mxu0 0.0
  %1267 = vmatpush1.msra.mxu0 0.0
  %1268 = vmatprep.subr.mxu0 0.0
  %1269 = vmatpush1.msra.mxu0 0.0
  %1270 = vmatprep.subr.mxu0 0.0
  %1271 = vmatpush1.msra.mxu0 0.0
  %1272 = vmatprep.subr.mxu0 0.0
  %1273 = vmatpush1.msra.mxu0 0.0
  %1274 = vmatprep.subr.mxu0 0.0
  %1275 = vmatpush1.msra.mxu0 0.0
  %1276 = vmatprep.subr.mxu0 0.0
  %1277 = vmatpush1.msra.mxu0 0.0
  %1278 = vmatprep.subr.mxu0 0.0
  %1279 = vmatpush1.msra.mxu0 0.0
  %1280 = vmatprep.subr.mxu0 0.0
  %1281 = vmatpush1.msra.mxu0 0.0
  %1282 = vmatprep.subr.mxu0 0.0
  %1283 = vmatpush1.msra.mxu0 0.0
  %1284 = vmatprep.subr.mxu0 0.0
  %1285 = vmatpush1.msra.mxu0 0.0
  %1286 = vmatprep.subr.mxu0 0.0
  %1287 = vmatpush1.msra.mxu0 0.0
  %1288 = vmatprep.subr.mxu0 0.0
  %1289 = vmatpush1.msra.mxu0 0.0
  %1290 = vmatprep.subr.mxu0 0.0
  %1291 = vmatpush1.msra.mxu0 0.0
  %1292 = vmatprep.subr.mxu0 0.0
  %1293 = vmatpush1.msra.mxu0 0.0
  %1294 = vmatprep.subr.mxu0 0.0
  %1295 = vmatpush1.msra.mxu0 0.0
  %1296 = vmatprep.subr.mxu0 0.0
  %1297 = vmatpush1.msra.mxu0 0.0
  %1298 = vmatprep.subr.mxu0 0.0
  %1299 = vmatpush1.msra.mxu0 0.0
  %1300 = vmatprep.subr.mxu0 0.0
  %1301 = vmatpush1.msra.mxu0 0.0
  %1302 = vmatprep.subr.mxu0 0.0
  %1303 = vmatpush1.msra.mxu0 0.0
  %1304 = vmatprep.subr.mxu0 0.0
  %1305 = vmatpush1.msra.mxu0 0.0
  %1306 = vmatprep.subr.mxu0 0.0
  %1307 = vmatpush1.msra.mxu0 0.0
  %1308 = vmatprep.subr.mxu0 0.0
  %1309 = vmatpush1.msra.mxu0 0.0
  %1310 = vmatprep.mubr.f32.mxu0 0.0
  %1311 = vmatmul.mubr.f32.gmra.mrb[0].mxu0 %v1241
  %v1312 = vpop.f32.mrb[0].mxu0
  %v1313 = vadd.f32 0.0, %v1312
  %v1314 = vpop.f32.mrb[0].mxu0
  %1315 = vmatprep.mubr.f32.mxu0 0.0
  %1316 = vmatmul.mubr.f32.gmra.mrb[0].mxu0 %v1244
  %v1317 = vpop.f32.mrb[0].mxu0
  %v1318 = vadd.f32 0.0, %v1317
  %v1319 = vpop.f32.mrb[0].mxu0
  %1320 = vdwg.mxu0
  %1321 = vrot.lane.b32.xlu0 %v239, 96
  %v1322 = vpop.permute.xlu0 %1321
  %1323 = vrot.lane.b32.xlu0 %v244, 96
  %v1324 = vpop.permute.xlu0 %1323
  %v1328 = vsel %vm1239, %v1231, 0
  %v1331 = vsel %vm1239, %v1232, 0
  %1333 = vmatprep.subr.mxu0 0.0
  %1334 = vmatpush1.msra.mxu0 %v1322
  %1335 = vmatprep.subr.mxu0 0.0
  %1336 = vmatpush1.msra.mxu0 %v1324
  %1337 = vmatprep.subr.mxu0 0.0
  %1338 = vmatpush1.msra.mxu0 0.0
  %1339 = vmatprep.subr.mxu0 0.0
  %1340 = vmatpush1.msra.mxu0 0.0
  %1341 = vmatprep.subr.mxu0 0.0
  %1342 = vmatpush1.msra.mxu0 0.0
  %1343 = vmatprep.subr.mxu0 0.0
  %1344 = vmatpush1.msra.mxu0 0.0
  %1345 = vmatprep.subr.mxu0 0.0
  %1346 = vmatpush1.msra.mxu0 0.0
  %1347 = vmatprep.subr.mxu0 0.0
  %1348 = vmatpush1.msra.mxu0 0.0
  %1349 = vmatprep.subr.mxu0 0.0
  %1350 = vmatpush1.msra.mxu0 0.0
  %1351 = vmatprep.subr.mxu0 0.0
  %1352 = vmatpush1.msra.mxu0 0.0
  %1353 = vmatprep.subr.mxu0 0.0
  %1354 = vmatpush1.msra.mxu0 0.0
  %1355 = vmatprep.subr.mxu0 0.0
  %1356 = vmatpush1.msra.mxu0 0.0
  %1357 = vmatprep.subr.mxu0 0.0
  %1358 = vmatpush1.msra.mxu0 0.0
  %1359 = vmatprep.subr.mxu0 0.0
  %1360 = vmatpush1.msra.mxu0 0.0
  %1361 = vmatprep.subr.mxu0 0.0
  %1362 = vmatpush1.msra.mxu0 0.0
  %1363 = vmatprep.subr.mxu0 0.0
  %1364 = vmatpush1.msra.mxu0 0.0
  %1365 = vmatprep.subr.mxu0 0.0
  %1366 = vmatpush1.msra.mxu0 0.0
  %1367 = vmatprep.subr.mxu0 0.0
  %1368 = vmatpush1.msra.mxu0 0.0
  %1369 = vmatprep.subr.mxu0 0.0
  %1370 = vmatpush1.msra.mxu0 0.0
  %1371 = vmatprep.subr.mxu0 0.0
  %1372 = vmatpush1.msra.mxu0 0.0
  %1373 = vmatprep.subr.mxu0 0.0
  %1374 = vmatpush1.msra.mxu0 0.0
  %1375 = vmatprep.subr.mxu0 0.0
  %1376 = vmatpush1.msra.mxu0 0.0
  %1377 = vmatprep.subr.mxu0 0.0
  %1378 = vmatpush1.msra.mxu0 0.0
  %1379 = vmatprep.subr.mxu0 0.0
  %1380 = vmatpush1.msra.mxu0 0.0
  %1381 = vmatprep.subr.mxu0 0.0
  %1382 = vmatpush1.msra.mxu0 0.0
  %1383 = vmatprep.subr.mxu0 0.0
  %1384 = vmatpush1.msra.mxu0 0.0
  %1385 = vmatprep.subr.mxu0 0.0
  %1386 = vmatpush1.msra.mxu0 0.0
  %1387 = vmatprep.subr.mxu0 0.0
  %1388 = vmatpush1.msra.mxu0 0.0
  %1389 = vmatprep.subr.mxu0 0.0
  %1390 = vmatpush1.msra.mxu0 0.0
  %1391 = vmatprep.subr.mxu0 0.0
  %1392 = vmatpush1.msra.mxu0 0.0
  %1393 = vmatprep.subr.mxu0 0.0
  %1394 = vmatpush1.msra.mxu0 0.0
  %1395 = vmatprep.subr.mxu0 0.0
  %1396 = vmatpush1.msra.mxu0 0.0
  %1397 = vmatprep.mubr.f32.mxu0 0.0
  %1398 = vmatmul.mubr.f32.gmra.mrb[0].mxu0 %v1328
  %v1399 = vpop.f32.mrb[0].mxu0
  %v1400 = vadd.f32 0.0, %v1399
  %v1401 = vpop.f32.mrb[0].mxu0
  %1402 = vmatprep.mubr.f32.mxu0 0.0
  %1403 = vmatmul.mubr.f32.gmra.mrb[0].mxu0 %v1331
  %v1404 = vpop.f32.mrb[0].mxu0
  %v1405 = vadd.f32 0.0, %v1404
  %v1406 = vpop.f32.mrb[0].mxu0
  %1407 = vdwg.mxu0
  %v1408 = vld [vmem:[%s5] sm:$0xff]
  %v1409 = vld [vmem:[%s5 + $0x8] sm:$0xff]
  %v1410 = vld [vmem:[%s5 + $0x10] sm:$0xff]
  %v1411 = vld [vmem:[%s5 + $0x18] sm:$0xff]
  %v1412 = vld [vmem:[%s6] sm:$0x1]
  %v1414 = vlaneseq
  %v1415 = vshrl.u32 %v1414, 7
  %v1416 = vsub.s32 0, %v1415
  %v1417 = vrot.slane %v1412, %v1416
  %v1420 = vsel %vm58, %v1313, 0
  %v1423 = vsel %vm58, %v1318, 0
  %v1426 = vsel %vm58, %v1400, 0
  %v1429 = vsel %vm58, %v1405, 0
  %1431 = vmatprep.subr.mxu0 0.0
  %1432 = vmatpush1.msra.mxu0 %v1408
  %1433 = vmatprep.subr.mxu0 0.0
  %1434 = vmatpush1.msra.mxu0 %v1409
  %1435 = vmatprep.subr.mxu0 0.0
  %1436 = vmatpush1.msra.mxu0 %v1410
  %1437 = vmatprep.subr.mxu0 0.0
  %1438 = vmatpush1.msra.mxu0 %v1411
  %1439 = vmatprep.subr.mxu0 0.0
  %1440 = vmatpush1.msra.mxu0 0.0
  %1441 = vmatprep.subr.mxu0 0.0
  %1442 = vmatpush1.msra.mxu0 0.0
  %1443 = vmatprep.subr.mxu0 0.0
  %1444 = vmatpush1.msra.mxu0 0.0
  %1445 = vmatprep.subr.mxu0 0.0
  %1446 = vmatpush1.msra.mxu0 0.0
  %1447 = vmatprep.subr.mxu0 0.0
  %1448 = vmatpush1.msra.mxu0 0.0
  %1449 = vmatprep.subr.mxu0 0.0
  %1450 = vmatpush1.msra.mxu0 0.0
  %1451 = vmatprep.subr.mxu0 0.0
  %1452 = vmatpush1.msra.mxu0 0.0
  %1453 = vmatprep.subr.mxu0 0.0
  %1454 = vmatpush1.msra.mxu0 0.0
  %1455 = vmatprep.subr.mxu0 0.0
  %1456 = vmatpush1.msra.mxu0 0.0
  %1457 = vmatprep.subr.mxu0 0.0
  %1458 = vmatpush1.msra.mxu0 0.0
  %1459 = vmatprep.subr.mxu0 0.0
  %1460 = vmatpush1.msra.mxu0 0.0
  %1461 = vmatprep.subr.mxu0 0.0
  %1462 = vmatpush1.msra.mxu0 0.0
  %1463 = vmatprep.subr.mxu0 0.0
  %1464 = vmatpush1.msra.mxu0 0.0
  %1465 = vmatprep.subr.mxu0 0.0
  %1466 = vmatpush1.msra.mxu0 0.0
  %1467 = vmatprep.subr.mxu0 0.0
  %1468 = vmatpush1.msra.mxu0 0.0
  %1469 = vmatprep.subr.mxu0 0.0
  %1470 = vmatpush1.msra.mxu0 0.0
  %1471 = vmatprep.subr.mxu0 0.0
  %1472 = vmatpush1.msra.mxu0 0.0
  %1473 = vmatprep.subr.mxu0 0.0
  %1474 = vmatpush1.msra.mxu0 0.0
  %1475 = vmatprep.subr.mxu0 0.0
  %1476 = vmatpush1.msra.mxu0 0.0
  %1477 = vmatprep.subr.mxu0 0.0
  %1478 = vmatpush1.msra.mxu0 0.0
  %1479 = vmatprep.subr.mxu0 0.0
  %1480 = vmatpush1.msra.mxu0 0.0
  %1481 = vmatprep.subr.mxu0 0.0
  %1482 = vmatpush1.msra.mxu0 0.0
  %1483 = vmatprep.subr.mxu0 0.0
  %1484 = vmatpush1.msra.mxu0 0.0
  %1485 = vmatprep.subr.mxu0 0.0
  %1486 = vmatpush1.msra.mxu0 0.0
  %1487 = vmatprep.subr.mxu0 0.0
  %1488 = vmatpush1.msra.mxu0 0.0
  %1489 = vmatprep.subr.mxu0 0.0
  %1490 = vmatpush1.msra.mxu0 0.0
  %1491 = vmatprep.subr.mxu0 0.0
  %1492 = vmatpush1.msra.mxu0 0.0
  %1493 = vmatprep.subr.mxu0 0.0
  %1494 = vmatpush1.msra.mxu0 0.0
  %1495 = vmatprep.mubr.f32.mxu0 0.0
  %1496 = vmatmul.mubr.f32.gmra.mrb[0].mxu0 %v1420
  %v1497 = vpop.f32.mrb[0].mxu0
  %v1498 = vadd.f32 %v1417, %v1497
  %v1499 = vpop.f32.mrb[0].mxu0
  %1500 = vmatprep.mubr.f32.mxu0 0.0
  %1501 = vmatmul.mubr.f32.gmra.mrb[0].mxu0 %v1423
  %v1502 = vpop.f32.mrb[0].mxu0
  %v1503 = vadd.f32 %v1417, %v1502
  %v1504 = vpop.f32.mrb[0].mxu0
  %1505 = vmatprep.mubr.f32.mxu0 0.0
  %1506 = vmatmul.mubr.f32.gmra.mrb[0].mxu0 %v1426
  %v1507 = vpop.f32.mrb[0].mxu0
  %v1508 = vadd.f32 %v1417, %v1507
  %v1509 = vpop.f32.mrb[0].mxu0
  %1510 = vmatprep.mubr.f32.mxu0 0.0
  %1511 = vmatmul.mubr.f32.gmra.mrb[0].mxu0 %v1429
  %v1512 = vpop.f32.mrb[0].mxu0
  %v1513 = vadd.f32 %v1417, %v1512
  %v1514 = vpop.f32.mrb[0].mxu0
  %1515 = vdwg.mxu0
  %v1516 = vadd.f32 %v38, %v1498
  %v1517 = vadd.f32 %v39, %v1503
  %v1518 = vadd.f32 %v40, %v1508
  %v1519 = vadd.f32 %v41, %v1513
  %v1522 = vrot.slane %v1516, 7
  %v1523 = vrot.slane %v1518, 7
  %v1528 = vrot.slane %v1516, 6
  %v1529 = vrot.slane %v1517, 6
  %v1530 = vsel %vm356, %v1528, %v1529
  %v1531 = vrot.slane %v1518, 6
  %v1532 = vrot.slane %v1519, 6
  %v1533 = vsel %vm356, %v1531, %v1532
  %v1540 = vrot.slane %v1517, 5
  %v1541 = vrot.slane %v1519, 5
  %v1544 = vrot.slane %v1517, 4
  %v1545 = vrot.slane %v1519, 4
  %v1548 = vsel %vm300, %v1516, %v1522
  %v1549 = vsel %vm300, %v1518, %v1523
  %v1550 = vsel %vm356, %v1548, %v1528
  %v1551 = vsel %vm356, %v1549, %v1531
  %v1552 = vsel %vm356, %v1529, %v1540
  %v1553 = vsel %vm356, %v1532, %v1541
  %v1554 = vsel %vm412, %v1552, %v1544
  %v1555 = vsel %vm412, %v1553, %v1545
  %v1560 = vrot.slane %v1550, 1
  %v1561 = vrot.slane %v1530, 1
  %v1562 = vsel %vm636, %v1560, %v1561
  %v1563 = vrot.slane %v1554, 1
  %v1564 = vsel %vm636, %v1561, %v1563
  %v1565 = vrot.slane %v1551, 1
  %v1566 = vrot.slane %v1533, 1
  %v1567 = vsel %vm636, %v1565, %v1566
  %v1568 = vrot.slane %v1555, 1
  %v1569 = vsel %vm636, %v1566, %v1568
  %v1574 = vadd.f32 %v1550, %v1562
  %v1575 = vadd.f32 %v1530, %v1564
  %v1576 = vadd.f32 %v1551, %v1567
  %v1577 = vadd.f32 %v1533, %v1569
  %v1578 = vrot.slane %v1550, 2
  %v1579 = vrot.slane %v1530, 2
  %v1580 = vsel %vm580, %v1578, %v1579
  %v1581 = vrot.slane %v1554, 2
  %v1582 = vsel %vm580, %v1579, %v1581
  %v1583 = vrot.slane %v1551, 2
  %v1584 = vrot.slane %v1533, 2
  %v1585 = vsel %vm580, %v1583, %v1584
  %v1586 = vrot.slane %v1555, 2
  %v1587 = vsel %vm580, %v1584, %v1586
  %v1592 = vadd.f32 %v1574, %v1580
  %v1593 = vadd.f32 %v1575, %v1582
  %v1594 = vadd.f32 %v1576, %v1585
  %v1595 = vadd.f32 %v1577, %v1587
  %v1596 = vrot.slane %v1550, 3
  %v1597 = vrot.slane %v1530, 3
  %v1598 = vsel %vm524, %v1596, %v1597
  %v1599 = vrot.slane %v1554, 3
  %v1600 = vsel %vm524, %v1597, %v1599
  %v1601 = vrot.slane %v1551, 3
  %v1602 = vrot.slane %v1533, 3
  %v1603 = vsel %vm524, %v1601, %v1602
  %v1604 = vrot.slane %v1555, 3
  %v1605 = vsel %vm524, %v1602, %v1604
  %v1610 = vadd.f32 %v1592, %v1598
  %v1611 = vadd.f32 %v1593, %v1600
  %v1612 = vadd.f32 %v1594, %v1603
  %v1613 = vadd.f32 %v1595, %v1605
  %v1614 = vrot.slane %v1550, 4
  %v1615 = vrot.slane %v1530, 4
  %v1616 = vsel %vm468, %v1614, %v1615
  %v1617 = vrot.slane %v1554, 4
  %v1618 = vsel %vm468, %v1615, %v1617
  %v1619 = vrot.slane %v1551, 4
  %v1620 = vrot.slane %v1533, 4
  %v1621 = vsel %vm468, %v1619, %v1620
  %v1622 = vrot.slane %v1555, 4
  %v1623 = vsel %vm468, %v1620, %v1622
  %v1628 = vadd.f32 %v1610, %v1616
  %v1629 = vadd.f32 %v1611, %v1618
  %v1630 = vadd.f32 %v1612, %v1621
  %v1631 = vadd.f32 %v1613, %v1623
  %v1632 = vmul.f32 %v1628, 0.2
  %v1633 = vmul.f32 %v1629, 0.2
  %v1634 = vmul.f32 %v1630, 0.2
  %v1635 = vmul.f32 %v1631, 0.2
  %v1636 = vsub.f32 %v1516, %v1632
  %v1637 = vsub.f32 %v1517, %v1633
  %v1638 = vsub.f32 %v1518, %v1634
  %v1639 = vsub.f32 %v1519, %v1635
  %v1640 = vld [vmem:[%s7] sm:$0xff]
  %v1641 = vld [vmem:[%s7 + $0x8] sm:$0xff]
  %v1642 = vld [vmem:[%s7 + $0x10] sm:$0xff]
  %v1643 = vld [vmem:[%s7 + $0x18] sm:$0xff]
  %v1645 = vsel %vm58, %v1636, 0
  %v1648 = vsel %vm58, %v1637, 0
  %v1651 = vsel %vm58, %v1638, 0
  %v1654 = vsel %vm58, %v1639, 0
  %1656 = vmatprep.subr.mxu0 0.0
  %1657 = vmatpush1.msra.mxu0 %v1640
  %1658 = vmatprep.subr.mxu0 0.0
  %1659 = vmatpush1.msra.mxu0 %v1641
  %1660 = vmatprep.subr.mxu0 0.0
  %1661 = vmatpush1.msra.mxu0 %v1642
  %1662 = vmatprep.subr.mxu0 0.0
  %1663 = vmatpush1.msra.mxu0 %v1643
  %1664 = vmatprep.subr.mxu0 0.0
  %1665 = vmatpush1.msra.mxu0 0.0
  %1666 = vmatprep.subr.mxu0 0.0
  %1667 = vmatpush1.msra.mxu0 0.0
  %1668 = vmatprep.subr.mxu0 0.0
  %1669 = vmatpush1.msra.mxu0 0.0
  %1670 = vmatprep.subr.mxu0 0.0
  %1671 = vmatpush1.msra.mxu0 0.0
  %1672 = vmatprep.subr.mxu0 0.0
  %1673 = vmatpush1.msra.mxu0 0.0
  %1674 = vmatprep.subr.mxu0 0.0
  %1675 = vmatpush1.msra.mxu0 0.0
  %1676 = vmatprep.subr.mxu0 0.0
  %1677 = vmatpush1.msra.mxu0 0.0
  %1678 = vmatprep.subr.mxu0 0.0
  %1679 = vmatpush1.msra.mxu0 0.0
  %1680 = vmatprep.subr.mxu0 0.0
  %1681 = vmatpush1.msra.mxu0 0.0
  %1682 = vmatprep.subr.mxu0 0.0
  %1683 = vmatpush1.msra.mxu0 0.0
  %1684 = vmatprep.subr.mxu0 0.0
  %1685 = vmatpush1.msra.mxu0 0.0
  %1686 = vmatprep.subr.mxu0 0.0
  %1687 = vmatpush1.msra.mxu0 0.0
  %1688 = vmatprep.subr.mxu0 0.0
  %1689 = vmatpush1.msra.mxu0 0.0
  %1690 = vmatprep.subr.mxu0 0.0
  %1691 = vmatpush1.msra.mxu0 0.0
  %1692 = vmatprep.subr.mxu0 0.0
  %1693 = vmatpush1.msra.mxu0 0.0
  %1694 = vmatprep.subr.mxu0 0.0
  %1695 = vmatpush1.msra.mxu0 0.0
  %1696 = vmatprep.subr.mxu0 0.0
  %1697 = vmatpush1.msra.mxu0 0.0
  %1698 = vmatprep.subr.mxu0 0.0
  %1699 = vmatpush1.msra.mxu0 0.0
  %1700 = vmatprep.subr.mxu0 0.0
  %1701 = vmatpush1.msra.mxu0 0.0
  %1702 = vmatprep.subr.mxu0 0.0
  %1703 = vmatpush1.msra.mxu0 0.0
  %1704 = vmatprep.subr.mxu0 0.0
  %1705 = vmatpush1.msra.mxu0 0.0
  %1706 = vmatprep.subr.mxu0 0.0
  %1707 = vmatpush1.msra.mxu0 0.0
  %1708 = vmatprep.subr.mxu0 0.0
  %1709 = vmatpush1.msra.mxu0 0.0
  %1710 = vmatprep.subr.mxu0 0.0
  %1711 = vmatpush1.msra.mxu0 0.0
  %1712 = vmatprep.subr.mxu0 0.0
  %1713 = vmatpush1.msra.mxu0 0.0
  %1714 = vmatprep.subr.mxu0 0.0
  %1715 = vmatpush1.msra.mxu0 0.0
  %1716 = vmatprep.subr.mxu0 0.0
  %1717 = vmatpush1.msra.mxu0 0.0
  %1718 = vmatprep.subr.mxu0 0.0
  %1719 = vmatpush1.msra.mxu0 0.0
  %1720 = vmatprep.mubr.f32.mxu0 0.0
  %1721 = vmatmul.mubr.f32.gmra.mrb[0].mxu0 %v1645
  %v1722 = vpop.f32.mrb[0].mxu0
  %v1723 = vadd.f32 0.0, %v1722
  %v1724 = vpop.f32.mrb[0].mxu0
  %1725 = vmatprep.mubr.f32.mxu0 0.0
  %1726 = vmatmul.mubr.f32.gmra.mrb[0].mxu0 %v1648
  %v1727 = vpop.f32.mrb[0].mxu0
  %v1728 = vadd.f32 0.0, %v1727
  %v1729 = vpop.f32.mrb[0].mxu0
  %1730 = vmatprep.mubr.f32.mxu0 0.0
  %1731 = vmatmul.mubr.f32.gmra.mrb[0].mxu0 %v1651
  %v1732 = vpop.f32.mrb[0].mxu0
  %v1733 = vadd.f32 0.0, %v1732
  %v1734 = vpop.f32.mrb[0].mxu0
  %1735 = vmatprep.mubr.f32.mxu0 0.0
  %1736 = vmatmul.mubr.f32.gmra.mrb[0].mxu0 %v1654
  %v1737 = vpop.f32.mrb[0].mxu0
  %v1738 = vadd.f32 0.0, %v1737
  %v1739 = vpop.f32.mrb[0].mxu0
  %1740 = vdwg.mxu0
  %v1741 = vmax.f32 %v1723, 0.0
  %v1742 = vmax.f32 %v1728, 0.0
  %v1743 = vmax.f32 %v1733, 0.0
  %v1744 = vmax.f32 %v1738, 0.0
  %v1745 = vld [vmem:[%s8] sm:$0xff]
  %v1746 = vld [vmem:[%s8 + $0x8] sm:$0xff]
  %v1747 = vld [vmem:[%s8 + $0x10] sm:$0xff]
  %v1748 = vld [vmem:[%s8 + $0x18] sm:$0xff]
  %v1749 = vld [vmem:[%s8 + $0x20] sm:$0xff]
  %v1750 = vld [vmem:[%s8 + $0x28] sm:$0xff]
  %v1751 = vld [vmem:[%s8 + $0x30] sm:$0xff]
  %v1752 = vld [vmem:[%s8 + $0x38] sm:$0xff]
  %vm1753 = vcmask 523264
  %v1755 = vsel %vm1753, %v1741, 0
  %v1758 = vsel %vm1753, %v1742, 0
  %v1761 = vsel %vm1753, %v1743, 0
  %v1764 = vsel %vm1753, %v1744, 0
  %1766 = vmatprep.subr.mxu0 0.0
  %1767 = vmatpush1.msra.mxu0 %v1745
  %1768 = vmatprep.subr.mxu0 0.0
  %1769 = vmatpush1.msra.mxu0 %v1746
  %1770 = vmatprep.subr.mxu0 0.0
  %1771 = vmatpush1.msra.mxu0 %v1747
  %1772 = vmatprep.subr.mxu0 0.0
  %1773 = vmatpush1.msra.mxu0 %v1748
  %1774 = vmatprep.subr.mxu0 0.0
  %1775 = vmatpush1.msra.mxu0 %v1749
  %1776 = vmatprep.subr.mxu0 0.0
  %1777 = vmatpush1.msra.mxu0 %v1750
  %1778 = vmatprep.subr.mxu0 0.0
  %1779 = vmatpush1.msra.mxu0 %v1751
  %1780 = vmatprep.subr.mxu0 0.0
  %1781 = vmatpush1.msra.mxu0 %v1752
  %1782 = vmatprep.subr.mxu0 0.0
  %1783 = vmatpush1.msra.mxu0 0.0
  %1784 = vmatprep.subr.mxu0 0.0
  %1785 = vmatpush1.msra.mxu0 0.0
  %1786 = vmatprep.subr.mxu0 0.0
  %1787 = vmatpush1.msra.mxu0 0.0
  %1788 = vmatprep.subr.mxu0 0.0
  %1789 = vmatpush1.msra.mxu0 0.0
  %1790 = vmatprep.subr.mxu0 0.0
  %1791 = vmatpush1.msra.mxu0 0.0
  %1792 = vmatprep.subr.mxu0 0.0
  %1793 = vmatpush1.msra.mxu0 0.0
  %1794 = vmatprep.subr.mxu0 0.0
  %1795 = vmatpush1.msra.mxu0 0.0
  %1796 = vmatprep.subr.mxu0 0.0
  %1797 = vmatpush1.msra.mxu0 0.0
  %1798 = vmatprep.subr.mxu0 0.0
  %1799 = vmatpush1.msra.mxu0 0.0
  %1800 = vmatprep.subr.mxu0 0.0
  %1801 = vmatpush1.msra.mxu0 0.0
  %1802 = vmatprep.subr.mxu0 0.0
  %1803 = vmatpush1.msra.mxu0 0.0
  %1804 = vmatprep.subr.mxu0 0.0
  %1805 = vmatpush1.msra.mxu0 0.0
  %1806 = vmatprep.subr.mxu0 0.0
  %1807 = vmatpush1.msra.mxu0 0.0
  %1808 = vmatprep.subr.mxu0 0.0
  %1809 = vmatpush1.msra.mxu0 0.0
  %1810 = vmatprep.subr.mxu0 0.0
  %1811 = vmatpush1.msra.mxu0 0.0
  %1812 = vmatprep.subr.mxu0 0.0
  %1813 = vmatpush1.msra.mxu0 0.0
  %1814 = vmatprep.subr.mxu0 0.0
  %1815 = vmatpush1.msra.mxu0 0.0
  %1816 = vmatprep.subr.mxu0 0.0
  %1817 = vmatpush1.msra.mxu0 0.0
  %1818 = vmatprep.subr.mxu0 0.0
  %1819 = vmatpush1.msra.mxu0 0.0
  %1820 = vmatprep.subr.mxu0 0.0
  %1821 = vmatpush1.msra.mxu0 0.0
  %1822 = vmatprep.subr.mxu0 0.0
  %1823 = vmatpush1.msra.mxu0 0.0
  %1824 = vmatprep.subr.mxu0 0.0
  %1825 = vmatpush1.msra.mxu0 0.0
  %1826 = vmatprep.subr.mxu0 0.0
  %1827 = vmatpush1.msra.mxu0 0.0
  %1828 = vmatprep.subr.mxu0 0.0
  %1829 = vmatpush1.msra.mxu0 0.0
  %1830 = vmatprep.mubr.f32.mxu0 0.0
  %1831 = vmatmul.mubr.f32.gmra.mrb[0].mxu0 %v1755
  %v1832 = vpop.f32.mrb[0].mxu0
  %v1833 = vadd.f32 0.0, %v1832
  %v1834 = vpop.f32.mrb[0].mxu0
  %1835 = vmatprep.mubr.f32.mxu0 0.0
  %1836 = vmatmul.mubr.f32.gmra.mrb[0].mxu0 %v1758
  %v1837 = vpop.f32.mrb[0].mxu0
  %v1838 = vadd.f32 0.0, %v1837
  %v1839 = vpop.f32.mrb[0].mxu0
  %1840 = vmatprep.mubr.f32.mxu0 0.0
  %1841 = vmatmul.mubr.f32.gmra.mrb[0].mxu0 %v1761
  %v1842 = vpop.f32.mrb[0].mxu0
  %v1843 = vadd.f32 0.0, %v1842
  %v1844 = vpop.f32.mrb[0].mxu0
  %1845 = vmatprep.mubr.f32.mxu0 0.0
  %1846 = vmatmul.mubr.f32.gmra.mrb[0].mxu0 %v1764
  %v1847 = vpop.f32.mrb[0].mxu0
  %v1848 = vadd.f32 0.0, %v1847
  %v1849 = vpop.f32.mrb[0].mxu0
  %1850 = vdwg.mxu0
  %v1851 = vadd.f32 %v1636, %v1833
  %v1852 = vadd.f32 %v1637, %v1838
  %v1853 = vadd.f32 %v1638, %v1843
  %v1854 = vadd.f32 %v1639, %v1848
  %v1857 = vrot.slane %v1851, 7
  %v1858 = vrot.slane %v1853, 7
  %v1863 = vrot.slane %v1851, 6
  %v1864 = vrot.slane %v1852, 6
  %v1865 = vsel %vm356, %v1863, %v1864
  %v1866 = vrot.slane %v1853, 6
  %v1867 = vrot.slane %v1854, 6
  %v1868 = vsel %vm356, %v1866, %v1867
  %v1875 = vrot.slane %v1852, 5
  %v1876 = vrot.slane %v1854, 5
  %v1879 = vrot.slane %v1852, 4
  %v1880 = vrot.slane %v1854, 4
  %v1883 = vsel %vm300, %v1851, %v1857
  %v1884 = vsel %vm300, %v1853, %v1858
  %v1885 = vsel %vm356, %v1883, %v1863
  %v1886 = vsel %vm356, %v1884, %v1866
  %v1887 = vsel %vm356, %v1864, %v1875
  %v1888 = vsel %vm356, %v1867, %v1876
  %v1889 = vsel %vm412, %v1887, %v1879
  %v1890 = vsel %vm412, %v1888, %v1880
  %v1895 = vrot.slane %v1885, 1
  %v1896 = vrot.slane %v1865, 1
  %v1897 = vsel %vm636, %v1895, %v1896
  %v1898 = vrot.slane %v1889, 1
  %v1899 = vsel %vm636, %v1896, %v1898
  %v1900 = vrot.slane %v1886, 1
  %v1901 = vrot.slane %v1868, 1
  %v1902 = vsel %vm636, %v1900, %v1901
  %v1903 = vrot.slane %v1890, 1
  %v1904 = vsel %vm636, %v1901, %v1903
  %v1909 = vadd.f32 %v1885, %v1897
  %v1910 = vadd.f32 %v1865, %v1899
  %v1911 = vadd.f32 %v1886, %v1902
  %v1912 = vadd.f32 %v1868, %v1904
  %v1913 = vrot.slane %v1885, 2
  %v1914 = vrot.slane %v1865, 2
  %v1915 = vsel %vm580, %v1913, %v1914
  %v1916 = vrot.slane %v1889, 2
  %v1917 = vsel %vm580, %v1914, %v1916
  %v1918 = vrot.slane %v1886, 2
  %v1919 = vrot.slane %v1868, 2
  %v1920 = vsel %vm580, %v1918, %v1919
  %v1921 = vrot.slane %v1890, 2
  %v1922 = vsel %vm580, %v1919, %v1921
  %v1927 = vadd.f32 %v1909, %v1915
  %v1928 = vadd.f32 %v1910, %v1917
  %v1929 = vadd.f32 %v1911, %v1920
  %v1930 = vadd.f32 %v1912, %v1922
  %v1931 = vrot.slane %v1885, 3
  %v1932 = vrot.slane %v1865, 3
  %v1933 = vsel %vm524, %v1931, %v1932
  %v1934 = vrot.slane %v1889, 3
  %v1935 = vsel %vm524, %v1932, %v1934
  %v1936 = vrot.slane %v1886, 3
  %v1937 = vrot.slane %v1868, 3
  %v1938 = vsel %vm524, %v1936, %v1937
  %v1939 = vrot.slane %v1890, 3
  %v1940 = vsel %vm524, %v1937, %v1939
  %v1945 = vadd.f32 %v1927, %v1933
  %v1946 = vadd.f32 %v1928, %v1935
  %v1947 = vadd.f32 %v1929, %v1938
  %v1948 = vadd.f32 %v1930, %v1940
  %v1949 = vrot.slane %v1885, 4
  %v1950 = vrot.slane %v1865, 4
  %v1951 = vsel %vm468, %v1949, %v1950
  %v1952 = vrot.slane %v1889, 4
  %v1953 = vsel %vm468, %v1950, %v1952
  %v1954 = vrot.slane %v1886, 4
  %v1955 = vrot.slane %v1868, 4
  %v1956 = vsel %vm468, %v1954, %v1955
  %v1957 = vrot.slane %v1890, 4
  %v1958 = vsel %vm468, %v1955, %v1957
  %v1963 = vadd.f32 %v1945, %v1951
  %v1964 = vadd.f32 %v1946, %v1953
  %v1965 = vadd.f32 %v1947, %v1956
  %v1966 = vadd.f32 %v1948, %v1958
  %v1967 = vmul.f32 %v1963, 0.2
  %v1968 = vmul.f32 %v1964, 0.2
  %v1969 = vmul.f32 %v1965, 0.2
  %v1970 = vmul.f32 %v1966, 0.2
  %v1971 = vsub.f32 %v1851, %v1967
  %v1972 = vsub.f32 %v1852, %v1968
  %v1973 = vsub.f32 %v1853, %v1969
  %v1974 = vsub.f32 %v1854, %v1970
  %v1975 = vld [vmem:[%s9] sm:$0x1]
  %v1976 = vld [vmem:[%s10] sm:$0x1]
  %v1977 = vsel %vm58, %v1971, 0.0
  %1978 = vadd.xlane.f32.xlu0 %v1977
  %v1979 = vpop.xlane.xlu0 %1978
  %v1980 = vsel %vm58, %v1972, 0.0
  %1981 = vadd.xlane.f32.xlu0 %v1980
  %v1982 = vpop.xlane.xlu0 %1981
  %v1983 = vsel %vm58, %v1973, 0.0
  %1984 = vadd.xlane.f32.xlu0 %v1983
  %v1985 = vpop.xlane.xlu0 %1984
  %v1986 = vsel %vm58, %v1974, 0.0
  %1987 = vadd.xlane.f32.xlu0 %v1986
  %v1988 = vpop.xlane.xlu0 %1987
  %v1989 = vrcp.pop 32.0
  %v1990 = vmul.f32 %v1979, %v1989
  %v1991 = vmul.f32 %v1982, %v1989
  %v1992 = vmul.f32 %v1985, %v1989
  %v1993 = vmul.f32 %v1988, %v1989
  %v1994 = vsub.f32 %v1971, %v1990
  %v1995 = vsub.f32 %v1972, %v1991
  %v1996 = vsub.f32 %v1973, %v1992
  %v1997 = vsub.f32 %v1974, %v1993
  %v1998 = vmul.f32 %v1994, %v1994
  %v1999 = vmul.f32 %v1995, %v1995
  %v2000 = vmul.f32 %v1996, %v1996
  %v2001 = vmul.f32 %v1997, %v1997
  %v2002 = vsel %vm58, %v1998, 0.0
  %2003 = vadd.xlane.f32.xlu0 %v2002
  %v2004 = vpop.xlane.xlu0 %2003
  %v2005 = vsel %vm58, %v1999, 0.0
  %2006 = vadd.xlane.f32.xlu0 %v2005
  %v2007 = vpop.xlane.xlu0 %2006
  %v2008 = vsel %vm58, %v2000, 0.0
  %2009 = vadd.xlane.f32.xlu0 %v2008
  %v2010 = vpop.xlane.xlu0 %2009
  %v2011 = vsel %vm58, %v2001, 0.0
  %2012 = vadd.xlane.f32.xlu0 %v2011
  %v2013 = vpop.xlane.xlu0 %2012
  %v2014 = vmul.f32 %v2004, %v1989
  %v2015 = vmul.f32 %v2007, %v1989
  %v2016 = vmul.f32 %v2010, %v1989
  %v2017 = vmul.f32 %v2013, %v1989
  %v2018 = vadd.f32 %v2014, 1e-05
  %v2019 = vadd.f32 %v2015, 1e-05
  %v2020 = vadd.f32 %v2016, 1e-05
  %v2021 = vadd.f32 %v2017, 1e-05
  %v2022 = vrsqrt.pop %v2018
  %v2023 = vrsqrt.pop %v2019
  %v2024 = vrsqrt.pop %v2020
  %v2025 = vrsqrt.pop %v2021
  %v2026 = vmul.f32 %v1994, %v2022
  %v2027 = vmul.f32 %v1995, %v2023
  %v2028 = vmul.f32 %v1996, %v2024
  %v2029 = vmul.f32 %v1997, %v2025
  %v2031 = vlaneseq
  %v2032 = vshrl.u32 %v2031, 7
  %v2033 = vsub.s32 0, %v2032
  %v2034 = vrot.slane %v1975, %v2033
  %v2036 = vmul.f32 %v2026, %v2034
  %v2037 = vmul.f32 %v2027, %v2034
  %v2038 = vmul.f32 %v2028, %v2034
  %v2039 = vmul.f32 %v2029, %v2034
  %v2041 = vlaneseq
  %v2042 = vshrl.u32 %v2041, 7
  %v2043 = vsub.s32 0, %v2042
  %v2044 = vrot.slane %v1976, %v2043
  %v2046 = vadd.f32 %v2036, %v2044
  %v2047 = vadd.f32 %v2037, %v2044
  %v2048 = vadd.f32 %v2038, %v2044
  %v2049 = vadd.f32 %v2039, %v2044
  %v2050 = vsel %vm58, %v2046, 0.0
  %v2051 = vsel %vm58, %v2047, 0.0
  %v2052 = vadd.f32 %v2050, %v2051
  %v2053 = vrot.slane %v2052, 4
  %v2054 = vadd.f32 %v2052, %v2053
  %v2055 = vrot.slane %v2054, 2
  %v2056 = vadd.f32 %v2054, %v2055
  %v2057 = vrot.slane %v2056, 1
  %v2058 = vadd.f32 %v2056, %v2057
  %v2059 = vsel %vm58, %v2048, 0.0
  %v2060 = vsel %vm58, %v2049, 0.0
  %v2061 = vadd.f32 %v2059, %v2060
  %v2062 = vrot.slane %v2061, 4
  %v2063 = vadd.f32 %v2061, %v2062
  %v2064 = vrot.slane %v2063, 2
  %v2065 = vadd.f32 %v2063, %v2064
  %v2066 = vrot.slane %v2065, 1
  %v2067 = vadd.f32 %v2065, %v2066
  %v2068 = vrcp.pop 16.0
  %v2069 = vmul.f32 %v2058, %v2068
  %v2070 = vmul.f32 %v2067, %v2068
  %v2071 = vsub.f32 %v2046, %v2069
  %v2072 = vsub.f32 %v2047, %v2069
  %v2073 = vsub.f32 %v2048, %v2070
  %v2074 = vsub.f32 %v2049, %v2070
  %2075 = vst.msk [vmem:[%s11] sm:$0xff] %vm58, %v2071
  %2076 = vst.msk [vmem:[%s11 + $0x8] sm:$0xff] %vm58, %v2072
  %2077 = vst.msk [vmem:[%s11 + $0x10] sm:$0xff] %vm58, %v2073
  %2078 = vst.msk [vmem:[%s11 + $0x18] sm:$0xff] %vm58, %v2074
  // Predicated region
  $region46: #{_lambda_.6} parent=0 // pred_check
    _
  $region47: #{_lambda_.6} parent=0 // pred_check_branch
    %2080 = sbr.rel (0) target = $region49
  $region48: #{_lambda_.6} parent=0 // pred_region
    _
  $region49: #{_lambda_.6} parent=0 // pred_fallthru
    _
  // Predicated region
  $region50: #{_lambda_.6} parent=0 // pred_check
    _
  $region51: #{_lambda_.6} parent=0 // pred_check_branch
    %2082 = sbr.rel (0) target = $region53
  $region52: #{_lambda_.6} parent=0 // pred_region
    _
  $region53: #{_lambda_.6} parent=0 // pred_fallthru
    _

// kernel: _lambda_.8
$region0: #{_lambda_.8}
  #allocation0 [shape = 'u32[]', space=smem, size = 0x4, offset = 0x4, fixed_abs, tag = 'smem constant byte address 0x4 - core index']
  #allocation1 [shape = 'u32[144,128]{1,0:T(1,128)}', space=vmem, size = 0x12000, scoped, tag = 'internal scratch']
  %s0 = inlined_call_operand.vmem [shape: f32[2,16,32], index: 0, kind: input, shape index: {}]
  %s1 = inlined_call_operand.vmem [shape: f32[2,16,32], index: 1, kind: input, shape index: {}]
  %s2 = inlined_call_operand.vmem [shape: f32[2,16,4], index: 2, kind: input, shape index: {}]
  %s3 = inlined_call_operand.vmem [shape: f32[32,32], index: 3, kind: input, shape index: {}]
  %s4 = inlined_call_operand.vmem [shape: f32[1,32], index: 4, kind: input, shape index: {}]
  %s5 = inlined_call_operand.vmem [shape: f32[32,64], index: 5, kind: input, shape index: {}]
  %s6 = inlined_call_operand.vmem [shape: f32[1,64], index: 6, kind: input, shape index: {}]
  %s7 = inlined_call_operand.vmem [shape: f32[32,32], index: 7, kind: input, shape index: {}]
  %s8 = inlined_call_operand.vmem [shape: f32[1,32], index: 8, kind: input, shape index: {}]
  %s9 = inlined_call_operand.vmem [shape: f32[32,32], index: 9, kind: input, shape index: {}]
  %s10 = inlined_call_operand.vmem [shape: f32[1,32], index: 10, kind: input, shape index: {}]
  %s11 = inlined_call_operand.vmem [shape: f32[32,64], index: 11, kind: input, shape index: {}]
  %s12 = inlined_call_operand.vmem [shape: f32[1,64], index: 12, kind: input, shape index: {}]
  %s13 = inlined_call_operand.vmem [shape: f32[32,32], index: 13, kind: input, shape index: {}]
  %s14 = inlined_call_operand.vmem [shape: f32[1,32], index: 14, kind: input, shape index: {}]
  %s15 = inlined_call_operand.vmem [shape: f32[32,64], index: 15, kind: input, shape index: {}]
  %s16 = inlined_call_operand.vmem [shape: f32[64,32], index: 16, kind: input, shape index: {}]
  %s17 = inlined_call_operand.vmem [shape: f32[96,4], index: 17, kind: input, shape index: {}]
  %s18 = inlined_call_operand.vmem [shape: f32[2,16,32], index: 18, kind: output, shape index: {0}]
  %s19 = inlined_call_operand.vmem [shape: f32[2,16,4], index: 19, kind: output, shape index: {1}]
  %20 = xla_tuple %s18, %s19
  %s21 = sld [smem:[#allocation0]]
  $region90: #{_lambda_.8} parent=0
    _
  %s23 = ssub.s32 1, %s21
  %s24 = scalar_select 0, %s23, %s21
  // Predicated region
  $region2: #{_lambda_.8} parent=0 // pred_check
    _
  $region3: #{_lambda_.8} parent=0 // pred_check_branch
    %26 = sbr.rel (0) target = $region5
  $region4: #{_lambda_.8} parent=0 // pred_region
    _
  $region5: #{_lambda_.8} parent=0 // pred_fallthru
    _
  // Predicated region
  $region6: #{_lambda_.8} parent=0 // pred_check
    _
  $region7: #{_lambda_.8} parent=0 // pred_check_branch
    %28 = sbr.rel (0) target = $region9
  $region8: #{_lambda_.8} parent=0 // pred_region
    _
  $region9: #{_lambda_.8} parent=0 // pred_fallthru
    _
  // Predicated region
  $region10: #{_lambda_.8} parent=0 // pred_check
    _
  $region11: #{_lambda_.8} parent=0 // pred_check_branch
    %30 = sbr.rel (0) target = $region13
  $region12: #{_lambda_.8} parent=0 // pred_region
    _
  $region13: #{_lambda_.8} parent=0 // pred_fallthru
    _
  // Predicated region
  $region14: #{_lambda_.8} parent=0 // pred_check
    _
  $region15: #{_lambda_.8} parent=0 // pred_check_branch
    %32 = sbr.rel (0) target = $region17
  $region16: #{_lambda_.8} parent=0 // pred_region
    _
  $region17: #{_lambda_.8} parent=0 // pred_fallthru
    _
  // Predicated region
  $region18: #{_lambda_.8} parent=0 // pred_check
    _
  $region19: #{_lambda_.8} parent=0 // pred_check_branch
    %34 = sbr.rel (0) target = $region21
  $region20: #{_lambda_.8} parent=0 // pred_region
    _
  $region21: #{_lambda_.8} parent=0 // pred_fallthru
    _
  // Predicated region
  $region22: #{_lambda_.8} parent=0 // pred_check
    _
  $region23: #{_lambda_.8} parent=0 // pred_check_branch
    %36 = sbr.rel (0) target = $region25
  $region24: #{_lambda_.8} parent=0 // pred_region
    _
  $region25: #{_lambda_.8} parent=0 // pred_fallthru
    _
  // Predicated region
  $region26: #{_lambda_.8} parent=0 // pred_check
    _
  $region27: #{_lambda_.8} parent=0 // pred_check_branch
    %38 = sbr.rel (0) target = $region29
  $region28: #{_lambda_.8} parent=0 // pred_region
    _
  $region29: #{_lambda_.8} parent=0 // pred_fallthru
    _
  // Predicated region
  $region30: #{_lambda_.8} parent=0 // pred_check
    _
  $region31: #{_lambda_.8} parent=0 // pred_check_branch
    %40 = sbr.rel (0) target = $region33
  $region32: #{_lambda_.8} parent=0 // pred_region
    _
  $region33: #{_lambda_.8} parent=0 // pred_fallthru
    _
  // Predicated region
  $region34: #{_lambda_.8} parent=0 // pred_check
    _
  $region35: #{_lambda_.8} parent=0 // pred_check_branch
    %42 = sbr.rel (0) target = $region37
  $region36: #{_lambda_.8} parent=0 // pred_region
    _
  $region37: #{_lambda_.8} parent=0 // pred_fallthru
    _
  // Predicated region
  $region38: #{_lambda_.8} parent=0 // pred_check
    _
  $region39: #{_lambda_.8} parent=0 // pred_check_branch
    %44 = sbr.rel (0) target = $region41
  $region40: #{_lambda_.8} parent=0 // pred_region
    _
  $region41: #{_lambda_.8} parent=0 // pred_fallthru
    _
  // Predicated region
  $region42: #{_lambda_.8} parent=0 // pred_check
    _
  $region43: #{_lambda_.8} parent=0 // pred_check_branch
    %46 = sbr.rel (0) target = $region45
  $region44: #{_lambda_.8} parent=0 // pred_region
    _
  $region45: #{_lambda_.8} parent=0 // pred_fallthru
    _
  // Predicated region
  $region46: #{_lambda_.8} parent=0 // pred_check
    _
  $region47: #{_lambda_.8} parent=0 // pred_check_branch
    %48 = sbr.rel (0) target = $region49
  $region48: #{_lambda_.8} parent=0 // pred_region
    _
  $region49: #{_lambda_.8} parent=0 // pred_fallthru
    _
  // Predicated region
  $region50: #{_lambda_.8} parent=0 // pred_check
    _
  $region51: #{_lambda_.8} parent=0 // pred_check_branch
    %50 = sbr.rel (0) target = $region53
  $region52: #{_lambda_.8} parent=0 // pred_region
    _
  $region53: #{_lambda_.8} parent=0 // pred_fallthru
    _
  // Predicated region
  $region54: #{_lambda_.8} parent=0 // pred_check
    _
  $region55: #{_lambda_.8} parent=0 // pred_check_branch
    %52 = sbr.rel (0) target = $region57
  $region56: #{_lambda_.8} parent=0 // pred_region
    _
  $region57: #{_lambda_.8} parent=0 // pred_fallthru
    _
  // Predicated region
  $region58: #{_lambda_.8} parent=0 // pred_check
    _
  $region59: #{_lambda_.8} parent=0 // pred_check_branch
    %54 = sbr.rel (0) target = $region61
  $region60: #{_lambda_.8} parent=0 // pred_region
    _
  $region61: #{_lambda_.8} parent=0 // pred_fallthru
    _
  // Predicated region
  $region62: #{_lambda_.8} parent=0 // pred_check
    _
  $region63: #{_lambda_.8} parent=0 // pred_check_branch
    %56 = sbr.rel (0) target = $region65
  $region64: #{_lambda_.8} parent=0 // pred_region
    _
  $region65: #{_lambda_.8} parent=0 // pred_fallthru
    _
  // Predicated region
  $region66: #{_lambda_.8} parent=0 // pred_check
    _
  $region67: #{_lambda_.8} parent=0 // pred_check_branch
    %58 = sbr.rel (0) target = $region69
  $region68: #{_lambda_.8} parent=0 // pred_region
    _
  $region69: #{_lambda_.8} parent=0 // pred_fallthru
    _
  // Predicated region
  $region70: #{_lambda_.8} parent=0 // pred_check
    _
  $region71: #{_lambda_.8} parent=0 // pred_check_branch
    %60 = sbr.rel (0) target = $region73
  $region72: #{_lambda_.8} parent=0 // pred_region
    _
  $region73: #{_lambda_.8} parent=0 // pred_fallthru
    _
  %v61 = vld [vmem:[%s0] sm:$0xff]
  %v62 = vld [vmem:[%s0 + $0x8] sm:$0xff]
  %v63 = vld [vmem:[%s0 + $0x10] sm:$0xff]
  %v64 = vld [vmem:[%s0 + $0x18] sm:$0xff]
  %v65 = vld [vmem:[%s1] sm:$0xff]
  %v66 = vld [vmem:[%s1 + $0x8] sm:$0xff]
  %v67 = vld [vmem:[%s1 + $0x10] sm:$0xff]
  %v68 = vld [vmem:[%s1 + $0x18] sm:$0xff]
  %v69 = vld [vmem:[%s3] sm:$0xff]
  %v70 = vld [vmem:[%s3 + $0x8] sm:$0xff]
  %v71 = vld [vmem:[%s3 + $0x10] sm:$0xff]
  %v72 = vld [vmem:[%s3 + $0x18] sm:$0xff]
  %v73 = vld [vmem:[%s4] sm:$0x1]
  %v74 = vld [vmem:[%s5] sm:$0xff]
  %v75 = vld [vmem:[%s5 + $0x8] sm:$0xff]
  %v76 = vld [vmem:[%s5 + $0x10] sm:$0xff]
  %v77 = vld [vmem:[%s5 + $0x18] sm:$0xff]
  %v78 = vld [vmem:[%s6] sm:$0x1]
  %v80 = vlaneseq
  %v81 = vshrl.u32 %v80, 7
  %v82 = vsub.s32 0, %v81
  %v83 = vrot.slane %v73, %v82
  %vm85 = vcmask 261120
  %v87 = vsel %vm85, %v61, 0
  %v90 = vsel %vm85, %v62, 0
  %v93 = vsel %vm85, %v63, 0
  %v96 = vsel %vm85, %v64, 0
  %98 = vmatprep.subr.mxu0 0.0
  %99 = vmatpush1.msra.mxu0 %v69
  %100 = vmatprep.subr.mxu0 0.0
  %101 = vmatpush1.msra.mxu0 %v70
  %102 = vmatprep.subr.mxu0 0.0
  %103 = vmatpush1.msra.mxu0 %v71
  %104 = vmatprep.subr.mxu0 0.0
  %105 = vmatpush1.msra.mxu0 %v72
  %106 = vmatprep.subr.mxu0 0.0
  %107 = vmatpush1.msra.mxu0 0.0
  %108 = vmatprep.subr.mxu0 0.0
  %109 = vmatpush1.msra.mxu0 0.0
  %110 = vmatprep.subr.mxu0 0.0
  %111 = vmatpush1.msra.mxu0 0.0
  %112 = vmatprep.subr.mxu0 0.0
  %113 = vmatpush1.msra.mxu0 0.0
  %114 = vmatprep.subr.mxu0 0.0
  %115 = vmatpush1.msra.mxu0 0.0
  %116 = vmatprep.subr.mxu0 0.0
  %117 = vmatpush1.msra.mxu0 0.0
  %118 = vmatprep.subr.mxu0 0.0
  %119 = vmatpush1.msra.mxu0 0.0
  %120 = vmatprep.subr.mxu0 0.0
  %121 = vmatpush1.msra.mxu0 0.0
  %122 = vmatprep.subr.mxu0 0.0
  %123 = vmatpush1.msra.mxu0 0.0
  %124 = vmatprep.subr.mxu0 0.0
  %125 = vmatpush1.msra.mxu0 0.0
  %126 = vmatprep.subr.mxu0 0.0
  %127 = vmatpush1.msra.mxu0 0.0
  %128 = vmatprep.subr.mxu0 0.0
  %129 = vmatpush1.msra.mxu0 0.0
  %130 = vmatprep.subr.mxu0 0.0
  %131 = vmatpush1.msra.mxu0 0.0
  %132 = vmatprep.subr.mxu0 0.0
  %133 = vmatpush1.msra.mxu0 0.0
  %134 = vmatprep.subr.mxu0 0.0
  %135 = vmatpush1.msra.mxu0 0.0
  %136 = vmatprep.subr.mxu0 0.0
  %137 = vmatpush1.msra.mxu0 0.0
  %138 = vmatprep.subr.mxu0 0.0
  %139 = vmatpush1.msra.mxu0 0.0
  %140 = vmatprep.subr.mxu0 0.0
  %141 = vmatpush1.msra.mxu0 0.0
  %142 = vmatprep.subr.mxu0 0.0
  %143 = vmatpush1.msra.mxu0 0.0
  %144 = vmatprep.subr.mxu0 0.0
  %145 = vmatpush1.msra.mxu0 0.0
  %146 = vmatprep.subr.mxu0 0.0
  %147 = vmatpush1.msra.mxu0 0.0
  %148 = vmatprep.subr.mxu0 0.0
  %149 = vmatpush1.msra.mxu0 0.0
  %150 = vmatprep.subr.mxu0 0.0
  %151 = vmatpush1.msra.mxu0 0.0
  %152 = vmatprep.subr.mxu0 0.0
  %153 = vmatpush1.msra.mxu0 0.0
  %154 = vmatprep.subr.mxu0 0.0
  %155 = vmatpush1.msra.mxu0 0.0
  %156 = vmatprep.subr.mxu0 0.0
  %157 = vmatpush1.msra.mxu0 0.0
  %158 = vmatprep.subr.mxu0 0.0
  %159 = vmatpush1.msra.mxu0 0.0
  %160 = vmatprep.subr.mxu0 0.0
  %161 = vmatpush1.msra.mxu0 0.0
  %162 = vmatprep.mubr.f32.mxu0 0.0
  %163 = vmatmul.mubr.f32.gmra.mrb[0].mxu0 %v87
  %v164 = vpop.f32.mrb[0].mxu0
  %v165 = vadd.f32 %v83, %v164
  %v166 = vpop.f32.mrb[0].mxu0
  %167 = vmatprep.mubr.f32.mxu0 0.0
  %168 = vmatmul.mubr.f32.gmra.mrb[0].mxu0 %v90
  %v169 = vpop.f32.mrb[0].mxu0
  %v170 = vadd.f32 %v83, %v169
  %v171 = vpop.f32.mrb[0].mxu0
  %172 = vmatprep.mubr.f32.mxu0 0.0
  %173 = vmatmul.mubr.f32.gmra.mrb[0].mxu0 %v93
  %v174 = vpop.f32.mrb[0].mxu0
  %v175 = vadd.f32 %v83, %v174
  %v176 = vpop.f32.mrb[0].mxu0
  %177 = vmatprep.mubr.f32.mxu0 0.0
  %178 = vmatmul.mubr.f32.gmra.mrb[0].mxu0 %v96
  %v179 = vpop.f32.mrb[0].mxu0
  %v180 = vadd.f32 %v83, %v179
  %v181 = vpop.f32.mrb[0].mxu0
  %182 = vdwg.mxu0
  %v184 = vlaneseq
  %v185 = vshrl.u32 %v184, 7
  %v186 = vsub.s32 0, %v185
  %v187 = vrot.slane %v78, %v186
  %189 = vmatprep.subr.mxu0 0.0
  %190 = vmatpush1.msra.mxu0 %v74
  %191 = vmatprep.subr.mxu0 0.0
  %192 = vmatpush1.msra.mxu0 %v75
  %193 = vmatprep.subr.mxu0 0.0
  %194 = vmatpush1.msra.mxu0 %v76
  %195 = vmatprep.subr.mxu0 0.0
  %196 = vmatpush1.msra.mxu0 %v77
  %197 = vmatprep.subr.mxu0 0.0
  %198 = vmatpush1.msra.mxu0 0.0
  %199 = vmatprep.subr.mxu0 0.0
  %200 = vmatpush1.msra.mxu0 0.0
  %201 = vmatprep.subr.mxu0 0.0
  %202 = vmatpush1.msra.mxu0 0.0
  %203 = vmatprep.subr.mxu0 0.0
  %204 = vmatpush1.msra.mxu0 0.0
  %205 = vmatprep.subr.mxu0 0.0
  %206 = vmatpush1.msra.mxu0 0.0
  %207 = vmatprep.subr.mxu0 0.0
  %208 = vmatpush1.msra.mxu0 0.0
  %209 = vmatprep.subr.mxu0 0.0
  %210 = vmatpush1.msra.mxu0 0.0
  %211 = vmatprep.subr.mxu0 0.0
  %212 = vmatpush1.msra.mxu0 0.0
  %213 = vmatprep.subr.mxu0 0.0
  %214 = vmatpush1.msra.mxu0 0.0
  %215 = vmatprep.subr.mxu0 0.0
  %216 = vmatpush1.msra.mxu0 0.0
  %217 = vmatprep.subr.mxu0 0.0
  %218 = vmatpush1.msra.mxu0 0.0
  %219 = vmatprep.subr.mxu0 0.0
  %220 = vmatpush1.msra.mxu0 0.0
  %221 = vmatprep.subr.mxu0 0.0
  %222 = vmatpush1.msra.mxu0 0.0
  %223 = vmatprep.subr.mxu0 0.0
  %224 = vmatpush1.msra.mxu0 0.0
  %225 = vmatprep.subr.mxu0 0.0
  %226 = vmatpush1.msra.mxu0 0.0
  %227 = vmatprep.subr.mxu0 0.0
  %228 = vmatpush1.msra.mxu0 0.0
  %229 = vmatprep.subr.mxu0 0.0
  %230 = vmatpush1.msra.mxu0 0.0
  %231 = vmatprep.subr.mxu0 0.0
  %232 = vmatpush1.msra.mxu0 0.0
  %233 = vmatprep.subr.mxu0 0.0
  %234 = vmatpush1.msra.mxu0 0.0
  %235 = vmatprep.subr.mxu0 0.0
  %236 = vmatpush1.msra.mxu0 0.0
  %237 = vmatprep.subr.mxu0 0.0
  %238 = vmatpush1.msra.mxu0 0.0
  %239 = vmatprep.subr.mxu0 0.0
  %240 = vmatpush1.msra.mxu0 0.0
  %241 = vmatprep.subr.mxu0 0.0
  %242 = vmatpush1.msra.mxu0 0.0
  %243 = vmatprep.subr.mxu0 0.0
  %244 = vmatpush1.msra.mxu0 0.0
  %245 = vmatprep.subr.mxu0 0.0
  %246 = vmatpush1.msra.mxu0 0.0
  %247 = vmatprep.subr.mxu0 0.0
  %248 = vmatpush1.msra.mxu0 0.0
  %249 = vmatprep.subr.mxu0 0.0
  %250 = vmatpush1.msra.mxu0 0.0
  %251 = vmatprep.subr.mxu0 0.0
  %252 = vmatpush1.msra.mxu0 0.0
  %253 = vmatprep.mubr.f32.mxu0 0.0
  %254 = vmatmul.mubr.f32.gmra.mrb[0].mxu0 %v87
  %v255 = vpop.f32.mrb[0].mxu0
  %v256 = vadd.f32 %v187, %v255
  %v257 = vpop.f32.mrb[0].mxu0
  %258 = vmatprep.mubr.f32.mxu0 0.0
  %259 = vmatmul.mubr.f32.gmra.mrb[0].mxu0 %v90
  %v260 = vpop.f32.mrb[0].mxu0
  %v261 = vadd.f32 %v187, %v260
  %v262 = vpop.f32.mrb[0].mxu0
  %263 = vmatprep.mubr.f32.mxu0 0.0
  %264 = vmatmul.mubr.f32.gmra.mrb[0].mxu0 %v93
  %v265 = vpop.f32.mrb[0].mxu0
  %v266 = vadd.f32 %v187, %v265
  %v267 = vpop.f32.mrb[0].mxu0
  %268 = vmatprep.mubr.f32.mxu0 0.0
  %269 = vmatmul.mubr.f32.gmra.mrb[0].mxu0 %v96
  %v270 = vpop.f32.mrb[0].mxu0
  %v271 = vadd.f32 %v187, %v270
  %v272 = vpop.f32.mrb[0].mxu0
  %273 = vdwg.mxu0
  %v274 = vmul.f32 %v165, %v256
  %v275 = vmul.f32 %v170, %v261
  %v276 = vmul.f32 %v175, %v266
  %v277 = vmul.f32 %v180, %v271
  %v278 = vsel %vm85, %v274, 0.0
  %279 = vadd.xlane.f32.xlu0 %v278
  %v280 = vpop.xlane.xlu0 %279
  %v281 = vsel %vm85, %v275, 0.0
  %282 = vadd.xlane.f32.xlu0 %v281
  %v283 = vpop.xlane.xlu0 %282
  %v284 = vsel %vm85, %v276, 0.0
  %285 = vadd.xlane.f32.xlu0 %v284
  %v286 = vpop.xlane.xlu0 %285
  %v287 = vsel %vm85, %v277, 0.0
  %288 = vadd.xlane.f32.xlu0 %v287
  %v289 = vpop.xlane.xlu0 %288
  %v294 = vlaneseq
  %v295 = vand.u32 %v294, 127
  %v296 = vlaneseq
  %v297 = vshrl.u32 %v296, 7
  %v298 = vsub.s32 %v295, %v297
  %v299 = vrot.slane %v280, %v298
  %v300 = vadd.s32 %v295, 4294967288
  %v301 = vlaneseq
  %v302 = vshrl.u32 %v301, 7
  %v303 = vsub.s32 %v300, %v302
  %v304 = vrot.slane %v283, %v303
  %vm305 = vcmask 130112
  %v306 = vsel %vm305, %v304, %v299
  %v307 = vlaneseq
  %v308 = vshrl.u32 %v307, 7
  %v309 = vsub.s32 %v295, %v308
  %v310 = vrot.slane %v286, %v309
  %v311 = vlaneseq
  %v312 = vshrl.u32 %v311, 7
  %v313 = vsub.s32 %v300, %v312
  %v314 = vrot.slane %v289, %v313
  %v315 = vsel %vm305, %v314, %v310
  %vm316 = vcmask 1041409
  %v317 = vsel %vm316, %v315, %v306
  %vm319 = vcmask 123904
  %v320 = vsel %vm319, %v317, 0.0
  %321 = vadd.xlane.f32.xlu0 %v320
  %v322 = vpop.xlane.xlu0 %321
  %vm327 = vcmask 1040384
  %v328 = vrot.slane %v261, 7
  %v329 = vrot.slane %v256, 7
  %v330 = vsel %vm327, %v328, %v329
  %v331 = vsel %vm327, %v329, %v328
  %v332 = vrot.slane %v271, 7
  %v333 = vrot.slane %v266, 7
  %v334 = vsel %vm327, %v332, %v333
  %v335 = vsel %vm327, %v333, %v332
  %v340 = vmul.f32 %v165, %v330
  %v341 = vmul.f32 %v170, %v331
  %v342 = vmul.f32 %v175, %v334
  %v343 = vmul.f32 %v180, %v335
  %v344 = vsel %vm85, %v340, 0.0
  %345 = vadd.xlane.f32.xlu0 %v344
  %v346 = vpop.xlane.xlu0 %345
  %v347 = vsel %vm85, %v341, 0.0
  %348 = vadd.xlane.f32.xlu0 %v347
  %v349 = vpop.xlane.xlu0 %348
  %v350 = vsel %vm85, %v342, 0.0
  %351 = vadd.xlane.f32.xlu0 %v350
  %v352 = vpop.xlane.xlu0 %351
  %v353 = vsel %vm85, %v343, 0.0
  %354 = vadd.xlane.f32.xlu0 %v353
  %v355 = vpop.xlane.xlu0 %354
  %v360 = vlaneseq
  %v361 = vshrl.u32 %v360, 7
  %v362 = vsub.s32 %v295, %v361
  %v363 = vrot.slane %v346, %v362
  %v364 = vlaneseq
  %v365 = vshrl.u32 %v364, 7
  %v366 = vsub.s32 %v300, %v365
  %v367 = vrot.slane %v349, %v366
  %v368 = vsel %vm305, %v367, %v363
  %v369 = vlaneseq
  %v370 = vshrl.u32 %v369, 7
  %v371 = vsub.s32 %v295, %v370
  %v372 = vrot.slane %v352, %v371
  %v373 = vlaneseq
  %v374 = vshrl.u32 %v373, 7
  %v375 = vsub.s32 %v300, %v374
  %v376 = vrot.slane %v355, %v375
  %v377 = vsel %vm305, %v376, %v372
  %v378 = vsel %vm316, %v377, %v368
  %v380 = vsel %vm319, %v378, 0.0
  %381 = vadd.xlane.f32.xlu0 %v380
  %v382 = vpop.xlane.xlu0 %381
  %vm383 = vcmask 1041408
  %v384 = vrot.slane %v261, 6
  %v385 = vrot.slane %v256, 6
  %v386 = vsel %vm383, %v384, %v385
  %v387 = vsel %vm383, %v385, %v384
  %v388 = vrot.slane %v271, 6
  %v389 = vrot.slane %v266, 6
  %v390 = vsel %vm383, %v388, %v389
  %v391 = vsel %vm383, %v389, %v388
  %v396 = vmul.f32 %v165, %v386
  %v397 = vmul.f32 %v170, %v387
  %v398 = vmul.f32 %v175, %v390
  %v399 = vmul.f32 %v180, %v391
  %v400 = vsel %vm85, %v396, 0.0
  %401 = vadd.xlane.f32.xlu0 %v400
  %v402 = vpop.xlane.xlu0 %401
  %v403 = vsel %vm85, %v397, 0.0
  %404 = vadd.xlane.f32.xlu0 %v403
  %v405 = vpop.xlane.xlu0 %404
  %v406 = vsel %vm85, %v398, 0.0
  %407 = vadd.xlane.f32.xlu0 %v406
  %v408 = vpop.xlane.xlu0 %407
  %v409 = vsel %vm85, %v399, 0.0
  %410 = vadd.xlane.f32.xlu0 %v409
  %v411 = vpop.xlane.xlu0 %410
  %v416 = vlaneseq
  %v417 = vshrl.u32 %v416, 7
  %v418 = vsub.s32 %v295, %v417
  %v419 = vrot.slane %v402, %v418
  %v420 = vlaneseq
  %v421 = vshrl.u32 %v420, 7
  %v422 = vsub.s32 %v300, %v421
  %v423 = vrot.slane %v405, %v422
  %v424 = vsel %vm305, %v423, %v419
  %v425 = vlaneseq
  %v426 = vshrl.u32 %v425, 7
  %v427 = vsub.s32 %v295, %v426
  %v428 = vrot.slane %v408, %v427
  %v429 = vlaneseq
  %v430 = vshrl.u32 %v429, 7
  %v431 = vsub.s32 %v300, %v430
  %v432 = vrot.slane %v411, %v431
  %v433 = vsel %vm305, %v432, %v428
  %v434 = vsel %vm316, %v433, %v424
  %v436 = vsel %vm319, %v434, 0.0
  %437 = vadd.xlane.f32.xlu0 %v436
  %v438 = vpop.xlane.xlu0 %437
  %vm439 = vcmask 1042432
  %v440 = vrot.slane %v261, 5
  %v441 = vrot.slane %v256, 5
  %v442 = vsel %vm439, %v440, %v441
  %v443 = vsel %vm439, %v441, %v440
  %v444 = vrot.slane %v271, 5
  %v445 = vrot.slane %v266, 5
  %v446 = vsel %vm439, %v444, %v445
  %v447 = vsel %vm439, %v445, %v444
  %v452 = vmul.f32 %v165, %v442
  %v453 = vmul.f32 %v170, %v443
  %v454 = vmul.f32 %v175, %v446
  %v455 = vmul.f32 %v180, %v447
  %v456 = vsel %vm85, %v452, 0.0
  %457 = vadd.xlane.f32.xlu0 %v456
  %v458 = vpop.xlane.xlu0 %457
  %v459 = vsel %vm85, %v453, 0.0
  %460 = vadd.xlane.f32.xlu0 %v459
  %v461 = vpop.xlane.xlu0 %460
  %v462 = vsel %vm85, %v454, 0.0
  %463 = vadd.xlane.f32.xlu0 %v462
  %v464 = vpop.xlane.xlu0 %463
  %v465 = vsel %vm85, %v455, 0.0
  %466 = vadd.xlane.f32.xlu0 %v465
  %v467 = vpop.xlane.xlu0 %466
  %v472 = vlaneseq
  %v473 = vshrl.u32 %v472, 7
  %v474 = vsub.s32 %v295, %v473
  %v475 = vrot.slane %v458, %v474
  %v476 = vlaneseq
  %v477 = vshrl.u32 %v476, 7
  %v478 = vsub.s32 %v300, %v477
  %v479 = vrot.slane %v461, %v478
  %v480 = vsel %vm305, %v479, %v475
  %v481 = vlaneseq
  %v482 = vshrl.u32 %v481, 7
  %v483 = vsub.s32 %v295, %v482
  %v484 = vrot.slane %v464, %v483
  %v485 = vlaneseq
  %v486 = vshrl.u32 %v485, 7
  %v487 = vsub.s32 %v300, %v486
  %v488 = vrot.slane %v467, %v487
  %v489 = vsel %vm305, %v488, %v484
  %v490 = vsel %vm316, %v489, %v480
  %v492 = vsel %vm319, %v490, 0.0
  %493 = vadd.xlane.f32.xlu0 %v492
  %v494 = vpop.xlane.xlu0 %493
  %vm495 = vcmask 1043456
  %v496 = vrot.slane %v261, 4
  %v497 = vrot.slane %v256, 4
  %v498 = vsel %vm495, %v496, %v497
  %v499 = vsel %vm495, %v497, %v496
  %v500 = vrot.slane %v271, 4
  %v501 = vrot.slane %v266, 4
  %v502 = vsel %vm495, %v500, %v501
  %v503 = vsel %vm495, %v501, %v500
  %v508 = vmul.f32 %v165, %v498
  %v509 = vmul.f32 %v170, %v499
  %v510 = vmul.f32 %v175, %v502
  %v511 = vmul.f32 %v180, %v503
  %v512 = vsel %vm85, %v508, 0.0
  %513 = vadd.xlane.f32.xlu0 %v512
  %v514 = vpop.xlane.xlu0 %513
  %v515 = vsel %vm85, %v509, 0.0
  %516 = vadd.xlane.f32.xlu0 %v515
  %v517 = vpop.xlane.xlu0 %516
  %v518 = vsel %vm85, %v510, 0.0
  %519 = vadd.xlane.f32.xlu0 %v518
  %v520 = vpop.xlane.xlu0 %519
  %v521 = vsel %vm85, %v511, 0.0
  %522 = vadd.xlane.f32.xlu0 %v521
  %v523 = vpop.xlane.xlu0 %522
  %v528 = vlaneseq
  %v529 = vshrl.u32 %v528, 7
  %v530 = vsub.s32 %v295, %v529
  %v531 = vrot.slane %v514, %v530
  %v532 = vlaneseq
  %v533 = vshrl.u32 %v532, 7
  %v534 = vsub.s32 %v300, %v533
  %v535 = vrot.slane %v517, %v534
  %v536 = vsel %vm305, %v535, %v531
  %v537 = vlaneseq
  %v538 = vshrl.u32 %v537, 7
  %v539 = vsub.s32 %v295, %v538
  %v540 = vrot.slane %v520, %v539
  %v541 = vlaneseq
  %v542 = vshrl.u32 %v541, 7
  %v543 = vsub.s32 %v300, %v542
  %v544 = vrot.slane %v523, %v543
  %v545 = vsel %vm305, %v544, %v540
  %v546 = vsel %vm316, %v545, %v536
  %v548 = vsel %vm319, %v546, 0.0
  %549 = vadd.xlane.f32.xlu0 %v548
  %v550 = vpop.xlane.xlu0 %549
  %vm551 = vcmask 1044480
  %v552 = vrot.slane %v261, 3
  %v553 = vrot.slane %v256, 3
  %v554 = vsel %vm551, %v552, %v553
  %v555 = vsel %vm551, %v553, %v552
  %v556 = vrot.slane %v271, 3
  %v557 = vrot.slane %v266, 3
  %v558 = vsel %vm551, %v556, %v557
  %v559 = vsel %vm551, %v557, %v556
  %v564 = vmul.f32 %v165, %v554
  %v565 = vmul.f32 %v170, %v555
  %v566 = vmul.f32 %v175, %v558
  %v567 = vmul.f32 %v180, %v559
  %v568 = vsel %vm85, %v564, 0.0
  %569 = vadd.xlane.f32.xlu0 %v568
  %v570 = vpop.xlane.xlu0 %569
  %v571 = vsel %vm85, %v565, 0.0
  %572 = vadd.xlane.f32.xlu0 %v571
  %v573 = vpop.xlane.xlu0 %572
  %v574 = vsel %vm85, %v566, 0.0
  %575 = vadd.xlane.f32.xlu0 %v574
  %v576 = vpop.xlane.xlu0 %575
  %v577 = vsel %vm85, %v567, 0.0
  %578 = vadd.xlane.f32.xlu0 %v577
  %v579 = vpop.xlane.xlu0 %578
  %v584 = vlaneseq
  %v585 = vshrl.u32 %v584, 7
  %v586 = vsub.s32 %v295, %v585
  %v587 = vrot.slane %v570, %v586
  %v588 = vlaneseq
  %v589 = vshrl.u32 %v588, 7
  %v590 = vsub.s32 %v300, %v589
  %v591 = vrot.slane %v573, %v590
  %v592 = vsel %vm305, %v591, %v587
  %v593 = vlaneseq
  %v594 = vshrl.u32 %v593, 7
  %v595 = vsub.s32 %v295, %v594
  %v596 = vrot.slane %v576, %v595
  %v597 = vlaneseq
  %v598 = vshrl.u32 %v597, 7
  %v599 = vsub.s32 %v300, %v598
  %v600 = vrot.slane %v579, %v599
  %v601 = vsel %vm305, %v600, %v596
  %v602 = vsel %vm316, %v601, %v592
  %v604 = vsel %vm319, %v602, 0.0
  %605 = vadd.xlane.f32.xlu0 %v604
  %v606 = vpop.xlane.xlu0 %605
  %vm607 = vcmask 1045504
  %v608 = vrot.slane %v261, 2
  %v609 = vrot.slane %v256, 2
  %v610 = vsel %vm607, %v608, %v609
  %v611 = vsel %vm607, %v609, %v608
  %v612 = vrot.slane %v271, 2
  %v613 = vrot.slane %v266, 2
  %v614 = vsel %vm607, %v612, %v613
  %v615 = vsel %vm607, %v613, %v612
  %v620 = vmul.f32 %v165, %v610
  %v621 = vmul.f32 %v170, %v611
  %v622 = vmul.f32 %v175, %v614
  %v623 = vmul.f32 %v180, %v615
  %v624 = vsel %vm85, %v620, 0.0
  %625 = vadd.xlane.f32.xlu0 %v624
  %v626 = vpop.xlane.xlu0 %625
  %v627 = vsel %vm85, %v621, 0.0
  %628 = vadd.xlane.f32.xlu0 %v627
  %v629 = vpop.xlane.xlu0 %628
  %v630 = vsel %vm85, %v622, 0.0
  %631 = vadd.xlane.f32.xlu0 %v630
  %v632 = vpop.xlane.xlu0 %631
  %v633 = vsel %vm85, %v623, 0.0
  %634 = vadd.xlane.f32.xlu0 %v633
  %v635 = vpop.xlane.xlu0 %634
  %v640 = vlaneseq
  %v641 = vshrl.u32 %v640, 7
  %v642 = vsub.s32 %v295, %v641
  %v643 = vrot.slane %v626, %v642
  %v644 = vlaneseq
  %v645 = vshrl.u32 %v644, 7
  %v646 = vsub.s32 %v300, %v645
  %v647 = vrot.slane %v629, %v646
  %v648 = vsel %vm305, %v647, %v643
  %v649 = vlaneseq
  %v650 = vshrl.u32 %v649, 7
  %v651 = vsub.s32 %v295, %v650
  %v652 = vrot.slane %v632, %v651
  %v653 = vlaneseq
  %v654 = vshrl.u32 %v653, 7
  %v655 = vsub.s32 %v300, %v654
  %v656 = vrot.slane %v635, %v655
  %v657 = vsel %vm305, %v656, %v652
  %v658 = vsel %vm316, %v657, %v648
  %v660 = vsel %vm319, %v658, 0.0
  %661 = vadd.xlane.f32.xlu0 %v660
  %v662 = vpop.xlane.xlu0 %661
  %vm663 = vcmask 1046528
  %v664 = vrot.slane %v261, 1
  %v665 = vrot.slane %v256, 1
  %v666 = vsel %vm663, %v664, %v665
  %v667 = vsel %vm663, %v665, %v664
  %v668 = vrot.slane %v271, 1
  %v669 = vrot.slane %v266, 1
  %v670 = vsel %vm663, %v668, %v669
  %v671 = vsel %vm663, %v669, %v668
  %v676 = vmul.f32 %v165, %v666
  %v677 = vmul.f32 %v170, %v667
  %v678 = vmul.f32 %v175, %v670
  %v679 = vmul.f32 %v180, %v671
  %v680 = vsel %vm85, %v676, 0.0
  %681 = vadd.xlane.f32.xlu0 %v680
  %v682 = vpop.xlane.xlu0 %681
  %v683 = vsel %vm85, %v677, 0.0
  %684 = vadd.xlane.f32.xlu0 %v683
  %v685 = vpop.xlane.xlu0 %684
  %v686 = vsel %vm85, %v678, 0.0
  %687 = vadd.xlane.f32.xlu0 %v686
  %v688 = vpop.xlane.xlu0 %687
  %v689 = vsel %vm85, %v679, 0.0
  %690 = vadd.xlane.f32.xlu0 %v689
  %v691 = vpop.xlane.xlu0 %690
  %v696 = vlaneseq
  %v697 = vshrl.u32 %v696, 7
  %v698 = vsub.s32 %v295, %v697
  %v699 = vrot.slane %v682, %v698
  %v700 = vlaneseq
  %v701 = vshrl.u32 %v700, 7
  %v702 = vsub.s32 %v300, %v701
  %v703 = vrot.slane %v685, %v702
  %v704 = vsel %vm305, %v703, %v699
  %v705 = vlaneseq
  %v706 = vshrl.u32 %v705, 7
  %v707 = vsub.s32 %v295, %v706
  %v708 = vrot.slane %v688, %v707
  %v709 = vlaneseq
  %v710 = vshrl.u32 %v709, 7
  %v711 = vsub.s32 %v300, %v710
  %v712 = vrot.slane %v691, %v711
  %v713 = vsel %vm305, %v712, %v708
  %v714 = vsel %vm316, %v713, %v704
  %v716 = vsel %vm319, %v714, 0.0
  %717 = vadd.xlane.f32.xlu0 %v716
  %v718 = vpop.xlane.xlu0 %717
  %v719 = vmul.f32 %v165, %v261
  %v720 = vmul.f32 %v170, %v256
  %v721 = vmul.f32 %v175, %v271
  %v722 = vmul.f32 %v180, %v266
  %v723 = vsel %vm85, %v719, 0.0
  %724 = vadd.xlane.f32.xlu0 %v723
  %v725 = vpop.xlane.xlu0 %724
  %v726 = vsel %vm85, %v720, 0.0
  %727 = vadd.xlane.f32.xlu0 %v726
  %v728 = vpop.xlane.xlu0 %727
  %v729 = vsel %vm85, %v721, 0.0
  %730 = vadd.xlane.f32.xlu0 %v729
  %v731 = vpop.xlane.xlu0 %730
  %v732 = vsel %vm85, %v722, 0.0
  %733 = vadd.xlane.f32.xlu0 %v732
  %v734 = vpop.xlane.xlu0 %733
  %v739 = vlaneseq
  %v740 = vshrl.u32 %v739, 7
  %v741 = vsub.s32 %v295, %v740
  %v742 = vrot.slane %v725, %v741
  %v743 = vlaneseq
  %v744 = vshrl.u32 %v743, 7
  %v745 = vsub.s32 %v300, %v744
  %v746 = vrot.slane %v728, %v745
  %v747 = vsel %vm305, %v746, %v742
  %v748 = vlaneseq
  %v749 = vshrl.u32 %v748, 7
  %v750 = vsub.s32 %v295, %v749
  %v751 = vrot.slane %v731, %v750
  %v752 = vlaneseq
  %v753 = vshrl.u32 %v752, 7
  %v754 = vsub.s32 %v300, %v753
  %v755 = vrot.slane %v734, %v754
  %v756 = vsel %vm305, %v755, %v751
  %v757 = vsel %vm316, %v756, %v747
  %v759 = vsel %vm319, %v757, 0.0
  %760 = vadd.xlane.f32.xlu0 %v759
  %v761 = vpop.xlane.xlu0 %760
  %v762 = vmul.f32 %v165, %v331
  %v763 = vmul.f32 %v170, %v330
  %v764 = vmul.f32 %v175, %v335
  %v765 = vmul.f32 %v180, %v334
  %v766 = vsel %vm85, %v762, 0.0
  %767 = vadd.xlane.f32.xlu0 %v766
  %v768 = vpop.xlane.xlu0 %767
  %v769 = vsel %vm85, %v763, 0.0
  %770 = vadd.xlane.f32.xlu0 %v769
  %v771 = vpop.xlane.xlu0 %770
  %v772 = vsel %vm85, %v764, 0.0
  %773 = vadd.xlane.f32.xlu0 %v772
  %v774 = vpop.xlane.xlu0 %773
  %v775 = vsel %vm85, %v765, 0.0
  %776 = vadd.xlane.f32.xlu0 %v775
  %v777 = vpop.xlane.xlu0 %776
  %v782 = vlaneseq
  %v783 = vshrl.u32 %v782, 7
  %v784 = vsub.s32 %v295, %v783
  %v785 = vrot.slane %v768, %v784
  %v786 = vlaneseq
  %v787 = vshrl.u32 %v786, 7
  %v788 = vsub.s32 %v300, %v787
  %v789 = vrot.slane %v771, %v788
  %v790 = vsel %vm305, %v789, %v785
  %v791 = vlaneseq
  %v792 = vshrl.u32 %v791, 7
  %v793 = vsub.s32 %v295, %v792
  %v794 = vrot.slane %v774, %v793
  %v795 = vlaneseq
  %v796 = vshrl.u32 %v795, 7
  %v797 = vsub.s32 %v300, %v796
  %v798 = vrot.slane %v777, %v797
  %v799 = vsel %vm305, %v798, %v794
  %v800 = vsel %vm316, %v799, %v790
  %v802 = vsel %vm319, %v800, 0.0
  %803 = vadd.xlane.f32.xlu0 %v802
  %v804 = vpop.xlane.xlu0 %803
  %v805 = vmul.f32 %v165, %v387
  %v806 = vmul.f32 %v170, %v386
  %v807 = vmul.f32 %v175, %v391
  %v808 = vmul.f32 %v180, %v390
  %v809 = vsel %vm85, %v805, 0.0
  %810 = vadd.xlane.f32.xlu0 %v809
  %v811 = vpop.xlane.xlu0 %810
  %v812 = vsel %vm85, %v806, 0.0
  %813 = vadd.xlane.f32.xlu0 %v812
  %v814 = vpop.xlane.xlu0 %813
  %v815 = vsel %vm85, %v807, 0.0
  %816 = vadd.xlane.f32.xlu0 %v815
  %v817 = vpop.xlane.xlu0 %816
  %v818 = vsel %vm85, %v808, 0.0
  %819 = vadd.xlane.f32.xlu0 %v818
  %v820 = vpop.xlane.xlu0 %819
  %v825 = vlaneseq
  %v826 = vshrl.u32 %v825, 7
  %v827 = vsub.s32 %v295, %v826
  %v828 = vrot.slane %v811, %v827
  %v829 = vlaneseq
  %v830 = vshrl.u32 %v829, 7
  %v831 = vsub.s32 %v300, %v830
  %v832 = vrot.slane %v814, %v831
  %v833 = vsel %vm305, %v832, %v828
  %v834 = vlaneseq
  %v835 = vshrl.u32 %v834, 7
  %v836 = vsub.s32 %v295, %v835
  %v837 = vrot.slane %v817, %v836
  %v838 = vlaneseq
  %v839 = vshrl.u32 %v838, 7
  %v840 = vsub.s32 %v300, %v839
  %v841 = vrot.slane %v820, %v840
  %v842 = vsel %vm305, %v841, %v837
  %v843 = vsel %vm316, %v842, %v833
  %v845 = vsel %vm319, %v843, 0.0
  %846 = vadd.xlane.f32.xlu0 %v845
  %v847 = vpop.xlane.xlu0 %846
  %v848 = vmul.f32 %v165, %v443
  %v849 = vmul.f32 %v170, %v442
  %v850 = vmul.f32 %v175, %v447
  %v851 = vmul.f32 %v180, %v446
  %v852 = vsel %vm85, %v848, 0.0
  %853 = vadd.xlane.f32.xlu0 %v852
  %v854 = vpop.xlane.xlu0 %853
  %v855 = vsel %vm85, %v849, 0.0
  %856 = vadd.xlane.f32.xlu0 %v855
  %v857 = vpop.xlane.xlu0 %856
  %v858 = vsel %vm85, %v850, 0.0
  %859 = vadd.xlane.f32.xlu0 %v858
  %v860 = vpop.xlane.xlu0 %859
  %v861 = vsel %vm85, %v851, 0.0
  %862 = vadd.xlane.f32.xlu0 %v861
  %v863 = vpop.xlane.xlu0 %862
  %v868 = vlaneseq
  %v869 = vshrl.u32 %v868, 7
  %v870 = vsub.s32 %v295, %v869
  %v871 = vrot.slane %v854, %v870
  %v872 = vlaneseq
  %v873 = vshrl.u32 %v872, 7
  %v874 = vsub.s32 %v300, %v873
  %v875 = vrot.slane %v857, %v874
  %v876 = vsel %vm305, %v875, %v871
  %v877 = vlaneseq
  %v878 = vshrl.u32 %v877, 7
  %v879 = vsub.s32 %v295, %v878
  %v880 = vrot.slane %v860, %v879
  %v881 = vlaneseq
  %v882 = vshrl.u32 %v881, 7
  %v883 = vsub.s32 %v300, %v882
  %v884 = vrot.slane %v863, %v883
  %v885 = vsel %vm305, %v884, %v880
  %v886 = vsel %vm316, %v885, %v876
  %v888 = vsel %vm319, %v886, 0.0
  %889 = vadd.xlane.f32.xlu0 %v888
  %v890 = vpop.xlane.xlu0 %889
  %v891 = vmul.f32 %v165, %v499
  %v892 = vmul.f32 %v170, %v498
  %v893 = vmul.f32 %v175, %v503
  %v894 = vmul.f32 %v180, %v502
  %v895 = vsel %vm85, %v891, 0.0
  %896 = vadd.xlane.f32.xlu0 %v895
  %v897 = vpop.xlane.xlu0 %896
  %v898 = vsel %vm85, %v892, 0.0
  %899 = vadd.xlane.f32.xlu0 %v898
  %v900 = vpop.xlane.xlu0 %899
  %v901 = vsel %vm85, %v893, 0.0
  %902 = vadd.xlane.f32.xlu0 %v901
  %v903 = vpop.xlane.xlu0 %902
  %v904 = vsel %vm85, %v894, 0.0
  %905 = vadd.xlane.f32.xlu0 %v904
  %v906 = vpop.xlane.xlu0 %905
  %v911 = vlaneseq
  %v912 = vshrl.u32 %v911, 7
  %v913 = vsub.s32 %v295, %v912
  %v914 = vrot.slane %v897, %v913
  %v915 = vlaneseq
  %v916 = vshrl.u32 %v915, 7
  %v917 = vsub.s32 %v300, %v916
  %v918 = vrot.slane %v900, %v917
  %v919 = vsel %vm305, %v918, %v914
  %v920 = vlaneseq
  %v921 = vshrl.u32 %v920, 7
  %v922 = vsub.s32 %v295, %v921
  %v923 = vrot.slane %v903, %v922
  %v924 = vlaneseq
  %v925 = vshrl.u32 %v924, 7
  %v926 = vsub.s32 %v300, %v925
  %v927 = vrot.slane %v906, %v926
  %v928 = vsel %vm305, %v927, %v923
  %v929 = vsel %vm316, %v928, %v919
  %v931 = vsel %vm319, %v929, 0.0
  %932 = vadd.xlane.f32.xlu0 %v931
  %v933 = vpop.xlane.xlu0 %932
  %v934 = vmul.f32 %v165, %v555
  %v935 = vmul.f32 %v170, %v554
  %v936 = vmul.f32 %v175, %v559
  %v937 = vmul.f32 %v180, %v558
  %v938 = vsel %vm85, %v934, 0.0
  %939 = vadd.xlane.f32.xlu0 %v938
  %v940 = vpop.xlane.xlu0 %939
  %v941 = vsel %vm85, %v935, 0.0
  %942 = vadd.xlane.f32.xlu0 %v941
  %v943 = vpop.xlane.xlu0 %942
  %v944 = vsel %vm85, %v936, 0.0
  %945 = vadd.xlane.f32.xlu0 %v944
  %v946 = vpop.xlane.xlu0 %945
  %v947 = vsel %vm85, %v937, 0.0
  %948 = vadd.xlane.f32.xlu0 %v947
  %v949 = vpop.xlane.xlu0 %948
  %v954 = vlaneseq
  %v955 = vshrl.u32 %v954, 7
  %v956 = vsub.s32 %v295, %v955
  %v957 = vrot.slane %v940, %v956
  %v958 = vlaneseq
  %v959 = vshrl.u32 %v958, 7
  %v960 = vsub.s32 %v300, %v959
  %v961 = vrot.slane %v943, %v960
  %v962 = vsel %vm305, %v961, %v957
  %v963 = vlaneseq
  %v964 = vshrl.u32 %v963, 7
  %v965 = vsub.s32 %v295, %v964
  %v966 = vrot.slane %v946, %v965
  %v967 = vlaneseq
  %v968 = vshrl.u32 %v967, 7
  %v969 = vsub.s32 %v300, %v968
  %v970 = vrot.slane %v949, %v969
  %v971 = vsel %vm305, %v970, %v966
  %v972 = vsel %vm316, %v971, %v962
  %v974 = vsel %vm319, %v972, 0.0
  %975 = vadd.xlane.f32.xlu0 %v974
  %v976 = vpop.xlane.xlu0 %975
  %v977 = vmul.f32 %v165, %v611
  %v978 = vmul.f32 %v170, %v610
  %v979 = vmul.f32 %v175, %v615
  %v980 = vmul.f32 %v180, %v614
  %v981 = vsel %vm85, %v977, 0.0
  %982 = vadd.xlane.f32.xlu0 %v981
  %v983 = vpop.xlane.xlu0 %982
  %v984 = vsel %vm85, %v978, 0.0
  %985 = vadd.xlane.f32.xlu0 %v984
  %v986 = vpop.xlane.xlu0 %985
  %v987 = vsel %vm85, %v979, 0.0
  %988 = vadd.xlane.f32.xlu0 %v987
  %v989 = vpop.xlane.xlu0 %988
  %v990 = vsel %vm85, %v980, 0.0
  %991 = vadd.xlane.f32.xlu0 %v990
  %v992 = vpop.xlane.xlu0 %991
  %v997 = vlaneseq
  %v998 = vshrl.u32 %v997, 7
  %v999 = vsub.s32 %v295, %v998
  %v1000 = vrot.slane %v983, %v999
  %v1001 = vlaneseq
  %v1002 = vshrl.u32 %v1001, 7
  %v1003 = vsub.s32 %v300, %v1002
  %v1004 = vrot.slane %v986, %v1003
  %v1005 = vsel %vm305, %v1004, %v1000
  %v1006 = vlaneseq
  %v1007 = vshrl.u32 %v1006, 7
  %v1008 = vsub.s32 %v295, %v1007
  %v1009 = vrot.slane %v989, %v1008
  %v1010 = vlaneseq
  %v1011 = vshrl.u32 %v1010, 7
  %v1012 = vsub.s32 %v300, %v1011
  %v1013 = vrot.slane %v992, %v1012
  %v1014 = vsel %vm305, %v1013, %v1009
  %v1015 = vsel %vm316, %v1014, %v1005
  %v1017 = vsel %vm319, %v1015, 0.0
  %1018 = vadd.xlane.f32.xlu0 %v1017
  %v1019 = vpop.xlane.xlu0 %1018
  %v1020 = vmul.f32 %v165, %v667
  %v1021 = vmul.f32 %v170, %v666
  %v1022 = vmul.f32 %v175, %v671
  %v1023 = vmul.f32 %v180, %v670
  %v1024 = vsel %vm85, %v1020, 0.0
  %1025 = vadd.xlane.f32.xlu0 %v1024
  %v1026 = vpop.xlane.xlu0 %1025
  %v1027 = vsel %vm85, %v1021, 0.0
  %1028 = vadd.xlane.f32.xlu0 %v1027
  %v1029 = vpop.xlane.xlu0 %1028
  %v1030 = vsel %vm85, %v1022, 0.0
  %1031 = vadd.xlane.f32.xlu0 %v1030
  %v1032 = vpop.xlane.xlu0 %1031
  %v1033 = vsel %vm85, %v1023, 0.0
  %1034 = vadd.xlane.f32.xlu0 %v1033
  %v1035 = vpop.xlane.xlu0 %1034
  %v1040 = vlaneseq
  %v1041 = vshrl.u32 %v1040, 7
  %v1042 = vsub.s32 %v295, %v1041
  %v1043 = vrot.slane %v1026, %v1042
  %v1044 = vlaneseq
  %v1045 = vshrl.u32 %v1044, 7
  %v1046 = vsub.s32 %v300, %v1045
  %v1047 = vrot.slane %v1029, %v1046
  %v1048 = vsel %vm305, %v1047, %v1043
  %v1049 = vlaneseq
  %v1050 = vshrl.u32 %v1049, 7
  %v1051 = vsub.s32 %v295, %v1050
  %v1052 = vrot.slane %v1032, %v1051
  %v1053 = vlaneseq
  %v1054 = vshrl.u32 %v1053, 7
  %v1055 = vsub.s32 %v300, %v1054
  %v1056 = vrot.slane %v1035, %v1055
  %v1057 = vsel %vm305, %v1056, %v1052
  %v1058 = vsel %vm316, %v1057, %v1048
  %v1060 = vsel %vm319, %v1058, 0.0
  %1061 = vadd.xlane.f32.xlu0 %v1060
  %v1062 = vpop.xlane.xlu0 %1061
  %vm1063 = vcmask 7168
  %v1064 = vsel %vm1063, %v322, %v382
  %vm1065 = vcmask 15360
  %v1066 = vsel %vm1065, %v1064, %v438
  %vm1067 = vcmask 23552
  %v1068 = vsel %vm1067, %v1066, %v494
  %vm1069 = vcmask 31744
  %v1070 = vsel %vm1069, %v1068, %v550
  %vm1071 = vcmask 39936
  %v1072 = vsel %vm1071, %v1070, %v606
  %vm1073 = vcmask 48128
  %v1074 = vsel %vm1073, %v1072, %v662
  %vm1075 = vcmask 56320
  %v1076 = vsel %vm1075, %v1074, %v718
  %vm1077 = vcmask 64512
  %v1078 = vsel %vm1077, %v1076, %v761
  %vm1079 = vcmask 72704
  %v1080 = vsel %vm1079, %v1078, %v804
  %vm1081 = vcmask 80896
  %v1082 = vsel %vm1081, %v1080, %v847
  %vm1083 = vcmask 89088
  %v1084 = vsel %vm1083, %v1082, %v890
  %vm1085 = vcmask 97280
  %v1086 = vsel %vm1085, %v1084, %v933
  %vm1087 = vcmask 105472
  %v1088 = vsel %vm1087, %v1086, %v976
  %vm1089 = vcmask 113664
  %v1090 = vsel %vm1089, %v1088, %v1019
  %vm1091 = vcmask 121856
  %v1092 = vsel %vm1091, %v1090, %v1062
  %v1093 = vmul.f32 %v1092, 0.03125
  %v1094 = vsel %vm319, %v1093, -inf
  %1095 = vmax.xlane.f32.xlu0 %v1094
  %v1096 = vpop.xlane.xlu0 %1095
  %vm1097 = vcmp.eq.f32.partialorder %v1093, %v1096
  %v1098 = vsel %vm1097, %v295, 16
  %v1099 = vsel %vm319, %v1098, 2147483647
  %v1100 = vand.u32 %v1099, 65535
  %v1101 = vshra.s32 %v1099, 16
  %v1102 = vcvt.s32.f32 %v1100
  %v1103 = vcvt.s32.f32 %v1101
  %1104 = vmin.xlane.f32.xlu0 %v1103
  %v1105 = vpop.xlane.xlu0 %1104
  %vm1106 = vcmp.eq.f32.partialorder %v1103, %v1105
  %v1107 = vsel %vm1106, %v1102, inf
  %1108 = vmin.xlane.f32.xlu0 %v1107
  %v1109 = vpop.xlane.xlu0 %1108
  %v1110 = vcvt.f32.s32 %v1109
  %v1111 = vcvt.f32.s32 %v1105
  %v1112 = vshll.u32 %v1111, 16
  %v1113 = vadd.s32 %v1112, %v1110
  %vm1114 = vcmp.eq.s32.totalorder %v295, %v1113
  %v1115 = vsel %vm1114, -1e+30, %v1093
  %v1116 = vsel %vm319, %v1115, -inf
  %1117 = vmax.xlane.f32.xlu0 %v1116
  %v1118 = vpop.xlane.xlu0 %1117
  %vm1119 = vcmp.eq.f32.partialorder %v1115, %v1118
  %v1120 = vsel %vm1119, %v295, 16
  %v1121 = vsel %vm319, %v1120, 2147483647
  %v1122 = vand.u32 %v1121, 65535
  %v1123 = vshra.s32 %v1121, 16
  %v1124 = vcvt.s32.f32 %v1122
  %v1125 = vcvt.s32.f32 %v1123
  %1126 = vmin.xlane.f32.xlu0 %v1125
  %v1127 = vpop.xlane.xlu0 %1126
  %vm1128 = vcmp.eq.f32.partialorder %v1125, %v1127
  %v1129 = vsel %vm1128, %v1124, inf
  %1130 = vmin.xlane.f32.xlu0 %v1129
  %v1131 = vpop.xlane.xlu0 %1130
  %v1132 = vcvt.f32.s32 %v1131
  %v1133 = vcvt.f32.s32 %v1127
  %v1134 = vshll.u32 %v1133, 16
  %v1135 = vadd.s32 %v1134, %v1132
  %v1136 = vsel %vm1063, %v1096, %v1118
  %v1137 = vsub.f32 %v1136, %v1096
  %v1138 = vmul.f32 %v1137, 1.442695
  %v1139 = vpow.pop %v1138
  %vm1140 = vcmask 9216
  %v1141 = vsel %vm1140, %v1139, 0.0
  %1142 = vadd.xlane.f32.xlu0 %v1141
  %v1143 = vpop.xlane.xlu0 %1142
  %v1144 = vrcp.pop %v1143
  %v1145 = vmul.f32 %v1139, %v1144
  %v1146 = vlaneseq
  %v1147 = vshrl.u32 %v1146, 7
  %v1148 = vadd.s32 %v1147, 8
  %v1149 = vsub.s32 %v295, %v1147
  %v1150 = vsub.s32 %v295, %v1148
  %vm1151 = vcmp.lt.s32.totalorder %v1149, 0
  %vm1152 = vcmp.lt.s32.totalorder %v1150, 0
  %v1153 = vadd.s32 %v1149, 16
  %v1154 = vadd.s32 %v1150, 16
  %v1155 = vsel %vm1151, %v1153, %v1149
  %v1156 = vsel %vm1152, %v1154, %v1150
  %v1157 = vlaneseq
  %v1158 = vshrl.u32 %v1157, 7
  %v1159 = vsub.s32 0, %v1158
  %v1160 = vrot.slane %v1113, %v1159
  %v1161 = vlaneseq
  %v1162 = vshrl.u32 %v1161, 7
  %v1163 = vsub.s32 1, %v1162
  %v1164 = vrot.slane %v1113, %v1163
  %vm1165 = vcmp.eq.s32.totalorder %v1155, %v1160
  %vm1166 = vcmp.eq.s32.totalorder %v1156, %v1160
  %vm1167 = vcmp.eq.s32.totalorder %v1155, %v1164
  %vm1168 = vcmp.eq.s32.totalorder %v1156, %v1164
  %v1169 = vsel %vm1165, 1, 0
  %v1170 = vsel %vm1166, 1, 0
  %v1171 = vsel %vm1167, 1, 0
  %v1172 = vsel %vm1168, 1, 0
  %v1173 = vcvt.s32.f32 %v1169
  %v1174 = vcvt.s32.f32 %v1170
  %v1175 = vcvt.s32.f32 %v1171
  %v1176 = vcvt.s32.f32 %v1172
  %v1179 = vunpack.c.l.s4 1966171168
  %v1180 = vunpack.c.0.s8 %v1179
  %v1181 = vlaneseq
  %v1182 = vshrl.u32 %v1181, 7
  %v1183 = vsub.s32 %v1180, %v1182
  %v1184 = vrot.slane %v1145, %v1183
  %v1185 = vcombine.high %v1184, %v1184
  %v1187 = vunpack.c.l.s4 1966171168
  %v1188 = vunpack.c.0.s8 %v1187
  %v1189 = vlaneseq
  %v1190 = vshrl.u32 %v1189, 7
  %v1191 = vsub.s32 %v1188, %v1190
  %v1192 = vrot.slane %v1184, %v1191
  %v1194 = vunpack.c.l.s4 1966171168
  %v1195 = vunpack.c.0.s8 %v1194
  %v1196 = vlaneseq
  %v1197 = vshrl.u32 %v1196, 7
  %v1198 = vsub.s32 %v1195, %v1197
  %v1199 = vrot.slane %v1185, %v1198
  %v1200 = vlaneseq
  %v1201 = vshrl.u32 %v1200, 7
  %v1202 = vsub.s32 0, %v1201
  %v1203 = vrot.slane %v1192, %v1202
  %v1204 = vlaneseq
  %v1205 = vshrl.u32 %v1204, 7
  %v1206 = vsub.s32 0, %v1205
  %v1207 = vrot.slane %v1199, %v1206
  %1208 = vset.pattern.permute.xlu0 0
  %1209 = vperm.xlu0 %1208, %v1203
  %v1210 = vpop.permute.xlu0 %1209
  %1212 = vset.pattern.permute.xlu0 0
  %1213 = vperm.xlu0 %1212, %v1207
  %v1214 = vpop.permute.xlu0 %1213
  %v1216 = vmul.f32 %v1210, %v1173
  %v1217 = vmul.f32 %v1210, %v1174
  %v1218 = vmul.f32 %v1214, %v1175
  %v1219 = vmul.f32 %v1214, %v1176
  %v1220 = vadd.f32 %v1216, 0.0
  %v1221 = vadd.f32 %v1217, 0.0
  %v1222 = vadd.f32 %v1218, 0.0
  %v1223 = vadd.f32 %v1219, 0.0
  %v1224 = vlaneseq
  %v1225 = vshrl.u32 %v1224, 7
  %v1226 = vsub.s32 0, %v1225
  %v1227 = vrot.slane %v1135, %v1226
  %v1228 = vlaneseq
  %v1229 = vshrl.u32 %v1228, 7
  %v1230 = vsub.s32 1, %v1229
  %v1231 = vrot.slane %v1135, %v1230
  %vm1232 = vcmp.eq.s32.totalorder %v1155, %v1227
  %vm1233 = vcmp.eq.s32.totalorder %v1156, %v1227
  %vm1234 = vcmp.eq.s32.totalorder %v1155, %v1231
  %vm1235 = vcmp.eq.s32.totalorder %v1156, %v1231
  %v1236 = vsel %vm1232, 1, 0
  %v1237 = vsel %vm1233, 1, 0
  %v1238 = vsel %vm1234, 1, 0
  %v1239 = vsel %vm1235, 1, 0
  %v1240 = vcvt.s32.f32 %v1236
  %v1241 = vcvt.s32.f32 %v1237
  %v1242 = vcvt.s32.f32 %v1238
  %v1243 = vcvt.s32.f32 %v1239
  %1244 = vset.pattern.permute.xlu0 1
  %1245 = vperm.xlu0 %1244, %v1203
  %v1246 = vpop.permute.xlu0 %1245
  %1248 = vset.pattern.permute.xlu0 1
  %1249 = vperm.xlu0 %1248, %v1207
  %v1250 = vpop.permute.xlu0 %1249
  %v1252 = vmul.f32 %v1246, %v1240
  %v1253 = vmul.f32 %v1246, %v1241
  %v1254 = vmul.f32 %v1250, %v1242
  %v1255 = vmul.f32 %v1250, %v1243
  %v1256 = vadd.f32 %v1220, %v1252
  %v1257 = vadd.f32 %v1221, %v1253
  %v1258 = vadd.f32 %v1222, %v1254
  %v1259 = vadd.f32 %v1223, %v1255
  %1260 = vrot.lane.b32.xlu0 %v256, 96
  %v1261 = vpop.permute.xlu0 %1260
  %1262 = vrot.lane.b32.xlu0 %v261, 96
  %v1263 = vpop.permute.xlu0 %1262
  %vm1266 = vcmask 130048
  %v1268 = vsel %vm1266, %v1256, 0
  %v1271 = vsel %vm1266, %v1257, 0
  %1273 = vmatprep.subr.mxu0 0.0
  %1274 = vmatpush1.msra.mxu0 %v1261
  %1275 = vmatprep.subr.mxu0 0.0
  %1276 = vmatpush1.msra.mxu0 %v1263
  %1277 = vmatprep.subr.mxu0 0.0
  %1278 = vmatpush1.msra.mxu0 0.0
  %1279 = vmatprep.subr.mxu0 0.0
  %1280 = vmatpush1.msra.mxu0 0.0
  %1281 = vmatprep.subr.mxu0 0.0
  %1282 = vmatpush1.msra.mxu0 0.0
  %1283 = vmatprep.subr.mxu0 0.0
  %1284 = vmatpush1.msra.mxu0 0.0
  %1285 = vmatprep.subr.mxu0 0.0
  %1286 = vmatpush1.msra.mxu0 0.0
  %1287 = vmatprep.subr.mxu0 0.0
  %1288 = vmatpush1.msra.mxu0 0.0
  %1289 = vmatprep.subr.mxu0 0.0
  %1290 = vmatpush1.msra.mxu0 0.0
  %1291 = vmatprep.subr.mxu0 0.0
  %1292 = vmatpush1.msra.mxu0 0.0
  %1293 = vmatprep.subr.mxu0 0.0
  %1294 = vmatpush1.msra.mxu0 0.0
  %1295 = vmatprep.subr.mxu0 0.0
  %1296 = vmatpush1.msra.mxu0 0.0
  %1297 = vmatprep.subr.mxu0 0.0
  %1298 = vmatpush1.msra.mxu0 0.0
  %1299 = vmatprep.subr.mxu0 0.0
  %1300 = vmatpush1.msra.mxu0 0.0
  %1301 = vmatprep.subr.mxu0 0.0
  %1302 = vmatpush1.msra.mxu0 0.0
  %1303 = vmatprep.subr.mxu0 0.0
  %1304 = vmatpush1.msra.mxu0 0.0
  %1305 = vmatprep.subr.mxu0 0.0
  %1306 = vmatpush1.msra.mxu0 0.0
  %1307 = vmatprep.subr.mxu0 0.0
  %1308 = vmatpush1.msra.mxu0 0.0
  %1309 = vmatprep.subr.mxu0 0.0
  %1310 = vmatpush1.msra.mxu0 0.0
  %1311 = vmatprep.subr.mxu0 0.0
  %1312 = vmatpush1.msra.mxu0 0.0
  %1313 = vmatprep.subr.mxu0 0.0
  %1314 = vmatpush1.msra.mxu0 0.0
  %1315 = vmatprep.subr.mxu0 0.0
  %1316 = vmatpush1.msra.mxu0 0.0
  %1317 = vmatprep.subr.mxu0 0.0
  %1318 = vmatpush1.msra.mxu0 0.0
  %1319 = vmatprep.subr.mxu0 0.0
  %1320 = vmatpush1.msra.mxu0 0.0
  %1321 = vmatprep.subr.mxu0 0.0
  %1322 = vmatpush1.msra.mxu0 0.0
  %1323 = vmatprep.subr.mxu0 0.0
  %1324 = vmatpush1.msra.mxu0 0.0
  %1325 = vmatprep.subr.mxu0 0.0
  %1326 = vmatpush1.msra.mxu0 0.0
  %1327 = vmatprep.subr.mxu0 0.0
  %1328 = vmatpush1.msra.mxu0 0.0
  %1329 = vmatprep.subr.mxu0 0.0
  %1330 = vmatpush1.msra.mxu0 0.0
  %1331 = vmatprep.subr.mxu0 0.0
  %1332 = vmatpush1.msra.mxu0 0.0
  %1333 = vmatprep.subr.mxu0 0.0
  %1334 = vmatpush1.msra.mxu0 0.0
  %1335 = vmatprep.subr.mxu0 0.0
  %1336 = vmatpush1.msra.mxu0 0.0
  %1337 = vmatprep.mubr.f32.mxu0 0.0
  %1338 = vmatmul.mubr.f32.gmra.mrb[0].mxu0 %v1268
  %v1339 = vpop.f32.mrb[0].mxu0
  %v1340 = vadd.f32 0.0, %v1339
  %v1341 = vpop.f32.mrb[0].mxu0
  %1342 = vmatprep.mubr.f32.mxu0 0.0
  %1343 = vmatmul.mubr.f32.gmra.mrb[0].mxu0 %v1271
  %v1344 = vpop.f32.mrb[0].mxu0
  %v1345 = vadd.f32 0.0, %v1344
  %v1346 = vpop.f32.mrb[0].mxu0
  %1347 = vdwg.mxu0
  %1348 = vrot.lane.b32.xlu0 %v266, 96
  %v1349 = vpop.permute.xlu0 %1348
  %1350 = vrot.lane.b32.xlu0 %v271, 96
  %v1351 = vpop.permute.xlu0 %1350
  %v1355 = vsel %vm1266, %v1258, 0
  %v1358 = vsel %vm1266, %v1259, 0
  %1360 = vmatprep.subr.mxu0 0.0
  %1361 = vmatpush1.msra.mxu0 %v1349
  %1362 = vmatprep.subr.mxu0 0.0
  %1363 = vmatpush1.msra.mxu0 %v1351
  %1364 = vmatprep.subr.mxu0 0.0
  %1365 = vmatpush1.msra.mxu0 0.0
  %1366 = vmatprep.subr.mxu0 0.0
  %1367 = vmatpush1.msra.mxu0 0.0
  %1368 = vmatprep.subr.mxu0 0.0
  %1369 = vmatpush1.msra.mxu0 0.0
  %1370 = vmatprep.subr.mxu0 0.0
  %1371 = vmatpush1.msra.mxu0 0.0
  %1372 = vmatprep.subr.mxu0 0.0
  %1373 = vmatpush1.msra.mxu0 0.0
  %1374 = vmatprep.subr.mxu0 0.0
  %1375 = vmatpush1.msra.mxu0 0.0
  %1376 = vmatprep.subr.mxu0 0.0
  %1377 = vmatpush1.msra.mxu0 0.0
  %1378 = vmatprep.subr.mxu0 0.0
  %1379 = vmatpush1.msra.mxu0 0.0
  %1380 = vmatprep.subr.mxu0 0.0
  %1381 = vmatpush1.msra.mxu0 0.0
  %1382 = vmatprep.subr.mxu0 0.0
  %1383 = vmatpush1.msra.mxu0 0.0
  %1384 = vmatprep.subr.mxu0 0.0
  %1385 = vmatpush1.msra.mxu0 0.0
  %1386 = vmatprep.subr.mxu0 0.0
  %1387 = vmatpush1.msra.mxu0 0.0
  %1388 = vmatprep.subr.mxu0 0.0
  %1389 = vmatpush1.msra.mxu0 0.0
  %1390 = vmatprep.subr.mxu0 0.0
  %1391 = vmatpush1.msra.mxu0 0.0
  %1392 = vmatprep.subr.mxu0 0.0
  %1393 = vmatpush1.msra.mxu0 0.0
  %1394 = vmatprep.subr.mxu0 0.0
  %1395 = vmatpush1.msra.mxu0 0.0
  %1396 = vmatprep.subr.mxu0 0.0
  %1397 = vmatpush1.msra.mxu0 0.0
  %1398 = vmatprep.subr.mxu0 0.0
  %1399 = vmatpush1.msra.mxu0 0.0
  %1400 = vmatprep.subr.mxu0 0.0
  %1401 = vmatpush1.msra.mxu0 0.0
  %1402 = vmatprep.subr.mxu0 0.0
  %1403 = vmatpush1.msra.mxu0 0.0
  %1404 = vmatprep.subr.mxu0 0.0
  %1405 = vmatpush1.msra.mxu0 0.0
  %1406 = vmatprep.subr.mxu0 0.0
  %1407 = vmatpush1.msra.mxu0 0.0
  %1408 = vmatprep.subr.mxu0 0.0
  %1409 = vmatpush1.msra.mxu0 0.0
  %1410 = vmatprep.subr.mxu0 0.0
  %1411 = vmatpush1.msra.mxu0 0.0
  %1412 = vmatprep.subr.mxu0 0.0
  %1413 = vmatpush1.msra.mxu0 0.0
  %1414 = vmatprep.subr.mxu0 0.0
  %1415 = vmatpush1.msra.mxu0 0.0
  %1416 = vmatprep.subr.mxu0 0.0
  %1417 = vmatpush1.msra.mxu0 0.0
  %1418 = vmatprep.subr.mxu0 0.0
  %1419 = vmatpush1.msra.mxu0 0.0
  %1420 = vmatprep.subr.mxu0 0.0
  %1421 = vmatpush1.msra.mxu0 0.0
  %1422 = vmatprep.subr.mxu0 0.0
  %1423 = vmatpush1.msra.mxu0 0.0
  %1424 = vmatprep.mubr.f32.mxu0 0.0
  %1425 = vmatmul.mubr.f32.gmra.mrb[0].mxu0 %v1355
  %v1426 = vpop.f32.mrb[0].mxu0
  %v1427 = vadd.f32 0.0, %v1426
  %v1428 = vpop.f32.mrb[0].mxu0
  %1429 = vmatprep.mubr.f32.mxu0 0.0
  %1430 = vmatmul.mubr.f32.gmra.mrb[0].mxu0 %v1358
  %v1431 = vpop.f32.mrb[0].mxu0
  %v1432 = vadd.f32 0.0, %v1431
  %v1433 = vpop.f32.mrb[0].mxu0
  %1434 = vdwg.mxu0
  %v1435 = vld [vmem:[%s7] sm:$0xff]
  %v1436 = vld [vmem:[%s7 + $0x8] sm:$0xff]
  %v1437 = vld [vmem:[%s7 + $0x10] sm:$0xff]
  %v1438 = vld [vmem:[%s7 + $0x18] sm:$0xff]
  %v1439 = vld [vmem:[%s8] sm:$0x1]
  %v1441 = vlaneseq
  %v1442 = vshrl.u32 %v1441, 7
  %v1443 = vsub.s32 0, %v1442
  %v1444 = vrot.slane %v1439, %v1443
  %v1447 = vsel %vm85, %v1340, 0
  %v1450 = vsel %vm85, %v1345, 0
  %v1453 = vsel %vm85, %v1427, 0
  %v1456 = vsel %vm85, %v1432, 0
  %1458 = vmatprep.subr.mxu0 0.0
  %1459 = vmatpush1.msra.mxu0 %v1435
  %1460 = vmatprep.subr.mxu0 0.0
  %1461 = vmatpush1.msra.mxu0 %v1436
  %1462 = vmatprep.subr.mxu0 0.0
  %1463 = vmatpush1.msra.mxu0 %v1437
  %1464 = vmatprep.subr.mxu0 0.0
  %1465 = vmatpush1.msra.mxu0 %v1438
  %1466 = vmatprep.subr.mxu0 0.0
  %1467 = vmatpush1.msra.mxu0 0.0
  %1468 = vmatprep.subr.mxu0 0.0
  %1469 = vmatpush1.msra.mxu0 0.0
  %1470 = vmatprep.subr.mxu0 0.0
  %1471 = vmatpush1.msra.mxu0 0.0
  %1472 = vmatprep.subr.mxu0 0.0
  %1473 = vmatpush1.msra.mxu0 0.0
  %1474 = vmatprep.subr.mxu0 0.0
  %1475 = vmatpush1.msra.mxu0 0.0
  %1476 = vmatprep.subr.mxu0 0.0
  %1477 = vmatpush1.msra.mxu0 0.0
  %1478 = vmatprep.subr.mxu0 0.0
  %1479 = vmatpush1.msra.mxu0 0.0
  %1480 = vmatprep.subr.mxu0 0.0
  %1481 = vmatpush1.msra.mxu0 0.0
  %1482 = vmatprep.subr.mxu0 0.0
  %1483 = vmatpush1.msra.mxu0 0.0
  %1484 = vmatprep.subr.mxu0 0.0
  %1485 = vmatpush1.msra.mxu0 0.0
  %1486 = vmatprep.subr.mxu0 0.0
  %1487 = vmatpush1.msra.mxu0 0.0
  %1488 = vmatprep.subr.mxu0 0.0
  %1489 = vmatpush1.msra.mxu0 0.0
  %1490 = vmatprep.subr.mxu0 0.0
  %1491 = vmatpush1.msra.mxu0 0.0
  %1492 = vmatprep.subr.mxu0 0.0
  %1493 = vmatpush1.msra.mxu0 0.0
  %1494 = vmatprep.subr.mxu0 0.0
  %1495 = vmatpush1.msra.mxu0 0.0
  %1496 = vmatprep.subr.mxu0 0.0
  %1497 = vmatpush1.msra.mxu0 0.0
  %1498 = vmatprep.subr.mxu0 0.0
  %1499 = vmatpush1.msra.mxu0 0.0
  %1500 = vmatprep.subr.mxu0 0.0
  %1501 = vmatpush1.msra.mxu0 0.0
  %1502 = vmatprep.subr.mxu0 0.0
  %1503 = vmatpush1.msra.mxu0 0.0
  %1504 = vmatprep.subr.mxu0 0.0
  %1505 = vmatpush1.msra.mxu0 0.0
  %1506 = vmatprep.subr.mxu0 0.0
  %1507 = vmatpush1.msra.mxu0 0.0
  %1508 = vmatprep.subr.mxu0 0.0
  %1509 = vmatpush1.msra.mxu0 0.0
  %1510 = vmatprep.subr.mxu0 0.0
  %1511 = vmatpush1.msra.mxu0 0.0
  %1512 = vmatprep.subr.mxu0 0.0
  %1513 = vmatpush1.msra.mxu0 0.0
  %1514 = vmatprep.subr.mxu0 0.0
  %1515 = vmatpush1.msra.mxu0 0.0
  %1516 = vmatprep.subr.mxu0 0.0
  %1517 = vmatpush1.msra.mxu0 0.0
  %1518 = vmatprep.subr.mxu0 0.0
  %1519 = vmatpush1.msra.mxu0 0.0
  %1520 = vmatprep.subr.mxu0 0.0
  %1521 = vmatpush1.msra.mxu0 0.0
  %1522 = vmatprep.mubr.f32.mxu0 0.0
  %1523 = vmatmul.mubr.f32.gmra.mrb[0].mxu0 %v1447
  %v1524 = vpop.f32.mrb[0].mxu0
  %v1525 = vadd.f32 %v1444, %v1524
  %v1526 = vpop.f32.mrb[0].mxu0
  %1527 = vmatprep.mubr.f32.mxu0 0.0
  %1528 = vmatmul.mubr.f32.gmra.mrb[0].mxu0 %v1450
  %v1529 = vpop.f32.mrb[0].mxu0
  %v1530 = vadd.f32 %v1444, %v1529
  %v1531 = vpop.f32.mrb[0].mxu0
  %1532 = vmatprep.mubr.f32.mxu0 0.0
  %1533 = vmatmul.mubr.f32.gmra.mrb[0].mxu0 %v1453
  %v1534 = vpop.f32.mrb[0].mxu0
  %v1535 = vadd.f32 %v1444, %v1534
  %v1536 = vpop.f32.mrb[0].mxu0
  %1537 = vmatprep.mubr.f32.mxu0 0.0
  %1538 = vmatmul.mubr.f32.gmra.mrb[0].mxu0 %v1456
  %v1539 = vpop.f32.mrb[0].mxu0
  %v1540 = vadd.f32 %v1444, %v1539
  %v1541 = vpop.f32.mrb[0].mxu0
  %1542 = vdwg.mxu0
  %v1543 = vadd.f32 %v61, %v1525
  %v1544 = vadd.f32 %v62, %v1530
  %v1545 = vadd.f32 %v63, %v1535
  %v1546 = vadd.f32 %v64, %v1540
  %v1549 = vrot.slane %v1543, 7
  %v1550 = vrot.slane %v1545, 7
  %v1555 = vrot.slane %v1543, 6
  %v1556 = vrot.slane %v1544, 6
  %v1557 = vsel %vm383, %v1555, %v1556
  %v1558 = vrot.slane %v1545, 6
  %v1559 = vrot.slane %v1546, 6
  %v1560 = vsel %vm383, %v1558, %v1559
  %v1567 = vrot.slane %v1544, 5
  %v1568 = vrot.slane %v1546, 5
  %v1571 = vrot.slane %v1544, 4
  %v1572 = vrot.slane %v1546, 4
  %v1575 = vsel %vm327, %v1543, %v1549
  %v1576 = vsel %vm327, %v1545, %v1550
  %v1577 = vsel %vm383, %v1575, %v1555
  %v1578 = vsel %vm383, %v1576, %v1558
  %v1579 = vsel %vm383, %v1556, %v1567
  %v1580 = vsel %vm383, %v1559, %v1568
  %v1581 = vsel %vm439, %v1579, %v1571
  %v1582 = vsel %vm439, %v1580, %v1572
  %v1587 = vrot.slane %v1577, 1
  %v1588 = vrot.slane %v1557, 1
  %v1589 = vsel %vm663, %v1587, %v1588
  %v1590 = vrot.slane %v1581, 1
  %v1591 = vsel %vm663, %v1588, %v1590
  %v1592 = vrot.slane %v1578, 1
  %v1593 = vrot.slane %v1560, 1
  %v1594 = vsel %vm663, %v1592, %v1593
  %v1595 = vrot.slane %v1582, 1
  %v1596 = vsel %vm663, %v1593, %v1595
  %v1601 = vadd.f32 %v1577, %v1589
  %v1602 = vadd.f32 %v1557, %v1591
  %v1603 = vadd.f32 %v1578, %v1594
  %v1604 = vadd.f32 %v1560, %v1596
  %v1605 = vrot.slane %v1577, 2
  %v1606 = vrot.slane %v1557, 2
  %v1607 = vsel %vm607, %v1605, %v1606
  %v1608 = vrot.slane %v1581, 2
  %v1609 = vsel %vm607, %v1606, %v1608
  %v1610 = vrot.slane %v1578, 2
  %v1611 = vrot.slane %v1560, 2
  %v1612 = vsel %vm607, %v1610, %v1611
  %v1613 = vrot.slane %v1582, 2
  %v1614 = vsel %vm607, %v1611, %v1613
  %v1619 = vadd.f32 %v1601, %v1607
  %v1620 = vadd.f32 %v1602, %v1609
  %v1621 = vadd.f32 %v1603, %v1612
  %v1622 = vadd.f32 %v1604, %v1614
  %v1623 = vrot.slane %v1577, 3
  %v1624 = vrot.slane %v1557, 3
  %v1625 = vsel %vm551, %v1623, %v1624
  %v1626 = vrot.slane %v1581, 3
  %v1627 = vsel %vm551, %v1624, %v1626
  %v1628 = vrot.slane %v1578, 3
  %v1629 = vrot.slane %v1560, 3
  %v1630 = vsel %vm551, %v1628, %v1629
  %v1631 = vrot.slane %v1582, 3
  %v1632 = vsel %vm551, %v1629, %v1631
  %v1637 = vadd.f32 %v1619, %v1625
  %v1638 = vadd.f32 %v1620, %v1627
  %v1639 = vadd.f32 %v1621, %v1630
  %v1640 = vadd.f32 %v1622, %v1632
  %v1641 = vrot.slane %v1577, 4
  %v1642 = vrot.slane %v1557, 4
  %v1643 = vsel %vm495, %v1641, %v1642
  %v1644 = vrot.slane %v1581, 4
  %v1645 = vsel %vm495, %v1642, %v1644
  %v1646 = vrot.slane %v1578, 4
  %v1647 = vrot.slane %v1560, 4
  %v1648 = vsel %vm495, %v1646, %v1647
  %v1649 = vrot.slane %v1582, 4
  %v1650 = vsel %vm495, %v1647, %v1649
  %v1655 = vadd.f32 %v1637, %v1643
  %v1656 = vadd.f32 %v1638, %v1645
  %v1657 = vadd.f32 %v1639, %v1648
  %v1658 = vadd.f32 %v1640, %v1650
  %v1659 = vmul.f32 %v1655, 0.2
  %v1660 = vmul.f32 %v1656, 0.2
  %v1661 = vmul.f32 %v1657, 0.2
  %v1662 = vmul.f32 %v1658, 0.2
  %v1663 = vsub.f32 %v1543, %v1659
  %v1664 = vsub.f32 %v1544, %v1660
  %v1665 = vsub.f32 %v1545, %v1661
  %v1666 = vsub.f32 %v1546, %v1662
  %v1667 = vld [vmem:[%s9] sm:$0xff]
  %v1668 = vld [vmem:[%s9 + $0x8] sm:$0xff]
  %v1669 = vld [vmem:[%s9 + $0x10] sm:$0xff]
  %v1670 = vld [vmem:[%s9 + $0x18] sm:$0xff]
  %v1671 = vld [vmem:[%s10] sm:$0x1]
  %v1672 = vld [vmem:[%s11] sm:$0xff]
  %v1673 = vld [vmem:[%s11 + $0x8] sm:$0xff]
  %v1674 = vld [vmem:[%s11 + $0x10] sm:$0xff]
  %v1675 = vld [vmem:[%s11 + $0x18] sm:$0xff]
  %v1676 = vld [vmem:[%s12] sm:$0x1]
  %v1678 = vlaneseq
  %v1679 = vshrl.u32 %v1678, 7
  %v1680 = vsub.s32 0, %v1679
  %v1681 = vrot.slane %v1671, %v1680
  %v1684 = vsel %vm85, %v1663, 0
  %v1687 = vsel %vm85, %v1664, 0
  %v1690 = vsel %vm85, %v1665, 0
  %v1693 = vsel %vm85, %v1666, 0
  %1695 = vmatprep.subr.mxu0 0.0
  %1696 = vmatpush1.msra.mxu0 %v1667
  %1697 = vmatprep.subr.mxu0 0.0
  %1698 = vmatpush1.msra.mxu0 %v1668
  %1699 = vmatprep.subr.mxu0 0.0
  %1700 = vmatpush1.msra.mxu0 %v1669
  %1701 = vmatprep.subr.mxu0 0.0
  %1702 = vmatpush1.msra.mxu0 %v1670
  %1703 = vmatprep.subr.mxu0 0.0
  %1704 = vmatpush1.msra.mxu0 0.0
  %1705 = vmatprep.subr.mxu0 0.0
  %1706 = vmatpush1.msra.mxu0 0.0
  %1707 = vmatprep.subr.mxu0 0.0
  %1708 = vmatpush1.msra.mxu0 0.0
  %1709 = vmatprep.subr.mxu0 0.0
  %1710 = vmatpush1.msra.mxu0 0.0
  %1711 = vmatprep.subr.mxu0 0.0
  %1712 = vmatpush1.msra.mxu0 0.0
  %1713 = vmatprep.subr.mxu0 0.0
  %1714 = vmatpush1.msra.mxu0 0.0
  %1715 = vmatprep.subr.mxu0 0.0
  %1716 = vmatpush1.msra.mxu0 0.0
  %1717 = vmatprep.subr.mxu0 0.0
  %1718 = vmatpush1.msra.mxu0 0.0
  %1719 = vmatprep.subr.mxu0 0.0
  %1720 = vmatpush1.msra.mxu0 0.0
  %1721 = vmatprep.subr.mxu0 0.0
  %1722 = vmatpush1.msra.mxu0 0.0
  %1723 = vmatprep.subr.mxu0 0.0
  %1724 = vmatpush1.msra.mxu0 0.0
  %1725 = vmatprep.subr.mxu0 0.0
  %1726 = vmatpush1.msra.mxu0 0.0
  %1727 = vmatprep.subr.mxu0 0.0
  %1728 = vmatpush1.msra.mxu0 0.0
  %1729 = vmatprep.subr.mxu0 0.0
  %1730 = vmatpush1.msra.mxu0 0.0
  %1731 = vmatprep.subr.mxu0 0.0
  %1732 = vmatpush1.msra.mxu0 0.0
  %1733 = vmatprep.subr.mxu0 0.0
  %1734 = vmatpush1.msra.mxu0 0.0
  %1735 = vmatprep.subr.mxu0 0.0
  %1736 = vmatpush1.msra.mxu0 0.0
  %1737 = vmatprep.subr.mxu0 0.0
  %1738 = vmatpush1.msra.mxu0 0.0
  %1739 = vmatprep.subr.mxu0 0.0
  %1740 = vmatpush1.msra.mxu0 0.0
  %1741 = vmatprep.subr.mxu0 0.0
  %1742 = vmatpush1.msra.mxu0 0.0
  %1743 = vmatprep.subr.mxu0 0.0
  %1744 = vmatpush1.msra.mxu0 0.0
  %1745 = vmatprep.subr.mxu0 0.0
  %1746 = vmatpush1.msra.mxu0 0.0
  %1747 = vmatprep.subr.mxu0 0.0
  %1748 = vmatpush1.msra.mxu0 0.0
  %1749 = vmatprep.subr.mxu0 0.0
  %1750 = vmatpush1.msra.mxu0 0.0
  %1751 = vmatprep.subr.mxu0 0.0
  %1752 = vmatpush1.msra.mxu0 0.0
  %1753 = vmatprep.subr.mxu0 0.0
  %1754 = vmatpush1.msra.mxu0 0.0
  %1755 = vmatprep.subr.mxu0 0.0
  %1756 = vmatpush1.msra.mxu0 0.0
  %1757 = vmatprep.subr.mxu0 0.0
  %1758 = vmatpush1.msra.mxu0 0.0
  %1759 = vmatprep.mubr.f32.mxu0 0.0
  %1760 = vmatmul.mubr.f32.gmra.mrb[0].mxu0 %v1684
  %v1761 = vpop.f32.mrb[0].mxu0
  %v1762 = vadd.f32 %v1681, %v1761
  %v1763 = vpop.f32.mrb[0].mxu0
  %1764 = vmatprep.mubr.f32.mxu0 0.0
  %1765 = vmatmul.mubr.f32.gmra.mrb[0].mxu0 %v1687
  %v1766 = vpop.f32.mrb[0].mxu0
  %v1767 = vadd.f32 %v1681, %v1766
  %v1768 = vpop.f32.mrb[0].mxu0
  %1769 = vmatprep.mubr.f32.mxu0 0.0
  %1770 = vmatmul.mubr.f32.gmra.mrb[0].mxu0 %v1690
  %v1771 = vpop.f32.mrb[0].mxu0
  %v1772 = vadd.f32 %v1681, %v1771
  %v1773 = vpop.f32.mrb[0].mxu0
  %1774 = vmatprep.mubr.f32.mxu0 0.0
  %1775 = vmatmul.mubr.f32.gmra.mrb[0].mxu0 %v1693
  %v1776 = vpop.f32.mrb[0].mxu0
  %v1777 = vadd.f32 %v1681, %v1776
  %v1778 = vpop.f32.mrb[0].mxu0
  %1779 = vdwg.mxu0
  %v1781 = vlaneseq
  %v1782 = vshrl.u32 %v1781, 7
  %v1783 = vsub.s32 0, %v1782
  %v1784 = vrot.slane %v1676, %v1783
  %v1787 = vsel %vm85, %v65, 0
  %v1790 = vsel %vm85, %v66, 0
  %v1793 = vsel %vm85, %v67, 0
  %v1796 = vsel %vm85, %v68, 0
  %1798 = vmatprep.subr.mxu0 0.0
  %1799 = vmatpush1.msra.mxu0 %v1672
  %1800 = vmatprep.subr.mxu0 0.0
  %1801 = vmatpush1.msra.mxu0 %v1673
  %1802 = vmatprep.subr.mxu0 0.0
  %1803 = vmatpush1.msra.mxu0 %v1674
  %1804 = vmatprep.subr.mxu0 0.0
  %1805 = vmatpush1.msra.mxu0 %v1675
  %1806 = vmatprep.subr.mxu0 0.0
  %1807 = vmatpush1.msra.mxu0 0.0
  %1808 = vmatprep.subr.mxu0 0.0
  %1809 = vmatpush1.msra.mxu0 0.0
  %1810 = vmatprep.subr.mxu0 0.0
  %1811 = vmatpush1.msra.mxu0 0.0
  %1812 = vmatprep.subr.mxu0 0.0
  %1813 = vmatpush1.msra.mxu0 0.0
  %1814 = vmatprep.subr.mxu0 0.0
  %1815 = vmatpush1.msra.mxu0 0.0
  %1816 = vmatprep.subr.mxu0 0.0
  %1817 = vmatpush1.msra.mxu0 0.0
  %1818 = vmatprep.subr.mxu0 0.0
  %1819 = vmatpush1.msra.mxu0 0.0
  %1820 = vmatprep.subr.mxu0 0.0
  %1821 = vmatpush1.msra.mxu0 0.0
  %1822 = vmatprep.subr.mxu0 0.0
  %1823 = vmatpush1.msra.mxu0 0.0
  %1824 = vmatprep.subr.mxu0 0.0
  %1825 = vmatpush1.msra.mxu0 0.0
  %1826 = vmatprep.subr.mxu0 0.0
  %1827 = vmatpush1.msra.mxu0 0.0
  %1828 = vmatprep.subr.mxu0 0.0
  %1829 = vmatpush1.msra.mxu0 0.0
  %1830 = vmatprep.subr.mxu0 0.0
  %1831 = vmatpush1.msra.mxu0 0.0
  %1832 = vmatprep.subr.mxu0 0.0
  %1833 = vmatpush1.msra.mxu0 0.0
  %1834 = vmatprep.subr.mxu0 0.0
  %1835 = vmatpush1.msra.mxu0 0.0
  %1836 = vmatprep.subr.mxu0 0.0
  %1837 = vmatpush1.msra.mxu0 0.0
  %1838 = vmatprep.subr.mxu0 0.0
  %1839 = vmatpush1.msra.mxu0 0.0
  %1840 = vmatprep.subr.mxu0 0.0
  %1841 = vmatpush1.msra.mxu0 0.0
  %1842 = vmatprep.subr.mxu0 0.0
  %1843 = vmatpush1.msra.mxu0 0.0
  %1844 = vmatprep.subr.mxu0 0.0
  %1845 = vmatpush1.msra.mxu0 0.0
  %1846 = vmatprep.subr.mxu0 0.0
  %1847 = vmatpush1.msra.mxu0 0.0
  %1848 = vmatprep.subr.mxu0 0.0
  %1849 = vmatpush1.msra.mxu0 0.0
  %1850 = vmatprep.subr.mxu0 0.0
  %1851 = vmatpush1.msra.mxu0 0.0
  %1852 = vmatprep.subr.mxu0 0.0
  %1853 = vmatpush1.msra.mxu0 0.0
  %1854 = vmatprep.subr.mxu0 0.0
  %1855 = vmatpush1.msra.mxu0 0.0
  %1856 = vmatprep.subr.mxu0 0.0
  %1857 = vmatpush1.msra.mxu0 0.0
  %1858 = vmatprep.subr.mxu0 0.0
  %1859 = vmatpush1.msra.mxu0 0.0
  %1860 = vmatprep.subr.mxu0 0.0
  %1861 = vmatpush1.msra.mxu0 0.0
  %1862 = vmatprep.mubr.f32.mxu0 0.0
  %1863 = vmatmul.mubr.f32.gmra.mrb[0].mxu0 %v1787
  %v1864 = vpop.f32.mrb[0].mxu0
  %v1865 = vadd.f32 %v1784, %v1864
  %v1866 = vpop.f32.mrb[0].mxu0
  %1867 = vmatprep.mubr.f32.mxu0 0.0
  %1868 = vmatmul.mubr.f32.gmra.mrb[0].mxu0 %v1790
  %v1869 = vpop.f32.mrb[0].mxu0
  %v1870 = vadd.f32 %v1784, %v1869
  %v1871 = vpop.f32.mrb[0].mxu0
  %1872 = vmatprep.mubr.f32.mxu0 0.0
  %1873 = vmatmul.mubr.f32.gmra.mrb[0].mxu0 %v1793
  %v1874 = vpop.f32.mrb[0].mxu0
  %v1875 = vadd.f32 %v1784, %v1874
  %v1876 = vpop.f32.mrb[0].mxu0
  %1877 = vmatprep.mubr.f32.mxu0 0.0
  %1878 = vmatmul.mubr.f32.gmra.mrb[0].mxu0 %v1796
  %v1879 = vpop.f32.mrb[0].mxu0
  %v1880 = vadd.f32 %v1784, %v1879
  %v1881 = vpop.f32.mrb[0].mxu0
  %1882 = vdwg.mxu0
  %v1883 = vmul.f32 %v1762, %v1865
  %v1884 = vmul.f32 %v1767, %v1870
  %v1885 = vmul.f32 %v1772, %v1875
  %v1886 = vmul.f32 %v1777, %v1880
  %v1887 = vsel %vm85, %v1883, 0.0
  %1888 = vadd.xlane.f32.xlu0 %v1887
  %v1889 = vpop.xlane.xlu0 %1888
  %v1890 = vsel %vm85, %v1884, 0.0
  %1891 = vadd.xlane.f32.xlu0 %v1890
  %v1892 = vpop.xlane.xlu0 %1891
  %v1893 = vsel %vm85, %v1885, 0.0
  %1894 = vadd.xlane.f32.xlu0 %v1893
  %v1895 = vpop.xlane.xlu0 %1894
  %v1896 = vsel %vm85, %v1886, 0.0
  %1897 = vadd.xlane.f32.xlu0 %v1896
  %v1898 = vpop.xlane.xlu0 %1897
  %v1903 = vlaneseq
  %v1904 = vshrl.u32 %v1903, 7
  %v1905 = vsub.s32 %v295, %v1904
  %v1906 = vrot.slane %v1889, %v1905
  %v1907 = vlaneseq
  %v1908 = vshrl.u32 %v1907, 7
  %v1909 = vsub.s32 %v300, %v1908
  %v1910 = vrot.slane %v1892, %v1909
  %v1911 = vsel %vm305, %v1910, %v1906
  %v1912 = vlaneseq
  %v1913 = vshrl.u32 %v1912, 7
  %v1914 = vsub.s32 %v295, %v1913
  %v1915 = vrot.slane %v1895, %v1914
  %v1916 = vlaneseq
  %v1917 = vshrl.u32 %v1916, 7
  %v1918 = vsub.s32 %v300, %v1917
  %v1919 = vrot.slane %v1898, %v1918
  %v1920 = vsel %vm305, %v1919, %v1915
  %v1921 = vsel %vm316, %v1920, %v1911
  %v1923 = vsel %vm319, %v1921, 0.0
  %1924 = vadd.xlane.f32.xlu0 %v1923
  %v1925 = vpop.xlane.xlu0 %1924
  %v1930 = vrot.slane %v1870, 7
  %v1931 = vrot.slane %v1865, 7
  %v1932 = vsel %vm327, %v1930, %v1931
  %v1933 = vsel %vm327, %v1931, %v1930
  %v1934 = vrot.slane %v1880, 7
  %v1935 = vrot.slane %v1875, 7
  %v1936 = vsel %vm327, %v1934, %v1935
  %v1937 = vsel %vm327, %v1935, %v1934
  %v1942 = vmul.f32 %v1762, %v1932
  %v1943 = vmul.f32 %v1767, %v1933
  %v1944 = vmul.f32 %v1772, %v1936
  %v1945 = vmul.f32 %v1777, %v1937
  %v1946 = vsel %vm85, %v1942, 0.0
  %1947 = vadd.xlane.f32.xlu0 %v1946
  %v1948 = vpop.xlane.xlu0 %1947
  %v1949 = vsel %vm85, %v1943, 0.0
  %1950 = vadd.xlane.f32.xlu0 %v1949
  %v1951 = vpop.xlane.xlu0 %1950
  %v1952 = vsel %vm85, %v1944, 0.0
  %1953 = vadd.xlane.f32.xlu0 %v1952
  %v1954 = vpop.xlane.xlu0 %1953
  %v1955 = vsel %vm85, %v1945, 0.0
  %1956 = vadd.xlane.f32.xlu0 %v1955
  %v1957 = vpop.xlane.xlu0 %1956
  %v1962 = vlaneseq
  %v1963 = vshrl.u32 %v1962, 7
  %v1964 = vsub.s32 %v295, %v1963
  %v1965 = vrot.slane %v1948, %v1964
  %v1966 = vlaneseq
  %v1967 = vshrl.u32 %v1966, 7
  %v1968 = vsub.s32 %v300, %v1967
  %v1969 = vrot.slane %v1951, %v1968
  %v1970 = vsel %vm305, %v1969, %v1965
  %v1971 = vlaneseq
  %v1972 = vshrl.u32 %v1971, 7
  %v1973 = vsub.s32 %v295, %v1972
  %v1974 = vrot.slane %v1954, %v1973
  %v1975 = vlaneseq
  %v1976 = vshrl.u32 %v1975, 7
  %v1977 = vsub.s32 %v300, %v1976
  %v1978 = vrot.slane %v1957, %v1977
  %v1979 = vsel %vm305, %v1978, %v1974
  %v1980 = vsel %vm316, %v1979, %v1970
  %v1982 = vsel %vm319, %v1980, 0.0
  %1983 = vadd.xlane.f32.xlu0 %v1982
  %v1984 = vpop.xlane.xlu0 %1983
  %v1985 = vrot.slane %v1870, 6
  %v1986 = vrot.slane %v1865, 6
  %v1987 = vsel %vm383, %v1985, %v1986
  %v1988 = vsel %vm383, %v1986, %v1985
  %v1989 = vrot.slane %v1880, 6
  %v1990 = vrot.slane %v1875, 6
  %v1991 = vsel %vm383, %v1989, %v1990
  %v1992 = vsel %vm383, %v1990, %v1989
  %v1997 = vmul.f32 %v1762, %v1987
  %v1998 = vmul.f32 %v1767, %v1988
  %v1999 = vmul.f32 %v1772, %v1991
  %v2000 = vmul.f32 %v1777, %v1992
  %v2001 = vsel %vm85, %v1997, 0.0
  %2002 = vadd.xlane.f32.xlu0 %v2001
  %v2003 = vpop.xlane.xlu0 %2002
  %v2004 = vsel %vm85, %v1998, 0.0
  %2005 = vadd.xlane.f32.xlu0 %v2004
  %v2006 = vpop.xlane.xlu0 %2005
  %v2007 = vsel %vm85, %v1999, 0.0
  %2008 = vadd.xlane.f32.xlu0 %v2007
  %v2009 = vpop.xlane.xlu0 %2008
  %v2010 = vsel %vm85, %v2000, 0.0
  %2011 = vadd.xlane.f32.xlu0 %v2010
  %v2012 = vpop.xlane.xlu0 %2011
  %v2017 = vlaneseq
  %v2018 = vshrl.u32 %v2017, 7
  %v2019 = vsub.s32 %v295, %v2018
  %v2020 = vrot.slane %v2003, %v2019
  %v2021 = vlaneseq
  %v2022 = vshrl.u32 %v2021, 7
  %v2023 = vsub.s32 %v300, %v2022
  %v2024 = vrot.slane %v2006, %v2023
  %v2025 = vsel %vm305, %v2024, %v2020
  %v2026 = vlaneseq
  %v2027 = vshrl.u32 %v2026, 7
  %v2028 = vsub.s32 %v295, %v2027
  %v2029 = vrot.slane %v2009, %v2028
  %v2030 = vlaneseq
  %v2031 = vshrl.u32 %v2030, 7
  %v2032 = vsub.s32 %v300, %v2031
  %v2033 = vrot.slane %v2012, %v2032
  %v2034 = vsel %vm305, %v2033, %v2029
  %v2035 = vsel %vm316, %v2034, %v2025
  %v2037 = vsel %vm319, %v2035, 0.0
  %2038 = vadd.xlane.f32.xlu0 %v2037
  %v2039 = vpop.xlane.xlu0 %2038
  %v2040 = vrot.slane %v1870, 5
  %v2041 = vrot.slane %v1865, 5
  %v2042 = vsel %vm439, %v2040, %v2041
  %v2043 = vsel %vm439, %v2041, %v2040
  %v2044 = vrot.slane %v1880, 5
  %v2045 = vrot.slane %v1875, 5
  %v2046 = vsel %vm439, %v2044, %v2045
  %v2047 = vsel %vm439, %v2045, %v2044
  %v2052 = vmul.f32 %v1762, %v2042
  %v2053 = vmul.f32 %v1767, %v2043
  %v2054 = vmul.f32 %v1772, %v2046
  %v2055 = vmul.f32 %v1777, %v2047
  %v2056 = vsel %vm85, %v2052, 0.0
  %2057 = vadd.xlane.f32.xlu0 %v2056
  %v2058 = vpop.xlane.xlu0 %2057
  %v2059 = vsel %vm85, %v2053, 0.0
  %2060 = vadd.xlane.f32.xlu0 %v2059
  %v2061 = vpop.xlane.xlu0 %2060
  %v2062 = vsel %vm85, %v2054, 0.0
  %2063 = vadd.xlane.f32.xlu0 %v2062
  %v2064 = vpop.xlane.xlu0 %2063
  %v2065 = vsel %vm85, %v2055, 0.0
  %2066 = vadd.xlane.f32.xlu0 %v2065
  %v2067 = vpop.xlane.xlu0 %2066
  %v2072 = vlaneseq
  %v2073 = vshrl.u32 %v2072, 7
  %v2074 = vsub.s32 %v295, %v2073
  %v2075 = vrot.slane %v2058, %v2074
  %v2076 = vlaneseq
  %v2077 = vshrl.u32 %v2076, 7
  %v2078 = vsub.s32 %v300, %v2077
  %v2079 = vrot.slane %v2061, %v2078
  %v2080 = vsel %vm305, %v2079, %v2075
  %v2081 = vlaneseq
  %v2082 = vshrl.u32 %v2081, 7
  %v2083 = vsub.s32 %v295, %v2082
  %v2084 = vrot.slane %v2064, %v2083
  %v2085 = vlaneseq
  %v2086 = vshrl.u32 %v2085, 7
  %v2087 = vsub.s32 %v300, %v2086
  %v2088 = vrot.slane %v2067, %v2087
  %v2089 = vsel %vm305, %v2088, %v2084
  %v2090 = vsel %vm316, %v2089, %v2080
  %v2092 = vsel %vm319, %v2090, 0.0
  %2093 = vadd.xlane.f32.xlu0 %v2092
  %v2094 = vpop.xlane.xlu0 %2093
  %v2095 = vrot.slane %v1870, 4
  %v2096 = vrot.slane %v1865, 4
  %v2097 = vsel %vm495, %v2095, %v2096
  %v2098 = vsel %vm495, %v2096, %v2095
  %v2099 = vrot.slane %v1880, 4
  %v2100 = vrot.slane %v1875, 4
  %v2101 = vsel %vm495, %v2099, %v2100
  %v2102 = vsel %vm495, %v2100, %v2099
  %v2107 = vmul.f32 %v1762, %v2097
  %v2108 = vmul.f32 %v1767, %v2098
  %v2109 = vmul.f32 %v1772, %v2101
  %v2110 = vmul.f32 %v1777, %v2102
  %v2111 = vsel %vm85, %v2107, 0.0
  %2112 = vadd.xlane.f32.xlu0 %v2111
  %v2113 = vpop.xlane.xlu0 %2112
  %v2114 = vsel %vm85, %v2108, 0.0
  %2115 = vadd.xlane.f32.xlu0 %v2114
  %v2116 = vpop.xlane.xlu0 %2115
  %v2117 = vsel %vm85, %v2109, 0.0
  %2118 = vadd.xlane.f32.xlu0 %v2117
  %v2119 = vpop.xlane.xlu0 %2118
  %v2120 = vsel %vm85, %v2110, 0.0
  %2121 = vadd.xlane.f32.xlu0 %v2120
  %v2122 = vpop.xlane.xlu0 %2121
  %v2127 = vlaneseq
  %v2128 = vshrl.u32 %v2127, 7
  %v2129 = vsub.s32 %v295, %v2128
  %v2130 = vrot.slane %v2113, %v2129
  %v2131 = vlaneseq
  %v2132 = vshrl.u32 %v2131, 7
  %v2133 = vsub.s32 %v300, %v2132
  %v2134 = vrot.slane %v2116, %v2133
  %v2135 = vsel %vm305, %v2134, %v2130
  %v2136 = vlaneseq
  %v2137 = vshrl.u32 %v2136, 7
  %v2138 = vsub.s32 %v295, %v2137
  %v2139 = vrot.slane %v2119, %v2138
  %v2140 = vlaneseq
  %v2141 = vshrl.u32 %v2140, 7
  %v2142 = vsub.s32 %v300, %v2141
  %v2143 = vrot.slane %v2122, %v2142
  %v2144 = vsel %vm305, %v2143, %v2139
  %v2145 = vsel %vm316, %v2144, %v2135
  %v2147 = vsel %vm319, %v2145, 0.0
  %2148 = vadd.xlane.f32.xlu0 %v2147
  %v2149 = vpop.xlane.xlu0 %2148
  %v2150 = vrot.slane %v1870, 3
  %v2151 = vrot.slane %v1865, 3
  %v2152 = vsel %vm551, %v2150, %v2151
  %v2153 = vsel %vm551, %v2151, %v2150
  %v2154 = vrot.slane %v1880, 3
  %v2155 = vrot.slane %v1875, 3
  %v2156 = vsel %vm551, %v2154, %v2155
  %v2157 = vsel %vm551, %v2155, %v2154
  %v2162 = vmul.f32 %v1762, %v2152
  %v2163 = vmul.f32 %v1767, %v2153
  %v2164 = vmul.f32 %v1772, %v2156
  %v2165 = vmul.f32 %v1777, %v2157
  %v2166 = vsel %vm85, %v2162, 0.0
  %2167 = vadd.xlane.f32.xlu0 %v2166
  %v2168 = vpop.xlane.xlu0 %2167
  %v2169 = vsel %vm85, %v2163, 0.0
  %2170 = vadd.xlane.f32.xlu0 %v2169
  %v2171 = vpop.xlane.xlu0 %2170
  %v2172 = vsel %vm85, %v2164, 0.0
  %2173 = vadd.xlane.f32.xlu0 %v2172
  %v2174 = vpop.xlane.xlu0 %2173
  %v2175 = vsel %vm85, %v2165, 0.0
  %2176 = vadd.xlane.f32.xlu0 %v2175
  %v2177 = vpop.xlane.xlu0 %2176
  %v2182 = vlaneseq
  %v2183 = vshrl.u32 %v2182, 7
  %v2184 = vsub.s32 %v295, %v2183
  %v2185 = vrot.slane %v2168, %v2184
  %v2186 = vlaneseq
  %v2187 = vshrl.u32 %v2186, 7
  %v2188 = vsub.s32 %v300, %v2187
  %v2189 = vrot.slane %v2171, %v2188
  %v2190 = vsel %vm305, %v2189, %v2185
  %v2191 = vlaneseq
  %v2192 = vshrl.u32 %v2191, 7
  %v2193 = vsub.s32 %v295, %v2192
  %v2194 = vrot.slane %v2174, %v2193
  %v2195 = vlaneseq
  %v2196 = vshrl.u32 %v2195, 7
  %v2197 = vsub.s32 %v300, %v2196
  %v2198 = vrot.slane %v2177, %v2197
  %v2199 = vsel %vm305, %v2198, %v2194
  %v2200 = vsel %vm316, %v2199, %v2190
  %v2202 = vsel %vm319, %v2200, 0.0
  %2203 = vadd.xlane.f32.xlu0 %v2202
  %v2204 = vpop.xlane.xlu0 %2203
  %v2205 = vrot.slane %v1870, 2
  %v2206 = vrot.slane %v1865, 2
  %v2207 = vsel %vm607, %v2205, %v2206
  %v2208 = vsel %vm607, %v2206, %v2205
  %v2209 = vrot.slane %v1880, 2
  %v2210 = vrot.slane %v1875, 2
  %v2211 = vsel %vm607, %v2209, %v2210
  %v2212 = vsel %vm607, %v2210, %v2209
  %v2217 = vmul.f32 %v1762, %v2207
  %v2218 = vmul.f32 %v1767, %v2208
  %v2219 = vmul.f32 %v1772, %v2211
  %v2220 = vmul.f32 %v1777, %v2212
  %v2221 = vsel %vm85, %v2217, 0.0
  %2222 = vadd.xlane.f32.xlu0 %v2221
  %v2223 = vpop.xlane.xlu0 %2222
  %v2224 = vsel %vm85, %v2218, 0.0
  %2225 = vadd.xlane.f32.xlu0 %v2224
  %v2226 = vpop.xlane.xlu0 %2225
  %v2227 = vsel %vm85, %v2219, 0.0
  %2228 = vadd.xlane.f32.xlu0 %v2227
  %v2229 = vpop.xlane.xlu0 %2228
  %v2230 = vsel %vm85, %v2220, 0.0
  %2231 = vadd.xlane.f32.xlu0 %v2230
  %v2232 = vpop.xlane.xlu0 %2231
  %v2237 = vlaneseq
  %v2238 = vshrl.u32 %v2237, 7
  %v2239 = vsub.s32 %v295, %v2238
  %v2240 = vrot.slane %v2223, %v2239
  %v2241 = vlaneseq
  %v2242 = vshrl.u32 %v2241, 7
  %v2243 = vsub.s32 %v300, %v2242
  %v2244 = vrot.slane %v2226, %v2243
  %v2245 = vsel %vm305, %v2244, %v2240
  %v2246 = vlaneseq
  %v2247 = vshrl.u32 %v2246, 7
  %v2248 = vsub.s32 %v295, %v2247
  %v2249 = vrot.slane %v2229, %v2248
  %v2250 = vlaneseq
  %v2251 = vshrl.u32 %v2250, 7
  %v2252 = vsub.s32 %v300, %v2251
  %v2253 = vrot.slane %v2232, %v2252
  %v2254 = vsel %vm305, %v2253, %v2249
  %v2255 = vsel %vm316, %v2254, %v2245
  %v2257 = vsel %vm319, %v2255, 0.0
  %2258 = vadd.xlane.f32.xlu0 %v2257
  %v2259 = vpop.xlane.xlu0 %2258
  %v2260 = vrot.slane %v1870, 1
  %v2261 = vrot.slane %v1865, 1
  %v2262 = vsel %vm663, %v2260, %v2261
  %v2263 = vsel %vm663, %v2261, %v2260
  %v2264 = vrot.slane %v1880, 1
  %v2265 = vrot.slane %v1875, 1
  %v2266 = vsel %vm663, %v2264, %v2265
  %v2267 = vsel %vm663, %v2265, %v2264
  %v2272 = vmul.f32 %v1762, %v2262
  %v2273 = vmul.f32 %v1767, %v2263
  %v2274 = vmul.f32 %v1772, %v2266
  %v2275 = vmul.f32 %v1777, %v2267
  %v2276 = vsel %vm85, %v2272, 0.0
  %2277 = vadd.xlane.f32.xlu0 %v2276
  %v2278 = vpop.xlane.xlu0 %2277
  %v2279 = vsel %vm85, %v2273, 0.0
  %2280 = vadd.xlane.f32.xlu0 %v2279
  %v2281 = vpop.xlane.xlu0 %2280
  %v2282 = vsel %vm85, %v2274, 0.0
  %2283 = vadd.xlane.f32.xlu0 %v2282
  %v2284 = vpop.xlane.xlu0 %2283
  %v2285 = vsel %vm85, %v2275, 0.0
  %2286 = vadd.xlane.f32.xlu0 %v2285
  %v2287 = vpop.xlane.xlu0 %2286
  %v2292 = vlaneseq
  %v2293 = vshrl.u32 %v2292, 7
  %v2294 = vsub.s32 %v295, %v2293
  %v2295 = vrot.slane %v2278, %v2294
  %v2296 = vlaneseq
  %v2297 = vshrl.u32 %v2296, 7
  %v2298 = vsub.s32 %v300, %v2297
  %v2299 = vrot.slane %v2281, %v2298
  %v2300 = vsel %vm305, %v2299, %v2295
  %v2301 = vlaneseq
  %v2302 = vshrl.u32 %v2301, 7
  %v2303 = vsub.s32 %v295, %v2302
  %v2304 = vrot.slane %v2284, %v2303
  %v2305 = vlaneseq
  %v2306 = vshrl.u32 %v2305, 7
  %v2307 = vsub.s32 %v300, %v2306
  %v2308 = vrot.slane %v2287, %v2307
  %v2309 = vsel %vm305, %v2308, %v2304
  %v2310 = vsel %vm316, %v2309, %v2300
  %v2312 = vsel %vm319, %v2310, 0.0
  %2313 = vadd.xlane.f32.xlu0 %v2312
  %v2314 = vpop.xlane.xlu0 %2313
  %v2315 = vmul.f32 %v1762, %v1870
  %v2316 = vmul.f32 %v1767, %v1865
  %v2317 = vmul.f32 %v1772, %v1880
  %v2318 = vmul.f32 %v1777, %v1875
  %v2319 = vsel %vm85, %v2315, 0.0
  %2320 = vadd.xlane.f32.xlu0 %v2319
  %v2321 = vpop.xlane.xlu0 %2320
  %v2322 = vsel %vm85, %v2316, 0.0
  %2323 = vadd.xlane.f32.xlu0 %v2322
  %v2324 = vpop.xlane.xlu0 %2323
  %v2325 = vsel %vm85, %v2317, 0.0
  %2326 = vadd.xlane.f32.xlu0 %v2325
  %v2327 = vpop.xlane.xlu0 %2326
  %v2328 = vsel %vm85, %v2318, 0.0
  %2329 = vadd.xlane.f32.xlu0 %v2328
  %v2330 = vpop.xlane.xlu0 %2329
  %v2335 = vlaneseq
  %v2336 = vshrl.u32 %v2335, 7
  %v2337 = vsub.s32 %v295, %v2336
  %v2338 = vrot.slane %v2321, %v2337
  %v2339 = vlaneseq
  %v2340 = vshrl.u32 %v2339, 7
  %v2341 = vsub.s32 %v300, %v2340
  %v2342 = vrot.slane %v2324, %v2341
  %v2343 = vsel %vm305, %v2342, %v2338
  %v2344 = vlaneseq
  %v2345 = vshrl.u32 %v2344, 7
  %v2346 = vsub.s32 %v295, %v2345
  %v2347 = vrot.slane %v2327, %v2346
  %v2348 = vlaneseq
  %v2349 = vshrl.u32 %v2348, 7
  %v2350 = vsub.s32 %v300, %v2349
  %v2351 = vrot.slane %v2330, %v2350
  %v2352 = vsel %vm305, %v2351, %v2347
  %v2353 = vsel %vm316, %v2352, %v2343
  %v2355 = vsel %vm319, %v2353, 0.0
  %2356 = vadd.xlane.f32.xlu0 %v2355
  %v2357 = vpop.xlane.xlu0 %2356
  %v2358 = vmul.f32 %v1762, %v1933
  %v2359 = vmul.f32 %v1767, %v1932
  %v2360 = vmul.f32 %v1772, %v1937
  %v2361 = vmul.f32 %v1777, %v1936
  %v2362 = vsel %vm85, %v2358, 0.0
  %2363 = vadd.xlane.f32.xlu0 %v2362
  %v2364 = vpop.xlane.xlu0 %2363
  %v2365 = vsel %vm85, %v2359, 0.0
  %2366 = vadd.xlane.f32.xlu0 %v2365
  %v2367 = vpop.xlane.xlu0 %2366
  %v2368 = vsel %vm85, %v2360, 0.0
  %2369 = vadd.xlane.f32.xlu0 %v2368
  %v2370 = vpop.xlane.xlu0 %2369
  %v2371 = vsel %vm85, %v2361, 0.0
  %2372 = vadd.xlane.f32.xlu0 %v2371
  %v2373 = vpop.xlane.xlu0 %2372
  %v2378 = vlaneseq
  %v2379 = vshrl.u32 %v2378, 7
  %v2380 = vsub.s32 %v295, %v2379
  %v2381 = vrot.slane %v2364, %v2380
  %v2382 = vlaneseq
  %v2383 = vshrl.u32 %v2382, 7
  %v2384 = vsub.s32 %v300, %v2383
  %v2385 = vrot.slane %v2367, %v2384
  %v2386 = vsel %vm305, %v2385, %v2381
  %v2387 = vlaneseq
  %v2388 = vshrl.u32 %v2387, 7
  %v2389 = vsub.s32 %v295, %v2388
  %v2390 = vrot.slane %v2370, %v2389
  %v2391 = vlaneseq
  %v2392 = vshrl.u32 %v2391, 7
  %v2393 = vsub.s32 %v300, %v2392
  %v2394 = vrot.slane %v2373, %v2393
  %v2395 = vsel %vm305, %v2394, %v2390
  %v2396 = vsel %vm316, %v2395, %v2386
  %v2398 = vsel %vm319, %v2396, 0.0
  %2399 = vadd.xlane.f32.xlu0 %v2398
  %v2400 = vpop.xlane.xlu0 %2399
  %v2401 = vmul.f32 %v1762, %v1988
  %v2402 = vmul.f32 %v1767, %v1987
  %v2403 = vmul.f32 %v1772, %v1992
  %v2404 = vmul.f32 %v1777, %v1991
  %v2405 = vsel %vm85, %v2401, 0.0
  %2406 = vadd.xlane.f32.xlu0 %v2405
  %v2407 = vpop.xlane.xlu0 %2406
  %v2408 = vsel %vm85, %v2402, 0.0
  %2409 = vadd.xlane.f32.xlu0 %v2408
  %v2410 = vpop.xlane.xlu0 %2409
  %v2411 = vsel %vm85, %v2403, 0.0
  %2412 = vadd.xlane.f32.xlu0 %v2411
  %v2413 = vpop.xlane.xlu0 %2412
  %v2414 = vsel %vm85, %v2404, 0.0
  %2415 = vadd.xlane.f32.xlu0 %v2414
  %v2416 = vpop.xlane.xlu0 %2415
  %v2421 = vlaneseq
  %v2422 = vshrl.u32 %v2421, 7
  %v2423 = vsub.s32 %v295, %v2422
  %v2424 = vrot.slane %v2407, %v2423
  %v2425 = vlaneseq
  %v2426 = vshrl.u32 %v2425, 7
  %v2427 = vsub.s32 %v300, %v2426
  %v2428 = vrot.slane %v2410, %v2427
  %v2429 = vsel %vm305, %v2428, %v2424
  %v2430 = vlaneseq
  %v2431 = vshrl.u32 %v2430, 7
  %v2432 = vsub.s32 %v295, %v2431
  %v2433 = vrot.slane %v2413, %v2432
  %v2434 = vlaneseq
  %v2435 = vshrl.u32 %v2434, 7
  %v2436 = vsub.s32 %v300, %v2435
  %v2437 = vrot.slane %v2416, %v2436
  %v2438 = vsel %vm305, %v2437, %v2433
  %v2439 = vsel %vm316, %v2438, %v2429
  %v2441 = vsel %vm319, %v2439, 0.0
  %2442 = vadd.xlane.f32.xlu0 %v2441
  %v2443 = vpop.xlane.xlu0 %2442
  %v2444 = vmul.f32 %v1762, %v2043
  %v2445 = vmul.f32 %v1767, %v2042
  %v2446 = vmul.f32 %v1772, %v2047
  %v2447 = vmul.f32 %v1777, %v2046
  %v2448 = vsel %vm85, %v2444, 0.0
  %2449 = vadd.xlane.f32.xlu0 %v2448
  %v2450 = vpop.xlane.xlu0 %2449
  %v2451 = vsel %vm85, %v2445, 0.0
  %2452 = vadd.xlane.f32.xlu0 %v2451
  %v2453 = vpop.xlane.xlu0 %2452
  %v2454 = vsel %vm85, %v2446, 0.0
  %2455 = vadd.xlane.f32.xlu0 %v2454
  %v2456 = vpop.xlane.xlu0 %2455
  %v2457 = vsel %vm85, %v2447, 0.0
  %2458 = vadd.xlane.f32.xlu0 %v2457
  %v2459 = vpop.xlane.xlu0 %2458
  %v2464 = vlaneseq
  %v2465 = vshrl.u32 %v2464, 7
  %v2466 = vsub.s32 %v295, %v2465
  %v2467 = vrot.slane %v2450, %v2466
  %v2468 = vlaneseq
  %v2469 = vshrl.u32 %v2468, 7
  %v2470 = vsub.s32 %v300, %v2469
  %v2471 = vrot.slane %v2453, %v2470
  %v2472 = vsel %vm305, %v2471, %v2467
  %v2473 = vlaneseq
  %v2474 = vshrl.u32 %v2473, 7
  %v2475 = vsub.s32 %v295, %v2474
  %v2476 = vrot.slane %v2456, %v2475
  %v2477 = vlaneseq
  %v2478 = vshrl.u32 %v2477, 7
  %v2479 = vsub.s32 %v300, %v2478
  %v2480 = vrot.slane %v2459, %v2479
  %v2481 = vsel %vm305, %v2480, %v2476
  %v2482 = vsel %vm316, %v2481, %v2472
  %v2484 = vsel %vm319, %v2482, 0.0
  %2485 = vadd.xlane.f32.xlu0 %v2484
  %v2486 = vpop.xlane.xlu0 %2485
  %v2487 = vmul.f32 %v1762, %v2098
  %v2488 = vmul.f32 %v1767, %v2097
  %v2489 = vmul.f32 %v1772, %v2102
  %v2490 = vmul.f32 %v1777, %v2101
  %v2491 = vsel %vm85, %v2487, 0.0
  %2492 = vadd.xlane.f32.xlu0 %v2491
  %v2493 = vpop.xlane.xlu0 %2492
  %v2494 = vsel %vm85, %v2488, 0.0
  %2495 = vadd.xlane.f32.xlu0 %v2494
  %v2496 = vpop.xlane.xlu0 %2495
  %v2497 = vsel %vm85, %v2489, 0.0
  %2498 = vadd.xlane.f32.xlu0 %v2497
  %v2499 = vpop.xlane.xlu0 %2498
  %v2500 = vsel %vm85, %v2490, 0.0
  %2501 = vadd.xlane.f32.xlu0 %v2500
  %v2502 = vpop.xlane.xlu0 %2501
  %v2507 = vlaneseq
  %v2508 = vshrl.u32 %v2507, 7
  %v2509 = vsub.s32 %v295, %v2508
  %v2510 = vrot.slane %v2493, %v2509
  %v2511 = vlaneseq
  %v2512 = vshrl.u32 %v2511, 7
  %v2513 = vsub.s32 %v300, %v2512
  %v2514 = vrot.slane %v2496, %v2513
  %v2515 = vsel %vm305, %v2514, %v2510
  %v2516 = vlaneseq
  %v2517 = vshrl.u32 %v2516, 7
  %v2518 = vsub.s32 %v295, %v2517
  %v2519 = vrot.slane %v2499, %v2518
  %v2520 = vlaneseq
  %v2521 = vshrl.u32 %v2520, 7
  %v2522 = vsub.s32 %v300, %v2521
  %v2523 = vrot.slane %v2502, %v2522
  %v2524 = vsel %vm305, %v2523, %v2519
  %v2525 = vsel %vm316, %v2524, %v2515
  %v2527 = vsel %vm319, %v2525, 0.0
  %2528 = vadd.xlane.f32.xlu0 %v2527
  %v2529 = vpop.xlane.xlu0 %2528
  %v2530 = vmul.f32 %v1762, %v2153
  %v2531 = vmul.f32 %v1767, %v2152
  %v2532 = vmul.f32 %v1772, %v2157
  %v2533 = vmul.f32 %v1777, %v2156
  %v2534 = vsel %vm85, %v2530, 0.0
  %2535 = vadd.xlane.f32.xlu0 %v2534
  %v2536 = vpop.xlane.xlu0 %2535
  %v2537 = vsel %vm85, %v2531, 0.0
  %2538 = vadd.xlane.f32.xlu0 %v2537
  %v2539 = vpop.xlane.xlu0 %2538
  %v2540 = vsel %vm85, %v2532, 0.0
  %2541 = vadd.xlane.f32.xlu0 %v2540
  %v2542 = vpop.xlane.xlu0 %2541
  %v2543 = vsel %vm85, %v2533, 0.0
  %2544 = vadd.xlane.f32.xlu0 %v2543
  %v2545 = vpop.xlane.xlu0 %2544
  %v2550 = vlaneseq
  %v2551 = vshrl.u32 %v2550, 7
  %v2552 = vsub.s32 %v295, %v2551
  %v2553 = vrot.slane %v2536, %v2552
  %v2554 = vlaneseq
  %v2555 = vshrl.u32 %v2554, 7
  %v2556 = vsub.s32 %v300, %v2555
  %v2557 = vrot.slane %v2539, %v2556
  %v2558 = vsel %vm305, %v2557, %v2553
  %v2559 = vlaneseq
  %v2560 = vshrl.u32 %v2559, 7
  %v2561 = vsub.s32 %v295, %v2560
  %v2562 = vrot.slane %v2542, %v2561
  %v2563 = vlaneseq
  %v2564 = vshrl.u32 %v2563, 7
  %v2565 = vsub.s32 %v300, %v2564
  %v2566 = vrot.slane %v2545, %v2565
  %v2567 = vsel %vm305, %v2566, %v2562
  %v2568 = vsel %vm316, %v2567, %v2558
  %v2570 = vsel %vm319, %v2568, 0.0
  %2571 = vadd.xlane.f32.xlu0 %v2570
  %v2572 = vpop.xlane.xlu0 %2571
  %v2573 = vmul.f32 %v1762, %v2208
  %v2574 = vmul.f32 %v1767, %v2207
  %v2575 = vmul.f32 %v1772, %v2212
  %v2576 = vmul.f32 %v1777, %v2211
  %v2577 = vsel %vm85, %v2573, 0.0
  %2578 = vadd.xlane.f32.xlu0 %v2577
  %v2579 = vpop.xlane.xlu0 %2578
  %v2580 = vsel %vm85, %v2574, 0.0
  %2581 = vadd.xlane.f32.xlu0 %v2580
  %v2582 = vpop.xlane.xlu0 %2581
  %v2583 = vsel %vm85, %v2575, 0.0
  %2584 = vadd.xlane.f32.xlu0 %v2583
  %v2585 = vpop.xlane.xlu0 %2584
  %v2586 = vsel %vm85, %v2576, 0.0
  %2587 = vadd.xlane.f32.xlu0 %v2586
  %v2588 = vpop.xlane.xlu0 %2587
  %v2593 = vlaneseq
  %v2594 = vshrl.u32 %v2593, 7
  %v2595 = vsub.s32 %v295, %v2594
  %v2596 = vrot.slane %v2579, %v2595
  %v2597 = vlaneseq
  %v2598 = vshrl.u32 %v2597, 7
  %v2599 = vsub.s32 %v300, %v2598
  %v2600 = vrot.slane %v2582, %v2599
  %v2601 = vsel %vm305, %v2600, %v2596
  %v2602 = vlaneseq
  %v2603 = vshrl.u32 %v2602, 7
  %v2604 = vsub.s32 %v295, %v2603
  %v2605 = vrot.slane %v2585, %v2604
  %v2606 = vlaneseq
  %v2607 = vshrl.u32 %v2606, 7
  %v2608 = vsub.s32 %v300, %v2607
  %v2609 = vrot.slane %v2588, %v2608
  %v2610 = vsel %vm305, %v2609, %v2605
  %v2611 = vsel %vm316, %v2610, %v2601
  %v2613 = vsel %vm319, %v2611, 0.0
  %2614 = vadd.xlane.f32.xlu0 %v2613
  %v2615 = vpop.xlane.xlu0 %2614
  %v2616 = vmul.f32 %v1762, %v2263
  %v2617 = vmul.f32 %v1767, %v2262
  %v2618 = vmul.f32 %v1772, %v2267
  %v2619 = vmul.f32 %v1777, %v2266
  %v2620 = vsel %vm85, %v2616, 0.0
  %2621 = vadd.xlane.f32.xlu0 %v2620
  %v2622 = vpop.xlane.xlu0 %2621
  %v2623 = vsel %vm85, %v2617, 0.0
  %2624 = vadd.xlane.f32.xlu0 %v2623
  %v2625 = vpop.xlane.xlu0 %2624
  %v2626 = vsel %vm85, %v2618, 0.0
  %2627 = vadd.xlane.f32.xlu0 %v2626
  %v2628 = vpop.xlane.xlu0 %2627
  %v2629 = vsel %vm85, %v2619, 0.0
  %2630 = vadd.xlane.f32.xlu0 %v2629
  %v2631 = vpop.xlane.xlu0 %2630
  %v2636 = vlaneseq
  %v2637 = vshrl.u32 %v2636, 7
  %v2638 = vsub.s32 %v295, %v2637
  %v2639 = vrot.slane %v2622, %v2638
  %v2640 = vlaneseq
  %v2641 = vshrl.u32 %v2640, 7
  %v2642 = vsub.s32 %v300, %v2641
  %v2643 = vrot.slane %v2625, %v2642
  %v2644 = vsel %vm305, %v2643, %v2639
  %v2645 = vlaneseq
  %v2646 = vshrl.u32 %v2645, 7
  %v2647 = vsub.s32 %v295, %v2646
  %v2648 = vrot.slane %v2628, %v2647
  %v2649 = vlaneseq
  %v2650 = vshrl.u32 %v2649, 7
  %v2651 = vsub.s32 %v300, %v2650
  %v2652 = vrot.slane %v2631, %v2651
  %v2653 = vsel %vm305, %v2652, %v2648
  %v2654 = vsel %vm316, %v2653, %v2644
  %v2656 = vsel %vm319, %v2654, 0.0
  %2657 = vadd.xlane.f32.xlu0 %v2656
  %v2658 = vpop.xlane.xlu0 %2657
  %v2659 = vsel %vm1063, %v1925, %v1984
  %v2660 = vsel %vm1065, %v2659, %v2039
  %v2661 = vsel %vm1067, %v2660, %v2094
  %v2662 = vsel %vm1069, %v2661, %v2149
  %v2663 = vsel %vm1071, %v2662, %v2204
  %v2664 = vsel %vm1073, %v2663, %v2259
  %v2665 = vsel %vm1075, %v2664, %v2314
  %v2666 = vsel %vm1077, %v2665, %v2357
  %v2667 = vsel %vm1079, %v2666, %v2400
  %v2668 = vsel %vm1081, %v2667, %v2443
  %v2669 = vsel %vm1083, %v2668, %v2486
  %v2670 = vsel %vm1085, %v2669, %v2529
  %v2671 = vsel %vm1087, %v2670, %v2572
  %v2672 = vsel %vm1089, %v2671, %v2615
  %v2673 = vsel %vm1091, %v2672, %v2658
  %v2674 = vmul.f32 %v2673, 0.03125
  %v2675 = vsel %vm319, %v2674, -inf
  %2676 = vmax.xlane.f32.xlu0 %v2675
  %v2677 = vpop.xlane.xlu0 %2676
  %vm2678 = vcmp.eq.f32.partialorder %v2674, %v2677
  %v2679 = vsel %vm2678, %v295, 16
  %v2680 = vsel %vm319, %v2679, 2147483647
  %v2681 = vand.u32 %v2680, 65535
  %v2682 = vshra.s32 %v2680, 16
  %v2683 = vcvt.s32.f32 %v2681
  %v2684 = vcvt.s32.f32 %v2682
  %2685 = vmin.xlane.f32.xlu0 %v2684
  %v2686 = vpop.xlane.xlu0 %2685
  %vm2687 = vcmp.eq.f32.partialorder %v2684, %v2686
  %v2688 = vsel %vm2687, %v2683, inf
  %2689 = vmin.xlane.f32.xlu0 %v2688
  %v2690 = vpop.xlane.xlu0 %2689
  %v2691 = vcvt.f32.s32 %v2690
  %v2692 = vcvt.f32.s32 %v2686
  %v2693 = vshll.u32 %v2692, 16
  %v2694 = vadd.s32 %v2693, %v2691
  %vm2695 = vcmp.eq.s32.totalorder %v295, %v2694
  %v2696 = vsel %vm2695, -1e+30, %v2674
  %v2697 = vsel %vm319, %v2696, -inf
  %2698 = vmax.xlane.f32.xlu0 %v2697
  %v2699 = vpop.xlane.xlu0 %2698
  %vm2700 = vcmp.eq.f32.partialorder %v2696, %v2699
  %v2701 = vsel %vm2700, %v295, 16
  %v2702 = vsel %vm319, %v2701, 2147483647
  %v2703 = vand.u32 %v2702, 65535
  %v2704 = vshra.s32 %v2702, 16
  %v2705 = vcvt.s32.f32 %v2703
  %v2706 = vcvt.s32.f32 %v2704
  %2707 = vmin.xlane.f32.xlu0 %v2706
  %v2708 = vpop.xlane.xlu0 %2707
  %vm2709 = vcmp.eq.f32.partialorder %v2706, %v2708
  %v2710 = vsel %vm2709, %v2705, inf
  %2711 = vmin.xlane.f32.xlu0 %v2710
  %v2712 = vpop.xlane.xlu0 %2711
  %v2713 = vcvt.f32.s32 %v2712
  %v2714 = vcvt.f32.s32 %v2708
  %v2715 = vshll.u32 %v2714, 16
  %v2716 = vadd.s32 %v2715, %v2713
  %v2717 = vsel %vm1063, %v2677, %v2699
  %v2718 = vsub.f32 %v2717, %v2677
  %v2719 = vmul.f32 %v2718, 1.442695
  %v2720 = vpow.pop %v2719
  %v2721 = vsel %vm1140, %v2720, 0.0
  %2722 = vadd.xlane.f32.xlu0 %v2721
  %v2723 = vpop.xlane.xlu0 %2722
  %v2724 = vrcp.pop %v2723
  %v2725 = vmul.f32 %v2720, %v2724
  %v2726 = vlaneseq
  %v2727 = vshrl.u32 %v2726, 7
  %v2728 = vsub.s32 0, %v2727
  %v2729 = vrot.slane %v2694, %v2728
  %v2730 = vlaneseq
  %v2731 = vshrl.u32 %v2730, 7
  %v2732 = vsub.s32 1, %v2731
  %v2733 = vrot.slane %v2694, %v2732
  %vm2734 = vcmp.eq.s32.totalorder %v1155, %v2729
  %vm2735 = vcmp.eq.s32.totalorder %v1156, %v2729
  %vm2736 = vcmp.eq.s32.totalorder %v1155, %v2733
  %vm2737 = vcmp.eq.s32.totalorder %v1156, %v2733
  %v2738 = vsel %vm2734, 1, 0
  %v2739 = vsel %vm2735, 1, 0
  %v2740 = vsel %vm2736, 1, 0
  %v2741 = vsel %vm2737, 1, 0
  %v2742 = vcvt.s32.f32 %v2738
  %v2743 = vcvt.s32.f32 %v2739
  %v2744 = vcvt.s32.f32 %v2740
  %v2745 = vcvt.s32.f32 %v2741
  %v2748 = vunpack.c.l.s4 1966171168
  %v2749 = vunpack.c.0.s8 %v2748
  %v2750 = vlaneseq
  %v2751 = vshrl.u32 %v2750, 7
  %v2752 = vsub.s32 %v2749, %v2751
  %v2753 = vrot.slane %v2725, %v2752
  %v2754 = vcombine.high %v2753, %v2753
  %v2756 = vunpack.c.l.s4 1966171168
  %v2757 = vunpack.c.0.s8 %v2756
  %v2758 = vlaneseq
  %v2759 = vshrl.u32 %v2758, 7
  %v2760 = vsub.s32 %v2757, %v2759
  %v2761 = vrot.slane %v2753, %v2760
  %v2763 = vunpack.c.l.s4 1966171168
  %v2764 = vunpack.c.0.s8 %v2763
  %v2765 = vlaneseq
  %v2766 = vshrl.u32 %v2765, 7
  %v2767 = vsub.s32 %v2764, %v2766
  %v2768 = vrot.slane %v2754, %v2767
  %v2769 = vlaneseq
  %v2770 = vshrl.u32 %v2769, 7
  %v2771 = vsub.s32 0, %v2770
  %v2772 = vrot.slane %v2761, %v2771
  %v2773 = vlaneseq
  %v2774 = vshrl.u32 %v2773, 7
  %v2775 = vsub.s32 0, %v2774
  %v2776 = vrot.slane %v2768, %v2775
  %2777 = vset.pattern.permute.xlu0 0
  %2778 = vperm.xlu0 %2777, %v2772
  %v2779 = vpop.permute.xlu0 %2778
  %2781 = vset.pattern.permute.xlu0 0
  %2782 = vperm.xlu0 %2781, %v2776
  %v2783 = vpop.permute.xlu0 %2782
  %v2785 = vmul.f32 %v2779, %v2742
  %v2786 = vmul.f32 %v2779, %v2743
  %v2787 = vmul.f32 %v2783, %v2744
  %v2788 = vmul.f32 %v2783, %v2745
  %v2789 = vadd.f32 %v2785, 0.0
  %v2790 = vadd.f32 %v2786, 0.0
  %v2791 = vadd.f32 %v2787, 0.0
  %v2792 = vadd.f32 %v2788, 0.0
  %v2793 = vlaneseq
  %v2794 = vshrl.u32 %v2793, 7
  %v2795 = vsub.s32 0, %v2794
  %v2796 = vrot.slane %v2716, %v2795
  %v2797 = vlaneseq
  %v2798 = vshrl.u32 %v2797, 7
  %v2799 = vsub.s32 1, %v2798
  %v2800 = vrot.slane %v2716, %v2799
  %vm2801 = vcmp.eq.s32.totalorder %v1155, %v2796
  %vm2802 = vcmp.eq.s32.totalorder %v1156, %v2796
  %vm2803 = vcmp.eq.s32.totalorder %v1155, %v2800
  %vm2804 = vcmp.eq.s32.totalorder %v1156, %v2800
  %v2805 = vsel %vm2801, 1, 0
  %v2806 = vsel %vm2802, 1, 0
  %v2807 = vsel %vm2803, 1, 0
  %v2808 = vsel %vm2804, 1, 0
  %v2809 = vcvt.s32.f32 %v2805
  %v2810 = vcvt.s32.f32 %v2806
  %v2811 = vcvt.s32.f32 %v2807
  %v2812 = vcvt.s32.f32 %v2808
  %2813 = vset.pattern.permute.xlu0 1
  %2814 = vperm.xlu0 %2813, %v2772
  %v2815 = vpop.permute.xlu0 %2814
  %2817 = vset.pattern.permute.xlu0 1
  %2818 = vperm.xlu0 %2817, %v2776
  %v2819 = vpop.permute.xlu0 %2818
  %v2821 = vmul.f32 %v2815, %v2809
  %v2822 = vmul.f32 %v2815, %v2810
  %v2823 = vmul.f32 %v2819, %v2811
  %v2824 = vmul.f32 %v2819, %v2812
  %v2825 = vadd.f32 %v2789, %v2821
  %v2826 = vadd.f32 %v2790, %v2822
  %v2827 = vadd.f32 %v2791, %v2823
  %v2828 = vadd.f32 %v2792, %v2824
  %2829 = vrot.lane.b32.xlu0 %v1865, 96
  %v2830 = vpop.permute.xlu0 %2829
  %2831 = vrot.lane.b32.xlu0 %v1870, 96
  %v2832 = vpop.permute.xlu0 %2831
  %v2836 = vsel %vm1266, %v2825, 0
  %v2839 = vsel %vm1266, %v2826, 0
  %2841 = vmatprep.subr.mxu0 0.0
  %2842 = vmatpush1.msra.mxu0 %v2830
  %2843 = vmatprep.subr.mxu0 0.0
  %2844 = vmatpush1.msra.mxu0 %v2832
  %2845 = vmatprep.subr.mxu0 0.0
  %2846 = vmatpush1.msra.mxu0 0.0
  %2847 = vmatprep.subr.mxu0 0.0
  %2848 = vmatpush1.msra.mxu0 0.0
  %2849 = vmatprep.subr.mxu0 0.0
  %2850 = vmatpush1.msra.mxu0 0.0
  %2851 = vmatprep.subr.mxu0 0.0
  %2852 = vmatpush1.msra.mxu0 0.0
  %2853 = vmatprep.subr.mxu0 0.0
  %2854 = vmatpush1.msra.mxu0 0.0
  %2855 = vmatprep.subr.mxu0 0.0
  %2856 = vmatpush1.msra.mxu0 0.0
  %2857 = vmatprep.subr.mxu0 0.0
  %2858 = vmatpush1.msra.mxu0 0.0
  %2859 = vmatprep.subr.mxu0 0.0
  %2860 = vmatpush1.msra.mxu0 0.0
  %2861 = vmatprep.subr.mxu0 0.0
  %2862 = vmatpush1.msra.mxu0 0.0
  %2863 = vmatprep.subr.mxu0 0.0
  %2864 = vmatpush1.msra.mxu0 0.0
  %2865 = vmatprep.subr.mxu0 0.0
  %2866 = vmatpush1.msra.mxu0 0.0
  %2867 = vmatprep.subr.mxu0 0.0
  %2868 = vmatpush1.msra.mxu0 0.0
  %2869 = vmatprep.subr.mxu0 0.0
  %2870 = vmatpush1.msra.mxu0 0.0
  %2871 = vmatprep.subr.mxu0 0.0
  %2872 = vmatpush1.msra.mxu0 0.0
  %2873 = vmatprep.subr.mxu0 0.0
  %2874 = vmatpush1.msra.mxu0 0.0
  %2875 = vmatprep.subr.mxu0 0.0
  %2876 = vmatpush1.msra.mxu0 0.0
  %2877 = vmatprep.subr.mxu0 0.0
  %2878 = vmatpush1.msra.mxu0 0.0
  %2879 = vmatprep.subr.mxu0 0.0
  %2880 = vmatpush1.msra.mxu0 0.0
  %2881 = vmatprep.subr.mxu0 0.0
  %2882 = vmatpush1.msra.mxu0 0.0
  %2883 = vmatprep.subr.mxu0 0.0
  %2884 = vmatpush1.msra.mxu0 0.0
  %2885 = vmatprep.subr.mxu0 0.0
  %2886 = vmatpush1.msra.mxu0 0.0
  %2887 = vmatprep.subr.mxu0 0.0
  %2888 = vmatpush1.msra.mxu0 0.0
  %2889 = vmatprep.subr.mxu0 0.0
  %2890 = vmatpush1.msra.mxu0 0.0
  %2891 = vmatprep.subr.mxu0 0.0
  %2892 = vmatpush1.msra.mxu0 0.0
  %2893 = vmatprep.subr.mxu0 0.0
  %2894 = vmatpush1.msra.mxu0 0.0
  %2895 = vmatprep.subr.mxu0 0.0
  %2896 = vmatpush1.msra.mxu0 0.0
  %2897 = vmatprep.subr.mxu0 0.0
  %2898 = vmatpush1.msra.mxu0 0.0
  %2899 = vmatprep.subr.mxu0 0.0
  %2900 = vmatpush1.msra.mxu0 0.0
  %2901 = vmatprep.subr.mxu0 0.0
  %2902 = vmatpush1.msra.mxu0 0.0
  %2903 = vmatprep.subr.mxu0 0.0
  %2904 = vmatpush1.msra.mxu0 0.0
  %2905 = vmatprep.mubr.f32.mxu0 0.0
  %2906 = vmatmul.mubr.f32.gmra.mrb[0].mxu0 %v2836
  %v2907 = vpop.f32.mrb[0].mxu0
  %v2908 = vadd.f32 0.0, %v2907
  %v2909 = vpop.f32.mrb[0].mxu0
  %2910 = vmatprep.mubr.f32.mxu0 0.0
  %2911 = vmatmul.mubr.f32.gmra.mrb[0].mxu0 %v2839
  %v2912 = vpop.f32.mrb[0].mxu0
  %v2913 = vadd.f32 0.0, %v2912
  %v2914 = vpop.f32.mrb[0].mxu0
  %2915 = vdwg.mxu0
  %2916 = vrot.lane.b32.xlu0 %v1875, 96
  %v2917 = vpop.permute.xlu0 %2916
  %2918 = vrot.lane.b32.xlu0 %v1880, 96
  %v2919 = vpop.permute.xlu0 %2918
  %v2923 = vsel %vm1266, %v2827, 0
  %v2926 = vsel %vm1266, %v2828, 0
  %2928 = vmatprep.subr.mxu0 0.0
  %2929 = vmatpush1.msra.mxu0 %v2917
  %2930 = vmatprep.subr.mxu0 0.0
  %2931 = vmatpush1.msra.mxu0 %v2919
  %2932 = vmatprep.subr.mxu0 0.0
  %2933 = vmatpush1.msra.mxu0 0.0
  %2934 = vmatprep.subr.mxu0 0.0
  %2935 = vmatpush1.msra.mxu0 0.0
  %2936 = vmatprep.subr.mxu0 0.0
  %2937 = vmatpush1.msra.mxu0 0.0
  %2938 = vmatprep.subr.mxu0 0.0
  %2939 = vmatpush1.msra.mxu0 0.0
  %2940 = vmatprep.subr.mxu0 0.0
  %2941 = vmatpush1.msra.mxu0 0.0
  %2942 = vmatprep.subr.mxu0 0.0
  %2943 = vmatpush1.msra.mxu0 0.0
  %2944 = vmatprep.subr.mxu0 0.0
  %2945 = vmatpush1.msra.mxu0 0.0
  %2946 = vmatprep.subr.mxu0 0.0
  %2947 = vmatpush1.msra.mxu0 0.0
  %2948 = vmatprep.subr.mxu0 0.0
  %2949 = vmatpush1.msra.mxu0 0.0
  %2950 = vmatprep.subr.mxu0 0.0
  %2951 = vmatpush1.msra.mxu0 0.0
  %2952 = vmatprep.subr.mxu0 0.0
  %2953 = vmatpush1.msra.mxu0 0.0
  %2954 = vmatprep.subr.mxu0 0.0
  %2955 = vmatpush1.msra.mxu0 0.0
  %2956 = vmatprep.subr.mxu0 0.0
  %2957 = vmatpush1.msra.mxu0 0.0
  %2958 = vmatprep.subr.mxu0 0.0
  %2959 = vmatpush1.msra.mxu0 0.0
  %2960 = vmatprep.subr.mxu0 0.0
  %2961 = vmatpush1.msra.mxu0 0.0
  %2962 = vmatprep.subr.mxu0 0.0
  %2963 = vmatpush1.msra.mxu0 0.0
  %2964 = vmatprep.subr.mxu0 0.0
  %2965 = vmatpush1.msra.mxu0 0.0
  %2966 = vmatprep.subr.mxu0 0.0
  %2967 = vmatpush1.msra.mxu0 0.0
  %2968 = vmatprep.subr.mxu0 0.0
  %2969 = vmatpush1.msra.mxu0 0.0
  %2970 = vmatprep.subr.mxu0 0.0
  %2971 = vmatpush1.msra.mxu0 0.0
  %2972 = vmatprep.subr.mxu0 0.0
  %2973 = vmatpush1.msra.mxu0 0.0
  %2974 = vmatprep.subr.mxu0 0.0
  %2975 = vmatpush1.msra.mxu0 0.0
  %2976 = vmatprep.subr.mxu0 0.0
  %2977 = vmatpush1.msra.mxu0 0.0
  %2978 = vmatprep.subr.mxu0 0.0
  %2979 = vmatpush1.msra.mxu0 0.0
  %2980 = vmatprep.subr.mxu0 0.0
  %2981 = vmatpush1.msra.mxu0 0.0
  %2982 = vmatprep.subr.mxu0 0.0
  %2983 = vmatpush1.msra.mxu0 0.0
  %2984 = vmatprep.subr.mxu0 0.0
  %2985 = vmatpush1.msra.mxu0 0.0
  %2986 = vmatprep.subr.mxu0 0.0
  %2987 = vmatpush1.msra.mxu0 0.0
  %2988 = vmatprep.subr.mxu0 0.0
  %2989 = vmatpush1.msra.mxu0 0.0
  %2990 = vmatprep.subr.mxu0 0.0
  %2991 = vmatpush1.msra.mxu0 0.0
  %2992 = vmatprep.mubr.f32.mxu0 0.0
  %2993 = vmatmul.mubr.f32.gmra.mrb[0].mxu0 %v2923
  %v2994 = vpop.f32.mrb[0].mxu0
  %v2995 = vadd.f32 0.0, %v2994
  %v2996 = vpop.f32.mrb[0].mxu0
  %2997 = vmatprep.mubr.f32.mxu0 0.0
  %2998 = vmatmul.mubr.f32.gmra.mrb[0].mxu0 %v2926
  %v2999 = vpop.f32.mrb[0].mxu0
  %v3000 = vadd.f32 0.0, %v2999
  %v3001 = vpop.f32.mrb[0].mxu0
  %3002 = vdwg.mxu0
  %v3003 = vld [vmem:[%s13] sm:$0xff]
  %v3004 = vld [vmem:[%s13 + $0x8] sm:$0xff]
  %v3005 = vld [vmem:[%s13 + $0x10] sm:$0xff]
  %v3006 = vld [vmem:[%s13 + $0x18] sm:$0xff]
  %v3007 = vld [vmem:[%s14] sm:$0x1]
  %v3009 = vlaneseq
  %v3010 = vshrl.u32 %v3009, 7
  %v3011 = vsub.s32 0, %v3010
  %v3012 = vrot.slane %v3007, %v3011
  %v3015 = vsel %vm85, %v2908, 0
  %v3018 = vsel %vm85, %v2913, 0
  %v3021 = vsel %vm85, %v2995, 0
  %v3024 = vsel %vm85, %v3000, 0
  %3026 = vmatprep.subr.mxu0 0.0
  %3027 = vmatpush1.msra.mxu0 %v3003
  %3028 = vmatprep.subr.mxu0 0.0
  %3029 = vmatpush1.msra.mxu0 %v3004
  %3030 = vmatprep.subr.mxu0 0.0
  %3031 = vmatpush1.msra.mxu0 %v3005
  %3032 = vmatprep.subr.mxu0 0.0
  %3033 = vmatpush1.msra.mxu0 %v3006
  %3034 = vmatprep.subr.mxu0 0.0
  %3035 = vmatpush1.msra.mxu0 0.0
  %3036 = vmatprep.subr.mxu0 0.0
  %3037 = vmatpush1.msra.mxu0 0.0
  %3038 = vmatprep.subr.mxu0 0.0
  %3039 = vmatpush1.msra.mxu0 0.0
  %3040 = vmatprep.subr.mxu0 0.0
  %3041 = vmatpush1.msra.mxu0 0.0
  %3042 = vmatprep.subr.mxu0 0.0
  %3043 = vmatpush1.msra.mxu0 0.0
  %3044 = vmatprep.subr.mxu0 0.0
  %3045 = vmatpush1.msra.mxu0 0.0
  %3046 = vmatprep.subr.mxu0 0.0
  %3047 = vmatpush1.msra.mxu0 0.0
  %3048 = vmatprep.subr.mxu0 0.0
  %3049 = vmatpush1.msra.mxu0 0.0
  %3050 = vmatprep.subr.mxu0 0.0
  %3051 = vmatpush1.msra.mxu0 0.0
  %3052 = vmatprep.subr.mxu0 0.0
  %3053 = vmatpush1.msra.mxu0 0.0
  %3054 = vmatprep.subr.mxu0 0.0
  %3055 = vmatpush1.msra.mxu0 0.0
  %3056 = vmatprep.subr.mxu0 0.0
  %3057 = vmatpush1.msra.mxu0 0.0
  %3058 = vmatprep.subr.mxu0 0.0
  %3059 = vmatpush1.msra.mxu0 0.0
  %3060 = vmatprep.subr.mxu0 0.0
  %3061 = vmatpush1.msra.mxu0 0.0
  %3062 = vmatprep.subr.mxu0 0.0
  %3063 = vmatpush1.msra.mxu0 0.0
  %3064 = vmatprep.subr.mxu0 0.0
  %3065 = vmatpush1.msra.mxu0 0.0
  %3066 = vmatprep.subr.mxu0 0.0
  %3067 = vmatpush1.msra.mxu0 0.0
  %3068 = vmatprep.subr.mxu0 0.0
  %3069 = vmatpush1.msra.mxu0 0.0
  %3070 = vmatprep.subr.mxu0 0.0
  %3071 = vmatpush1.msra.mxu0 0.0
  %3072 = vmatprep.subr.mxu0 0.0
  %3073 = vmatpush1.msra.mxu0 0.0
  %3074 = vmatprep.subr.mxu0 0.0
  %3075 = vmatpush1.msra.mxu0 0.0
  %3076 = vmatprep.subr.mxu0 0.0
  %3077 = vmatpush1.msra.mxu0 0.0
  %3078 = vmatprep.subr.mxu0 0.0
  %3079 = vmatpush1.msra.mxu0 0.0
  %3080 = vmatprep.subr.mxu0 0.0
  %3081 = vmatpush1.msra.mxu0 0.0
  %3082 = vmatprep.subr.mxu0 0.0
  %3083 = vmatpush1.msra.mxu0 0.0
  %3084 = vmatprep.subr.mxu0 0.0
  %3085 = vmatpush1.msra.mxu0 0.0
  %3086 = vmatprep.subr.mxu0 0.0
  %3087 = vmatpush1.msra.mxu0 0.0
  %3088 = vmatprep.subr.mxu0 0.0
  %3089 = vmatpush1.msra.mxu0 0.0
  %3090 = vmatprep.mubr.f32.mxu0 0.0
  %3091 = vmatmul.mubr.f32.gmra.mrb[0].mxu0 %v3015
  %v3092 = vpop.f32.mrb[0].mxu0
  %v3093 = vadd.f32 %v3012, %v3092
  %v3094 = vpop.f32.mrb[0].mxu0
  %3095 = vmatprep.mubr.f32.mxu0 0.0
  %3096 = vmatmul.mubr.f32.gmra.mrb[0].mxu0 %v3018
  %v3097 = vpop.f32.mrb[0].mxu0
  %v3098 = vadd.f32 %v3012, %v3097
  %v3099 = vpop.f32.mrb[0].mxu0
  %3100 = vmatprep.mubr.f32.mxu0 0.0
  %3101 = vmatmul.mubr.f32.gmra.mrb[0].mxu0 %v3021
  %v3102 = vpop.f32.mrb[0].mxu0
  %v3103 = vadd.f32 %v3012, %v3102
  %v3104 = vpop.f32.mrb[0].mxu0
  %3105 = vmatprep.mubr.f32.mxu0 0.0
  %3106 = vmatmul.mubr.f32.gmra.mrb[0].mxu0 %v3024
  %v3107 = vpop.f32.mrb[0].mxu0
  %v3108 = vadd.f32 %v3012, %v3107
  %v3109 = vpop.f32.mrb[0].mxu0
  %3110 = vdwg.mxu0
  %v3111 = vadd.f32 %v1663, %v3093
  %v3112 = vadd.f32 %v1664, %v3098
  %v3113 = vadd.f32 %v1665, %v3103
  %v3114 = vadd.f32 %v1666, %v3108
  %v3117 = vrot.slane %v3111, 7
  %v3118 = vrot.slane %v3113, 7
  %v3123 = vrot.slane %v3111, 6
  %v3124 = vrot.slane %v3112, 6
  %v3125 = vsel %vm383, %v3123, %v3124
  %v3126 = vrot.slane %v3113, 6
  %v3127 = vrot.slane %v3114, 6
  %v3128 = vsel %vm383, %v3126, %v3127
  %v3135 = vrot.slane %v3112, 5
  %v3136 = vrot.slane %v3114, 5
  %v3139 = vrot.slane %v3112, 4
  %v3140 = vrot.slane %v3114, 4
  %v3143 = vsel %vm327, %v3111, %v3117
  %v3144 = vsel %vm327, %v3113, %v3118
  %v3145 = vsel %vm383, %v3143, %v3123
  %v3146 = vsel %vm383, %v3144, %v3126
  %v3147 = vsel %vm383, %v3124, %v3135
  %v3148 = vsel %vm383, %v3127, %v3136
  %v3149 = vsel %vm439, %v3147, %v3139
  %v3150 = vsel %vm439, %v3148, %v3140
  %v3155 = vrot.slane %v3145, 1
  %v3156 = vrot.slane %v3125, 1
  %v3157 = vsel %vm663, %v3155, %v3156
  %v3158 = vrot.slane %v3149, 1
  %v3159 = vsel %vm663, %v3156, %v3158
  %v3160 = vrot.slane %v3146, 1
  %v3161 = vrot.slane %v3128, 1
  %v3162 = vsel %vm663, %v3160, %v3161
  %v3163 = vrot.slane %v3150, 1
  %v3164 = vsel %vm663, %v3161, %v3163
  %v3169 = vadd.f32 %v3145, %v3157
  %v3170 = vadd.f32 %v3125, %v3159
  %v3171 = vadd.f32 %v3146, %v3162
  %v3172 = vadd.f32 %v3128, %v3164
  %v3173 = vrot.slane %v3145, 2
  %v3174 = vrot.slane %v3125, 2
  %v3175 = vsel %vm607, %v3173, %v3174
  %v3176 = vrot.slane %v3149, 2
  %v3177 = vsel %vm607, %v3174, %v3176
  %v3178 = vrot.slane %v3146, 2
  %v3179 = vrot.slane %v3128, 2
  %v3180 = vsel %vm607, %v3178, %v3179
  %v3181 = vrot.slane %v3150, 2
  %v3182 = vsel %vm607, %v3179, %v3181
  %v3187 = vadd.f32 %v3169, %v3175
  %v3188 = vadd.f32 %v3170, %v3177
  %v3189 = vadd.f32 %v3171, %v3180
  %v3190 = vadd.f32 %v3172, %v3182
  %v3191 = vrot.slane %v3145, 3
  %v3192 = vrot.slane %v3125, 3
  %v3193 = vsel %vm551, %v3191, %v3192
  %v3194 = vrot.slane %v3149, 3
  %v3195 = vsel %vm551, %v3192, %v3194
  %v3196 = vrot.slane %v3146, 3
  %v3197 = vrot.slane %v3128, 3
  %v3198 = vsel %vm551, %v3196, %v3197
  %v3199 = vrot.slane %v3150, 3
  %v3200 = vsel %vm551, %v3197, %v3199
  %v3205 = vadd.f32 %v3187, %v3193
  %v3206 = vadd.f32 %v3188, %v3195
  %v3207 = vadd.f32 %v3189, %v3198
  %v3208 = vadd.f32 %v3190, %v3200
  %v3209 = vrot.slane %v3145, 4
  %v3210 = vrot.slane %v3125, 4
  %v3211 = vsel %vm495, %v3209, %v3210
  %v3212 = vrot.slane %v3149, 4
  %v3213 = vsel %vm495, %v3210, %v3212
  %v3214 = vrot.slane %v3146, 4
  %v3215 = vrot.slane %v3128, 4
  %v3216 = vsel %vm495, %v3214, %v3215
  %v3217 = vrot.slane %v3150, 4
  %v3218 = vsel %vm495, %v3215, %v3217
  %v3223 = vadd.f32 %v3205, %v3211
  %v3224 = vadd.f32 %v3206, %v3213
  %v3225 = vadd.f32 %v3207, %v3216
  %v3226 = vadd.f32 %v3208, %v3218
  %v3227 = vmul.f32 %v3223, 0.2
  %v3228 = vmul.f32 %v3224, 0.2
  %v3229 = vmul.f32 %v3225, 0.2
  %v3230 = vmul.f32 %v3226, 0.2
  %v3231 = vsub.f32 %v3111, %v3227
  %v3232 = vsub.f32 %v3112, %v3228
  %v3233 = vsub.f32 %v3113, %v3229
  %v3234 = vsub.f32 %v3114, %v3230
  %v3235 = vld [vmem:[%s15] sm:$0xff]
  %v3236 = vld [vmem:[%s15 + $0x8] sm:$0xff]
  %v3237 = vld [vmem:[%s15 + $0x10] sm:$0xff]
  %v3238 = vld [vmem:[%s15 + $0x18] sm:$0xff]
  %v3240 = vsel %vm85, %v3231, 0
  %v3243 = vsel %vm85, %v3232, 0
  %v3246 = vsel %vm85, %v3233, 0
  %v3249 = vsel %vm85, %v3234, 0
  %3251 = vmatprep.subr.mxu0 0.0
  %3252 = vmatpush1.msra.mxu0 %v3235
  %3253 = vmatprep.subr.mxu0 0.0
  %3254 = vmatpush1.msra.mxu0 %v3236
  %3255 = vmatprep.subr.mxu0 0.0
  %3256 = vmatpush1.msra.mxu0 %v3237
  %3257 = vmatprep.subr.mxu0 0.0
  %3258 = vmatpush1.msra.mxu0 %v3238
  %3259 = vmatprep.subr.mxu0 0.0
  %3260 = vmatpush1.msra.mxu0 0.0
  %3261 = vmatprep.subr.mxu0 0.0
  %3262 = vmatpush1.msra.mxu0 0.0
  %3263 = vmatprep.subr.mxu0 0.0
  %3264 = vmatpush1.msra.mxu0 0.0
  %3265 = vmatprep.subr.mxu0 0.0
  %3266 = vmatpush1.msra.mxu0 0.0
  %3267 = vmatprep.subr.mxu0 0.0
  %3268 = vmatpush1.msra.mxu0 0.0
  %3269 = vmatprep.subr.mxu0 0.0
  %3270 = vmatpush1.msra.mxu0 0.0
  %3271 = vmatprep.subr.mxu0 0.0
  %3272 = vmatpush1.msra.mxu0 0.0
  %3273 = vmatprep.subr.mxu0 0.0
  %3274 = vmatpush1.msra.mxu0 0.0
  %3275 = vmatprep.subr.mxu0 0.0
  %3276 = vmatpush1.msra.mxu0 0.0
  %3277 = vmatprep.subr.mxu0 0.0
  %3278 = vmatpush1.msra.mxu0 0.0
  %3279 = vmatprep.subr.mxu0 0.0
  %3280 = vmatpush1.msra.mxu0 0.0
  %3281 = vmatprep.subr.mxu0 0.0
  %3282 = vmatpush1.msra.mxu0 0.0
  %3283 = vmatprep.subr.mxu0 0.0
  %3284 = vmatpush1.msra.mxu0 0.0
  %3285 = vmatprep.subr.mxu0 0.0
  %3286 = vmatpush1.msra.mxu0 0.0
  %3287 = vmatprep.subr.mxu0 0.0
  %3288 = vmatpush1.msra.mxu0 0.0
  %3289 = vmatprep.subr.mxu0 0.0
  %3290 = vmatpush1.msra.mxu0 0.0
  %3291 = vmatprep.subr.mxu0 0.0
  %3292 = vmatpush1.msra.mxu0 0.0
  %3293 = vmatprep.subr.mxu0 0.0
  %3294 = vmatpush1.msra.mxu0 0.0
  %3295 = vmatprep.subr.mxu0 0.0
  %3296 = vmatpush1.msra.mxu0 0.0
  %3297 = vmatprep.subr.mxu0 0.0
  %3298 = vmatpush1.msra.mxu0 0.0
  %3299 = vmatprep.subr.mxu0 0.0
  %3300 = vmatpush1.msra.mxu0 0.0
  %3301 = vmatprep.subr.mxu0 0.0
  %3302 = vmatpush1.msra.mxu0 0.0
  %3303 = vmatprep.subr.mxu0 0.0
  %3304 = vmatpush1.msra.mxu0 0.0
  %3305 = vmatprep.subr.mxu0 0.0
  %3306 = vmatpush1.msra.mxu0 0.0
  %3307 = vmatprep.subr.mxu0 0.0
  %3308 = vmatpush1.msra.mxu0 0.0
  %3309 = vmatprep.subr.mxu0 0.0
  %3310 = vmatpush1.msra.mxu0 0.0
  %3311 = vmatprep.subr.mxu0 0.0
  %3312 = vmatpush1.msra.mxu0 0.0
  %3313 = vmatprep.subr.mxu0 0.0
  %3314 = vmatpush1.msra.mxu0 0.0
  %3315 = vmatprep.mubr.f32.mxu0 0.0
  %3316 = vmatmul.mubr.f32.gmra.mrb[0].mxu0 %v3240
  %v3317 = vpop.f32.mrb[0].mxu0
  %v3318 = vadd.f32 0.0, %v3317
  %v3319 = vpop.f32.mrb[0].mxu0
  %3320 = vmatprep.mubr.f32.mxu0 0.0
  %3321 = vmatmul.mubr.f32.gmra.mrb[0].mxu0 %v3243
  %v3322 = vpop.f32.mrb[0].mxu0
  %v3323 = vadd.f32 0.0, %v3322
  %v3324 = vpop.f32.mrb[0].mxu0
  %3325 = vmatprep.mubr.f32.mxu0 0.0
  %3326 = vmatmul.mubr.f32.gmra.mrb[0].mxu0 %v3246
  %v3327 = vpop.f32.mrb[0].mxu0
  %v3328 = vadd.f32 0.0, %v3327
  %v3329 = vpop.f32.mrb[0].mxu0
  %3330 = vmatprep.mubr.f32.mxu0 0.0
  %3331 = vmatmul.mubr.f32.gmra.mrb[0].mxu0 %v3249
  %v3332 = vpop.f32.mrb[0].mxu0
  %v3333 = vadd.f32 0.0, %v3332
  %v3334 = vpop.f32.mrb[0].mxu0
  %3335 = vdwg.mxu0
  %v3336 = vmax.f32 %v3318, 0.0
  %v3337 = vmax.f32 %v3323, 0.0
  %v3338 = vmax.f32 %v3328, 0.0
  %v3339 = vmax.f32 %v3333, 0.0
  %v3340 = vld [vmem:[%s16] sm:$0xff]
  %v3341 = vld [vmem:[%s16 + $0x8] sm:$0xff]
  %v3342 = vld [vmem:[%s16 + $0x10] sm:$0xff]
  %v3343 = vld [vmem:[%s16 + $0x18] sm:$0xff]
  %v3344 = vld [vmem:[%s16 + $0x20] sm:$0xff]
  %v3345 = vld [vmem:[%s16 + $0x28] sm:$0xff]
  %v3346 = vld [vmem:[%s16 + $0x30] sm:$0xff]
  %v3347 = vld [vmem:[%s16 + $0x38] sm:$0xff]
  %vm3348 = vcmask 523264
  %v3350 = vsel %vm3348, %v3336, 0
  %v3353 = vsel %vm3348, %v3337, 0
  %v3356 = vsel %vm3348, %v3338, 0
  %v3359 = vsel %vm3348, %v3339, 0
  %3361 = vmatprep.subr.mxu0 0.0
  %3362 = vmatpush1.msra.mxu0 %v3340
  %3363 = vmatprep.subr.mxu0 0.0
  %3364 = vmatpush1.msra.mxu0 %v3341
  %3365 = vmatprep.subr.mxu0 0.0
  %3366 = vmatpush1.msra.mxu0 %v3342
  %3367 = vmatprep.subr.mxu0 0.0
  %3368 = vmatpush1.msra.mxu0 %v3343
  %3369 = vmatprep.subr.mxu0 0.0
  %3370 = vmatpush1.msra.mxu0 %v3344
  %3371 = vmatprep.subr.mxu0 0.0
  %3372 = vmatpush1.msra.mxu0 %v3345
  %3373 = vmatprep.subr.mxu0 0.0
  %3374 = vmatpush1.msra.mxu0 %v3346
  %3375 = vmatprep.subr.mxu0 0.0
  %3376 = vmatpush1.msra.mxu0 %v3347
  %3377 = vmatprep.subr.mxu0 0.0
  %3378 = vmatpush1.msra.mxu0 0.0
  %3379 = vmatprep.subr.mxu0 0.0
  %3380 = vmatpush1.msra.mxu0 0.0
  %3381 = vmatprep.subr.mxu0 0.0
  %3382 = vmatpush1.msra.mxu0 0.0
  %3383 = vmatprep.subr.mxu0 0.0
  %3384 = vmatpush1.msra.mxu0 0.0
  %3385 = vmatprep.subr.mxu0 0.0
  %3386 = vmatpush1.msra.mxu0 0.0
  %3387 = vmatprep.subr.mxu0 0.0
  %3388 = vmatpush1.msra.mxu0 0.0
  %3389 = vmatprep.subr.mxu0 0.0
  %3390 = vmatpush1.msra.mxu0 0.0
  %3391 = vmatprep.subr.mxu0 0.0
  %3392 = vmatpush1.msra.mxu0 0.0
  %3393 = vmatprep.subr.mxu0 0.0
  %3394 = vmatpush1.msra.mxu0 0.0
  %3395 = vmatprep.subr.mxu0 0.0
  %3396 = vmatpush1.msra.mxu0 0.0
  %3397 = vmatprep.subr.mxu0 0.0
  %3398 = vmatpush1.msra.mxu0 0.0
  %3399 = vmatprep.subr.mxu0 0.0
  %3400 = vmatpush1.msra.mxu0 0.0
  %3401 = vmatprep.subr.mxu0 0.0
  %3402 = vmatpush1.msra.mxu0 0.0
  %3403 = vmatprep.subr.mxu0 0.0
  %3404 = vmatpush1.msra.mxu0 0.0
  %3405 = vmatprep.subr.mxu0 0.0
  %3406 = vmatpush1.msra.mxu0 0.0
  %3407 = vmatprep.subr.mxu0 0.0
  %3408 = vmatpush1.msra.mxu0 0.0
  %3409 = vmatprep.subr.mxu0 0.0
  %3410 = vmatpush1.msra.mxu0 0.0
  %3411 = vmatprep.subr.mxu0 0.0
  %3412 = vmatpush1.msra.mxu0 0.0
  %3413 = vmatprep.subr.mxu0 0.0
  %3414 = vmatpush1.msra.mxu0 0.0
  %3415 = vmatprep.subr.mxu0 0.0
  %3416 = vmatpush1.msra.mxu0 0.0
  %3417 = vmatprep.subr.mxu0 0.0
  %3418 = vmatpush1.msra.mxu0 0.0
  %3419 = vmatprep.subr.mxu0 0.0
  %3420 = vmatpush1.msra.mxu0 0.0
  %3421 = vmatprep.subr.mxu0 0.0
  %3422 = vmatpush1.msra.mxu0 0.0
  %3423 = vmatprep.subr.mxu0 0.0
  %3424 = vmatpush1.msra.mxu0 0.0
  %3425 = vmatprep.mubr.f32.mxu0 0.0
  %3426 = vmatmul.mubr.f32.gmra.mrb[0].mxu0 %v3350
  %v3427 = vpop.f32.mrb[0].mxu0
  %v3428 = vadd.f32 0.0, %v3427
  %v3429 = vpop.f32.mrb[0].mxu0
  %3430 = vmatprep.mubr.f32.mxu0 0.0
  %3431 = vmatmul.mubr.f32.gmra.mrb[0].mxu0 %v3353
  %v3432 = vpop.f32.mrb[0].mxu0
  %v3433 = vadd.f32 0.0, %v3432
  %v3434 = vpop.f32.mrb[0].mxu0
  %3435 = vmatprep.mubr.f32.mxu0 0.0
  %3436 = vmatmul.mubr.f32.gmra.mrb[0].mxu0 %v3356
  %v3437 = vpop.f32.mrb[0].mxu0
  %v3438 = vadd.f32 0.0, %v3437
  %v3439 = vpop.f32.mrb[0].mxu0
  %3440 = vmatprep.mubr.f32.mxu0 0.0
  %3441 = vmatmul.mubr.f32.gmra.mrb[0].mxu0 %v3359
  %v3442 = vpop.f32.mrb[0].mxu0
  %v3443 = vadd.f32 0.0, %v3442
  %v3444 = vpop.f32.mrb[0].mxu0
  %3445 = vdwg.mxu0
  %v3446 = vadd.f32 %v3231, %v3428
  %v3447 = vadd.f32 %v3232, %v3433
  %v3448 = vadd.f32 %v3233, %v3438
  %v3449 = vadd.f32 %v3234, %v3443
  %v3452 = vrot.slane %v3446, 7
  %v3453 = vrot.slane %v3448, 7
  %v3458 = vrot.slane %v3446, 6
  %v3459 = vrot.slane %v3447, 6
  %v3460 = vsel %vm383, %v3458, %v3459
  %v3461 = vrot.slane %v3448, 6
  %v3462 = vrot.slane %v3449, 6
  %v3463 = vsel %vm383, %v3461, %v3462
  %v3470 = vrot.slane %v3447, 5
  %v3471 = vrot.slane %v3449, 5
  %v3474 = vrot.slane %v3447, 4
  %v3475 = vrot.slane %v3449, 4
  %v3478 = vsel %vm327, %v3446, %v3452
  %v3479 = vsel %vm327, %v3448, %v3453
  %v3480 = vsel %vm383, %v3478, %v3458
  %v3481 = vsel %vm383, %v3479, %v3461
  %v3482 = vsel %vm383, %v3459, %v3470
  %v3483 = vsel %vm383, %v3462, %v3471
  %v3484 = vsel %vm439, %v3482, %v3474
  %v3485 = vsel %vm439, %v3483, %v3475
  %v3490 = vrot.slane %v3480, 1
  %v3491 = vrot.slane %v3460, 1
  %v3492 = vsel %vm663, %v3490, %v3491
  %v3493 = vrot.slane %v3484, 1
  %v3494 = vsel %vm663, %v3491, %v3493
  %v3495 = vrot.slane %v3481, 1
  %v3496 = vrot.slane %v3463, 1
  %v3497 = vsel %vm663, %v3495, %v3496
  %v3498 = vrot.slane %v3485, 1
  %v3499 = vsel %vm663, %v3496, %v3498
  %v3504 = vadd.f32 %v3480, %v3492
  %v3505 = vadd.f32 %v3460, %v3494
  %v3506 = vadd.f32 %v3481, %v3497
  %v3507 = vadd.f32 %v3463, %v3499
  %v3508 = vrot.slane %v3480, 2
  %v3509 = vrot.slane %v3460, 2
  %v3510 = vsel %vm607, %v3508, %v3509
  %v3511 = vrot.slane %v3484, 2
  %v3512 = vsel %vm607, %v3509, %v3511
  %v3513 = vrot.slane %v3481, 2
  %v3514 = vrot.slane %v3463, 2
  %v3515 = vsel %vm607, %v3513, %v3514
  %v3516 = vrot.slane %v3485, 2
  %v3517 = vsel %vm607, %v3514, %v3516
  %v3522 = vadd.f32 %v3504, %v3510
  %v3523 = vadd.f32 %v3505, %v3512
  %v3524 = vadd.f32 %v3506, %v3515
  %v3525 = vadd.f32 %v3507, %v3517
  %v3526 = vrot.slane %v3480, 3
  %v3527 = vrot.slane %v3460, 3
  %v3528 = vsel %vm551, %v3526, %v3527
  %v3529 = vrot.slane %v3484, 3
  %v3530 = vsel %vm551, %v3527, %v3529
  %v3531 = vrot.slane %v3481, 3
  %v3532 = vrot.slane %v3463, 3
  %v3533 = vsel %vm551, %v3531, %v3532
  %v3534 = vrot.slane %v3485, 3
  %v3535 = vsel %vm551, %v3532, %v3534
  %v3540 = vadd.f32 %v3522, %v3528
  %v3541 = vadd.f32 %v3523, %v3530
  %v3542 = vadd.f32 %v3524, %v3533
  %v3543 = vadd.f32 %v3525, %v3535
  %v3544 = vrot.slane %v3480, 4
  %v3545 = vrot.slane %v3460, 4
  %v3546 = vsel %vm495, %v3544, %v3545
  %v3547 = vrot.slane %v3484, 4
  %v3548 = vsel %vm495, %v3545, %v3547
  %v3549 = vrot.slane %v3481, 4
  %v3550 = vrot.slane %v3463, 4
  %v3551 = vsel %vm495, %v3549, %v3550
  %v3552 = vrot.slane %v3485, 4
  %v3553 = vsel %vm495, %v3550, %v3552
  %v3558 = vadd.f32 %v3540, %v3546
  %v3559 = vadd.f32 %v3541, %v3548
  %v3560 = vadd.f32 %v3542, %v3551
  %v3561 = vadd.f32 %v3543, %v3553
  %v3562 = vmul.f32 %v3558, 0.2
  %v3563 = vmul.f32 %v3559, 0.2
  %v3564 = vmul.f32 %v3560, 0.2
  %v3565 = vmul.f32 %v3561, 0.2
  %v3566 = vsub.f32 %v3446, %v3562
  %v3567 = vsub.f32 %v3447, %v3563
  %v3568 = vsub.f32 %v3448, %v3564
  %v3569 = vsub.f32 %v3449, %v3565
  %3570 = vst.msk [vmem:[%s18] sm:$0xff] %vm85, %v3566
  %3571 = vst.msk [vmem:[%s18 + $0x8] sm:$0xff] %vm85, %v3567
  %3572 = vst.msk [vmem:[%s18 + $0x10] sm:$0xff] %vm85, %v3568
  %3573 = vst.msk [vmem:[%s18 + $0x18] sm:$0xff] %vm85, %v3569
  %v3574 = vadd.f32 %v1659, %v3227
  %v3575 = vadd.f32 %v1660, %v3228
  %v3576 = vadd.f32 %v1661, %v3229
  %v3577 = vadd.f32 %v1662, %v3230
  %v3578 = vadd.f32 %v3574, %v3562
  %v3579 = vadd.f32 %v3575, %v3563
  %v3580 = vadd.f32 %v3576, %v3564
  %v3581 = vadd.f32 %v3577, %v3565
  %v3584 = vrot.slane %v3579, 7
  %v3585 = vrot.slane %v3581, 7
  %v3590 = vrot.slane %v3578, 7
  %v3591 = vsel %vm327, %v3590, %v3584
  %v3592 = vrot.slane %v3580, 7
  %v3593 = vsel %vm327, %v3592, %v3585
  %v3598 = vsel %vm327, %v3584, %v3590
  %v3599 = vsel %vm327, %v3585, %v3592
  %v3600 = vrot.slane %v3578, 1
  %v3601 = vrot.slane %v3579, 1
  %v3602 = vsel %vm663, %v3600, %v3601
  %v3603 = vrot.slane %v3580, 1
  %v3604 = vrot.slane %v3581, 1
  %v3605 = vsel %vm663, %v3603, %v3604
  %v3610 = vsel %vm663, %v3601, %v3600
  %v3611 = vsel %vm663, %v3604, %v3603
  %3612 = vrot.lane.b32.xlu0 %v3578, 32
  %v3613 = vpop.permute.xlu0 %3612
  %3614 = vrot.lane.b32.xlu0 %v3579, 32
  %v3615 = vpop.permute.xlu0 %3614
  %3616 = vrot.lane.b32.xlu0 %v3580, 32
  %v3617 = vpop.permute.xlu0 %3616
  %3618 = vrot.lane.b32.xlu0 %v3581, 32
  %v3619 = vpop.permute.xlu0 %3618
  %3626 = vrot.lane.b32.xlu0 %v3602, 64
  %v3627 = vpop.permute.xlu0 %3626
  %3628 = vrot.lane.b32.xlu0 %v3610, 64
  %v3629 = vpop.permute.xlu0 %3628
  %3630 = vrot.lane.b32.xlu0 %v3605, 64
  %v3631 = vpop.permute.xlu0 %3630
  %3632 = vrot.lane.b32.xlu0 %v3611, 64
  %v3633 = vpop.permute.xlu0 %3632
  %v3638 = vsel %vm85, %v3598, %v3613
  %v3639 = vsel %vm85, %v3591, %v3615
  %v3640 = vsel %vm85, %v3599, %v3617
  %v3641 = vsel %vm85, %v3593, %v3619
  %v3642 = vsel %vm3348, %v3638, %v3627
  %v3643 = vsel %vm3348, %v3639, %v3629
  %v3644 = vsel %vm3348, %v3640, %v3631
  %v3645 = vsel %vm3348, %v3641, %v3633
  %v3646 = vld [vmem:[%s17] sm:$0xff]
  %v3647 = vld [vmem:[%s17 + $0x8] sm:$0xff]
  %v3648 = vld [vmem:[%s17 + $0x10] sm:$0xff]
  %v3649 = vld [vmem:[%s17 + $0x18] sm:$0xff]
  %v3650 = vld [vmem:[%s17 + $0x20] sm:$0xff]
  %v3651 = vld [vmem:[%s17 + $0x28] sm:$0xff]
  %v3652 = vld [vmem:[%s17 + $0x30] sm:$0xff]
  %v3653 = vld [vmem:[%s17 + $0x38] sm:$0xff]
  %v3654 = vld [vmem:[%s17 + $0x40] sm:$0xff]
  %v3655 = vld [vmem:[%s17 + $0x48] sm:$0xff]
  %v3656 = vld [vmem:[%s17 + $0x50] sm:$0xff]
  %v3657 = vld [vmem:[%s17 + $0x58] sm:$0xff]
  %vm3658 = vcmask 785408
  %v3660 = vsel %vm3658, %v3642, 0
  %v3663 = vsel %vm3658, %v3643, 0
  %v3666 = vsel %vm3658, %v3644, 0
  %v3669 = vsel %vm3658, %v3645, 0
  %3671 = vmatprep.subr.mxu0 0.0
  %3672 = vmatpush1.msra.mxu0 %v3646
  %3673 = vmatprep.subr.mxu0 0.0
  %3674 = vmatpush1.msra.mxu0 %v3647
  %3675 = vmatprep.subr.mxu0 0.0
  %3676 = vmatpush1.msra.mxu0 %v3648
  %3677 = vmatprep.subr.mxu0 0.0
  %3678 = vmatpush1.msra.mxu0 %v3649
  %3679 = vmatprep.subr.mxu0 0.0
  %3680 = vmatpush1.msra.mxu0 %v3650
  %3681 = vmatprep.subr.mxu0 0.0
  %3682 = vmatpush1.msra.mxu0 %v3651
  %3683 = vmatprep.subr.mxu0 0.0
  %3684 = vmatpush1.msra.mxu0 %v3652
  %3685 = vmatprep.subr.mxu0 0.0
  %3686 = vmatpush1.msra.mxu0 %v3653
  %3687 = vmatprep.subr.mxu0 0.0
  %3688 = vmatpush1.msra.mxu0 %v3654
  %3689 = vmatprep.subr.mxu0 0.0
  %3690 = vmatpush1.msra.mxu0 %v3655
  %3691 = vmatprep.subr.mxu0 0.0
  %3692 = vmatpush1.msra.mxu0 %v3656
  %3693 = vmatprep.subr.mxu0 0.0
  %3694 = vmatpush1.msra.mxu0 %v3657
  %3695 = vmatprep.subr.mxu0 0.0
  %3696 = vmatpush1.msra.mxu0 0.0
  %3697 = vmatprep.subr.mxu0 0.0
  %3698 = vmatpush1.msra.mxu0 0.0
  %3699 = vmatprep.subr.mxu0 0.0
  %3700 = vmatpush1.msra.mxu0 0.0
  %3701 = vmatprep.subr.mxu0 0.0
  %3702 = vmatpush1.msra.mxu0 0.0
  %3703 = vmatprep.subr.mxu0 0.0
  %3704 = vmatpush1.msra.mxu0 0.0
  %3705 = vmatprep.subr.mxu0 0.0
  %3706 = vmatpush1.msra.mxu0 0.0
  %3707 = vmatprep.subr.mxu0 0.0
  %3708 = vmatpush1.msra.mxu0 0.0
  %3709 = vmatprep.subr.mxu0 0.0
  %3710 = vmatpush1.msra.mxu0 0.0
  %3711 = vmatprep.subr.mxu0 0.0
  %3712 = vmatpush1.msra.mxu0 0.0
  %3713 = vmatprep.subr.mxu0 0.0
  %3714 = vmatpush1.msra.mxu0 0.0
  %3715 = vmatprep.subr.mxu0 0.0
  %3716 = vmatpush1.msra.mxu0 0.0
  %3717 = vmatprep.subr.mxu0 0.0
  %3718 = vmatpush1.msra.mxu0 0.0
  %3719 = vmatprep.subr.mxu0 0.0
  %3720 = vmatpush1.msra.mxu0 0.0
  %3721 = vmatprep.subr.mxu0 0.0
  %3722 = vmatpush1.msra.mxu0 0.0
  %3723 = vmatprep.subr.mxu0 0.0
  %3724 = vmatpush1.msra.mxu0 0.0
  %3725 = vmatprep.subr.mxu0 0.0
  %3726 = vmatpush1.msra.mxu0 0.0
  %3727 = vmatprep.subr.mxu0 0.0
  %3728 = vmatpush1.msra.mxu0 0.0
  %3729 = vmatprep.subr.mxu0 0.0
  %3730 = vmatpush1.msra.mxu0 0.0
  %3731 = vmatprep.subr.mxu0 0.0
  %3732 = vmatpush1.msra.mxu0 0.0
  %3733 = vmatprep.subr.mxu0 0.0
  %3734 = vmatpush1.msra.mxu0 0.0
  %3735 = vmatprep.mubr.f32.mxu0 0.0
  %3736 = vmatmul.mubr.f32.gmra.mrb[0].mxu0 %v3660
  %v3737 = vpop.f32.mrb[0].mxu0
  %v3738 = vadd.f32 0.0, %v3737
  %v3739 = vpop.f32.mrb[0].mxu0
  %3740 = vmatprep.mubr.f32.mxu0 0.0
  %3741 = vmatmul.mubr.f32.gmra.mrb[0].mxu0 %v3663
  %v3742 = vpop.f32.mrb[0].mxu0
  %v3743 = vadd.f32 0.0, %v3742
  %v3744 = vpop.f32.mrb[0].mxu0
  %3745 = vmatprep.mubr.f32.mxu0 0.0
  %3746 = vmatmul.mubr.f32.gmra.mrb[0].mxu0 %v3666
  %v3747 = vpop.f32.mrb[0].mxu0
  %v3748 = vadd.f32 0.0, %v3747
  %v3749 = vpop.f32.mrb[0].mxu0
  %3750 = vmatprep.mubr.f32.mxu0 0.0
  %3751 = vmatmul.mubr.f32.gmra.mrb[0].mxu0 %v3669
  %v3752 = vpop.f32.mrb[0].mxu0
  %v3753 = vadd.f32 0.0, %v3752
  %v3754 = vpop.f32.mrb[0].mxu0
  %3755 = vdwg.mxu0
  %v3756 = vld [vmem:[%s2] sm:$0xff]
  %v3757 = vld [vmem:[%s2 + $0x8] sm:$0xff]
  %v3758 = vld [vmem:[%s2 + $0x10] sm:$0xff]
  %v3759 = vld [vmem:[%s2 + $0x18] sm:$0xff]
  %v3760 = vadd.f32 %v3756, %v3738
  %v3761 = vadd.f32 %v3757, %v3743
  %v3762 = vadd.f32 %v3758, %v3748
  %v3763 = vadd.f32 %v3759, %v3753
  %3764 = vst.msk [vmem:[%s19] sm:$0xff] %vm1069, %v3760
  %3765 = vst.msk [vmem:[%s19 + $0x8] sm:$0xff] %vm1069, %v3761
  %3766 = vst.msk [vmem:[%s19 + $0x10] sm:$0xff] %vm1069, %v3762
  %3767 = vst.msk [vmem:[%s19 + $0x18] sm:$0xff] %vm1069, %v3763
  // Predicated region
  $region74: #{_lambda_.8} parent=0 // pred_check
    _
  $region75: #{_lambda_.8} parent=0 // pred_check_branch
    %3769 = sbr.rel (0) target = $region77
  $region76: #{_lambda_.8} parent=0 // pred_region
    _
  $region77: #{_lambda_.8} parent=0 // pred_fallthru
    _
  // Predicated region
  $region78: #{_lambda_.8} parent=0 // pred_check
    _
  $region79: #{_lambda_.8} parent=0 // pred_check_branch
    %3771 = sbr.rel (0) target = $region81
  $region80: #{_lambda_.8} parent=0 // pred_region
    _
  $region81: #{_lambda_.8} parent=0 // pred_fallthru
    _
  // Predicated region
  $region82: #{_lambda_.8} parent=0 // pred_check
    _
  $region83: #{_lambda_.8} parent=0 // pred_check_branch
    %3773 = sbr.rel (0) target = $region85
  $region84: #{_lambda_.8} parent=0 // pred_region
    _
  $region85: #{_lambda_.8} parent=0 // pred_fallthru
    _
  // Predicated region
  $region86: #{_lambda_.8} parent=0 // pred_check
    _
  $region87: #{_lambda_.8} parent=0 // pred_check_branch
    %3775 = sbr.rel (0) target = $region89
  $region88: #{_lambda_.8} parent=0 // pred_region
    _
  $region89: #{_lambda_.8} parent=0 // pred_fallthru
    _

</llo_original>
